<compile_context>
chip_gen: v6e
topology: v6e:2x2x1
jax: 0.10.0
libtpu: 0.0.40
codegen_flags: <defaults>
</compile_context>

<pallas_src>
import functools
import math

import jax
import jax.numpy as jnp
from jax.experimental import pallas as pl
from jax.experimental.pallas import tpu as pltpu


# ----------------------------- shared helpers -------------------------------

def _gelu(x):
    # TODO(synk): torch nn.GELU defaults to exact erf; tanh approximation used
    # so it lowers onto the TPU EUP.
    return jax.nn.gelu(x, approximate=True)


def _full_spec(a):
    """Whole-array block: the same (small) weight block at every grid step."""
    return pl.BlockSpec(a.shape, lambda i: (0,) * a.ndim)


def _mm(x, w_ref, b_ref):
    """bf16 MXU matmul with f32 accumulation + bias (bias is a (1, N) ref)."""
    y = jnp.dot(x.astype(jnp.bfloat16), w_ref[...],
                preferred_element_type=jnp.float32)
    return y + b_ref[...]


def _ln(x, g_ref, b_ref, eps):
    mu = jnp.mean(x, axis=-1, keepdims=True)
    var = jnp.mean(jnp.square(x - mu), axis=-1, keepdims=True)
    return (x - mu) * jax.lax.rsqrt(var + eps) * g_ref[...] + b_ref[...]


# ----------------------------- Pallas kernels -------------------------------

def _step_mlp_kernel(emb_ref, w1_ref, b1_ref, w2_ref, b2_ref, o_ref):
    h = jax.nn.silu(_mm(emb_ref[...], w1_ref, b1_ref))
    o_ref[...] = _mm(h, w2_ref, b2_ref)


def _embed_kernel(noisy_ref, cond_ref, pe_ref, semb_ref,
                  wx_ref, bx_ref, wc_ref, bc_ref,
                  cxs_ref, cproj_ref):
    # Fused: in_layer_x, in_layer_mel, c + x, + positional encoding, + step emb.
    x = _mm(noisy_ref[0], wx_ref, bx_ref)             # (T, D)
    c = _mm(cond_ref[0], wc_ref, bc_ref)              # (T, D)
    cxs_ref[0] = c + x + pe_ref[...] + semb_ref[0]
    cproj_ref[0] = c


def _conformer_layer_kernel(x_ref, c_ref,
                            wqkv_ref, bqkv_ref, wo_ref, bo_ref,
                            ln1g_ref, ln1b_ref,
                            dww_ref, dwb_ref,
                            cw1_ref, cb1_ref, cw2_ref, cb2_ref,
                            lncg_ref, lncb_ref,
                            fw1_ref, fb1_ref, fw2_ref, fb2_ref,
                            ln2g_ref, ln2b_ref,
                            o_ref, *, nhead, eps):
    T, D = x_ref.shape[1], x_ref.shape[2]
    Dh = D // nhead
    scale = 1.0 / math.sqrt(Dh)

    # TODO(synk): exact condition-injection of the reference ConformerLayer is
    # unavailable; additive conditioning is assumed.
    x = x_ref[0] + c_ref[0]                           # (T, D) f32

    # ---- self-attention: fused QKV GEMM, heads via static lane slices ------
    qkv = _mm(x, wqkv_ref, bqkv_ref)                  # (T, 3D)
    heads = []
    for h in range(nhead):                            # static unroll
        qh = qkv[:, h * Dh:(h + 1) * Dh]
        kh = qkv[:, D + h * Dh:D + (h + 1) * Dh]
        vh = qkv[:, 2 * D + h * Dh:2 * D + (h + 1) * Dh]
        s = jax.lax.dot_general(
            qh.astype(jnp.bfloat16), kh.astype(jnp.bfloat16),
            (((1,), (1,)), ((), ())),
            preferred_element_type=jnp.float32) * scale        # (T, T)
        m = jnp.max(s, axis=-1, keepdims=True)
        p = jnp.exp(s - m)
        p = p * pl.reciprocal(jnp.sum(p, axis=-1, keepdims=True), approx=True)
        heads.append(jnp.dot(p.astype(jnp.bfloat16), vh.astype(jnp.bfloat16),
                             preferred_element_type=jnp.float32))
    attn = jnp.concatenate(heads, axis=-1)            # (T, D)
    attn = _mm(attn, wo_ref, bo_ref)
    x = _ln(x + attn, ln1g_ref, ln1b_ref, eps)

    # ---- conv module: in-kernel 'same' depthwise conv over time ------------
    K = dww_ref.shape[0]
    pad = (K - 1) // 2
    dww = dww_ref[...]                                # (K, D)
    t_idx = jax.lax.broadcasted_iota(jnp.int32, (T, D), 0)
    acc = jnp.zeros((T, D), jnp.float32)
    for k in range(K):                                # static unroll (K = 3)
        off = k - pad
        if off == 0:
            xs = x
        else:
            xs = pltpu.roll(x, shift=(-off) % T, axis=0)
            if off > 0:                               # zero wrapped tail rows
                xs = jnp.where(t_idx >= T - off, 0.0, xs)
            else:                                     # zero wrapped head rows
                xs = jnp.where(t_idx < -off, 0.0, xs)
        acc = acc + xs * dww[k][None, :]
    acc = acc + dwb_ref[...]
    h1 = _mm(_gelu(_mm(acc, cw1_ref, cb1_ref)), cw2_ref, cb2_ref)
    x = _ln(x + h1, lncg_ref, lncb_ref, eps)

    # ---- feed-forward sub-block --------------------------------------------
    h2 = _mm(_gelu(_mm(x, fw1_ref, fb1_ref)), fw2_ref, fb2_ref)
    x = _ln(x + h2, ln2g_ref, ln2b_ref, eps)

    o_ref[0] = x.astype(o_ref.dtype)


def _out_head_kernel(x_ref, w1_ref, b1_ref, w2_ref, b2_ref, w3_ref, b3_ref,
                     o_ref):
    h = _gelu(_mm(x_ref[0], w1_ref, b1_ref))
    h = _gelu(_mm(h, w2_ref, b2_ref))
    o_ref[0] = _mm(h, w3_ref, b3_ref)


# ----------------------------- model pieces ---------------------------------

def step_embedding(step, p, embed_dim):
    # TODO(synk): reference StepEmbedding internals unavailable; DDPM-style
    # sinusoidal embedding (dim = in_channels) + Linear/SiLU/Linear assumed.
    half = embed_dim // 2
    freqs = jnp.exp(-math.log(10000.0) *
                    jnp.arange(half, dtype=jnp.float32) / half)
    args = step.astype(jnp.float32)[:, None] * freqs[None, :]
    emb = jnp.concatenate([jnp.sin(args), jnp.cos(args)], axis=-1)  # (B, Cin)
    out = pl.pallas_call(
        _step_mlp_kernel,
        out_shape=jax.ShapeDtypeStruct((emb.shape[0], p["w2"].shape[1]),
                                       jnp.float32),
    )(emb, p["w1"], p["b1"], p["w2"], p["b2"])
    return out[:, None, :]                                          # (B, 1, D)


def positional_encoding(T, d):
    pos = jnp.arange(T, dtype=jnp.float32)[:, None]
    div = jnp.exp(-math.log(10000.0) *
                  jnp.arange(0, d, 2, dtype=jnp.float32) / d)
    pe = jnp.zeros((T, d), jnp.float32)
    pe = pe.at[:, 0::2].set(jnp.sin(pos * div))
    pe = pe.at[:, 1::2].set(jnp.cos(pos * div))
    return pe


def embed(noisy, cond, pe, semb, p):
    """Fused in_layer_x + in_layer_mel + PE + step embedding. Returns (cxs, c)."""
    B, T, Cin = noisy.shape
    D = pe.shape[-1]
    seq_in = pl.BlockSpec((1, T, Cin), lambda i: (i, 0, 0))
    seq_out = pl.BlockSpec((1, T, D), lambda i: (i, 0, 0))
    cxs, cproj = pl.pallas_call(
        _embed_kernel,
        grid=(B,),
        in_specs=[seq_in, seq_in, _full_spec(pe),
                  pl.BlockSpec((1, 1, D), lambda i: (i, 0, 0)),
                  _full_spec(p["in_x_w"]), _full_spec(p["in_x_b"]),
                  _full_spec(p["in_c_w"]), _full_spec(p["in_c_b"])],
        out_specs=[seq_out, seq_out],
        out_shape=[jax.ShapeDtypeStruct((B, T, D), jnp.float32),
                   jax.ShapeDtypeStruct((B, T, D), jnp.float32)],
        compiler_params=pltpu.CompilerParams(
            dimension_semantics=("parallel",)),
    )(noisy, cond, pe, semb, p["in_x_w"], p["in_x_b"],
      p["in_c_w"], p["in_c_b"])
    return cxs, cproj


def conformer_layer(x, cond, p, nhead):
    """One fused pallas_call per conformer layer; grid over batch."""
    B, T, D = x.shape
    seq = pl.BlockSpec((1, T, D), lambda i: (i, 0, 0))
    weights = (p["wqkv"], p["bqkv"], p["wo"], p["bo"],
               p["ln1_g"], p["ln1_b"],
               p["dw_w"], p["dw_b"],
               p["cw1"], p["cb1"], p["cw2"], p["cb2"],
               p["lnc_g"], p["lnc_b"],
               p["fw1"], p["fb1"], p["fw2"], p["fb2"],
               p["ln2_g"], p["ln2_b"])
    return pl.pallas_call(
        functools.partial(_conformer_layer_kernel, nhead=nhead, eps=1e-5),
        grid=(B,),
        in_specs=[seq, seq] + [_full_spec(w) for w in weights],
        out_specs=seq,
        out_shape=jax.ShapeDtypeStruct((B, T, D), jnp.float32),
        compiler_params=pltpu.CompilerParams(
            dimension_semantics=("parallel",)),
    )(x, cond, *weights)


def out_head(x, p):
    """Fused Linear -> GELU -> Linear -> GELU -> Linear output head."""
    B, T, D = x.shape
    Cout = p["out_w3"].shape[1]
    weights = (p["out_w1"], p["out_b1"], p["out_w2"], p["out_b2"],
               p["out_w3"], p["out_b3"])
    return pl.pallas_call(
        _out_head_kernel,
        grid=(B,),
        in_specs=[pl.BlockSpec((1, T, D), lambda i: (i, 0, 0))]
                 + [_full_spec(w) for w in weights],
        out_specs=pl.BlockSpec((1, T, Cout), lambda i: (i, 0, 0)),
        out_shape=jax.ShapeDtypeStruct((B, T, Cout), jnp.float32),
        compiler_params=pltpu.CompilerParams(
            dimension_semantics=("parallel",)),
    )(x, *weights)


def sm_diffusion_forward(params, cond_mel, noisy_mel, step, cfg):
    T = noisy_mel.shape[1]
    D = cfg["filter_size"]
    semb = step_embedding(step, params["step"], cfg["in_channels"])   # (B,1,D)
    pe = positional_encoding(T, D)                                    # (T, D)
    cxs, c = embed(noisy_mel, cond_mel, pe, semb, params)
    for lp in params["layers"]:
        cxs = conformer_layer(cxs, c, lp, cfg["nhead"])
    return out_head(cxs, params)


# ----------------------------- parameters -----------------------------------

def init_params(key, cfg):
    d = cfg["filter_size"]
    cin, cout = cfg["in_channels"], cfg["out_channels"]
    cf, hid, K = cfg["conv_filter_size"], cfg["step_hidden"], cfg["kernel_size"]
    keys = iter(jax.random.split(key, 256))

    def lin(ki, ko):
        # matmul weights stored bf16 (MXU inputs); biases stay f32.
        w = (jax.random.normal(next(keys), (ki, ko), jnp.float32) * 0.02
             ).astype(jnp.bfloat16)
        return w, jnp.zeros((1, ko), jnp.float32)

    def ln_p():
        return jnp.ones((1, d), jnp.float32), jnp.zeros((1, d), jnp.float32)

    p = {}
    p["in_x_w"], p["in_x_b"] = lin(cin, d)
    p["in_c_w"], p["in_c_b"] = lin(cin, d)
    sw1, sb1 = lin(cin, hid)
    sw2, sb2 = lin(hid, d)
    p["step"] = {"w1": sw1, "b1": sb1, "w2": sw2, "b2": sb2}

    layers = []
    for _ in range(cfg["num_layers"]):
        lp = {}
        lp["wqkv"], lp["bqkv"] = lin(d, 3 * d)          # fused Wq|Wk|Wv
        lp["wo"], lp["bo"] = lin(d, d)
        lp["ln1_g"], lp["ln1_b"] = ln_p()
        lp["dw_w"] = jax.random.normal(next(keys), (K, d), jnp.float32) * 0.02
        lp["dw_b"] = jnp.zeros((1, d), jnp.float32)
        lp["cw1"], lp["cb1"] = lin(d, cf)
        lp["cw2"], lp["cb2"] = lin(cf, d)
        lp["lnc_g"], lp["lnc_b"] = ln_p()
        lp["fw1"], lp["fb1"] = lin(d, cf)
        lp["fw2"], lp["fb2"] = lin(cf, d)
        lp["ln2_g"], lp["ln2_b"] = ln_p()
        layers.append(lp)
    p["layers"] = layers

    p["out_w1"], p["out_b1"] = lin(d, d)
    p["out_w2"], p["out_b2"] = lin(d, d)
    p["out_w3"], p["out_b3"] = lin(d, cout)
    return p


# ------------------------------- main ----------------------------------------

if __name__ == "__main__":
    cfg = dict(in_channels=32, out_channels=32, filter_size=128, kernel_size=3,
               conv_filter_size=256, step_hidden=64, num_layers=2, nhead=4)
    key = jax.random.PRNGKey(0)
    kp, k1, k2, k3 = jax.random.split(key, 4)
    params = init_params(kp, cfg)

    B, T = 2, 16
    cond_mel = jax.random.normal(k1, (B, T, cfg["in_channels"]), jnp.float32)
    noisy_mel = jax.random.normal(k2, (B, T, cfg["in_channels"]), jnp.float32)
    step = jax.random.randint(k3, (B,), 0, 1000)

    fwd = jax.jit(functools.partial(sm_diffusion_forward, cfg=cfg))
    out = fwd(params, cond_mel, noisy_mel, step)
    jax.block_until_ready(out)
    assert out.shape == (B, T, cfg["out_channels"]), out.shape
    print("KERNEL_OK")
</pallas_src>

<mosaic_0001>
module attributes {stable_mosaic.version = 11 : i64} {
  func.func @_embed_kernel(%arg0: i32, %arg1: memref<1x16x32xf32, #tpu.memory_space<vmem>>, %arg2: memref<1x16x32xf32, #tpu.memory_space<vmem>>, %arg3: memref<16x128xf32, #tpu.memory_space<vmem>>, %arg4: memref<1x1x128xf32, #tpu.memory_space<vmem>>, %arg5: memref<32x128xbf16, #tpu.memory_space<vmem>>, %arg6: memref<1x128xf32, #tpu.memory_space<vmem>>, %arg7: memref<32x128xbf16, #tpu.memory_space<vmem>>, %arg8: memref<1x128xf32, #tpu.memory_space<vmem>>, %arg9: memref<1x16x128xf32, #tpu.memory_space<vmem>>, %arg10: memref<1x16x128xf32, #tpu.memory_space<vmem>>) attributes {dimension_semantics = [#tpu.dimension_semantics<parallel>], iteration_bounds = array<i64: 2>, scalar_prefetch = 0 : i64, scratch_operands = 0 : i64, tpu.core_type = #tpu.core_type<tc>, window_params = [{transform_indices = @transform_0, window_bounds = array<i64: 1, 16, 32>}, {transform_indices = @transform_1, window_bounds = array<i64: 1, 16, 32>}, {pipeline_mode = #tpu.pipeline_mode<synchronous>, transform_indices = @transform_2, window_bounds = array<i64: 16, 128>}, {transform_indices = @transform_3, window_bounds = array<i64: 1, 1, 128>}, {pipeline_mode = #tpu.pipeline_mode<synchronous>, transform_indices = @transform_4, window_bounds = array<i64: 32, 128>}, {pipeline_mode = #tpu.pipeline_mode<synchronous>, transform_indices = @transform_5, window_bounds = array<i64: 1, 128>}, {pipeline_mode = #tpu.pipeline_mode<synchronous>, transform_indices = @transform_6, window_bounds = array<i64: 32, 128>}, {pipeline_mode = #tpu.pipeline_mode<synchronous>, transform_indices = @transform_7, window_bounds = array<i64: 1, 128>}, {transform_indices = @transform_8, window_bounds = array<i64: 1, 16, 128>}, {transform_indices = @transform_9, window_bounds = array<i64: 1, 16, 128>}]} {
    %c0 = arith.constant 0 : index
    %c0_0 = arith.constant 0 : index
    %c0_1 = arith.constant 0 : index
    %0 = vector.load %arg1[%c0, %c0_0, %c0_1] : memref<1x16x32xf32, #tpu.memory_space<vmem>>, vector<1x16x32xf32>
    %1 = vector.shape_cast %0 : vector<1x16x32xf32> to vector<16x32xf32>
    %2 = arith.truncf %1 : vector<16x32xf32> to vector<16x32xbf16>
    %c0_2 = arith.constant 0 : index
    %c0_3 = arith.constant 0 : index
    %3 = vector.load %arg5[%c0_2, %c0_3] : memref<32x128xbf16, #tpu.memory_space<vmem>>, vector<32x128xbf16>
    %cst = arith.constant dense<0.000000e+00> : vector<16x128xf32>
    %4 = tpu.matmul %2, %3, %cst {dimension_numbers = #tpu.dot_dimension_numbers<[1], [0], [0], [1], [0, 0, 1, 1], [], []>} : vector<16x32xbf16>, vector<32x128xbf16>, vector<16x128xf32> -> vector<16x128xf32>
    %c0_4 = arith.constant 0 : index
    %c0_5 = arith.constant 0 : index
    %5 = vector.load %arg6[%c0_4, %c0_5] : memref<1x128xf32, #tpu.memory_space<vmem>>, vector<1x128xf32>
    %6 = vector.broadcast %5 : vector<1x128xf32> to vector<16x128xf32>
    %7 = arith.addf %4, %6 : vector<16x128xf32>
    %c0_6 = arith.constant 0 : index
    %c0_7 = arith.constant 0 : index
    %c0_8 = arith.constant 0 : index
    %8 = vector.load %arg2[%c0_6, %c0_7, %c0_8] : memref<1x16x32xf32, #tpu.memory_space<vmem>>, vector<1x16x32xf32>
    %9 = vector.shape_cast %8 : vector<1x16x32xf32> to vector<16x32xf32>
    %10 = arith.truncf %9 : vector<16x32xf32> to vector<16x32xbf16>
    %c0_9 = arith.constant 0 : index
    %c0_10 = arith.constant 0 : index
    %11 = vector.load %arg7[%c0_9, %c0_10] : memref<32x128xbf16, #tpu.memory_space<vmem>>, vector<32x128xbf16>
    %cst_11 = arith.constant dense<0.000000e+00> : vector<16x128xf32>
    %12 = tpu.matmul %10, %11, %cst_11 {dimension_numbers = #tpu.dot_dimension_numbers<[1], [0], [0], [1], [0, 0, 1, 1], [], []>} : vector<16x32xbf16>, vector<32x128xbf16>, vector<16x128xf32> -> vector<16x128xf32>
    %c0_12 = arith.constant 0 : index
    %c0_13 = arith.constant 0 : index
    %13 = vector.load %arg8[%c0_12, %c0_13] : memref<1x128xf32, #tpu.memory_space<vmem>>, vector<1x128xf32>
    %14 = vector.broadcast %13 : vector<1x128xf32> to vector<16x128xf32>
    %15 = arith.addf %12, %14 : vector<16x128xf32>
    %16 = arith.addf %15, %7 : vector<16x128xf32>
    %c0_14 = arith.constant 0 : index
    %c0_15 = arith.constant 0 : index
    %17 = vector.load %arg3[%c0_14, %c0_15] : memref<16x128xf32, #tpu.memory_space<vmem>>, vector<16x128xf32>
    %18 = arith.addf %16, %17 : vector<16x128xf32>
    %c0_16 = arith.constant 0 : index
    %c0_17 = arith.constant 0 : index
    %c0_18 = arith.constant 0 : index
    %19 = vector.load %arg4[%c0_16, %c0_17, %c0_18] : memref<1x1x128xf32, #tpu.memory_space<vmem>>, vector<1x1x128xf32>
    %20 = vector.shape_cast %19 : vector<1x1x128xf32> to vector<1x128xf32>
    %21 = vector.broadcast %20 : vector<1x128xf32> to vector<16x128xf32>
    %22 = arith.addf %18, %21 : vector<16x128xf32>
    %c0_19 = arith.constant 0 : index
    %c0_20 = arith.constant 0 : index
    %c0_21 = arith.constant 0 : index
    %23 = vector.load %arg9[%c0_19, %c0_20, %c0_21] : memref<1x16x128xf32, #tpu.memory_space<vmem>>, vector<1x16x128xf32>
    %24 = vector.shape_cast %23 : vector<1x16x128xf32> to vector<16x128xf32>
    %25 = vector.shape_cast %22 : vector<16x128xf32> to vector<1x16x128xf32>
    tpu.vector_store %arg9[%c0_19, %c0_20, %c0_21], %25 {strides = array<i32>} : memref<1x16x128xf32, #tpu.memory_space<vmem>>, vector<1x16x128xf32>,
    %c0_22 = arith.constant 0 : index
    %c0_23 = arith.constant 0 : index
    %c0_24 = arith.constant 0 : index
    %26 = vector.load %arg10[%c0_22, %c0_23, %c0_24] : memref<1x16x128xf32, #tpu.memory_space<vmem>>, vector<1x16x128xf32>
    %27 = vector.shape_cast %26 : vector<1x16x128xf32> to vector<16x128xf32>
    %28 = vector.shape_cast %15 : vector<16x128xf32> to vector<1x16x128xf32>
    tpu.vector_store %arg10[%c0_22, %c0_23, %c0_24], %28 {strides = array<i32>} : memref<1x16x128xf32, #tpu.memory_space<vmem>>, vector<1x16x128xf32>,
    return
  }
  func.func @transform_0(%arg0: i32) -> (i32, i32, i32) {
    %c0_i32 = arith.constant 0 : i32
    %c0_i32_0 = arith.constant 0 : i32
    %c0_i32_1 = arith.constant 0 : i32
    return %arg0, %c0_i32, %c0_i32_0 : i32, i32, i32
  }
  func.func @transform_1(%arg0: i32) -> (i32, i32, i32) {
    %c0_i32 = arith.constant 0 : i32
    %c0_i32_0 = arith.constant 0 : i32
    %c0_i32_1 = arith.constant 0 : i32
    return %arg0, %c0_i32, %c0_i32_0 : i32, i32, i32
  }
  func.func @transform_2(%arg0: i32) -> (i32, i32) {
    %c0_i32 = arith.constant 0 : i32
    %c0_i32_0 = arith.constant 0 : i32
    %c0_i32_1 = arith.constant 0 : i32
    return %c0_i32, %c0_i32_0 : i32, i32
  }
  func.func @transform_3(%arg0: i32) -> (i32, i32, i32) {
    %c0_i32 = arith.constant 0 : i32
    %c0_i32_0 = arith.constant 0 : i32
    %c0_i32_1 = arith.constant 0 : i32
    return %arg0, %c0_i32, %c0_i32_0 : i32, i32, i32
  }
  func.func @transform_4(%arg0: i32) -> (i32, i32) {
    %c0_i32 = arith.constant 0 : i32
    %c0_i32_0 = arith.constant 0 : i32
    %c0_i32_1 = arith.constant 0 : i32
    return %c0_i32, %c0_i32_0 : i32, i32
  }
  func.func @transform_5(%arg0: i32) -> (i32, i32) {
    %c0_i32 = arith.constant 0 : i32
    %c0_i32_0 = arith.constant 0 : i32
    %c0_i32_1 = arith.constant 0 : i32
    return %c0_i32, %c0_i32_0 : i32, i32
  }
  func.func @transform_6(%arg0: i32) -> (i32, i32) {
    %c0_i32 = arith.constant 0 : i32
    %c0_i32_0 = arith.constant 0 : i32
    %c0_i32_1 = arith.constant 0 : i32
    return %c0_i32, %c0_i32_0 : i32, i32
  }
  func.func @transform_7(%arg0: i32) -> (i32, i32) {
    %c0_i32 = arith.constant 0 : i32
    %c0_i32_0 = arith.constant 0 : i32
    %c0_i32_1 = arith.constant 0 : i32
    return %c0_i32, %c0_i32_0 : i32, i32
  }
  func.func @transform_8(%arg0: i32) -> (i32, i32, i32) {
    %c0_i32 = arith.constant 0 : i32
    %c0_i32_0 = arith.constant 0 : i32
    %c0_i32_1 = arith.constant 0 : i32
    return %arg0, %c0_i32, %c0_i32_0 : i32, i32, i32
  }
  func.func @transform_9(%arg0: i32) -> (i32, i32, i32) {
    %c0_i32 = arith.constant 0 : i32
    %c0_i32_0 = arith.constant 0 : i32
    %c0_i32_1 = arith.constant 0 : i32
    return %arg0, %c0_i32, %c0_i32_0 : i32, i32, i32
  }
}

module attributes {stable_mosaic.version = 11 : i64} {
  func.func @_step_mlp_kernel(%arg0: memref<2x32xf32, #tpu.memory_space<vmem>>, %arg1: memref<32x64xbf16, #tpu.memory_space<vmem>>, %arg2: memref<1x64xf32, #tpu.memory_space<vmem>>, %arg3: memref<64x128xbf16, #tpu.memory_space<vmem>>, %arg4: memref<1x128xf32, #tpu.memory_space<vmem>>, %arg5: memref<2x128xf32, #tpu.memory_space<vmem>>) attributes {dimension_semantics = [], scalar_prefetch = 0 : i64, scratch_operands = 0 : i64, tpu.core_type = #tpu.core_type<tc>} {
    %c0 = arith.constant 0 : index
    %c0_0 = arith.constant 0 : index
    %0 = vector.load %arg0[%c0, %c0_0] : memref<2x32xf32, #tpu.memory_space<vmem>>, vector<2x32xf32>
    %1 = arith.truncf %0 : vector<2x32xf32> to vector<2x32xbf16>
    %c0_1 = arith.constant 0 : index
    %c0_2 = arith.constant 0 : index
    %2 = vector.load %arg1[%c0_1, %c0_2] : memref<32x64xbf16, #tpu.memory_space<vmem>>, vector<32x64xbf16>
    %cst = arith.constant dense<0.000000e+00> : vector<2x64xf32>
    %3 = tpu.matmul %1, %2, %cst {dimension_numbers = #tpu.dot_dimension_numbers<[1], [0], [0], [1], [0, 0, 1, 1], [], []>} : vector<2x32xbf16>, vector<32x64xbf16>, vector<2x64xf32> -> vector<2x64xf32>
    %c0_3 = arith.constant 0 : index
    %c0_4 = arith.constant 0 : index
    %4 = vector.load %arg2[%c0_3, %c0_4] : memref<1x64xf32, #tpu.memory_space<vmem>>, vector<1x64xf32>
    %5 = vector.broadcast %4 : vector<1x64xf32> to vector<2x64xf32>
    %6 = arith.addf %3, %5 : vector<2x64xf32>
    %7 = arith.negf %6 : vector<2x64xf32>
    %8 = math.exp %7 : vector<2x64xf32>
    %cst_5 = arith.constant 1.000000e+00 : f32
    %9 = vector.broadcast %cst_5 : f32 to vector<2x64xf32>
    %10 = arith.addf %9, %8 : vector<2x64xf32>
    %11 = arith.divf %9, %10 : vector<2x64xf32>
    %12 = arith.mulf %6, %11 : vector<2x64xf32>
    %13 = arith.truncf %12 : vector<2x64xf32> to vector<2x64xbf16>
    %c0_6 = arith.constant 0 : index
    %c0_7 = arith.constant 0 : index
    %14 = vector.load %arg3[%c0_6, %c0_7] : memref<64x128xbf16, #tpu.memory_space<vmem>>, vector<64x128xbf16>
    %cst_8 = arith.constant dense<0.000000e+00> : vector<2x128xf32>
    %15 = tpu.matmul %13, %14, %cst_8 {dimension_numbers = #tpu.dot_dimension_numbers<[1], [0], [0], [1], [0, 0, 1, 1], [], []>} : vector<2x64xbf16>, vector<64x128xbf16>, vector<2x128xf32> -> vector<2x128xf32>
    %c0_9 = arith.constant 0 : index
    %c0_10 = arith.constant 0 : index
    %16 = vector.load %arg4[%c0_9, %c0_10] : memref<1x128xf32, #tpu.memory_space<vmem>>, vector<1x128xf32>
    %17 = vector.broadcast %16 : vector<1x128xf32> to vector<2x128xf32>
    %18 = arith.addf %15, %17 : vector<2x128xf32>
    %c0_11 = arith.constant 0 : index
    %c0_12 = arith.constant 0 : index
    %19 = vector.load %arg5[%c0_11, %c0_12] : memref<2x128xf32, #tpu.memory_space<vmem>>, vector<2x128xf32>
    tpu.vector_store %arg5[%c0_11, %c0_12], %18 {strides = array<i32>} : memref<2x128xf32, #tpu.memory_space<vmem>>, vector<2x128xf32>,
    return
  }
}

module attributes {stable_mosaic.version = 11 : i64} {
  func.func @_conformer_layer_kernel(%arg0: i32, %arg1: memref<1x16x128xf32, #tpu.memory_space<vmem>>, %arg2: memref<1x16x128xf32, #tpu.memory_space<vmem>>, %arg3: memref<128x384xbf16, #tpu.memory_space<vmem>>, %arg4: memref<1x384xf32, #tpu.memory_space<vmem>>, %arg5: memref<128x128xbf16, #tpu.memory_space<vmem>>, %arg6: memref<1x128xf32, #tpu.memory_space<vmem>>, %arg7: memref<1x128xf32, #tpu.memory_space<vmem>>, %arg8: memref<1x128xf32, #tpu.memory_space<vmem>>, %arg9: memref<3x128xf32, #tpu.memory_space<vmem>>, %arg10: memref<1x128xf32, #tpu.memory_space<vmem>>, %arg11: memref<128x256xbf16, #tpu.memory_space<vmem>>, %arg12: memref<1x256xf32, #tpu.memory_space<vmem>>, %arg13: memref<256x128xbf16, #tpu.memory_space<vmem>>, %arg14: memref<1x128xf32, #tpu.memory_space<vmem>>, %arg15: memref<1x128xf32, #tpu.memory_space<vmem>>, %arg16: memref<1x128xf32, #tpu.memory_space<vmem>>, %arg17: memref<128x256xbf16, #tpu.memory_space<vmem>>, %arg18: memref<1x256xf32, #tpu.memory_space<vmem>>, %arg19: memref<256x128xbf16, #tpu.memory_space<vmem>>, %arg20: memref<1x128xf32, #tpu.memory_space<vmem>>, %arg21: memref<1x128xf32, #tpu.memory_space<vmem>>, %arg22: memref<1x128xf32, #tpu.memory_space<vmem>>, %arg23: memref<1x16x128xf32, #tpu.memory_space<vmem>>) attributes {dimension_semantics = [#tpu.dimension_semantics<parallel>], iteration_bounds = array<i64: 2>, scalar_prefetch = 0 : i64, scratch_operands = 0 : i64, tpu.core_type = #tpu.core_type<tc>, window_params = [{transform_indices = @transform_0, window_bounds = array<i64: 1, 16, 128>}, {transform_indices = @transform_1, window_bounds = array<i64: 1, 16, 128>}, {pipeline_mode = #tpu.pipeline_mode<synchronous>, transform_indices = @transform_2, window_bounds = array<i64: 128, 384>}, {pipeline_mode = #tpu.pipeline_mode<synchronous>, transform_indices = @transform_3, window_bounds = array<i64: 1, 384>}, {pipeline_mode = #tpu.pipeline_mode<synchronous>, transform_indices = @transform_4, window_bounds = array<i64: 128, 128>}, {pipeline_mode = #tpu.pipeline_mode<synchronous>, transform_indices = @transform_5, window_bounds = array<i64: 1, 128>}, {pipeline_mode = #tpu.pipeline_mode<synchronous>, transform_indices = @transform_6, window_bounds = array<i64: 1, 128>}, {pipeline_mode = #tpu.pipeline_mode<synchronous>, transform_indices = @transform_7, window_bounds = array<i64: 1, 128>}, {pipeline_mode = #tpu.pipeline_mode<synchronous>, transform_indices = @transform_8, window_bounds = array<i64: 3, 128>}, {pipeline_mode = #tpu.pipeline_mode<synchronous>, transform_indices = @transform_9, window_bounds = array<i64: 1, 128>}, {pipeline_mode = #tpu.pipeline_mode<synchronous>, transform_indices = @transform_10, window_bounds = array<i64: 128, 256>}, {pipeline_mode = #tpu.pipeline_mode<synchronous>, transform_indices = @transform_11, window_bounds = array<i64: 1, 256>}, {pipeline_mode = #tpu.pipeline_mode<synchronous>, transform_indices = @transform_12, window_bounds = array<i64: 256, 128>}, {pipeline_mode = #tpu.pipeline_mode<synchronous>, transform_indices = @transform_13, window_bounds = array<i64: 1, 128>}, {pipeline_mode = #tpu.pipeline_mode<synchronous>, transform_indices = @transform_14, window_bounds = array<i64: 1, 128>}, {pipeline_mode = #tpu.pipeline_mode<synchronous>, transform_indices = @transform_15, window_bounds = array<i64: 1, 128>}, {pipeline_mode = #tpu.pipeline_mode<synchronous>, transform_indices = @transform_16, window_bounds = array<i64: 128, 256>}, {pipeline_mode = #tpu.pipeline_mode<synchronous>, transform_indices = @transform_17, window_bounds = array<i64: 1, 256>}, {pipeline_mode = #tpu.pipeline_mode<synchronous>, transform_indices = @transform_18, window_bounds = array<i64: 256, 128>}, {pipeline_mode = #tpu.pipeline_mode<synchronous>, transform_indices = @transform_19, window_bounds = array<i64: 1, 128>}, {pipeline_mode = #tpu.pipeline_mode<synchronous>, transform_indices = @transform_20, window_bounds = array<i64: 1, 128>}, {pipeline_mode = #tpu.pipeline_mode<synchronous>, transform_indices = @transform_21, window_bounds = array<i64: 1, 128>}, {transform_indices = @transform_22, window_bounds = array<i64: 1, 16, 128>}]} {
    %c0 = arith.constant 0 : index
    %c0_0 = arith.constant 0 : index
    %c0_1 = arith.constant 0 : index
    %0 = vector.load %arg1[%c0, %c0_0, %c0_1] : memref<1x16x128xf32, #tpu.memory_space<vmem>>, vector<1x16x128xf32>
    %1 = vector.shape_cast %0 : vector<1x16x128xf32> to vector<16x128xf32>
    %c0_2 = arith.constant 0 : index
    %c0_3 = arith.constant 0 : index
    %c0_4 = arith.constant 0 : index
    %2 = vector.load %arg2[%c0_2, %c0_3, %c0_4] : memref<1x16x128xf32, #tpu.memory_space<vmem>>, vector<1x16x128xf32>
    %3 = vector.shape_cast %2 : vector<1x16x128xf32> to vector<16x128xf32>
    %4 = arith.addf %1, %3 : vector<16x128xf32>
    %5 = arith.truncf %4 : vector<16x128xf32> to vector<16x128xbf16>
    %c0_5 = arith.constant 0 : index
    %c0_6 = arith.constant 0 : index
    %6 = vector.load %arg3[%c0_5, %c0_6] : memref<128x384xbf16, #tpu.memory_space<vmem>>, vector<128x384xbf16>
    %cst = arith.constant dense<0.000000e+00> : vector<16x384xf32>
    %7 = tpu.matmul %5, %6, %cst {dimension_numbers = #tpu.dot_dimension_numbers<[1], [0], [0], [1], [0, 0, 1, 1], [], []>} : vector<16x128xbf16>, vector<128x384xbf16>, vector<16x384xf32> -> vector<16x384xf32>
    %c0_7 = arith.constant 0 : index
    %c0_8 = arith.constant 0 : index
    %8 = vector.load %arg4[%c0_7, %c0_8] : memref<1x384xf32, #tpu.memory_space<vmem>>, vector<1x384xf32>
    %9 = vector.broadcast %8 : vector<1x384xf32> to vector<16x384xf32>
    %10 = arith.addf %7, %9 : vector<16x384xf32>
    %11 = vector.extract_strided_slice %10 {offsets = [0, 0], sizes = [16, 32], strides = [1, 1]} : vector<16x384xf32> to vector<16x32xf32>
    %12 = vector.extract_strided_slice %10 {offsets = [0, 128], sizes = [16, 32], strides = [1, 1]} : vector<16x384xf32> to vector<16x32xf32>
    %13 = vector.extract_strided_slice %10 {offsets = [0, 256], sizes = [16, 32], strides = [1, 1]} : vector<16x384xf32> to vector<16x32xf32>
    %14 = arith.truncf %11 : vector<16x32xf32> to vector<16x32xbf16>
    %15 = arith.truncf %12 : vector<16x32xf32> to vector<16x32xbf16>
    %cst_9 = arith.constant dense<0.000000e+00> : vector<16x16xf32>
    %16 = tpu.matmul %14, %15, %cst_9 {dimension_numbers = #tpu.dot_dimension_numbers<[1], [1], [0], [0], [0, 0, 1, 0], [], []>} : vector<16x32xbf16>, vector<16x32xbf16>, vector<16x16xf32> -> vector<16x16xf32>
    %cst_10 = arith.constant 0.176776692 : f32
    %17 = vector.broadcast %cst_10 : f32 to vector<16x16xf32>
    %18 = arith.mulf %16, %17 : vector<16x16xf32>
    %cst_11 = arith.constant dense<0xFF800000> : vector<16xf32>
    %19 = vector.multi_reduction <maximumf>, %18, %cst_11 [1] : vector<16x16xf32> to vector<16xf32>
    %20 = vector.shape_cast %19 : vector<16xf32> to vector<16x1xf32>
    %21 = vector.broadcast %20 : vector<16x1xf32> to vector<16x16xf32>
    %22 = arith.subf %18, %21 : vector<16x16xf32>
    %23 = math.exp %22 : vector<16x16xf32>
    %cst_12 = arith.constant dense<0.000000e+00> : vector<16xf32>
    %24 = vector.multi_reduction <add>, %23, %cst_12 [1] : vector<16x16xf32> to vector<16xf32>
    %25 = vector.shape_cast %24 : vector<16xf32> to vector<16x1xf32>
    %26 = tpu.reciprocal %25 {approx = true} : vector<16x1xf32> -> vector<16x1xf32>
    %27 = vector.broadcast %26 : vector<16x1xf32> to vector<16x16xf32>
    %28 = arith.mulf %23, %27 : vector<16x16xf32>
    %29 = arith.truncf %28 : vector<16x16xf32> to vector<16x16xbf16>
    %30 = arith.truncf %13 : vector<16x32xf32> to vector<16x32xbf16>
    %cst_13 = arith.constant dense<0.000000e+00> : vector<16x32xf32>
    %31 = tpu.matmul %29, %30, %cst_13 {dimension_numbers = #tpu.dot_dimension_numbers<[1], [0], [0], [1], [0, 0, 1, 1], [], []>} : vector<16x16xbf16>, vector<16x32xbf16>, vector<16x32xf32> -> vector<16x32xf32>
    %32 = vector.extract_strided_slice %10 {offsets = [0, 32], sizes = [16, 32], strides = [1, 1]} : vector<16x384xf32> to vector<16x32xf32>
    %33 = vector.extract_strided_slice %10 {offsets = [0, 160], sizes = [16, 32], strides = [1, 1]} : vector<16x384xf32> to vector<16x32xf32>
    %34 = vector.extract_strided_slice %10 {offsets = [0, 288], sizes = [16, 32], strides = [1, 1]} : vector<16x384xf32> to vector<16x32xf32>
    %35 = arith.truncf %32 : vector<16x32xf32> to vector<16x32xbf16>
    %36 = arith.truncf %33 : vector<16x32xf32> to vector<16x32xbf16>
    %cst_14 = arith.constant dense<0.000000e+00> : vector<16x16xf32>
    %37 = tpu.matmul %35, %36, %cst_14 {dimension_numbers = #tpu.dot_dimension_numbers<[1], [1], [0], [0], [0, 0, 1, 0], [], []>} : vector<16x32xbf16>, vector<16x32xbf16>, vector<16x16xf32> -> vector<16x16xf32>
    %cst_15 = arith.constant 0.176776692 : f32
    %38 = vector.broadcast %cst_15 : f32 to vector<16x16xf32>
    %39 = arith.mulf %37, %38 : vector<16x16xf32>
    %cst_16 = arith.constant dense<0xFF800000> : vector<16xf32>
    %40 = vector.multi_reduction <maximumf>, %39, %cst_16 [1] : vector<16x16xf32> to vector<16xf32>
    %41 = vector.shape_cast %40 : vector<16xf32> to vector<16x1xf32>
    %42 = vector.broadcast %41 : vector<16x1xf32> to vector<16x16xf32>
    %43 = arith.subf %39, %42 : vector<16x16xf32>
    %44 = math.exp %43 : vector<16x16xf32>
    %cst_17 = arith.constant dense<0.000000e+00> : vector<16xf32>
    %45 = vector.multi_reduction <add>, %44, %cst_17 [1] : vector<16x16xf32> to vector<16xf32>
    %46 = vector.shape_cast %45 : vector<16xf32> to vector<16x1xf32>
    %47 = tpu.reciprocal %46 {approx = true} : vector<16x1xf32> -> vector<16x1xf32>
    %48 = vector.broadcast %47 : vector<16x1xf32> to vector<16x16xf32>
    %49 = arith.mulf %44, %48 : vector<16x16xf32>
    %50 = arith.truncf %49 : vector<16x16xf32> to vector<16x16xbf16>
    %51 = arith.truncf %34 : vector<16x32xf32> to vector<16x32xbf16>
    %cst_18 = arith.constant dense<0.000000e+00> : vector<16x32xf32>
    %52 = tpu.matmul %50, %51, %cst_18 {dimension_numbers = #tpu.dot_dimension_numbers<[1], [0], [0], [1], [0, 0, 1, 1], [], []>} : vector<16x16xbf16>, vector<16x32xbf16>, vector<16x32xf32> -> vector<16x32xf32>
    %53 = vector.extract_strided_slice %10 {offsets = [0, 64], sizes = [16, 32], strides = [1, 1]} : vector<16x384xf32> to vector<16x32xf32>
    %54 = vector.extract_strided_slice %10 {offsets = [0, 192], sizes = [16, 32], strides = [1, 1]} : vector<16x384xf32> to vector<16x32xf32>
    %55 = vector.extract_strided_slice %10 {offsets = [0, 320], sizes = [16, 32], strides = [1, 1]} : vector<16x384xf32> to vector<16x32xf32>
    %56 = arith.truncf %53 : vector<16x32xf32> to vector<16x32xbf16>
    %57 = arith.truncf %54 : vector<16x32xf32> to vector<16x32xbf16>
    %cst_19 = arith.constant dense<0.000000e+00> : vector<16x16xf32>
    %58 = tpu.matmul %56, %57, %cst_19 {dimension_numbers = #tpu.dot_dimension_numbers<[1], [1], [0], [0], [0, 0, 1, 0], [], []>} : vector<16x32xbf16>, vector<16x32xbf16>, vector<16x16xf32> -> vector<16x16xf32>
    %cst_20 = arith.constant 0.176776692 : f32
    %59 = vector.broadcast %cst_20 : f32 to vector<16x16xf32>
    %60 = arith.mulf %58, %59 : vector<16x16xf32>
    %cst_21 = arith.constant dense<0xFF800000> : vector<16xf32>
    %61 = vector.multi_reduction <maximumf>, %60, %cst_21 [1] : vector<16x16xf32> to vector<16xf32>
    %62 = vector.shape_cast %61 : vector<16xf32> to vector<16x1xf32>
    %63 = vector.broadcast %62 : vector<16x1xf32> to vector<16x16xf32>
    %64 = arith.subf %60, %63 : vector<16x16xf32>
    %65 = math.exp %64 : vector<16x16xf32>
    %cst_22 = arith.constant dense<0.000000e+00> : vector<16xf32>
    %66 = vector.multi_reduction <add>, %65, %cst_22 [1] : vector<16x16xf32> to vector<16xf32>
    %67 = vector.shape_cast %66 : vector<16xf32> to vector<16x1xf32>
    %68 = tpu.reciprocal %67 {approx = true} : vector<16x1xf32> -> vector<16x1xf32>
    %69 = vector.broadcast %68 : vector<16x1xf32> to vector<16x16xf32>
    %70 = arith.mulf %65, %69 : vector<16x16xf32>
    %71 = arith.truncf %70 : vector<16x16xf32> to vector<16x16xbf16>
    %72 = arith.truncf %55 : vector<16x32xf32> to vector<16x32xbf16>
    %cst_23 = arith.constant dense<0.000000e+00> : vector<16x32xf32>
    %73 = tpu.matmul %71, %72, %cst_23 {dimension_numbers = #tpu.dot_dimension_numbers<[1], [0], [0], [1], [0, 0, 1, 1], [], []>} : vector<16x16xbf16>, vector<16x32xbf16>, vector<16x32xf32> -> vector<16x32xf32>
    %74 = vector.extract_strided_slice %10 {offsets = [0, 96], sizes = [16, 32], strides = [1, 1]} : vector<16x384xf32> to vector<16x32xf32>
    %75 = vector.extract_strided_slice %10 {offsets = [0, 224], sizes = [16, 32], strides = [1, 1]} : vector<16x384xf32> to vector<16x32xf32>
    %76 = vector.extract_strided_slice %10 {offsets = [0, 352], sizes = [16, 32], strides = [1, 1]} : vector<16x384xf32> to vector<16x32xf32>
    %77 = arith.truncf %74 : vector<16x32xf32> to vector<16x32xbf16>
    %78 = arith.truncf %75 : vector<16x32xf32> to vector<16x32xbf16>
    %cst_24 = arith.constant dense<0.000000e+00> : vector<16x16xf32>
    %79 = tpu.matmul %77, %78, %cst_24 {dimension_numbers = #tpu.dot_dimension_numbers<[1], [1], [0], [0], [0, 0, 1, 0], [], []>} : vector<16x32xbf16>, vector<16x32xbf16>, vector<16x16xf32> -> vector<16x16xf32>
    %cst_25 = arith.constant 0.176776692 : f32
    %80 = vector.broadcast %cst_25 : f32 to vector<16x16xf32>
    %81 = arith.mulf %79, %80 : vector<16x16xf32>
    %cst_26 = arith.constant dense<0xFF800000> : vector<16xf32>
    %82 = vector.multi_reduction <maximumf>, %81, %cst_26 [1] : vector<16x16xf32> to vector<16xf32>
    %83 = vector.shape_cast %82 : vector<16xf32> to vector<16x1xf32>
    %84 = vector.broadcast %83 : vector<16x1xf32> to vector<16x16xf32>
    %85 = arith.subf %81, %84 : vector<16x16xf32>
    %86 = math.exp %85 : vector<16x16xf32>
    %cst_27 = arith.constant dense<0.000000e+00> : vector<16xf32>
    %87 = vector.multi_reduction <add>, %86, %cst_27 [1] : vector<16x16xf32> to vector<16xf32>
    %88 = vector.shape_cast %87 : vector<16xf32> to vector<16x1xf32>
    %89 = tpu.reciprocal %88 {approx = true} : vector<16x1xf32> -> vector<16x1xf32>
    %90 = vector.broadcast %89 : vector<16x1xf32> to vector<16x16xf32>
    %91 = arith.mulf %86, %90 : vector<16x16xf32>
    %92 = arith.truncf %91 : vector<16x16xf32> to vector<16x16xbf16>
    %93 = arith.truncf %76 : vector<16x32xf32> to vector<16x32xbf16>
    %cst_28 = arith.constant dense<0.000000e+00> : vector<16x32xf32>
    %94 = tpu.matmul %92, %93, %cst_28 {dimension_numbers = #tpu.dot_dimension_numbers<[1], [0], [0], [1], [0, 0, 1, 1], [], []>} : vector<16x16xbf16>, vector<16x32xbf16>, vector<16x32xf32> -> vector<16x32xf32>
    %95 = tpu.concatenate %31, %52, %73, %94 in 1 : vector<16x32xf32>, vector<16x32xf32>, vector<16x32xf32>, vector<16x32xf32> -> vector<16x128xf32>
    %96 = arith.truncf %95 : vector<16x128xf32> to vector<16x128xbf16>
    %c0_29 = arith.constant 0 : index
    %c0_30 = arith.constant 0 : index
    %97 = vector.load %arg5[%c0_29, %c0_30] : memref<128x128xbf16, #tpu.memory_space<vmem>>, vector<128x128xbf16>
    %cst_31 = arith.constant dense<0.000000e+00> : vector<16x128xf32>
    %98 = tpu.matmul %96, %97, %cst_31 {dimension_numbers = #tpu.dot_dimension_numbers<[1], [0], [0], [1], [0, 0, 1, 1], [], []>} : vector<16x128xbf16>, vector<128x128xbf16>, vector<16x128xf32> -> vector<16x128xf32>
    %c0_32 = arith.constant 0 : index
    %c0_33 = arith.constant 0 : index
    %99 = vector.load %arg6[%c0_32, %c0_33] : memref<1x128xf32, #tpu.memory_space<vmem>>, vector<1x128xf32>
    %100 = vector.broadcast %99 : vector<1x128xf32> to vector<16x128xf32>
    %101 = arith.addf %98, %100 : vector<16x128xf32>
    %102 = arith.addf %4, %101 : vector<16x128xf32>
    %cst_34 = arith.constant dense<0.000000e+00> : vector<16xf32>
    %103 = vector.multi_reduction <add>, %102, %cst_34 [1] : vector<16x128xf32> to vector<16xf32>
    %104 = vector.shape_cast %103 : vector<16xf32> to vector<16x1xf32>
    %cst_35 = arith.constant 1.280000e+02 : f32
    %105 = vector.broadcast %cst_35 : f32 to vector<16x1xf32>
    %106 = arith.divf %104, %105 : vector<16x1xf32>
    %107 = vector.broadcast %106 : vector<16x1xf32> to vector<16x128xf32>
    %108 = arith.subf %102, %107 : vector<16x128xf32>
    %109 = arith.mulf %108, %108 : vector<16x128xf32>
    %cst_36 = arith.constant dense<0.000000e+00> : vector<16xf32>
    %110 = vector.multi_reduction <add>, %109, %cst_36 [1] : vector<16x128xf32> to vector<16xf32>
    %111 = vector.shape_cast %110 : vector<16xf32> to vector<16x1xf32>
    %cst_37 = arith.constant 1.280000e+02 : f32
    %112 = vector.broadcast %cst_37 : f32 to vector<16x1xf32>
    %113 = arith.divf %111, %112 : vector<16x1xf32>
    %114 = vector.broadcast %106 : vector<16x1xf32> to vector<16x128xf32>
    %115 = arith.subf %102, %114 : vector<16x128xf32>
    %cst_38 = arith.constant 9.99999974E-6 : f32
    %116 = vector.broadcast %cst_38 : f32 to vector<16x1xf32>
    %117 = arith.addf %113, %116 : vector<16x1xf32>
    %118 = math.rsqrt %117 : vector<16x1xf32>
    %119 = vector.broadcast %118 : vector<16x1xf32> to vector<16x128xf32>
    %120 = arith.mulf %115, %119 : vector<16x128xf32>
    %c0_39 = arith.constant 0 : index
    %c0_40 = arith.constant 0 : index
    %121 = vector.load %arg7[%c0_39, %c0_40] : memref<1x128xf32, #tpu.memory_space<vmem>>, vector<1x128xf32>
    %122 = vector.broadcast %121 : vector<1x128xf32> to vector<16x128xf32>
    %123 = arith.mulf %120, %122 : vector<16x128xf32>
    %c0_41 = arith.constant 0 : index
    %c0_42 = arith.constant 0 : index
    %124 = vector.load %arg8[%c0_41, %c0_42] : memref<1x128xf32, #tpu.memory_space<vmem>>, vector<1x128xf32>
    %125 = vector.broadcast %124 : vector<1x128xf32> to vector<16x128xf32>
    %126 = arith.addf %123, %125 : vector<16x128xf32>
    %c0_43 = arith.constant 0 : index
    %c0_44 = arith.constant 0 : index
    %127 = vector.load %arg9[%c0_43, %c0_44] : memref<3x128xf32, #tpu.memory_space<vmem>>, vector<3x128xf32>
    %128 = tpu.iota {dimensions = array<i32: 0>} : vector<16x128xi32>
    %cst_45 = arith.constant 0.000000e+00 : f32
    %129 = vector.broadcast %cst_45 : f32 to vector<16x128xf32>
    %c1_i32 = arith.constant 1 : i32
    %130 = tpu.dynamic_rotate %126 by %c1_i32 dim 0 : vector<16x128xf32>, i32 -> vector<16x128xf32>
    %c1_i32_46 = arith.constant 1 : i32
    %131 = vector.broadcast %c1_i32_46 : i32 to vector<16x128xi32>
    %132 = arith.cmpi slt, %128, %131 : vector<16x128xi32>
    %cst_47 = arith.constant 0.000000e+00 : f32
    %133 = vector.broadcast %cst_47 : f32 to vector<16x128xf32>
    %134 = arith.select %132, %133, %130 : vector<16x128xi1>, vector<16x128xf32>
    %135 = vector.extract_strided_slice %127 {offsets = [0, 0], sizes = [1, 128], strides = [1, 1]} : vector<3x128xf32> to vector<1x128xf32>
    %136 = vector.shape_cast %135 : vector<1x128xf32> to vector<128xf32>
    %137 = vector.shape_cast %136 : vector<128xf32> to vector<1x128xf32>
    %138 = vector.broadcast %137 : vector<1x128xf32> to vector<16x128xf32>
    %139 = arith.mulf %134, %138 : vector<16x128xf32>
    %140 = arith.addf %129, %139 : vector<16x128xf32>
    %141 = vector.extract_strided_slice %127 {offsets = [1, 0], sizes = [1, 128], strides = [1, 1]} : vector<3x128xf32> to vector<1x128xf32>
    %142 = vector.shape_cast %141 : vector<1x128xf32> to vector<128xf32>
    %143 = vector.shape_cast %142 : vector<128xf32> to vector<1x128xf32>
    %144 = vector.broadcast %143 : vector<1x128xf32> to vector<16x128xf32>
    %145 = arith.mulf %126, %144 : vector<16x128xf32>
    %146 = arith.addf %140, %145 : vector<16x128xf32>
    %c15_i32 = arith.constant 15 : i32
    %147 = tpu.dynamic_rotate %126 by %c15_i32 dim 0 : vector<16x128xf32>, i32 -> vector<16x128xf32>
    %c15_i32_48 = arith.constant 15 : i32
    %148 = vector.broadcast %c15_i32_48 : i32 to vector<16x128xi32>
    %149 = arith.cmpi sge, %128, %148 : vector<16x128xi32>
    %cst_49 = arith.constant 0.000000e+00 : f32
    %150 = vector.broadcast %cst_49 : f32 to vector<16x128xf32>
    %151 = arith.select %149, %150, %147 : vector<16x128xi1>, vector<16x128xf32>
    %152 = vector.extract_strided_slice %127 {offsets = [2, 0], sizes = [1, 128], strides = [1, 1]} : vector<3x128xf32> to vector<1x128xf32>
    %153 = vector.shape_cast %152 : vector<1x128xf32> to vector<128xf32>
    %154 = vector.shape_cast %153 : vector<128xf32> to vector<1x128xf32>
    %155 = vector.broadcast %154 : vector<1x128xf32> to vector<16x128xf32>
    %156 = arith.mulf %151, %155 : vector<16x128xf32>
    %157 = arith.addf %146, %156 : vector<16x128xf32>
    %c0_50 = arith.constant 0 : index
    %c0_51 = arith.constant 0 : index
    %158 = vector.load %arg10[%c0_50, %c0_51] : memref<1x128xf32, #tpu.memory_space<vmem>>, vector<1x128xf32>
    %159 = vector.broadcast %158 : vector<1x128xf32> to vector<16x128xf32>
    %160 = arith.addf %157, %159 : vector<16x128xf32>
    %161 = arith.truncf %160 : vector<16x128xf32> to vector<16x128xbf16>
    %c0_52 = arith.constant 0 : index
    %c0_53 = arith.constant 0 : index
    %162 = vector.load %arg11[%c0_52, %c0_53] : memref<128x256xbf16, #tpu.memory_space<vmem>>, vector<128x256xbf16>
    %cst_54 = arith.constant dense<0.000000e+00> : vector<16x256xf32>
    %163 = tpu.matmul %161, %162, %cst_54 {dimension_numbers = #tpu.dot_dimension_numbers<[1], [0], [0], [1], [0, 0, 1, 1], [], []>} : vector<16x128xbf16>, vector<128x256xbf16>, vector<16x256xf32> -> vector<16x256xf32>
    %c0_55 = arith.constant 0 : index
    %c0_56 = arith.constant 0 : index
    %164 = vector.load %arg12[%c0_55, %c0_56] : memref<1x256xf32, #tpu.memory_space<vmem>>, vector<1x256xf32>
    %165 = vector.broadcast %164 : vector<1x256xf32> to vector<16x256xf32>
    %166 = arith.addf %163, %165 : vector<16x256xf32>
    %167 = arith.mulf %166, %166 : vector<16x256xf32>
    %168 = arith.mulf %166, %167 : vector<16x256xf32>
    %cst_57 = arith.constant 4.471500e-02 : f32
    %169 = vector.broadcast %cst_57 : f32 to vector<16x256xf32>
    %170 = arith.mulf %169, %168 : vector<16x256xf32>
    %171 = arith.addf %166, %170 : vector<16x256xf32>
    %cst_58 = arith.constant 0.797884583 : f32
    %172 = vector.broadcast %cst_58 : f32 to vector<16x256xf32>
    %173 = arith.mulf %172, %171 : vector<16x256xf32>
    %174 = math.tanh %173 : vector<16x256xf32>
    %cst_59 = arith.constant 1.000000e+00 : f32
    %175 = vector.broadcast %cst_59 : f32 to vector<16x256xf32>
    %176 = arith.addf %175, %174 : vector<16x256xf32>
    %cst_60 = arith.constant 5.000000e-01 : f32
    %177 = vector.broadcast %cst_60 : f32 to vector<16x256xf32>
    %178 = arith.mulf %177, %176 : vector<16x256xf32>
    %179 = arith.mulf %166, %178 : vector<16x256xf32>
    %180 = arith.truncf %179 : vector<16x256xf32> to vector<16x256xbf16>
    %c0_61 = arith.constant 0 : index
    %c0_62 = arith.constant 0 : index
    %181 = vector.load %arg13[%c0_61, %c0_62] : memref<256x128xbf16, #tpu.memory_space<vmem>>, vector<256x128xbf16>
    %cst_63 = arith.constant dense<0.000000e+00> : vector<16x128xf32>
    %182 = tpu.matmul %180, %181, %cst_63 {dimension_numbers = #tpu.dot_dimension_numbers<[1], [0], [0], [1], [0, 0, 1, 1], [], []>} : vector<16x256xbf16>, vector<256x128xbf16>, vector<16x128xf32> -> vector<16x128xf32>
    %c0_64 = arith.constant 0 : index
    %c0_65 = arith.constant 0 : index
    %183 = vector.load %arg14[%c0_64, %c0_65] : memref<1x128xf32, #tpu.memory_space<vmem>>, vector<1x128xf32>
    %184 = vector.broadcast %183 : vector<1x128xf32> to vector<16x128xf32>
    %185 = arith.addf %182, %184 : vector<16x128xf32>
    %186 = arith.addf %126, %185 : vector<16x128xf32>
    %cst_66 = arith.constant dense<0.000000e+00> : vector<16xf32>
    %187 = vector.multi_reduction <add>, %186, %cst_66 [1] : vector<16x128xf32> to vector<16xf32>
    %188 = vector.shape_cast %187 : vector<16xf32> to vector<16x1xf32>
    %cst_67 = arith.constant 1.280000e+02 : f32
    %189 = vector.broadcast %cst_67 : f32 to vector<16x1xf32>
    %190 = arith.divf %188, %189 : vector<16x1xf32>
    %191 = vector.broadcast %190 : vector<16x1xf32> to vector<16x128xf32>
    %192 = arith.subf %186, %191 : vector<16x128xf32>
    %193 = arith.mulf %192, %192 : vector<16x128xf32>
    %cst_68 = arith.constant dense<0.000000e+00> : vector<16xf32>
    %194 = vector.multi_reduction <add>, %193, %cst_68 [1] : vector<16x128xf32> to vector<16xf32>
    %195 = vector.shape_cast %194 : vector<16xf32> to vector<16x1xf32>
    %cst_69 = arith.constant 1.280000e+02 : f32
    %196 = vector.broadcast %cst_69 : f32 to vector<16x1xf32>
    %197 = arith.divf %195, %196 : vector<16x1xf32>
    %198 = vector.broadcast %190 : vector<16x1xf32> to vector<16x128xf32>
    %199 = arith.subf %186, %198 : vector<16x128xf32>
    %cst_70 = arith.constant 9.99999974E-6 : f32
    %200 = vector.broadcast %cst_70 : f32 to vector<16x1xf32>
    %201 = arith.addf %197, %200 : vector<16x1xf32>
    %202 = math.rsqrt %201 : vector<16x1xf32>
    %203 = vector.broadcast %202 : vector<16x1xf32> to vector<16x128xf32>
    %204 = arith.mulf %199, %203 : vector<16x128xf32>
    %c0_71 = arith.constant 0 : index
    %c0_72 = arith.constant 0 : index
    %205 = vector.load %arg15[%c0_71, %c0_72] : memref<1x128xf32, #tpu.memory_space<vmem>>, vector<1x128xf32>
    %206 = vector.broadcast %205 : vector<1x128xf32> to vector<16x128xf32>
    %207 = arith.mulf %204, %206 : vector<16x128xf32>
    %c0_73 = arith.constant 0 : index
    %c0_74 = arith.constant 0 : index
    %208 = vector.load %arg16[%c0_73, %c0_74] : memref<1x128xf32, #tpu.memory_space<vmem>>, vector<1x128xf32>
    %209 = vector.broadcast %208 : vector<1x128xf32> to vector<16x128xf32>
    %210 = arith.addf %207, %209 : vector<16x128xf32>
    %211 = arith.truncf %210 : vector<16x128xf32> to vector<16x128xbf16>
    %c0_75 = arith.constant 0 : index
    %c0_76 = arith.constant 0 : index
    %212 = vector.load %arg17[%c0_75, %c0_76] : memref<128x256xbf16, #tpu.memory_space<vmem>>, vector<128x256xbf16>
    %cst_77 = arith.constant dense<0.000000e+00> : vector<16x256xf32>
    %213 = tpu.matmul %211, %212, %cst_77 {dimension_numbers = #tpu.dot_dimension_numbers<[1], [0], [0], [1], [0, 0, 1, 1], [], []>} : vector<16x128xbf16>, vector<128x256xbf16>, vector<16x256xf32> -> vector<16x256xf32>
    %c0_78 = arith.constant 0 : index
    %c0_79 = arith.constant 0 : index
    %214 = vector.load %arg18[%c0_78, %c0_79] : memref<1x256xf32, #tpu.memory_space<vmem>>, vector<1x256xf32>
    %215 = vector.broadcast %214 : vector<1x256xf32> to vector<16x256xf32>
    %216 = arith.addf %213, %215 : vector<16x256xf32>
    %217 = arith.mulf %216, %216 : vector<16x256xf32>
    %218 = arith.mulf %216, %217 : vector<16x256xf32>
    %cst_80 = arith.constant 4.471500e-02 : f32
    %219 = vector.broadcast %cst_80 : f32 to vector<16x256xf32>
    %220 = arith.mulf %219, %218 : vector<16x256xf32>
    %221 = arith.addf %216, %220 : vector<16x256xf32>
    %cst_81 = arith.constant 0.797884583 : f32
    %222 = vector.broadcast %cst_81 : f32 to vector<16x256xf32>
    %223 = arith.mulf %222, %221 : vector<16x256xf32>
    %224 = math.tanh %223 : vector<16x256xf32>
    %cst_82 = arith.constant 1.000000e+00 : f32
    %225 = vector.broadcast %cst_82 : f32 to vector<16x256xf32>
    %226 = arith.addf %225, %224 : vector<16x256xf32>
    %cst_83 = arith.constant 5.000000e-01 : f32
    %227 = vector.broadcast %cst_83 : f32 to vector<16x256xf32>
    %228 = arith.mulf %227, %226 : vector<16x256xf32>
    %229 = arith.mulf %216, %228 : vector<16x256xf32>
    %230 = arith.truncf %229 : vector<16x256xf32> to vector<16x256xbf16>
    %c0_84 = arith.constant 0 : index
    %c0_85 = arith.constant 0 : index
    %231 = vector.load %arg19[%c0_84, %c0_85] : memref<256x128xbf16, #tpu.memory_space<vmem>>, vector<256x128xbf16>
    %cst_86 = arith.constant dense<0.000000e+00> : vector<16x128xf32>
    %232 = tpu.matmul %230, %231, %cst_86 {dimension_numbers = #tpu.dot_dimension_numbers<[1], [0], [0], [1], [0, 0, 1, 1], [], []>} : vector<16x256xbf16>, vector<256x128xbf16>, vector<16x128xf32> -> vector<16x128xf32>
    %c0_87 = arith.constant 0 : index
    %c0_88 = arith.constant 0 : index
    %233 = vector.load %arg20[%c0_87, %c0_88] : memref<1x128xf32, #tpu.memory_space<vmem>>, vector<1x128xf32>
    %234 = vector.broadcast %233 : vector<1x128xf32> to vector<16x128xf32>
    %235 = arith.addf %232, %234 : vector<16x128xf32>
    %236 = arith.addf %210, %235 : vector<16x128xf32>
    %cst_89 = arith.constant dense<0.000000e+00> : vector<16xf32>
    %237 = vector.multi_reduction <add>, %236, %cst_89 [1] : vector<16x128xf32> to vector<16xf32>
    %238 = vector.shape_cast %237 : vector<16xf32> to vector<16x1xf32>
    %cst_90 = arith.constant 1.280000e+02 : f32
    %239 = vector.broadcast %cst_90 : f32 to vector<16x1xf32>
    %240 = arith.divf %238, %239 : vector<16x1xf32>
    %241 = vector.broadcast %240 : vector<16x1xf32> to vector<16x128xf32>
    %242 = arith.subf %236, %241 : vector<16x128xf32>
    %243 = arith.mulf %242, %242 : vector<16x128xf32>
    %cst_91 = arith.constant dense<0.000000e+00> : vector<16xf32>
    %244 = vector.multi_reduction <add>, %243, %cst_91 [1] : vector<16x128xf32> to vector<16xf32>
    %245 = vector.shape_cast %244 : vector<16xf32> to vector<16x1xf32>
    %cst_92 = arith.constant 1.280000e+02 : f32
    %246 = vector.broadcast %cst_92 : f32 to vector<16x1xf32>
    %247 = arith.divf %245, %246 : vector<16x1xf32>
    %248 = vector.broadcast %240 : vector<16x1xf32> to vector<16x128xf32>
    %249 = arith.subf %236, %248 : vector<16x128xf32>
    %cst_93 = arith.constant 9.99999974E-6 : f32
    %250 = vector.broadcast %cst_93 : f32 to vector<16x1xf32>
    %251 = arith.addf %247, %250 : vector<16x1xf32>
    %252 = math.rsqrt %251 : vector<16x1xf32>
    %253 = vector.broadcast %252 : vector<16x1xf32> to vector<16x128xf32>
    %254 = arith.mulf %249, %253 : vector<16x128xf32>
    %c0_94 = arith.constant 0 : index
    %c0_95 = arith.constant 0 : index
    %255 = vector.load %arg21[%c0_94, %c0_95] : memref<1x128xf32, #tpu.memory_space<vmem>>, vector<1x128xf32>
    %256 = vector.broadcast %255 : vector<1x128xf32> to vector<16x128xf32>
    %257 = arith.mulf %254, %256 : vector<16x128xf32>
    %c0_96 = arith.constant 0 : index
    %c0_97 = arith.constant 0 : index
    %258 = vector.load %arg22[%c0_96, %c0_97] : memref<1x128xf32, #tpu.memory_space<vmem>>, vector<1x128xf32>
    %259 = vector.broadcast %258 : vector<1x128xf32> to vector<16x128xf32>
    %260 = arith.addf %257, %259 : vector<16x128xf32>
    %c0_98 = arith.constant 0 : index
    %c0_99 = arith.constant 0 : index
    %c0_100 = arith.constant 0 : index
    %261 = vector.load %arg23[%c0_98, %c0_99, %c0_100] : memref<1x16x128xf32, #tpu.memory_space<vmem>>, vector<1x16x128xf32>
    %262 = vector.shape_cast %261 : vector<1x16x128xf32> to vector<16x128xf32>
    %263 = vector.shape_cast %260 : vector<16x128xf32> to vector<1x16x128xf32>
    tpu.vector_store %arg23[%c0_98, %c0_99, %c0_100], %263 {strides = array<i32>} : memref<1x16x128xf32, #tpu.memory_space<vmem>>, vector<1x16x128xf32>,
    return
  }
  func.func @transform_0(%arg0: i32) -> (i32, i32, i32) {
    %c0_i32 = arith.constant 0 : i32
    %c0_i32_0 = arith.constant 0 : i32
    %c0_i32_1 = arith.constant 0 : i32
    return %arg0, %c0_i32, %c0_i32_0 : i32, i32, i32
  }
  func.func @transform_1(%arg0: i32) -> (i32, i32, i32) {
    %c0_i32 = arith.constant 0 : i32
    %c0_i32_0 = arith.constant 0 : i32
    %c0_i32_1 = arith.constant 0 : i32
    return %arg0, %c0_i32, %c0_i32_0 : i32, i32, i32
  }
  func.func @transform_2(%arg0: i32) -> (i32, i32) {
    %c0_i32 = arith.constant 0 : i32
    %c0_i32_0 = arith.constant 0 : i32
    %c0_i32_1 = arith.constant 0 : i32
    return %c0_i32, %c0_i32_0 : i32, i32
  }
  func.func @transform_3(%arg0: i32) -> (i32, i32) {
    %c0_i32 = arith.constant 0 : i32
    %c0_i32_0 = arith.constant 0 : i32
    %c0_i32_1 = arith.constant 0 : i32
    return %c0_i32, %c0_i32_0 : i32, i32
  }
  func.func @transform_4(%arg0: i32) -> (i32, i32) {
    %c0_i32 = arith.constant 0 : i32
    %c0_i32_0 = arith.constant 0 : i32
    %c0_i32_1 = arith.constant 0 : i32
    return %c0_i32, %c0_i32_0 : i32, i32
  }
  func.func @transform_5(%arg0: i32) -> (i32, i32) {
    %c0_i32 = arith.constant 0 : i32
    %c0_i32_0 = arith.constant 0 : i32
    %c0_i32_1 = arith.constant 0 : i32
    return %c0_i32, %c0_i32_0 : i32, i32
  }
  func.func @transform_6(%arg0: i32) -> (i32, i32) {
    %c0_i32 = arith.constant 0 : i32
    %c0_i32_0 = arith.constant 0 : i32
    %c0_i32_1 = arith.constant 0 : i32
    return %c0_i32, %c0_i32_0 : i32, i32
  }
  func.func @transform_7(%arg0: i32) -> (i32, i32) {
    %c0_i32 = arith.constant 0 : i32
    %c0_i32_0 = arith.constant 0 : i32
    %c0_i32_1 = arith.constant 0 : i32
    return %c0_i32, %c0_i32_0 : i32, i32
  }
  func.func @transform_8(%arg0: i32) -> (i32, i32) {
    %c0_i32 = arith.constant 0 : i32
    %c0_i32_0 = arith.constant 0 : i32
    %c0_i32_1 = arith.constant 0 : i32
    return %c0_i32, %c0_i32_0 : i32, i32
  }
  func.func @transform_9(%arg0: i32) -> (i32, i32) {
    %c0_i32 = arith.constant 0 : i32
    %c0_i32_0 = arith.constant 0 : i32
    %c0_i32_1 = arith.constant 0 : i32
    return %c0_i32, %c0_i32_0 : i32, i32
  }
  func.func @transform_10(%arg0: i32) -> (i32, i32) {
    %c0_i32 = arith.constant 0 : i32
    %c0_i32_0 = arith.constant 0 : i32
    %c0_i32_1 = arith.constant 0 : i32
    return %c0_i32, %c0_i32_0 : i32, i32
  }
  func.func @transform_11(%arg0: i32) -> (i32, i32) {
    %c0_i32 = arith.constant 0 : i32
    %c0_i32_0 = arith.constant 0 : i32
    %c0_i32_1 = arith.constant 0 : i32
    return %c0_i32, %c0_i32_0 : i32, i32
  }
  func.func @transform_12(%arg0: i32) -> (i32, i32) {
    %c0_i32 = arith.constant 0 : i32
    %c0_i32_0 = arith.constant 0 : i32
    %c0_i32_1 = arith.constant 0 : i32
    return %c0_i32, %c0_i32_0 : i32, i32
  }
  func.func @transform_13(%arg0: i32) -> (i32, i32) {
    %c0_i32 = arith.constant 0 : i32
    %c0_i32_0 = arith.constant 0 : i32
    %c0_i32_1 = arith.constant 0 : i32
    return %c0_i32, %c0_i32_0 : i32, i32
  }
  func.func @transform_14(%arg0: i32) -> (i32, i32) {
    %c0_i32 = arith.constant 0 : i32
    %c0_i32_0 = arith.constant 0 : i32
    %c0_i32_1 = arith.constant 0 : i32
    return %c0_i32, %c0_i32_0 : i32, i32
  }
  func.func @transform_15(%arg0: i32) -> (i32, i32) {
    %c0_i32 = arith.constant 0 : i32
    %c0_i32_0 = arith.constant 0 : i32
    %c0_i32_1 = arith.constant 0 : i32
    return %c0_i32, %c0_i32_0 : i32, i32
  }
  func.func @transform_16(%arg0: i32) -> (i32, i32) {
    %c0_i32 = arith.constant 0 : i32
    %c0_i32_0 = arith.constant 0 : i32
    %c0_i32_1 = arith.constant 0 : i32
    return %c0_i32, %c0_i32_0 : i32, i32
  }
  func.func @transform_17(%arg0: i32) -> (i32, i32) {
    %c0_i32 = arith.constant 0 : i32
    %c0_i32_0 = arith.constant 0 : i32
    %c0_i32_1 = arith.constant 0 : i32
    return %c0_i32, %c0_i32_0 : i32, i32
  }
  func.func @transform_18(%arg0: i32) -> (i32, i32) {
    %c0_i32 = arith.constant 0 : i32
    %c0_i32_0 = arith.constant 0 : i32
    %c0_i32_1 = arith.constant 0 : i32
    return %c0_i32, %c0_i32_0 : i32, i32
  }
  func.func @transform_19(%arg0: i32) -> (i32, i32) {
    %c0_i32 = arith.constant 0 : i32
    %c0_i32_0 = arith.constant 0 : i32
    %c0_i32_1 = arith.constant 0 : i32
    return %c0_i32, %c0_i32_0 : i32, i32
  }
  func.func @transform_20(%arg0: i32) -> (i32, i32) {
    %c0_i32 = arith.constant 0 : i32
    %c0_i32_0 = arith.constant 0 : i32
    %c0_i32_1 = arith.constant 0 : i32
    return %c0_i32, %c0_i32_0 : i32, i32
  }
  func.func @transform_21(%arg0: i32) -> (i32, i32) {
    %c0_i32 = arith.constant 0 : i32
    %c0_i32_0 = arith.constant 0 : i32
    %c0_i32_1 = arith.constant 0 : i32
    return %c0_i32, %c0_i32_0 : i32, i32
  }
  func.func @transform_22(%arg0: i32) -> (i32, i32, i32) {
    %c0_i32 = arith.constant 0 : i32
    %c0_i32_0 = arith.constant 0 : i32
    %c0_i32_1 = arith.constant 0 : i32
    return %arg0, %c0_i32, %c0_i32_0 : i32, i32, i32
  }
}

module attributes {stable_mosaic.version = 11 : i64} {
  func.func @_conformer_layer_kernel(%arg0: i32, %arg1: memref<1x16x128xf32, #tpu.memory_space<vmem>>, %arg2: memref<1x16x128xf32, #tpu.memory_space<vmem>>, %arg3: memref<128x384xbf16, #tpu.memory_space<vmem>>, %arg4: memref<1x384xf32, #tpu.memory_space<vmem>>, %arg5: memref<128x128xbf16, #tpu.memory_space<vmem>>, %arg6: memref<1x128xf32, #tpu.memory_space<vmem>>, %arg7: memref<1x128xf32, #tpu.memory_space<vmem>>, %arg8: memref<1x128xf32, #tpu.memory_space<vmem>>, %arg9: memref<3x128xf32, #tpu.memory_space<vmem>>, %arg10: memref<1x128xf32, #tpu.memory_space<vmem>>, %arg11: memref<128x256xbf16, #tpu.memory_space<vmem>>, %arg12: memref<1x256xf32, #tpu.memory_space<vmem>>, %arg13: memref<256x128xbf16, #tpu.memory_space<vmem>>, %arg14: memref<1x128xf32, #tpu.memory_space<vmem>>, %arg15: memref<1x128xf32, #tpu.memory_space<vmem>>, %arg16: memref<1x128xf32, #tpu.memory_space<vmem>>, %arg17: memref<128x256xbf16, #tpu.memory_space<vmem>>, %arg18: memref<1x256xf32, #tpu.memory_space<vmem>>, %arg19: memref<256x128xbf16, #tpu.memory_space<vmem>>, %arg20: memref<1x128xf32, #tpu.memory_space<vmem>>, %arg21: memref<1x128xf32, #tpu.memory_space<vmem>>, %arg22: memref<1x128xf32, #tpu.memory_space<vmem>>, %arg23: memref<1x16x128xf32, #tpu.memory_space<vmem>>) attributes {dimension_semantics = [#tpu.dimension_semantics<parallel>], iteration_bounds = array<i64: 2>, scalar_prefetch = 0 : i64, scratch_operands = 0 : i64, tpu.core_type = #tpu.core_type<tc>, window_params = [{transform_indices = @transform_0, window_bounds = array<i64: 1, 16, 128>}, {transform_indices = @transform_1, window_bounds = array<i64: 1, 16, 128>}, {pipeline_mode = #tpu.pipeline_mode<synchronous>, transform_indices = @transform_2, window_bounds = array<i64: 128, 384>}, {pipeline_mode = #tpu.pipeline_mode<synchronous>, transform_indices = @transform_3, window_bounds = array<i64: 1, 384>}, {pipeline_mode = #tpu.pipeline_mode<synchronous>, transform_indices = @transform_4, window_bounds = array<i64: 128, 128>}, {pipeline_mode = #tpu.pipeline_mode<synchronous>, transform_indices = @transform_5, window_bounds = array<i64: 1, 128>}, {pipeline_mode = #tpu.pipeline_mode<synchronous>, transform_indices = @transform_6, window_bounds = array<i64: 1, 128>}, {pipeline_mode = #tpu.pipeline_mode<synchronous>, transform_indices = @transform_7, window_bounds = array<i64: 1, 128>}, {pipeline_mode = #tpu.pipeline_mode<synchronous>, transform_indices = @transform_8, window_bounds = array<i64: 3, 128>}, {pipeline_mode = #tpu.pipeline_mode<synchronous>, transform_indices = @transform_9, window_bounds = array<i64: 1, 128>}, {pipeline_mode = #tpu.pipeline_mode<synchronous>, transform_indices = @transform_10, window_bounds = array<i64: 128, 256>}, {pipeline_mode = #tpu.pipeline_mode<synchronous>, transform_indices = @transform_11, window_bounds = array<i64: 1, 256>}, {pipeline_mode = #tpu.pipeline_mode<synchronous>, transform_indices = @transform_12, window_bounds = array<i64: 256, 128>}, {pipeline_mode = #tpu.pipeline_mode<synchronous>, transform_indices = @transform_13, window_bounds = array<i64: 1, 128>}, {pipeline_mode = #tpu.pipeline_mode<synchronous>, transform_indices = @transform_14, window_bounds = array<i64: 1, 128>}, {pipeline_mode = #tpu.pipeline_mode<synchronous>, transform_indices = @transform_15, window_bounds = array<i64: 1, 128>}, {pipeline_mode = #tpu.pipeline_mode<synchronous>, transform_indices = @transform_16, window_bounds = array<i64: 128, 256>}, {pipeline_mode = #tpu.pipeline_mode<synchronous>, transform_indices = @transform_17, window_bounds = array<i64: 1, 256>}, {pipeline_mode = #tpu.pipeline_mode<synchronous>, transform_indices = @transform_18, window_bounds = array<i64: 256, 128>}, {pipeline_mode = #tpu.pipeline_mode<synchronous>, transform_indices = @transform_19, window_bounds = array<i64: 1, 128>}, {pipeline_mode = #tpu.pipeline_mode<synchronous>, transform_indices = @transform_20, window_bounds = array<i64: 1, 128>}, {pipeline_mode = #tpu.pipeline_mode<synchronous>, transform_indices = @transform_21, window_bounds = array<i64: 1, 128>}, {transform_indices = @transform_22, window_bounds = array<i64: 1, 16, 128>}]} {
    %c0 = arith.constant 0 : index
    %c0_0 = arith.constant 0 : index
    %c0_1 = arith.constant 0 : index
    %0 = vector.load %arg1[%c0, %c0_0, %c0_1] : memref<1x16x128xf32, #tpu.memory_space<vmem>>, vector<1x16x128xf32>
    %1 = vector.shape_cast %0 : vector<1x16x128xf32> to vector<16x128xf32>
    %c0_2 = arith.constant 0 : index
    %c0_3 = arith.constant 0 : index
    %c0_4 = arith.constant 0 : index
    %2 = vector.load %arg2[%c0_2, %c0_3, %c0_4] : memref<1x16x128xf32, #tpu.memory_space<vmem>>, vector<1x16x128xf32>
    %3 = vector.shape_cast %2 : vector<1x16x128xf32> to vector<16x128xf32>
    %4 = arith.addf %1, %3 : vector<16x128xf32>
    %5 = arith.truncf %4 : vector<16x128xf32> to vector<16x128xbf16>
    %c0_5 = arith.constant 0 : index
    %c0_6 = arith.constant 0 : index
    %6 = vector.load %arg3[%c0_5, %c0_6] : memref<128x384xbf16, #tpu.memory_space<vmem>>, vector<128x384xbf16>
    %cst = arith.constant dense<0.000000e+00> : vector<16x384xf32>
    %7 = tpu.matmul %5, %6, %cst {dimension_numbers = #tpu.dot_dimension_numbers<[1], [0], [0], [1], [0, 0, 1, 1], [], []>} : vector<16x128xbf16>, vector<128x384xbf16>, vector<16x384xf32> -> vector<16x384xf32>
    %c0_7 = arith.constant 0 : index
    %c0_8 = arith.constant 0 : index
    %8 = vector.load %arg4[%c0_7, %c0_8] : memref<1x384xf32, #tpu.memory_space<vmem>>, vector<1x384xf32>
    %9 = vector.broadcast %8 : vector<1x384xf32> to vector<16x384xf32>
    %10 = arith.addf %7, %9 : vector<16x384xf32>
    %11 = vector.extract_strided_slice %10 {offsets = [0, 0], sizes = [16, 32], strides = [1, 1]} : vector<16x384xf32> to vector<16x32xf32>
    %12 = vector.extract_strided_slice %10 {offsets = [0, 128], sizes = [16, 32], strides = [1, 1]} : vector<16x384xf32> to vector<16x32xf32>
    %13 = vector.extract_strided_slice %10 {offsets = [0, 256], sizes = [16, 32], strides = [1, 1]} : vector<16x384xf32> to vector<16x32xf32>
    %14 = arith.truncf %11 : vector<16x32xf32> to vector<16x32xbf16>
    %15 = arith.truncf %12 : vector<16x32xf32> to vector<16x32xbf16>
    %cst_9 = arith.constant dense<0.000000e+00> : vector<16x16xf32>
    %16 = tpu.matmul %14, %15, %cst_9 {dimension_numbers = #tpu.dot_dimension_numbers<[1], [1], [0], [0], [0, 0, 1, 0], [], []>} : vector<16x32xbf16>, vector<16x32xbf16>, vector<16x16xf32> -> vector<16x16xf32>
    %cst_10 = arith.constant 0.176776692 : f32
    %17 = vector.broadcast %cst_10 : f32 to vector<16x16xf32>
    %18 = arith.mulf %16, %17 : vector<16x16xf32>
    %cst_11 = arith.constant dense<0xFF800000> : vector<16xf32>
    %19 = vector.multi_reduction <maximumf>, %18, %cst_11 [1] : vector<16x16xf32> to vector<16xf32>
    %20 = vector.shape_cast %19 : vector<16xf32> to vector<16x1xf32>
    %21 = vector.broadcast %20 : vector<16x1xf32> to vector<16x16xf32>
    %22 = arith.subf %18, %21 : vector<16x16xf32>
    %23 = math.exp %22 : vector<16x16xf32>
    %cst_12 = arith.constant dense<0.000000e+00> : vector<16xf32>
    %24 = vector.multi_reduction <add>, %23, %cst_12 [1] : vector<16x16xf32> to vector<16xf32>
    %25 = vector.shape_cast %24 : vector<16xf32> to vector<16x1xf32>
    %26 = tpu.reciprocal %25 {approx = true} : vector<16x1xf32> -> vector<16x1xf32>
    %27 = vector.broadcast %26 : vector<16x1xf32> to vector<16x16xf32>
    %28 = arith.mulf %23, %27 : vector<16x16xf32>
    %29 = arith.truncf %28 : vector<16x16xf32> to vector<16x16xbf16>
    %30 = arith.truncf %13 : vector<16x32xf32> to vector<16x32xbf16>
    %cst_13 = arith.constant dense<0.000000e+00> : vector<16x32xf32>
    %31 = tpu.matmul %29, %30, %cst_13 {dimension_numbers = #tpu.dot_dimension_numbers<[1], [0], [0], [1], [0, 0, 1, 1], [], []>} : vector<16x16xbf16>, vector<16x32xbf16>, vector<16x32xf32> -> vector<16x32xf32>
    %32 = vector.extract_strided_slice %10 {offsets = [0, 32], sizes = [16, 32], strides = [1, 1]} : vector<16x384xf32> to vector<16x32xf32>
    %33 = vector.extract_strided_slice %10 {offsets = [0, 160], sizes = [16, 32], strides = [1, 1]} : vector<16x384xf32> to vector<16x32xf32>
    %34 = vector.extract_strided_slice %10 {offsets = [0, 288], sizes = [16, 32], strides = [1, 1]} : vector<16x384xf32> to vector<16x32xf32>
    %35 = arith.truncf %32 : vector<16x32xf32> to vector<16x32xbf16>
    %36 = arith.truncf %33 : vector<16x32xf32> to vector<16x32xbf16>
    %cst_14 = arith.constant dense<0.000000e+00> : vector<16x16xf32>
    %37 = tpu.matmul %35, %36, %cst_14 {dimension_numbers = #tpu.dot_dimension_numbers<[1], [1], [0], [0], [0, 0, 1, 0], [], []>} : vector<16x32xbf16>, vector<16x32xbf16>, vector<16x16xf32> -> vector<16x16xf32>
    %cst_15 = arith.constant 0.176776692 : f32
    %38 = vector.broadcast %cst_15 : f32 to vector<16x16xf32>
    %39 = arith.mulf %37, %38 : vector<16x16xf32>
    %cst_16 = arith.constant dense<0xFF800000> : vector<16xf32>
    %40 = vector.multi_reduction <maximumf>, %39, %cst_16 [1] : vector<16x16xf32> to vector<16xf32>
    %41 = vector.shape_cast %40 : vector<16xf32> to vector<16x1xf32>
    %42 = vector.broadcast %41 : vector<16x1xf32> to vector<16x16xf32>
    %43 = arith.subf %39, %42 : vector<16x16xf32>
    %44 = math.exp %43 : vector<16x16xf32>
    %cst_17 = arith.constant dense<0.000000e+00> : vector<16xf32>
    %45 = vector.multi_reduction <add>, %44, %cst_17 [1] : vector<16x16xf32> to vector<16xf32>
    %46 = vector.shape_cast %45 : vector<16xf32> to vector<16x1xf32>
    %47 = tpu.reciprocal %46 {approx = true} : vector<16x1xf32> -> vector<16x1xf32>
    %48 = vector.broadcast %47 : vector<16x1xf32> to vector<16x16xf32>
    %49 = arith.mulf %44, %48 : vector<16x16xf32>
    %50 = arith.truncf %49 : vector<16x16xf32> to vector<16x16xbf16>
    %51 = arith.truncf %34 : vector<16x32xf32> to vector<16x32xbf16>
    %cst_18 = arith.constant dense<0.000000e+00> : vector<16x32xf32>
    %52 = tpu.matmul %50, %51, %cst_18 {dimension_numbers = #tpu.dot_dimension_numbers<[1], [0], [0], [1], [0, 0, 1, 1], [], []>} : vector<16x16xbf16>, vector<16x32xbf16>, vector<16x32xf32> -> vector<16x32xf32>
    %53 = vector.extract_strided_slice %10 {offsets = [0, 64], sizes = [16, 32], strides = [1, 1]} : vector<16x384xf32> to vector<16x32xf32>
    %54 = vector.extract_strided_slice %10 {offsets = [0, 192], sizes = [16, 32], strides = [1, 1]} : vector<16x384xf32> to vector<16x32xf32>
    %55 = vector.extract_strided_slice %10 {offsets = [0, 320], sizes = [16, 32], strides = [1, 1]} : vector<16x384xf32> to vector<16x32xf32>
    %56 = arith.truncf %53 : vector<16x32xf32> to vector<16x32xbf16>
    %57 = arith.truncf %54 : vector<16x32xf32> to vector<16x32xbf16>
    %cst_19 = arith.constant dense<0.000000e+00> : vector<16x16xf32>
    %58 = tpu.matmul %56, %57, %cst_19 {dimension_numbers = #tpu.dot_dimension_numbers<[1], [1], [0], [0], [0, 0, 1, 0], [], []>} : vector<16x32xbf16>, vector<16x32xbf16>, vector<16x16xf32> -> vector<16x16xf32>
    %cst_20 = arith.constant 0.176776692 : f32
    %59 = vector.broadcast %cst_20 : f32 to vector<16x16xf32>
    %60 = arith.mulf %58, %59 : vector<16x16xf32>
    %cst_21 = arith.constant dense<0xFF800000> : vector<16xf32>
    %61 = vector.multi_reduction <maximumf>, %60, %cst_21 [1] : vector<16x16xf32> to vector<16xf32>
    %62 = vector.shape_cast %61 : vector<16xf32> to vector<16x1xf32>
    %63 = vector.broadcast %62 : vector<16x1xf32> to vector<16x16xf32>
    %64 = arith.subf %60, %63 : vector<16x16xf32>
    %65 = math.exp %64 : vector<16x16xf32>
    %cst_22 = arith.constant dense<0.000000e+00> : vector<16xf32>
    %66 = vector.multi_reduction <add>, %65, %cst_22 [1] : vector<16x16xf32> to vector<16xf32>
    %67 = vector.shape_cast %66 : vector<16xf32> to vector<16x1xf32>
    %68 = tpu.reciprocal %67 {approx = true} : vector<16x1xf32> -> vector<16x1xf32>
    %69 = vector.broadcast %68 : vector<16x1xf32> to vector<16x16xf32>
    %70 = arith.mulf %65, %69 : vector<16x16xf32>
    %71 = arith.truncf %70 : vector<16x16xf32> to vector<16x16xbf16>
    %72 = arith.truncf %55 : vector<16x32xf32> to vector<16x32xbf16>
    %cst_23 = arith.constant dense<0.000000e+00> : vector<16x32xf32>
    %73 = tpu.matmul %71, %72, %cst_23 {dimension_numbers = #tpu.dot_dimension_numbers<[1], [0], [0], [1], [0, 0, 1, 1], [], []>} : vector<16x16xbf16>, vector<16x32xbf16>, vector<16x32xf32> -> vector<16x32xf32>
    %74 = vector.extract_strided_slice %10 {offsets = [0, 96], sizes = [16, 32], strides = [1, 1]} : vector<16x384xf32> to vector<16x32xf32>
    %75 = vector.extract_strided_slice %10 {offsets = [0, 224], sizes = [16, 32], strides = [1, 1]} : vector<16x384xf32> to vector<16x32xf32>
    %76 = vector.extract_strided_slice %10 {offsets = [0, 352], sizes = [16, 32], strides = [1, 1]} : vector<16x384xf32> to vector<16x32xf32>
    %77 = arith.truncf %74 : vector<16x32xf32> to vector<16x32xbf16>
    %78 = arith.truncf %75 : vector<16x32xf32> to vector<16x32xbf16>
    %cst_24 = arith.constant dense<0.000000e+00> : vector<16x16xf32>
    %79 = tpu.matmul %77, %78, %cst_24 {dimension_numbers = #tpu.dot_dimension_numbers<[1], [1], [0], [0], [0, 0, 1, 0], [], []>} : vector<16x32xbf16>, vector<16x32xbf16>, vector<16x16xf32> -> vector<16x16xf32>
    %cst_25 = arith.constant 0.176776692 : f32
    %80 = vector.broadcast %cst_25 : f32 to vector<16x16xf32>
    %81 = arith.mulf %79, %80 : vector<16x16xf32>
    %cst_26 = arith.constant dense<0xFF800000> : vector<16xf32>
    %82 = vector.multi_reduction <maximumf>, %81, %cst_26 [1] : vector<16x16xf32> to vector<16xf32>
    %83 = vector.shape_cast %82 : vector<16xf32> to vector<16x1xf32>
    %84 = vector.broadcast %83 : vector<16x1xf32> to vector<16x16xf32>
    %85 = arith.subf %81, %84 : vector<16x16xf32>
    %86 = math.exp %85 : vector<16x16xf32>
    %cst_27 = arith.constant dense<0.000000e+00> : vector<16xf32>
    %87 = vector.multi_reduction <add>, %86, %cst_27 [1] : vector<16x16xf32> to vector<16xf32>
    %88 = vector.shape_cast %87 : vector<16xf32> to vector<16x1xf32>
    %89 = tpu.reciprocal %88 {approx = true} : vector<16x1xf32> -> vector<16x1xf32>
    %90 = vector.broadcast %89 : vector<16x1xf32> to vector<16x16xf32>
    %91 = arith.mulf %86, %90 : vector<16x16xf32>
    %92 = arith.truncf %91 : vector<16x16xf32> to vector<16x16xbf16>
    %93 = arith.truncf %76 : vector<16x32xf32> to vector<16x32xbf16>
    %cst_28 = arith.constant dense<0.000000e+00> : vector<16x32xf32>
    %94 = tpu.matmul %92, %93, %cst_28 {dimension_numbers = #tpu.dot_dimension_numbers<[1], [0], [0], [1], [0, 0, 1, 1], [], []>} : vector<16x16xbf16>, vector<16x32xbf16>, vector<16x32xf32> -> vector<16x32xf32>
    %95 = tpu.concatenate %31, %52, %73, %94 in 1 : vector<16x32xf32>, vector<16x32xf32>, vector<16x32xf32>, vector<16x32xf32> -> vector<16x128xf32>
    %96 = arith.truncf %95 : vector<16x128xf32> to vector<16x128xbf16>
    %c0_29 = arith.constant 0 : index
    %c0_30 = arith.constant 0 : index
    %97 = vector.load %arg5[%c0_29, %c0_30] : memref<128x128xbf16, #tpu.memory_space<vmem>>, vector<128x128xbf16>
    %cst_31 = arith.constant dense<0.000000e+00> : vector<16x128xf32>
    %98 = tpu.matmul %96, %97, %cst_31 {dimension_numbers = #tpu.dot_dimension_numbers<[1], [0], [0], [1], [0, 0, 1, 1], [], []>} : vector<16x128xbf16>, vector<128x128xbf16>, vector<16x128xf32> -> vector<16x128xf32>
    %c0_32 = arith.constant 0 : index
    %c0_33 = arith.constant 0 : index
    %99 = vector.load %arg6[%c0_32, %c0_33] : memref<1x128xf32, #tpu.memory_space<vmem>>, vector<1x128xf32>
    %100 = vector.broadcast %99 : vector<1x128xf32> to vector<16x128xf32>
    %101 = arith.addf %98, %100 : vector<16x128xf32>
    %102 = arith.addf %4, %101 : vector<16x128xf32>
    %cst_34 = arith.constant dense<0.000000e+00> : vector<16xf32>
    %103 = vector.multi_reduction <add>, %102, %cst_34 [1] : vector<16x128xf32> to vector<16xf32>
    %104 = vector.shape_cast %103 : vector<16xf32> to vector<16x1xf32>
    %cst_35 = arith.constant 1.280000e+02 : f32
    %105 = vector.broadcast %cst_35 : f32 to vector<16x1xf32>
    %106 = arith.divf %104, %105 : vector<16x1xf32>
    %107 = vector.broadcast %106 : vector<16x1xf32> to vector<16x128xf32>
    %108 = arith.subf %102, %107 : vector<16x128xf32>
    %109 = arith.mulf %108, %108 : vector<16x128xf32>
    %cst_36 = arith.constant dense<0.000000e+00> : vector<16xf32>
    %110 = vector.multi_reduction <add>, %109, %cst_36 [1] : vector<16x128xf32> to vector<16xf32>
    %111 = vector.shape_cast %110 : vector<16xf32> to vector<16x1xf32>
    %cst_37 = arith.constant 1.280000e+02 : f32
    %112 = vector.broadcast %cst_37 : f32 to vector<16x1xf32>
    %113 = arith.divf %111, %112 : vector<16x1xf32>
    %114 = vector.broadcast %106 : vector<16x1xf32> to vector<16x128xf32>
    %115 = arith.subf %102, %114 : vector<16x128xf32>
    %cst_38 = arith.constant 9.99999974E-6 : f32
    %116 = vector.broadcast %cst_38 : f32 to vector<16x1xf32>
    %117 = arith.addf %113, %116 : vector<16x1xf32>
    %118 = math.rsqrt %117 : vector<16x1xf32>
    %119 = vector.broadcast %118 : vector<16x1xf32> to vector<16x128xf32>
    %120 = arith.mulf %115, %119 : vector<16x128xf32>
    %c0_39 = arith.constant 0 : index
    %c0_40 = arith.constant 0 : index
    %121 = vector.load %arg7[%c0_39, %c0_40] : memref<1x128xf32, #tpu.memory_space<vmem>>, vector<1x128xf32>
    %122 = vector.broadcast %121 : vector<1x128xf32> to vector<16x128xf32>
    %123 = arith.mulf %120, %122 : vector<16x128xf32>
    %c0_41 = arith.constant 0 : index
    %c0_42 = arith.constant 0 : index
    %124 = vector.load %arg8[%c0_41, %c0_42] : memref<1x128xf32, #tpu.memory_space<vmem>>, vector<1x128xf32>
    %125 = vector.broadcast %124 : vector<1x128xf32> to vector<16x128xf32>
    %126 = arith.addf %123, %125 : vector<16x128xf32>
    %c0_43 = arith.constant 0 : index
    %c0_44 = arith.constant 0 : index
    %127 = vector.load %arg9[%c0_43, %c0_44] : memref<3x128xf32, #tpu.memory_space<vmem>>, vector<3x128xf32>
    %128 = tpu.iota {dimensions = array<i32: 0>} : vector<16x128xi32>
    %cst_45 = arith.constant 0.000000e+00 : f32
    %129 = vector.broadcast %cst_45 : f32 to vector<16x128xf32>
    %c1_i32 = arith.constant 1 : i32
    %130 = tpu.dynamic_rotate %126 by %c1_i32 dim 0 : vector<16x128xf32>, i32 -> vector<16x128xf32>
    %c1_i32_46 = arith.constant 1 : i32
    %131 = vector.broadcast %c1_i32_46 : i32 to vector<16x128xi32>
    %132 = arith.cmpi slt, %128, %131 : vector<16x128xi32>
    %cst_47 = arith.constant 0.000000e+00 : f32
    %133 = vector.broadcast %cst_47 : f32 to vector<16x128xf32>
    %134 = arith.select %132, %133, %130 : vector<16x128xi1>, vector<16x128xf32>
    %135 = vector.extract_strided_slice %127 {offsets = [0, 0], sizes = [1, 128], strides = [1, 1]} : vector<3x128xf32> to vector<1x128xf32>
    %136 = vector.shape_cast %135 : vector<1x128xf32> to vector<128xf32>
    %137 = vector.shape_cast %136 : vector<128xf32> to vector<1x128xf32>
    %138 = vector.broadcast %137 : vector<1x128xf32> to vector<16x128xf32>
    %139 = arith.mulf %134, %138 : vector<16x128xf32>
    %140 = arith.addf %129, %139 : vector<16x128xf32>
    %141 = vector.extract_strided_slice %127 {offsets = [1, 0], sizes = [1, 128], strides = [1, 1]} : vector<3x128xf32> to vector<1x128xf32>
    %142 = vector.shape_cast %141 : vector<1x128xf32> to vector<128xf32>
    %143 = vector.shape_cast %142 : vector<128xf32> to vector<1x128xf32>
    %144 = vector.broadcast %143 : vector<1x128xf32> to vector<16x128xf32>
    %145 = arith.mulf %126, %144 : vector<16x128xf32>
    %146 = arith.addf %140, %145 : vector<16x128xf32>
    %c15_i32 = arith.constant 15 : i32
    %147 = tpu.dynamic_rotate %126 by %c15_i32 dim 0 : vector<16x128xf32>, i32 -> vector<16x128xf32>
    %c15_i32_48 = arith.constant 15 : i32
    %148 = vector.broadcast %c15_i32_48 : i32 to vector<16x128xi32>
    %149 = arith.cmpi sge, %128, %148 : vector<16x128xi32>
    %cst_49 = arith.constant 0.000000e+00 : f32
    %150 = vector.broadcast %cst_49 : f32 to vector<16x128xf32>
    %151 = arith.select %149, %150, %147 : vector<16x128xi1>, vector<16x128xf32>
    %152 = vector.extract_strided_slice %127 {offsets = [2, 0], sizes = [1, 128], strides = [1, 1]} : vector<3x128xf32> to vector<1x128xf32>
    %153 = vector.shape_cast %152 : vector<1x128xf32> to vector<128xf32>
    %154 = vector.shape_cast %153 : vector<128xf32> to vector<1x128xf32>
    %155 = vector.broadcast %154 : vector<1x128xf32> to vector<16x128xf32>
    %156 = arith.mulf %151, %155 : vector<16x128xf32>
    %157 = arith.addf %146, %156 : vector<16x128xf32>
    %c0_50 = arith.constant 0 : index
    %c0_51 = arith.constant 0 : index
    %158 = vector.load %arg10[%c0_50, %c0_51] : memref<1x128xf32, #tpu.memory_space<vmem>>, vector<1x128xf32>
    %159 = vector.broadcast %158 : vector<1x128xf32> to vector<16x128xf32>
    %160 = arith.addf %157, %159 : vector<16x128xf32>
    %161 = arith.truncf %160 : vector<16x128xf32> to vector<16x128xbf16>
    %c0_52 = arith.constant 0 : index
    %c0_53 = arith.constant 0 : index
    %162 = vector.load %arg11[%c0_52, %c0_53] : memref<128x256xbf16, #tpu.memory_space<vmem>>, vector<128x256xbf16>
    %cst_54 = arith.constant dense<0.000000e+00> : vector<16x256xf32>
    %163 = tpu.matmul %161, %162, %cst_54 {dimension_numbers = #tpu.dot_dimension_numbers<[1], [0], [0], [1], [0, 0, 1, 1], [], []>} : vector<16x128xbf16>, vector<128x256xbf16>, vector<16x256xf32> -> vector<16x256xf32>
    %c0_55 = arith.constant 0 : index
    %c0_56 = arith.constant 0 : index
    %164 = vector.load %arg12[%c0_55, %c0_56] : memref<1x256xf32, #tpu.memory_space<vmem>>, vector<1x256xf32>
    %165 = vector.broadcast %164 : vector<1x256xf32> to vector<16x256xf32>
    %166 = arith.addf %163, %165 : vector<16x256xf32>
    %167 = arith.mulf %166, %166 : vector<16x256xf32>
    %168 = arith.mulf %166, %167 : vector<16x256xf32>
    %cst_57 = arith.constant 4.471500e-02 : f32
    %169 = vector.broadcast %cst_57 : f32 to vector<16x256xf32>
    %170 = arith.mulf %169, %168 : vector<16x256xf32>
    %171 = arith.addf %166, %170 : vector<16x256xf32>
    %cst_58 = arith.constant 0.797884583 : f32
    %172 = vector.broadcast %cst_58 : f32 to vector<16x256xf32>
    %173 = arith.mulf %172, %171 : vector<16x256xf32>
    %174 = math.tanh %173 : vector<16x256xf32>
    %cst_59 = arith.constant 1.000000e+00 : f32
    %175 = vector.broadcast %cst_59 : f32 to vector<16x256xf32>
    %176 = arith.addf %175, %174 : vector<16x256xf32>
    %cst_60 = arith.constant 5.000000e-01 : f32
    %177 = vector.broadcast %cst_60 : f32 to vector<16x256xf32>
    %178 = arith.mulf %177, %176 : vector<16x256xf32>
    %179 = arith.mulf %166, %178 : vector<16x256xf32>
    %180 = arith.truncf %179 : vector<16x256xf32> to vector<16x256xbf16>
    %c0_61 = arith.constant 0 : index
    %c0_62 = arith.constant 0 : index
    %181 = vector.load %arg13[%c0_61, %c0_62] : memref<256x128xbf16, #tpu.memory_space<vmem>>, vector<256x128xbf16>
    %cst_63 = arith.constant dense<0.000000e+00> : vector<16x128xf32>
    %182 = tpu.matmul %180, %181, %cst_63 {dimension_numbers = #tpu.dot_dimension_numbers<[1], [0], [0], [1], [0, 0, 1, 1], [], []>} : vector<16x256xbf16>, vector<256x128xbf16>, vector<16x128xf32> -> vector<16x128xf32>
    %c0_64 = arith.constant 0 : index
    %c0_65 = arith.constant 0 : index
    %183 = vector.load %arg14[%c0_64, %c0_65] : memref<1x128xf32, #tpu.memory_space<vmem>>, vector<1x128xf32>
    %184 = vector.broadcast %183 : vector<1x128xf32> to vector<16x128xf32>
    %185 = arith.addf %182, %184 : vector<16x128xf32>
    %186 = arith.addf %126, %185 : vector<16x128xf32>
    %cst_66 = arith.constant dense<0.000000e+00> : vector<16xf32>
    %187 = vector.multi_reduction <add>, %186, %cst_66 [1] : vector<16x128xf32> to vector<16xf32>
    %188 = vector.shape_cast %187 : vector<16xf32> to vector<16x1xf32>
    %cst_67 = arith.constant 1.280000e+02 : f32
    %189 = vector.broadcast %cst_67 : f32 to vector<16x1xf32>
    %190 = arith.divf %188, %189 : vector<16x1xf32>
    %191 = vector.broadcast %190 : vector<16x1xf32> to vector<16x128xf32>
    %192 = arith.subf %186, %191 : vector<16x128xf32>
    %193 = arith.mulf %192, %192 : vector<16x128xf32>
    %cst_68 = arith.constant dense<0.000000e+00> : vector<16xf32>
    %194 = vector.multi_reduction <add>, %193, %cst_68 [1] : vector<16x128xf32> to vector<16xf32>
    %195 = vector.shape_cast %194 : vector<16xf32> to vector<16x1xf32>
    %cst_69 = arith.constant 1.280000e+02 : f32
    %196 = vector.broadcast %cst_69 : f32 to vector<16x1xf32>
    %197 = arith.divf %195, %196 : vector<16x1xf32>
    %198 = vector.broadcast %190 : vector<16x1xf32> to vector<16x128xf32>
    %199 = arith.subf %186, %198 : vector<16x128xf32>
    %cst_70 = arith.constant 9.99999974E-6 : f32
    %200 = vector.broadcast %cst_70 : f32 to vector<16x1xf32>
    %201 = arith.addf %197, %200 : vector<16x1xf32>
    %202 = math.rsqrt %201 : vector<16x1xf32>
    %203 = vector.broadcast %202 : vector<16x1xf32> to vector<16x128xf32>
    %204 = arith.mulf %199, %203 : vector<16x128xf32>
    %c0_71 = arith.constant 0 : index
    %c0_72 = arith.constant 0 : index
    %205 = vector.load %arg15[%c0_71, %c0_72] : memref<1x128xf32, #tpu.memory_space<vmem>>, vector<1x128xf32>
    %206 = vector.broadcast %205 : vector<1x128xf32> to vector<16x128xf32>
    %207 = arith.mulf %204, %206 : vector<16x128xf32>
    %c0_73 = arith.constant 0 : index
    %c0_74 = arith.constant 0 : index
    %208 = vector.load %arg16[%c0_73, %c0_74] : memref<1x128xf32, #tpu.memory_space<vmem>>, vector<1x128xf32>
    %209 = vector.broadcast %208 : vector<1x128xf32> to vector<16x128xf32>
    %210 = arith.addf %207, %209 : vector<16x128xf32>
    %211 = arith.truncf %210 : vector<16x128xf32> to vector<16x128xbf16>
    %c0_75 = arith.constant 0 : index
    %c0_76 = arith.constant 0 : index
    %212 = vector.load %arg17[%c0_75, %c0_76] : memref<128x256xbf16, #tpu.memory_space<vmem>>, vector<128x256xbf16>
    %cst_77 = arith.constant dense<0.000000e+00> : vector<16x256xf32>
    %213 = tpu.matmul %211, %212, %cst_77 {dimension_numbers = #tpu.dot_dimension_numbers<[1], [0], [0], [1], [0, 0, 1, 1], [], []>} : vector<16x128xbf16>, vector<128x256xbf16>, vector<16x256xf32> -> vector<16x256xf32>
    %c0_78 = arith.constant 0 : index
    %c0_79 = arith.constant 0 : index
    %214 = vector.load %arg18[%c0_78, %c0_79] : memref<1x256xf32, #tpu.memory_space<vmem>>, vector<1x256xf32>
    %215 = vector.broadcast %214 : vector<1x256xf32> to vector<16x256xf32>
    %216 = arith.addf %213, %215 : vector<16x256xf32>
    %217 = arith.mulf %216, %216 : vector<16x256xf32>
    %218 = arith.mulf %216, %217 : vector<16x256xf32>
    %cst_80 = arith.constant 4.471500e-02 : f32
    %219 = vector.broadcast %cst_80 : f32 to vector<16x256xf32>
    %220 = arith.mulf %219, %218 : vector<16x256xf32>
    %221 = arith.addf %216, %220 : vector<16x256xf32>
    %cst_81 = arith.constant 0.797884583 : f32
    %222 = vector.broadcast %cst_81 : f32 to vector<16x256xf32>
    %223 = arith.mulf %222, %221 : vector<16x256xf32>
    %224 = math.tanh %223 : vector<16x256xf32>
    %cst_82 = arith.constant 1.000000e+00 : f32
    %225 = vector.broadcast %cst_82 : f32 to vector<16x256xf32>
    %226 = arith.addf %225, %224 : vector<16x256xf32>
    %cst_83 = arith.constant 5.000000e-01 : f32
    %227 = vector.broadcast %cst_83 : f32 to vector<16x256xf32>
    %228 = arith.mulf %227, %226 : vector<16x256xf32>
    %229 = arith.mulf %216, %228 : vector<16x256xf32>
    %230 = arith.truncf %229 : vector<16x256xf32> to vector<16x256xbf16>
    %c0_84 = arith.constant 0 : index
    %c0_85 = arith.constant 0 : index
    %231 = vector.load %arg19[%c0_84, %c0_85] : memref<256x128xbf16, #tpu.memory_space<vmem>>, vector<256x128xbf16>
    %cst_86 = arith.constant dense<0.000000e+00> : vector<16x128xf32>
    %232 = tpu.matmul %230, %231, %cst_86 {dimension_numbers = #tpu.dot_dimension_numbers<[1], [0], [0], [1], [0, 0, 1, 1], [], []>} : vector<16x256xbf16>, vector<256x128xbf16>, vector<16x128xf32> -> vector<16x128xf32>
    %c0_87 = arith.constant 0 : index
    %c0_88 = arith.constant 0 : index
    %233 = vector.load %arg20[%c0_87, %c0_88] : memref<1x128xf32, #tpu.memory_space<vmem>>, vector<1x128xf32>
    %234 = vector.broadcast %233 : vector<1x128xf32> to vector<16x128xf32>
    %235 = arith.addf %232, %234 : vector<16x128xf32>
    %236 = arith.addf %210, %235 : vector<16x128xf32>
    %cst_89 = arith.constant dense<0.000000e+00> : vector<16xf32>
    %237 = vector.multi_reduction <add>, %236, %cst_89 [1] : vector<16x128xf32> to vector<16xf32>
    %238 = vector.shape_cast %237 : vector<16xf32> to vector<16x1xf32>
    %cst_90 = arith.constant 1.280000e+02 : f32
    %239 = vector.broadcast %cst_90 : f32 to vector<16x1xf32>
    %240 = arith.divf %238, %239 : vector<16x1xf32>
    %241 = vector.broadcast %240 : vector<16x1xf32> to vector<16x128xf32>
    %242 = arith.subf %236, %241 : vector<16x128xf32>
    %243 = arith.mulf %242, %242 : vector<16x128xf32>
    %cst_91 = arith.constant dense<0.000000e+00> : vector<16xf32>
    %244 = vector.multi_reduction <add>, %243, %cst_91 [1] : vector<16x128xf32> to vector<16xf32>
    %245 = vector.shape_cast %244 : vector<16xf32> to vector<16x1xf32>
    %cst_92 = arith.constant 1.280000e+02 : f32
    %246 = vector.broadcast %cst_92 : f32 to vector<16x1xf32>
    %247 = arith.divf %245, %246 : vector<16x1xf32>
    %248 = vector.broadcast %240 : vector<16x1xf32> to vector<16x128xf32>
    %249 = arith.subf %236, %248 : vector<16x128xf32>
    %cst_93 = arith.constant 9.99999974E-6 : f32
    %250 = vector.broadcast %cst_93 : f32 to vector<16x1xf32>
    %251 = arith.addf %247, %250 : vector<16x1xf32>
    %252 = math.rsqrt %251 : vector<16x1xf32>
    %253 = vector.broadcast %252 : vector<16x1xf32> to vector<16x128xf32>
    %254 = arith.mulf %249, %253 : vector<16x128xf32>
    %c0_94 = arith.constant 0 : index
    %c0_95 = arith.constant 0 : index
    %255 = vector.load %arg21[%c0_94, %c0_95] : memref<1x128xf32, #tpu.memory_space<vmem>>, vector<1x128xf32>
    %256 = vector.broadcast %255 : vector<1x128xf32> to vector<16x128xf32>
    %257 = arith.mulf %254, %256 : vector<16x128xf32>
    %c0_96 = arith.constant 0 : index
    %c0_97 = arith.constant 0 : index
    %258 = vector.load %arg22[%c0_96, %c0_97] : memref<1x128xf32, #tpu.memory_space<vmem>>, vector<1x128xf32>
    %259 = vector.broadcast %258 : vector<1x128xf32> to vector<16x128xf32>
    %260 = arith.addf %257, %259 : vector<16x128xf32>
    %c0_98 = arith.constant 0 : index
    %c0_99 = arith.constant 0 : index
    %c0_100 = arith.constant 0 : index
    %261 = vector.load %arg23[%c0_98, %c0_99, %c0_100] : memref<1x16x128xf32, #tpu.memory_space<vmem>>, vector<1x16x128xf32>
    %262 = vector.shape_cast %261 : vector<1x16x128xf32> to vector<16x128xf32>
    %263 = vector.shape_cast %260 : vector<16x128xf32> to vector<1x16x128xf32>
    tpu.vector_store %arg23[%c0_98, %c0_99, %c0_100], %263 {strides = array<i32>} : memref<1x16x128xf32, #tpu.memory_space<vmem>>, vector<1x16x128xf32>,
    return
  }
  func.func @transform_0(%arg0: i32) -> (i32, i32, i32) {
    %c0_i32 = arith.constant 0 : i32
    %c0_i32_0 = arith.constant 0 : i32
    %c0_i32_1 = arith.constant 0 : i32
    return %arg0, %c0_i32, %c0_i32_0 : i32, i32, i32
  }
  func.func @transform_1(%arg0: i32) -> (i32, i32, i32) {
    %c0_i32 = arith.constant 0 : i32
    %c0_i32_0 = arith.constant 0 : i32
    %c0_i32_1 = arith.constant 0 : i32
    return %arg0, %c0_i32, %c0_i32_0 : i32, i32, i32
  }
  func.func @transform_2(%arg0: i32) -> (i32, i32) {
    %c0_i32 = arith.constant 0 : i32
    %c0_i32_0 = arith.constant 0 : i32
    %c0_i32_1 = arith.constant 0 : i32
    return %c0_i32, %c0_i32_0 : i32, i32
  }
  func.func @transform_3(%arg0: i32) -> (i32, i32) {
    %c0_i32 = arith.constant 0 : i32
    %c0_i32_0 = arith.constant 0 : i32
    %c0_i32_1 = arith.constant 0 : i32
    return %c0_i32, %c0_i32_0 : i32, i32
  }
  func.func @transform_4(%arg0: i32) -> (i32, i32) {
    %c0_i32 = arith.constant 0 : i32
    %c0_i32_0 = arith.constant 0 : i32
    %c0_i32_1 = arith.constant 0 : i32
    return %c0_i32, %c0_i32_0 : i32, i32
  }
  func.func @transform_5(%arg0: i32) -> (i32, i32) {
    %c0_i32 = arith.constant 0 : i32
    %c0_i32_0 = arith.constant 0 : i32
    %c0_i32_1 = arith.constant 0 : i32
    return %c0_i32, %c0_i32_0 : i32, i32
  }
  func.func @transform_6(%arg0: i32) -> (i32, i32) {
    %c0_i32 = arith.constant 0 : i32
    %c0_i32_0 = arith.constant 0 : i32
    %c0_i32_1 = arith.constant 0 : i32
    return %c0_i32, %c0_i32_0 : i32, i32
  }
  func.func @transform_7(%arg0: i32) -> (i32, i32) {
    %c0_i32 = arith.constant 0 : i32
    %c0_i32_0 = arith.constant 0 : i32
    %c0_i32_1 = arith.constant 0 : i32
    return %c0_i32, %c0_i32_0 : i32, i32
  }
  func.func @transform_8(%arg0: i32) -> (i32, i32) {
    %c0_i32 = arith.constant 0 : i32
    %c0_i32_0 = arith.constant 0 : i32
    %c0_i32_1 = arith.constant 0 : i32
    return %c0_i32, %c0_i32_0 : i32, i32
  }
  func.func @transform_9(%arg0: i32) -> (i32, i32) {
    %c0_i32 = arith.constant 0 : i32
    %c0_i32_0 = arith.constant 0 : i32
    %c0_i32_1 = arith.constant 0 : i32
    return %c0_i32, %c0_i32_0 : i32, i32
  }
  func.func @transform_10(%arg0: i32) -> (i32, i32) {
    %c0_i32 = arith.constant 0 : i32
    %c0_i32_0 = arith.constant 0 : i32
    %c0_i32_1 = arith.constant 0 : i32
    return %c0_i32, %c0_i32_0 : i32, i32
  }
  func.func @transform_11(%arg0: i32) -> (i32, i32) {
    %c0_i32 = arith.constant 0 : i32
    %c0_i32_0 = arith.constant 0 : i32
    %c0_i32_1 = arith.constant 0 : i32
    return %c0_i32, %c0_i32_0 : i32, i32
  }
  func.func @transform_12(%arg0: i32) -> (i32, i32) {
    %c0_i32 = arith.constant 0 : i32
    %c0_i32_0 = arith.constant 0 : i32
    %c0_i32_1 = arith.constant 0 : i32
    return %c0_i32, %c0_i32_0 : i32, i32
  }
  func.func @transform_13(%arg0: i32) -> (i32, i32) {
    %c0_i32 = arith.constant 0 : i32
    %c0_i32_0 = arith.constant 0 : i32
    %c0_i32_1 = arith.constant 0 : i32
    return %c0_i32, %c0_i32_0 : i32, i32
  }
  func.func @transform_14(%arg0: i32) -> (i32, i32) {
    %c0_i32 = arith.constant 0 : i32
    %c0_i32_0 = arith.constant 0 : i32
    %c0_i32_1 = arith.constant 0 : i32
    return %c0_i32, %c0_i32_0 : i32, i32
  }
  func.func @transform_15(%arg0: i32) -> (i32, i32) {
    %c0_i32 = arith.constant 0 : i32
    %c0_i32_0 = arith.constant 0 : i32
    %c0_i32_1 = arith.constant 0 : i32
    return %c0_i32, %c0_i32_0 : i32, i32
  }
  func.func @transform_16(%arg0: i32) -> (i32, i32) {
    %c0_i32 = arith.constant 0 : i32
    %c0_i32_0 = arith.constant 0 : i32
    %c0_i32_1 = arith.constant 0 : i32
    return %c0_i32, %c0_i32_0 : i32, i32
  }
  func.func @transform_17(%arg0: i32) -> (i32, i32) {
    %c0_i32 = arith.constant 0 : i32
    %c0_i32_0 = arith.constant 0 : i32
    %c0_i32_1 = arith.constant 0 : i32
    return %c0_i32, %c0_i32_0 : i32, i32
  }
  func.func @transform_18(%arg0: i32) -> (i32, i32) {
    %c0_i32 = arith.constant 0 : i32
    %c0_i32_0 = arith.constant 0 : i32
    %c0_i32_1 = arith.constant 0 : i32
    return %c0_i32, %c0_i32_0 : i32, i32
  }
  func.func @transform_19(%arg0: i32) -> (i32, i32) {
    %c0_i32 = arith.constant 0 : i32
    %c0_i32_0 = arith.constant 0 : i32
    %c0_i32_1 = arith.constant 0 : i32
    return %c0_i32, %c0_i32_0 : i32, i32
  }
  func.func @transform_20(%arg0: i32) -> (i32, i32) {
    %c0_i32 = arith.constant 0 : i32
    %c0_i32_0 = arith.constant 0 : i32
    %c0_i32_1 = arith.constant 0 : i32
    return %c0_i32, %c0_i32_0 : i32, i32
  }
  func.func @transform_21(%arg0: i32) -> (i32, i32) {
    %c0_i32 = arith.constant 0 : i32
    %c0_i32_0 = arith.constant 0 : i32
    %c0_i32_1 = arith.constant 0 : i32
    return %c0_i32, %c0_i32_0 : i32, i32
  }
  func.func @transform_22(%arg0: i32) -> (i32, i32, i32) {
    %c0_i32 = arith.constant 0 : i32
    %c0_i32_0 = arith.constant 0 : i32
    %c0_i32_1 = arith.constant 0 : i32
    return %arg0, %c0_i32, %c0_i32_0 : i32, i32, i32
  }
}

module attributes {stable_mosaic.version = 11 : i64} {
  func.func @_out_head_kernel(%arg0: i32, %arg1: memref<1x16x128xf32, #tpu.memory_space<vmem>>, %arg2: memref<128x128xbf16, #tpu.memory_space<vmem>>, %arg3: memref<1x128xf32, #tpu.memory_space<vmem>>, %arg4: memref<128x128xbf16, #tpu.memory_space<vmem>>, %arg5: memref<1x128xf32, #tpu.memory_space<vmem>>, %arg6: memref<128x32xbf16, #tpu.memory_space<vmem>>, %arg7: memref<1x32xf32, #tpu.memory_space<vmem>>, %arg8: memref<1x16x32xf32, #tpu.memory_space<vmem>>) attributes {dimension_semantics = [#tpu.dimension_semantics<parallel>], iteration_bounds = array<i64: 2>, scalar_prefetch = 0 : i64, scratch_operands = 0 : i64, tpu.core_type = #tpu.core_type<tc>, window_params = [{transform_indices = @transform_0, window_bounds = array<i64: 1, 16, 128>}, {pipeline_mode = #tpu.pipeline_mode<synchronous>, transform_indices = @transform_1, window_bounds = array<i64: 128, 128>}, {pipeline_mode = #tpu.pipeline_mode<synchronous>, transform_indices = @transform_2, window_bounds = array<i64: 1, 128>}, {pipeline_mode = #tpu.pipeline_mode<synchronous>, transform_indices = @transform_3, window_bounds = array<i64: 128, 128>}, {pipeline_mode = #tpu.pipeline_mode<synchronous>, transform_indices = @transform_4, window_bounds = array<i64: 1, 128>}, {pipeline_mode = #tpu.pipeline_mode<synchronous>, transform_indices = @transform_5, window_bounds = array<i64: 128, 32>}, {pipeline_mode = #tpu.pipeline_mode<synchronous>, transform_indices = @transform_6, window_bounds = array<i64: 1, 32>}, {transform_indices = @transform_7, window_bounds = array<i64: 1, 16, 32>}]} {
    %c0 = arith.constant 0 : index
    %c0_0 = arith.constant 0 : index
    %c0_1 = arith.constant 0 : index
    %0 = vector.load %arg1[%c0, %c0_0, %c0_1] : memref<1x16x128xf32, #tpu.memory_space<vmem>>, vector<1x16x128xf32>
    %1 = vector.shape_cast %0 : vector<1x16x128xf32> to vector<16x128xf32>
    %2 = arith.truncf %1 : vector<16x128xf32> to vector<16x128xbf16>
    %c0_2 = arith.constant 0 : index
    %c0_3 = arith.constant 0 : index
    %3 = vector.load %arg2[%c0_2, %c0_3] : memref<128x128xbf16, #tpu.memory_space<vmem>>, vector<128x128xbf16>
    %cst = arith.constant dense<0.000000e+00> : vector<16x128xf32>
    %4 = tpu.matmul %2, %3, %cst {dimension_numbers = #tpu.dot_dimension_numbers<[1], [0], [0], [1], [0, 0, 1, 1], [], []>} : vector<16x128xbf16>, vector<128x128xbf16>, vector<16x128xf32> -> vector<16x128xf32>
    %c0_4 = arith.constant 0 : index
    %c0_5 = arith.constant 0 : index
    %5 = vector.load %arg3[%c0_4, %c0_5] : memref<1x128xf32, #tpu.memory_space<vmem>>, vector<1x128xf32>
    %6 = vector.broadcast %5 : vector<1x128xf32> to vector<16x128xf32>
    %7 = arith.addf %4, %6 : vector<16x128xf32>
    %8 = arith.mulf %7, %7 : vector<16x128xf32>
    %9 = arith.mulf %7, %8 : vector<16x128xf32>
    %cst_6 = arith.constant 4.471500e-02 : f32
    %10 = vector.broadcast %cst_6 : f32 to vector<16x128xf32>
    %11 = arith.mulf %10, %9 : vector<16x128xf32>
    %12 = arith.addf %7, %11 : vector<16x128xf32>
    %cst_7 = arith.constant 0.797884583 : f32
    %13 = vector.broadcast %cst_7 : f32 to vector<16x128xf32>
    %14 = arith.mulf %13, %12 : vector<16x128xf32>
    %15 = math.tanh %14 : vector<16x128xf32>
    %cst_8 = arith.constant 1.000000e+00 : f32
    %16 = vector.broadcast %cst_8 : f32 to vector<16x128xf32>
    %17 = arith.addf %16, %15 : vector<16x128xf32>
    %cst_9 = arith.constant 5.000000e-01 : f32
    %18 = vector.broadcast %cst_9 : f32 to vector<16x128xf32>
    %19 = arith.mulf %18, %17 : vector<16x128xf32>
    %20 = arith.mulf %7, %19 : vector<16x128xf32>
    %21 = arith.truncf %20 : vector<16x128xf32> to vector<16x128xbf16>
    %c0_10 = arith.constant 0 : index
    %c0_11 = arith.constant 0 : index
    %22 = vector.load %arg4[%c0_10, %c0_11] : memref<128x128xbf16, #tpu.memory_space<vmem>>, vector<128x128xbf16>
    %cst_12 = arith.constant dense<0.000000e+00> : vector<16x128xf32>
    %23 = tpu.matmul %21, %22, %cst_12 {dimension_numbers = #tpu.dot_dimension_numbers<[1], [0], [0], [1], [0, 0, 1, 1], [], []>} : vector<16x128xbf16>, vector<128x128xbf16>, vector<16x128xf32> -> vector<16x128xf32>
    %c0_13 = arith.constant 0 : index
    %c0_14 = arith.constant 0 : index
    %24 = vector.load %arg5[%c0_13, %c0_14] : memref<1x128xf32, #tpu.memory_space<vmem>>, vector<1x128xf32>
    %25 = vector.broadcast %24 : vector<1x128xf32> to vector<16x128xf32>
    %26 = arith.addf %23, %25 : vector<16x128xf32>
    %27 = arith.mulf %26, %26 : vector<16x128xf32>
    %28 = arith.mulf %26, %27 : vector<16x128xf32>
    %cst_15 = arith.constant 4.471500e-02 : f32
    %29 = vector.broadcast %cst_15 : f32 to vector<16x128xf32>
    %30 = arith.mulf %29, %28 : vector<16x128xf32>
    %31 = arith.addf %26, %30 : vector<16x128xf32>
    %cst_16 = arith.constant 0.797884583 : f32
    %32 = vector.broadcast %cst_16 : f32 to vector<16x128xf32>
    %33 = arith.mulf %32, %31 : vector<16x128xf32>
    %34 = math.tanh %33 : vector<16x128xf32>
    %cst_17 = arith.constant 1.000000e+00 : f32
    %35 = vector.broadcast %cst_17 : f32 to vector<16x128xf32>
    %36 = arith.addf %35, %34 : vector<16x128xf32>
    %cst_18 = arith.constant 5.000000e-01 : f32
    %37 = vector.broadcast %cst_18 : f32 to vector<16x128xf32>
    %38 = arith.mulf %37, %36 : vector<16x128xf32>
    %39 = arith.mulf %26, %38 : vector<16x128xf32>
    %40 = arith.truncf %39 : vector<16x128xf32> to vector<16x128xbf16>
    %c0_19 = arith.constant 0 : index
    %c0_20 = arith.constant 0 : index
    %41 = vector.load %arg6[%c0_19, %c0_20] : memref<128x32xbf16, #tpu.memory_space<vmem>>, vector<128x32xbf16>
    %cst_21 = arith.constant dense<0.000000e+00> : vector<16x32xf32>
    %42 = tpu.matmul %40, %41, %cst_21 {dimension_numbers = #tpu.dot_dimension_numbers<[1], [0], [0], [1], [0, 0, 1, 1], [], []>} : vector<16x128xbf16>, vector<128x32xbf16>, vector<16x32xf32> -> vector<16x32xf32>
    %c0_22 = arith.constant 0 : index
    %c0_23 = arith.constant 0 : index
    %43 = vector.load %arg7[%c0_22, %c0_23] : memref<1x32xf32, #tpu.memory_space<vmem>>, vector<1x32xf32>
    %44 = vector.broadcast %43 : vector<1x32xf32> to vector<16x32xf32>
    %45 = arith.addf %42, %44 : vector<16x32xf32>
    %c0_24 = arith.constant 0 : index
    %c0_25 = arith.constant 0 : index
    %c0_26 = arith.constant 0 : index
    %46 = vector.load %arg8[%c0_24, %c0_25, %c0_26] : memref<1x16x32xf32, #tpu.memory_space<vmem>>, vector<1x16x32xf32>
    %47 = vector.shape_cast %46 : vector<1x16x32xf32> to vector<16x32xf32>
    %48 = vector.shape_cast %45 : vector<16x32xf32> to vector<1x16x32xf32>
    tpu.vector_store %arg8[%c0_24, %c0_25, %c0_26], %48 {strides = array<i32>} : memref<1x16x32xf32, #tpu.memory_space<vmem>>, vector<1x16x32xf32>,
    return
  }
  func.func @transform_0(%arg0: i32) -> (i32, i32, i32) {
    %c0_i32 = arith.constant 0 : i32
    %c0_i32_0 = arith.constant 0 : i32
    %c0_i32_1 = arith.constant 0 : i32
    return %arg0, %c0_i32, %c0_i32_0 : i32, i32, i32
  }
  func.func @transform_1(%arg0: i32) -> (i32, i32) {
    %c0_i32 = arith.constant 0 : i32
    %c0_i32_0 = arith.constant 0 : i32
    %c0_i32_1 = arith.constant 0 : i32
    return %c0_i32, %c0_i32_0 : i32, i32
  }
  func.func @transform_2(%arg0: i32) -> (i32, i32) {
    %c0_i32 = arith.constant 0 : i32
    %c0_i32_0 = arith.constant 0 : i32
    %c0_i32_1 = arith.constant 0 : i32
    return %c0_i32, %c0_i32_0 : i32, i32
  }
  func.func @transform_3(%arg0: i32) -> (i32, i32) {
    %c0_i32 = arith.constant 0 : i32
    %c0_i32_0 = arith.constant 0 : i32
    %c0_i32_1 = arith.constant 0 : i32
    return %c0_i32, %c0_i32_0 : i32, i32
  }
  func.func @transform_4(%arg0: i32) -> (i32, i32) {
    %c0_i32 = arith.constant 0 : i32
    %c0_i32_0 = arith.constant 0 : i32
    %c0_i32_1 = arith.constant 0 : i32
    return %c0_i32, %c0_i32_0 : i32, i32
  }
  func.func @transform_5(%arg0: i32) -> (i32, i32) {
    %c0_i32 = arith.constant 0 : i32
    %c0_i32_0 = arith.constant 0 : i32
    %c0_i32_1 = arith.constant 0 : i32
    return %c0_i32, %c0_i32_0 : i32, i32
  }
  func.func @transform_6(%arg0: i32) -> (i32, i32) {
    %c0_i32 = arith.constant 0 : i32
    %c0_i32_0 = arith.constant 0 : i32
    %c0_i32_1 = arith.constant 0 : i32
    return %c0_i32, %c0_i32_0 : i32, i32
  }
  func.func @transform_7(%arg0: i32) -> (i32, i32, i32) {
    %c0_i32 = arith.constant 0 : i32
    %c0_i32_0 = arith.constant 0 : i32
    %c0_i32_1 = arith.constant 0 : i32
    return %arg0, %c0_i32, %c0_i32_0 : i32, i32, i32
  }
}

</mosaic_0001>

<llo_original>
// kernel: sm_diffusion_forward.5
$region0: #{sm_diffusion_forward.5}
  #allocation0 [shape = 'u32[]', space=smem, size = 0x4, offset = 0x4, fixed_abs, tag = 'smem constant byte address 0x4 - core index']
  #allocation1 [shape = 'u32[144,128]{1,0:T(1,128)}', space=vmem, size = 0x12000, scoped, tag = 'internal scratch']
  %s0 = inlined_call_operand.vmem [shape: f32[2,32], index: 0, kind: input, shape index: {}]
  %s1 = inlined_call_operand.vmem [shape: bf16[32,64], index: 1, kind: input, shape index: {}]
  %s2 = inlined_call_operand.vmem [shape: f32[1,64], index: 2, kind: input, shape index: {}]
  %s3 = inlined_call_operand.hbm [shape: bf16[64,128], index: 3, kind: input, shape index: {}]
  %s4 = inlined_call_operand.vmem [shape: f32[1,128], index: 4, kind: input, shape index: {}]
  %s5 = inlined_call_operand.vmem [shape: f32[2,128], index: 5, kind: output, shape index: {}]
  %s6 = sld [smem:[#allocation0]]
  $region34: #{sm_diffusion_forward.5} parent=0
    _
  %s8 = ssub.s32 1, %s6
  %s9 = scalar_select 0, %s8, %s6
  $region1: #{sm_diffusion_forward.5} parent=0
    #allocation2 [shape = 'u8[16384]{0}', space=vmem, size = 0x4000, scoped, tag = 'input window, operand 3, single buffered']
    #allocation3 [shape = 's32[1]{0}', space=sflag, size = 0x4, scoped, tag = 'scoped memory for sm_diffusion_forward.5']
    %10 = vsyncpa [#allocation3], 0
    // Predicated region
    $region2: #{sm_diffusion_forward.5} parent=1 // pred_check
      _
    $region3: #{sm_diffusion_forward.5} parent=1 // pred_check_branch
      %12 = sbr.rel (0) target = $region5
    $region4: #{sm_diffusion_forward.5} parent=1 // pred_region
      _
    $region5: #{sm_diffusion_forward.5} parent=1 // pred_fallthru
      _
    // Predicated region
    $region6: #{sm_diffusion_forward.5} parent=1 // pred_check
      _
    $region7: #{sm_diffusion_forward.5} parent=1 // pred_check_branch
      %14 = sbr.rel (0) target = $region9
    $region8: #{sm_diffusion_forward.5} parent=1 // pred_region
      _
    $region9: #{sm_diffusion_forward.5} parent=1 // pred_fallthru
      _
    // Predicated region
    $region10: #{sm_diffusion_forward.5} parent=1 // pred_check
      _
    $region11: #{sm_diffusion_forward.5} parent=1 // pred_check_branch
      %16 = sbr.rel (0) target = $region13
    $region12: #{sm_diffusion_forward.5} parent=1 // pred_region
      _
    $region13: #{sm_diffusion_forward.5} parent=1 // pred_fallthru
      _
    // Predicated region
    $region14: #{sm_diffusion_forward.5} parent=1 // pred_check
      _
    $region15: #{sm_diffusion_forward.5} parent=1 // pred_check_branch
      %18 = sbr.rel (0) target = $region17
    $region16: #{sm_diffusion_forward.5} parent=1 // pred_region
      %s20 = ssub.s32 512, 512
      %21 = vsyncadd [#allocation3], %s20
      %s22 = sshll.u32 [#allocation2], 4
      %s23 = int_to_ptr.vmem [resolvable:$true] %s22
      %28 = dma.hbm_to_vmem [thread:$0]  %s3, 512, %s23, [#allocation3], 64, 64, 4
    $region17: #{sm_diffusion_forward.5} parent=1 // pred_fallthru
      _
    // Predicated region
    $region18: #{sm_diffusion_forward.5} parent=1 // pred_check
      _
    $region19: #{sm_diffusion_forward.5} parent=1 // pred_check_branch
      %30 = sbr.rel (0) target = $region21
    $region20: #{sm_diffusion_forward.5} parent=1 // pred_region
      _
    $region21: #{sm_diffusion_forward.5} parent=1 // pred_fallthru
      _
    // Predicated region
    $region22: #{sm_diffusion_forward.5} parent=1 // pred_check
      _
    $region23: #{sm_diffusion_forward.5} parent=1 // pred_check_branch
      %32 = sbr.rel (0) target = $region25
    $region24: #{sm_diffusion_forward.5} parent=1 // pred_region
      %33 = dma.done [#allocation3], 512
    $region25: #{sm_diffusion_forward.5} parent=1 // pred_fallthru
      _
    %v35 = vld [vmem:[%s0] sm:$0x3]
    %v36 = vpack.c.bf16 %v35, %v35
    %v37 = vld [vmem:[%s1] sm:$0xf]
    %v38 = vld [vmem:[%s1 + $0x4] sm:$0xf]
    %v39 = vld [vmem:[%s1 + $0x8] sm:$0xf]
    %v40 = vld [vmem:[%s1 + $0xc] sm:$0xf]
    %v41 = vld [vmem:[%s2] sm:$0x1]
    %v43 = vlaneseq
    %v44 = vshrl.u32 %v43, 7
    %v45 = vsub.s32 0, %v44
    %v46 = vrot.slane %v41, %v45
    %v52 = vunpack.c.l.b16 %v37
    %v53 = vunpack.c.l.b16 %v38
    %v54 = vunpack.c.l.b16 %v39
    %v55 = vunpack.c.l.b16 %v40
    %v56 = vpack.c.b16 %v53, %v52
    %v57 = vpack.c.b16 %v55, %v54
    %vm60 = vcmask 261120
    %v62 = vsel %vm60, %v36, 0
    %64 = vmatprep.subr.bf16.mxu0 0
    %65 = vmatpush1.bf16.msra.mxu0 0
    %66 = vmatprep.subr.bf16.mxu0 0
    %67 = vmatpush1.bf16.msra.mxu0 0
    %68 = vmatprep.subr.bf16.mxu0 0
    %69 = vmatpush1.bf16.msra.mxu0 0
    %70 = vmatprep.subr.bf16.mxu0 0
    %71 = vmatpush1.bf16.msra.mxu0 0
    %72 = vmatprep.subr.bf16.mxu0 0
    %73 = vmatpush1.bf16.msra.mxu0 0
    %74 = vmatprep.subr.bf16.mxu0 0
    %75 = vmatpush1.bf16.msra.mxu0 0
    %76 = vmatprep.subr.bf16.mxu0 0
    %77 = vmatpush1.bf16.msra.mxu0 %v57
    %78 = vmatprep.subr.bf16.mxu0 0
    %79 = vmatpush1.bf16.msra.mxu0 %v56
    %80 = vmatprep.subr.bf16.mxu0 0
    %81 = vmatpush2.bf16.msra.mxu0 0
    %82 = vmatprep.subr.bf16.mxu0 0
    %83 = vmatpush2.bf16.msra.mxu0 0
    %84 = vmatprep.subr.bf16.mxu0 0
    %85 = vmatpush2.bf16.msra.mxu0 0
    %86 = vmatprep.subr.bf16.mxu0 0
    %87 = vmatpush2.bf16.msra.mxu0 0
    %88 = vmatprep.subr.bf16.mxu0 0
    %89 = vmatpush2.bf16.msra.mxu0 0
    %90 = vmatprep.subr.bf16.mxu0 0
    %91 = vmatpush2.bf16.msra.mxu0 0
    %92 = vmatprep.subr.bf16.mxu0 0
    %93 = vmatpush2.bf16.msra.mxu0 0
    %94 = vmatprep.subr.bf16.mxu0 0
    %95 = vmatpush2.bf16.msra.mxu0 0
    %96 = vmatprep.mubr.bf16.mxu0 0
    %97 = vmatmul.mubr.bf16.gmra.mxu0 %v62
    %v98 = vpop.f32.mrf.mxu0
    %v99 = vadd.f32 %v46, %v98
    %v100 = vpop.f32.mrf.mxu0
    %v101 = vpop.f32.mrf.mxu0
    %v102 = vpop.f32.mrf.mxu0
    %103 = vdwg.mxu0
    %v104 = vxor.u32 %v99, 2147483648
    %v105 = vmul.f32 %v104, 1.442695
    %v106 = vpow.pop %v105
    %v107 = vadd.f32 %v106, 1.0
    %v108 = vrcp.pop %v107
    %v109 = vmul.f32 1.0, %v108
    %v110 = vmul.f32 %v99, %v109
    %v111 = vpack.c.bf16 %v110, %v110
    %v112 = vld [vmem:[#allocation2] sm:$0xf]
    %v113 = vld [vmem:[#allocation2 + $0x4] sm:$0xf]
    %v114 = vld [vmem:[#allocation2 + $0x8] sm:$0xf]
    %v115 = vld [vmem:[#allocation2 + $0xc] sm:$0xf]
    %v116 = vld [vmem:[#allocation2 + $0x10] sm:$0xf]
    %v117 = vld [vmem:[#allocation2 + $0x14] sm:$0xf]
    %v118 = vld [vmem:[#allocation2 + $0x18] sm:$0xf]
    %v119 = vld [vmem:[#allocation2 + $0x1c] sm:$0xf]
    %v120 = vld [vmem:[%s4] sm:$0x1]
    %v122 = vlaneseq
    %v123 = vshrl.u32 %v122, 7
    %v124 = vsub.s32 0, %v123
    %v125 = vrot.slane %v120, %v124
    %v135 = vunpack.c.l.b16 %v112
    %v136 = vunpack.c.l.b16 %v113
    %v137 = vunpack.c.l.b16 %v114
    %v138 = vunpack.c.l.b16 %v115
    %v139 = vunpack.c.l.b16 %v116
    %v140 = vunpack.c.l.b16 %v117
    %v141 = vunpack.c.l.b16 %v118
    %v142 = vunpack.c.l.b16 %v119
    %v143 = vpack.c.b16 %v136, %v135
    %v144 = vpack.c.b16 %v138, %v137
    %v145 = vpack.c.b16 %v140, %v139
    %v146 = vpack.c.b16 %v142, %v141
    %vm151 = vcmask 523264
    %v153 = vsel %vm151, %v111, 0
    %155 = vmatprep.subr.bf16.mxu0 0
    %156 = vmatpush1.bf16.msra.mxu0 0
    %157 = vmatprep.subr.bf16.mxu0 0
    %158 = vmatpush1.bf16.msra.mxu0 0
    %159 = vmatprep.subr.bf16.mxu0 0
    %160 = vmatpush1.bf16.msra.mxu0 0
    %161 = vmatprep.subr.bf16.mxu0 0
    %162 = vmatpush1.bf16.msra.mxu0 0
    %163 = vmatprep.subr.bf16.mxu0 0
    %164 = vmatpush1.bf16.msra.mxu0 %v146
    %165 = vmatprep.subr.bf16.mxu0 0
    %166 = vmatpush1.bf16.msra.mxu0 %v145
    %167 = vmatprep.subr.bf16.mxu0 0
    %168 = vmatpush1.bf16.msra.mxu0 %v144
    %169 = vmatprep.subr.bf16.mxu0 0
    %170 = vmatpush1.bf16.msra.mxu0 %v143
    %171 = vmatprep.subr.bf16.mxu0 0
    %172 = vmatpush2.bf16.msra.mxu0 0
    %173 = vmatprep.subr.bf16.mxu0 0
    %174 = vmatpush2.bf16.msra.mxu0 0
    %175 = vmatprep.subr.bf16.mxu0 0
    %176 = vmatpush2.bf16.msra.mxu0 0
    %177 = vmatprep.subr.bf16.mxu0 0
    %178 = vmatpush2.bf16.msra.mxu0 0
    %179 = vmatprep.subr.bf16.mxu0 0
    %180 = vmatpush2.bf16.msra.mxu0 0
    %181 = vmatprep.subr.bf16.mxu0 0
    %182 = vmatpush2.bf16.msra.mxu0 0
    %183 = vmatprep.subr.bf16.mxu0 0
    %184 = vmatpush2.bf16.msra.mxu0 0
    %185 = vmatprep.subr.bf16.mxu0 0
    %186 = vmatpush2.bf16.msra.mxu0 0
    %187 = vmatprep.mubr.bf16.mxu0 0
    %188 = vmatmul.mubr.bf16.gmra.mxu0 %v153
    %v189 = vpop.f32.mrf.mxu0
    %v190 = vadd.f32 %v125, %v189
    %v191 = vpop.f32.mrf.mxu0
    %v192 = vpop.f32.mrf.mxu0
    %v193 = vpop.f32.mrf.mxu0
    %194 = vdwg.mxu0
    %195 = vst [vmem:[%s5] sm:$0x3] %v190
    // Predicated region
    $region26: #{sm_diffusion_forward.5} parent=1 // pred_check
      _
    $region27: #{sm_diffusion_forward.5} parent=1 // pred_check_branch
      %197 = sbr.rel (0) target = $region29
    $region28: #{sm_diffusion_forward.5} parent=1 // pred_region
      _
    $region29: #{sm_diffusion_forward.5} parent=1 // pred_fallthru
      _
    // Predicated region
    $region30: #{sm_diffusion_forward.5} parent=1 // pred_check
      _
    $region31: #{sm_diffusion_forward.5} parent=1 // pred_check_branch
      %199 = sbr.rel (0) target = $region33
    $region32: #{sm_diffusion_forward.5} parent=1 // pred_region
      _
    $region33: #{sm_diffusion_forward.5} parent=1 // pred_fallthru
      _
    %200 = vsyncpa [#allocation3], 1

// kernel: sm_diffusion_forward.6
$region0: #{sm_diffusion_forward.6}
  #allocation0 [shape = 'u32[]', space=smem, size = 0x4, offset = 0x4, fixed_abs, tag = 'smem constant byte address 0x4 - core index']
  #allocation1 [shape = 'u32[144,128]{1,0:T(1,128)}', space=vmem, size = 0x12000, scoped, tag = 'internal scratch']
  %s0 = inlined_call_operand.vmem [shape: f32[2,16,32], index: 0, kind: input, shape index: {}]
  %s1 = inlined_call_operand.hbm [shape: f32[2,16,32], index: 1, kind: input, shape index: {}]
  %s2 = inlined_call_operand.vmem [shape: f32[16,128], index: 2, kind: input, shape index: {}]
  %s3 = inlined_call_operand.vmem [shape: f32[2,1,128], index: 3, kind: input, shape index: {}]
  %s4 = inlined_call_operand.hbm [shape: bf16[32,128], index: 4, kind: input, shape index: {}]
  %s5 = inlined_call_operand.hbm [shape: f32[1,128], index: 5, kind: input, shape index: {}]
  %s6 = inlined_call_operand.hbm [shape: bf16[32,128], index: 6, kind: input, shape index: {}]
  %s7 = inlined_call_operand.hbm [shape: f32[1,128], index: 7, kind: input, shape index: {}]
  %s8 = inlined_call_operand.vmem [shape: f32[2,16,128], index: 8, kind: output, shape index: {0}]
  %s9 = inlined_call_operand.vmem [shape: f32[2,16,128], index: 9, kind: output, shape index: {1}]
  %10 = xla_tuple %s8, %s9
  %s11 = sld [smem:[#allocation0]]
  $region93: #{sm_diffusion_forward.6} parent=0
    _
  %s13 = ssub.s32 1, %s11
  %s14 = scalar_select 0, %s13, %s11
  $region1: #{sm_diffusion_forward.6} parent=0
    #allocation2 [shape = 'u8[16384]{0}', space=vmem, size = 0x4000, scoped, tag = 'input window, operand 1']
    #allocation3 [shape = 's32[2]{0}', space=sflag, size = 0x8, scoped, tag = 'scoped memory for sm_diffusion_forward.6']
    #allocation4 [shape = 'u8[8192]{0}', space=vmem, size = 0x2000, scoped, tag = 'input window, operand 4, single buffered']
    #allocation5 [shape = 's32[1]{0}', space=sflag, size = 0x4, scoped, tag = 'scoped memory for sm_diffusion_forward.6']
    #allocation6 [shape = 'u8[512]{0}', space=vmem, size = 0x400, scoped, tag = 'input window, operand 5, single buffered']
    #allocation7 [shape = 'u8[8192]{0}', space=vmem, size = 0x2000, scoped, tag = 'input window, operand 6, single buffered']
    #allocation8 [shape = 's32[1]{0}', space=sflag, size = 0x4, scoped, tag = 'scoped memory for sm_diffusion_forward.6']
    #allocation9 [shape = 'u8[512]{0}', space=vmem, size = 0x400, scoped, tag = 'input window, operand 7, single buffered']
    %15 = vsyncpa [#allocation3], 0
    %s16 = scalar_lea.sflag [#allocation3], 1
    %17 = vsyncpa %s16, 0
    %18 = vsyncpa [#allocation5], 0
    %19 = vsyncpa [#allocation8], 0
    loop: start=0, step=1, limit=4
    $region2: #{sm_diffusion_forward.6} parent=1 // loop_pre_header
      _
    $region3: #{sm_diffusion_forward.6} parent=1 // loop_header
      %s21 = sphi 0, %s25
      %p22 = scmp.ge.s32.totalorder %s21, 4
      %s31 = sphi 0, %s33
      %s34 = sphi 0, %s31
      %s35 = sphi 0, %s34
      %s51 = sphi 0, %s35
      %s57 = sphi 0, %s59
      %s60 = sphi 0, %s57
      %s61 = sphi 0, %s60
      %s77 = sphi 0, %s61
      %s81 = sphi 0, %s81
      %s83 = sphi 0, %s81
      %s84 = sphi 0, %s83
      %s98 = sphi 0, %s84
      %s104 = sphi 0, %s106
      %s107 = sphi 0, %s104
      %s108 = sphi 0, %s107
      %s124 = sphi 0, %s108
      %s128 = sphi 0, %s128
      %s130 = sphi 0, %s128
      %s131 = sphi 0, %s130
      %s145 = sphi 0, %s131
      %s149 = sphi 0, %s149
      %s151 = sphi 0, %s149
      %s152 = sphi 0, %s151
      %s166 = sphi 0, %s152
      %s170 = sphi 0, %s170
      %s172 = sphi 0, %s170
      %s173 = sphi 0, %s172
      %s187 = sphi 0, %s173
      %s191 = sphi 0, %s191
      %s193 = sphi 0, %s191
      %s194 = sphi 0, %s193
      %s208 = sphi 0, %s194
      %s214 = sphi 0, %s216
      %s217 = sphi 0, %s214
      %s218 = sphi 0, %s217
      %s234 = sphi 0, %s218
      %s240 = sphi 0, %s242
      %s243 = sphi 0, %s240
      %s244 = sphi 0, %s243
      %s260 = sphi 0, %s244
    $region4: #{sm_diffusion_forward.6} parent=1 // loop_header_branch
      %24 = sbr.rel (%p22) target = $region8
    $region5: #{sm_diffusion_forward.6} parent=1 // loop_body
      %s26 = ssub.s32 %s21, 1
      %s27 = ssub.s32 %s21, 2
      %s28 = sadd.s32 %s21, 1
      %s29 = ssub.s32 %s21, %s28
      %p30 = scmp.eq.s32.totalorder %s29, 0
      %s32 = sadd.s32 %s31, 1
      %s33 = scalar_select %p30, %s31, %s32
      %p36 = pneg %p30
      %p37 = scmp.eq.s32.totalorder %s21, 1
      %p38 = por %p36, %p37
      %p39 = scmp.ne.s32.totalorder %s31, %s34
      %p40 = scmp.eq.s32.totalorder %s21, 0
      %p41 = por %p39, %p40
      %p42 = scmp.ne.s32.totalorder %s31, %s34
      %p43 = scmp.eq.s32.totalorder %s26, 1
      %p44 = por %p42, %p43
      %p45 = scmp.ne.s32.totalorder %s34, %s35
      %p46 = scmp.eq.s32.totalorder %s26, 0
      %p47 = por %p45, %p46
      %p48 = scmp.ne.s32.totalorder %s34, %s35
      %p49 = scmp.eq.s32.totalorder %s27, 1
      %p50 = por %p48, %p49
      %p52 = scmp.ne.s32.totalorder %s35, %s51
      %p53 = scmp.eq.s32.totalorder %s27, 0
      %p54 = por %p52, %p53
      %s55 = ssub.s32 %s21, %s28
      %p56 = scmp.eq.s32.totalorder %s55, 0
      %s58 = sadd.s32 %s57, 1
      %s59 = scalar_select %p56, %s57, %s58
      %p62 = pneg %p56
      %p63 = scmp.eq.s32.totalorder %s21, 1
      %p64 = por %p62, %p63
      %p65 = scmp.ne.s32.totalorder %s57, %s60
      %p66 = scmp.eq.s32.totalorder %s21, 0
      %p67 = por %p65, %p66
      %p68 = scmp.ne.s32.totalorder %s57, %s60
      %p69 = scmp.eq.s32.totalorder %s26, 1
      %p70 = por %p68, %p69
      %p71 = scmp.ne.s32.totalorder %s60, %s61
      %p72 = scmp.eq.s32.totalorder %s26, 0
      %p73 = por %p71, %p72
      %p74 = scmp.ne.s32.totalorder %s60, %s61
      %p75 = scmp.eq.s32.totalorder %s27, 1
      %p76 = por %p74, %p75
      %p78 = scmp.ne.s32.totalorder %s61, %s77
      %p79 = scmp.eq.s32.totalorder %s27, 0
      %p80 = por %p78, %p79
      %s82 = sadd.s32 %s81, 1
      %p85 = scmp.eq.s32.totalorder %s21, 1
      %p86 = scmp.ne.s32.totalorder %s81, %s83
      %p87 = scmp.eq.s32.totalorder %s21, 0
      %p88 = por %p86, %p87
      %p89 = scmp.ne.s32.totalorder %s81, %s83
      %p90 = scmp.eq.s32.totalorder %s26, 1
      %p91 = por %p89, %p90
      %p92 = scmp.ne.s32.totalorder %s83, %s84
      %p93 = scmp.eq.s32.totalorder %s26, 0
      %p94 = por %p92, %p93
      %p95 = scmp.ne.s32.totalorder %s83, %s84
      %p96 = scmp.eq.s32.totalorder %s27, 1
      %p97 = por %p95, %p96
      %p99 = scmp.ne.s32.totalorder %s84, %s98
      %p100 = scmp.eq.s32.totalorder %s27, 0
      %p101 = por %p99, %p100
      %s102 = ssub.s32 %s21, %s28
      %p103 = scmp.eq.s32.totalorder %s102, 0
      %s105 = sadd.s32 %s104, 1
      %s106 = scalar_select %p103, %s104, %s105
      %p109 = pneg %p103
      %p110 = scmp.eq.s32.totalorder %s21, 1
      %p111 = por %p109, %p110
      %p112 = scmp.ne.s32.totalorder %s104, %s107
      %p113 = scmp.eq.s32.totalorder %s21, 0
      %p114 = por %p112, %p113
      %p115 = scmp.ne.s32.totalorder %s104, %s107
      %p116 = scmp.eq.s32.totalorder %s26, 1
      %p117 = por %p115, %p116
      %p118 = scmp.ne.s32.totalorder %s107, %s108
      %p119 = scmp.eq.s32.totalorder %s26, 0
      %p120 = por %p118, %p119
      %p121 = scmp.ne.s32.totalorder %s107, %s108
      %p122 = scmp.eq.s32.totalorder %s27, 1
      %p123 = por %p121, %p122
      %p125 = scmp.ne.s32.totalorder %s108, %s124
      %p126 = scmp.eq.s32.totalorder %s27, 0
      %p127 = por %p125, %p126
      %s129 = sadd.s32 %s128, 1
      %p132 = scmp.eq.s32.totalorder %s21, 1
      %p133 = scmp.ne.s32.totalorder %s128, %s130
      %p134 = scmp.eq.s32.totalorder %s21, 0
      %p135 = por %p133, %p134
      %p136 = scmp.ne.s32.totalorder %s128, %s130
      %p137 = scmp.eq.s32.totalorder %s26, 1
      %p138 = por %p136, %p137
      %p139 = scmp.ne.s32.totalorder %s130, %s131
      %p140 = scmp.eq.s32.totalorder %s26, 0
      %p141 = por %p139, %p140
      %p142 = scmp.ne.s32.totalorder %s130, %s131
      %p143 = scmp.eq.s32.totalorder %s27, 1
      %p144 = por %p142, %p143
      %p146 = scmp.ne.s32.totalorder %s131, %s145
      %p147 = scmp.eq.s32.totalorder %s27, 0
      %p148 = por %p146, %p147
      %s150 = sadd.s32 %s149, 1
      %p153 = scmp.eq.s32.totalorder %s21, 1
      %p154 = scmp.ne.s32.totalorder %s149, %s151
      %p155 = scmp.eq.s32.totalorder %s21, 0
      %p156 = por %p154, %p155
      %p157 = scmp.ne.s32.totalorder %s149, %s151
      %p158 = scmp.eq.s32.totalorder %s26, 1
      %p159 = por %p157, %p158
      %p160 = scmp.ne.s32.totalorder %s151, %s152
      %p161 = scmp.eq.s32.totalorder %s26, 0
      %p162 = por %p160, %p161
      %p163 = scmp.ne.s32.totalorder %s151, %s152
      %p164 = scmp.eq.s32.totalorder %s27, 1
      %p165 = por %p163, %p164
      %p167 = scmp.ne.s32.totalorder %s152, %s166
      %p168 = scmp.eq.s32.totalorder %s27, 0
      %p169 = por %p167, %p168
      %s171 = sadd.s32 %s170, 1
      %p174 = scmp.eq.s32.totalorder %s21, 1
      %p175 = scmp.ne.s32.totalorder %s170, %s172
      %p176 = scmp.eq.s32.totalorder %s21, 0
      %p177 = por %p175, %p176
      %p178 = scmp.ne.s32.totalorder %s170, %s172
      %p179 = scmp.eq.s32.totalorder %s26, 1
      %p180 = por %p178, %p179
      %p181 = scmp.ne.s32.totalorder %s172, %s173
      %p182 = scmp.eq.s32.totalorder %s26, 0
      %p183 = por %p181, %p182
      %p184 = scmp.ne.s32.totalorder %s172, %s173
      %p185 = scmp.eq.s32.totalorder %s27, 1
      %p186 = por %p184, %p185
      %p188 = scmp.ne.s32.totalorder %s173, %s187
      %p189 = scmp.eq.s32.totalorder %s27, 0
      %p190 = por %p188, %p189
      %s192 = sadd.s32 %s191, 1
      %p195 = scmp.eq.s32.totalorder %s21, 1
      %p196 = scmp.ne.s32.totalorder %s191, %s193
      %p197 = scmp.eq.s32.totalorder %s21, 0
      %p198 = por %p196, %p197
      %p199 = scmp.ne.s32.totalorder %s191, %s193
      %p200 = scmp.eq.s32.totalorder %s26, 1
      %p201 = por %p199, %p200
      %p202 = scmp.ne.s32.totalorder %s193, %s194
      %p203 = scmp.eq.s32.totalorder %s26, 0
      %p204 = por %p202, %p203
      %p205 = scmp.ne.s32.totalorder %s193, %s194
      %p206 = scmp.eq.s32.totalorder %s27, 1
      %p207 = por %p205, %p206
      %p209 = scmp.ne.s32.totalorder %s194, %s208
      %p210 = scmp.eq.s32.totalorder %s27, 0
      %p211 = por %p209, %p210
      %s212 = ssub.s32 %s21, %s28
      %p213 = scmp.eq.s32.totalorder %s212, 0
      %s215 = sadd.s32 %s214, 1
      %s216 = scalar_select %p213, %s214, %s215
      %p219 = pneg %p213
      %p220 = scmp.eq.s32.totalorder %s21, 1
      %p221 = por %p219, %p220
      %p222 = scmp.ne.s32.totalorder %s214, %s217
      %p223 = scmp.eq.s32.totalorder %s21, 0
      %p224 = por %p222, %p223
      %p225 = scmp.ne.s32.totalorder %s214, %s217
      %p226 = scmp.eq.s32.totalorder %s26, 1
      %p227 = por %p225, %p226
      %p228 = scmp.ne.s32.totalorder %s217, %s218
      %p229 = scmp.eq.s32.totalorder %s26, 0
      %p230 = por %p228, %p229
      %p231 = scmp.ne.s32.totalorder %s217, %s218
      %p232 = scmp.eq.s32.totalorder %s27, 1
      %p233 = por %p231, %p232
      %p235 = scmp.ne.s32.totalorder %s218, %s234
      %p236 = scmp.eq.s32.totalorder %s27, 0
      %p237 = por %p235, %p236
      %s238 = ssub.s32 %s21, %s28
      %p239 = scmp.eq.s32.totalorder %s238, 0
      %s241 = sadd.s32 %s240, 1
      %s242 = scalar_select %p239, %s240, %s241
      %p245 = pneg %p239
      %p246 = scmp.eq.s32.totalorder %s21, 1
      %p247 = por %p245, %p246
      %p248 = scmp.ne.s32.totalorder %s240, %s243
      %p249 = scmp.eq.s32.totalorder %s21, 0
      %p250 = por %p248, %p249
      %p251 = scmp.ne.s32.totalorder %s240, %s243
      %p252 = scmp.eq.s32.totalorder %s26, 1
      %p253 = por %p251, %p252
      %p254 = scmp.ne.s32.totalorder %s243, %s244
      %p255 = scmp.eq.s32.totalorder %s26, 0
      %p256 = por %p254, %p255
      %p257 = scmp.ne.s32.totalorder %s243, %s244
      %p258 = scmp.eq.s32.totalorder %s27, 1
      %p259 = por %p257, %p258
      %p261 = scmp.ne.s32.totalorder %s244, %s260
      %p262 = scmp.eq.s32.totalorder %s27, 0
      %p263 = por %p261, %p262
      %p264 = scmp.le.s32.totalorder 1, %s21
      %p265 = scmp.lt.s32.totalorder %s21, 3
      %p266 = pnand %p264, %p265
      %p267 = pneg %p266
      // Predicated region
      $region9: #{sm_diffusion_forward.6} parent=5 // pred_check
        _
      $region10: #{sm_diffusion_forward.6} parent=5 // pred_check_branch
        %269 = sbr.rel (%p266) target = $region12
      $region11: #{sm_diffusion_forward.6} parent=5 // pred_region
        %s270 = ssub.s32 %s21, 1
        // Predicated region
        $region13: #{sm_diffusion_forward.6} parent=11 // pred_check
          %p271 = pneg %p94
        $region14: #{sm_diffusion_forward.6} parent=11 // pred_check_branch
          %273 = sbr.rel (%p271) target = $region16
        $region15: #{sm_diffusion_forward.6} parent=11 // pred_region
          _
        $region16: #{sm_diffusion_forward.6} parent=11 // pred_fallthru
          _
        // Predicated region
        $region17: #{sm_diffusion_forward.6} parent=11 // pred_check
          %p274 = pneg %p141
        $region18: #{sm_diffusion_forward.6} parent=11 // pred_check_branch
          %276 = sbr.rel (%p274) target = $region20
        $region19: #{sm_diffusion_forward.6} parent=11 // pred_region
          %s278 = ssub.s32 256, 256
          %279 = vsyncadd [#allocation5], %s278
          %s280 = sshll.u32 [#allocation4], 4
          %s281 = int_to_ptr.vmem [resolvable:$true] %s280
          %286 = dma.hbm_to_vmem [thread:$0]  %s4, 256, %s281, [#allocation5], 64, 64, 4
        $region20: #{sm_diffusion_forward.6} parent=11 // pred_fallthru
          _
        // Predicated region
        $region21: #{sm_diffusion_forward.6} parent=11 // pred_check
          %p287 = pneg %p162
        $region22: #{sm_diffusion_forward.6} parent=11 // pred_check_branch
          %289 = sbr.rel (%p287) target = $region24
        $region23: #{sm_diffusion_forward.6} parent=11 // pred_region
          %s291 = ssub.s32 16, 16
          %292 = vsyncadd [#allocation5], %s291
          %s294 = sshll.u32 [#allocation6], 4
          %s295 = int_to_ptr.vmem [resolvable:$true] %s294
          %297 = dma.hbm_to_vmem [thread:$0]  %s5, 16, %s295, [#allocation5]
        $region24: #{sm_diffusion_forward.6} parent=11 // pred_fallthru
          _
        // Predicated region
        $region25: #{sm_diffusion_forward.6} parent=11 // pred_check
          %p298 = pneg %p183
        $region26: #{sm_diffusion_forward.6} parent=11 // pred_check_branch
          %300 = sbr.rel (%p298) target = $region28
        $region27: #{sm_diffusion_forward.6} parent=11 // pred_region
          %s302 = ssub.s32 256, 256
          %303 = vsyncadd [#allocation8], %s302
          %s304 = sshll.u32 [#allocation7], 4
          %s305 = int_to_ptr.vmem [resolvable:$true] %s304
          %310 = dma.hbm_to_vmem [thread:$0]  %s6, 256, %s305, [#allocation8], 64, 64, 4
        $region28: #{sm_diffusion_forward.6} parent=11 // pred_fallthru
          _
        // Predicated region
        $region29: #{sm_diffusion_forward.6} parent=11 // pred_check
          %p311 = pneg %p204
        $region30: #{sm_diffusion_forward.6} parent=11 // pred_check_branch
          %313 = sbr.rel (%p311) target = $region32
        $region31: #{sm_diffusion_forward.6} parent=11 // pred_region
          %s315 = ssub.s32 16, 16
          %316 = vsyncadd [#allocation8], %s315
          %s318 = sshll.u32 [#allocation9], 4
          %s319 = int_to_ptr.vmem [resolvable:$true] %s318
          %321 = dma.hbm_to_vmem [thread:$0]  %s7, 16, %s319, [#allocation8]
        $region32: #{sm_diffusion_forward.6} parent=11 // pred_fallthru
          _
      $region12: #{sm_diffusion_forward.6} parent=5 // pred_fallthru
        _
      %p322 = scmp.lt.s32.totalorder %s21, 2
      // Predicated region
      $region33: #{sm_diffusion_forward.6} parent=5 // pred_check
        %p323 = pneg %p322
      $region34: #{sm_diffusion_forward.6} parent=5 // pred_check_branch
        %325 = sbr.rel (%p323) target = $region36
      $region35: #{sm_diffusion_forward.6} parent=5 // pred_region
        // Predicated region
        $region37: #{sm_diffusion_forward.6} parent=35 // pred_check
          %p326 = pneg %p41
        $region38: #{sm_diffusion_forward.6} parent=35 // pred_check_branch
          %328 = sbr.rel (%p326) target = $region40
        $region39: #{sm_diffusion_forward.6} parent=35 // pred_region
          %p329 = scmp.lt.s32.totalorder %s21, 1
          %s330 = scalar_select %p329, %s21, 1
          %s331 = smul.addr %s330, 2
          %s332 = smul.addr %s331, 8
          %s333 = scalar_lea.vmem %s0, %s332
        $region40: #{sm_diffusion_forward.6} parent=35 // pred_fallthru
          _
        // Predicated region
        $region41: #{sm_diffusion_forward.6} parent=35 // pred_check
          %p334 = pneg %p67
        $region42: #{sm_diffusion_forward.6} parent=35 // pred_check_branch
          %336 = sbr.rel (%p334) target = $region44
        $region43: #{sm_diffusion_forward.6} parent=35 // pred_region
          %s337 = sand.u32 %s57, 1
          %s338 = scalar_lea.sflag [#allocation3], %s337
          %s339 = sand.u32 %s57, 1
          %s340 = smul.addr %s339, 16
          %s341 = scalar_lea.vmem [#allocation2], %s340
          %s343 = ssub.s32 256, 256
          %344 = vsyncadd %s338, %s343
          %s345 = smul.addr %s21, 2
          %s346 = smul.addr %s345, 128
          %s347 = scalar_lea.hbm %s1, %s346
          %s348 = sshll.u32 %s341, 4
          %s349 = int_to_ptr.vmem [resolvable:$true] %s348
          %354 = dma.hbm_to_vmem [thread:$0]  %s347, 256, %s349, %s338, 128, 128, 8
        $region44: #{sm_diffusion_forward.6} parent=35 // pred_fallthru
          _
        // Predicated region
        $region45: #{sm_diffusion_forward.6} parent=35 // pred_check
          %p355 = pneg %p114
        $region46: #{sm_diffusion_forward.6} parent=35 // pred_check_branch
          %357 = sbr.rel (%p355) target = $region48
        $region47: #{sm_diffusion_forward.6} parent=35 // pred_region
          %p358 = scmp.lt.s32.totalorder %s21, 1
          %s359 = scalar_select %p358, %s21, 1
          %s360 = scalar_lea.vmem %s3, %s359
        $region48: #{sm_diffusion_forward.6} parent=35 // pred_fallthru
          _
      $region36: #{sm_diffusion_forward.6} parent=5 // pred_fallthru
        _
      %p361 = scmp.le.s32.totalorder 1, %s21
      %p362 = scmp.lt.s32.totalorder %s21, 3
      %p363 = pnand %p361, %p362
      %p364 = pneg %p363
      // Predicated region
      $region49: #{sm_diffusion_forward.6} parent=5 // pred_check
        _
      $region50: #{sm_diffusion_forward.6} parent=5 // pred_check_branch
        %366 = sbr.rel (%p363) target = $region52
      $region51: #{sm_diffusion_forward.6} parent=5 // pred_region
        %s367 = ssub.s32 %s21, 1
        %s368 = sand.u32 %s60, 1
        %s369 = scalar_lea.sflag [#allocation3], %s368
        %s370 = sand.u32 %s60, 1
        %s371 = smul.addr %s370, 16
        %s372 = scalar_lea.vmem [#allocation2], %s371
        // Predicated region
        $region53: #{sm_diffusion_forward.6} parent=51 // pred_check
          %p373 = pneg %p73
        $region54: #{sm_diffusion_forward.6} parent=51 // pred_check_branch
          %375 = sbr.rel (%p373) target = $region56
        $region55: #{sm_diffusion_forward.6} parent=51 // pred_region
          %376 = dma.done %s369, 256
        $region56: #{sm_diffusion_forward.6} parent=51 // pred_fallthru
          _
        // Predicated region
        $region57: #{sm_diffusion_forward.6} parent=51 // pred_check
          %p377 = pneg %p141
        $region58: #{sm_diffusion_forward.6} parent=51 // pred_check_branch
          %379 = sbr.rel (%p377) target = $region60
        $region59: #{sm_diffusion_forward.6} parent=51 // pred_region
          %380 = dma.done [#allocation5], 256
        $region60: #{sm_diffusion_forward.6} parent=51 // pred_fallthru
          _
        // Predicated region
        $region61: #{sm_diffusion_forward.6} parent=51 // pred_check
          %p381 = pneg %p162
        $region62: #{sm_diffusion_forward.6} parent=51 // pred_check_branch
          %383 = sbr.rel (%p381) target = $region64
        $region63: #{sm_diffusion_forward.6} parent=51 // pred_region
          %384 = dma.done [#allocation5], 16
        $region64: #{sm_diffusion_forward.6} parent=51 // pred_fallthru
          _
        // Predicated region
        $region65: #{sm_diffusion_forward.6} parent=51 // pred_check
          %p385 = pneg %p183
        $region66: #{sm_diffusion_forward.6} parent=51 // pred_check_branch
          %387 = sbr.rel (%p385) target = $region68
        $region67: #{sm_diffusion_forward.6} parent=51 // pred_region
          %388 = dma.done [#allocation8], 256
        $region68: #{sm_diffusion_forward.6} parent=51 // pred_fallthru
          _
        // Predicated region
        $region69: #{sm_diffusion_forward.6} parent=51 // pred_check
          %p389 = pneg %p204
        $region70: #{sm_diffusion_forward.6} parent=51 // pred_check_branch
          %391 = sbr.rel (%p389) target = $region72
        $region71: #{sm_diffusion_forward.6} parent=51 // pred_region
          %392 = dma.done [#allocation8], 16
        $region72: #{sm_diffusion_forward.6} parent=51 // pred_fallthru
          _
        %p393 = scmp.lt.s32.totalorder %s26, 1
        %s394 = scalar_select %p393, %s26, 1
        %s395 = smul.addr %s394, 2
        %s396 = smul.addr %s395, 8
        %s397 = scalar_lea.vmem %s0, %s396
        %p398 = pneg %p47
        %p399 = pneg %p44
        %s400 = sand.u32 %s60, 1
        %s401 = scalar_lea.sflag [#allocation3], %s400
        %s402 = sand.u32 %s60, 1
        %s403 = smul.addr %s402, 16
        %s404 = scalar_lea.vmem [#allocation2], %s403
        %p405 = pneg %p73
        %p406 = pneg %p70
        %p407 = pneg %p94
        %p408 = pneg %p91
        %p409 = scmp.lt.s32.totalorder %s26, 1
        %s410 = scalar_select %p409, %s26, 1
        %s411 = scalar_lea.vmem %s3, %s410
        %p412 = pneg %p120
        %p413 = pneg %p117
        %p414 = pneg %p141
        %p415 = pneg %p138
        %p416 = pneg %p162
        %p417 = pneg %p159
        %p418 = pneg %p183
        %p419 = pneg %p180
        %p420 = pneg %p204
        %p421 = pneg %p201
        %p422 = pneg %p230
        %p423 = pneg %p227
        %p424 = scmp.lt.s32.totalorder %s26, 1
        %s425 = scalar_select %p424, %s26, 1
        %s426 = smul.addr %s425, 2
        %s427 = smul.addr %s426, 8
        %s428 = scalar_lea.vmem %s8, %s427
        %p429 = pneg %p256
        %p430 = pneg %p253
        %p431 = scmp.lt.s32.totalorder %s26, 1
        %s432 = scalar_select %p431, %s26, 1
        %s433 = smul.addr %s432, 2
        %s434 = smul.addr %s433, 8
        %s435 = scalar_lea.vmem %s9, %s434
        %p436 = scmp.lt.s32.totalorder %s26, 1
        %s437 = scalar_select %p436, %s26, 1
        %s438 = smul.addr %s437, 2
        %s439 = smul.addr %s438, 8
        %s440 = scalar_lea.vmem %s0, %s439
        %p441 = scmp.lt.s32.totalorder %s26, 1
        %s442 = scalar_select %p441, %s26, 1
        %s443 = scalar_lea.vmem %s3, %s442
        %p444 = scmp.lt.s32.totalorder %s26, 1
        %s445 = scalar_select %p444, %s26, 1
        %s446 = smul.addr %s445, 2
        %s447 = smul.addr %s446, 8
        %s448 = scalar_lea.vmem %s8, %s447
        %p449 = scmp.lt.s32.totalorder %s26, 1
        %s450 = scalar_select %p449, %s26, 1
        %s451 = smul.addr %s450, 2
        %s452 = smul.addr %s451, 8
        %s453 = scalar_lea.vmem %s9, %s452
        %v455 = vld [vmem:[%s440] sm:$0xff]
        %v456 = vld [vmem:[%s440 + $0x8] sm:$0xff]
        %v457 = vpack.c.bf16 %v456, %v455
        %v458 = vld [vmem:[#allocation4] sm:$0xf]
        %v459 = vld [vmem:[#allocation4 + $0x4] sm:$0xf]
        %v460 = vld [vmem:[#allocation4 + $0x8] sm:$0xf]
        %v461 = vld [vmem:[#allocation4 + $0xc] sm:$0xf]
        %v462 = vld [vmem:[#allocation6] sm:$0x1]
        %v464 = vlaneseq
        %v465 = vshrl.u32 %v464, 7
        %v466 = vsub.s32 0, %v465
        %v467 = vrot.slane %v462, %v466
        %v473 = vunpack.c.l.b16 %v458
        %v474 = vunpack.c.l.b16 %v459
        %v475 = vunpack.c.l.b16 %v460
        %v476 = vunpack.c.l.b16 %v461
        %v477 = vpack.c.b16 %v474, %v473
        %v478 = vpack.c.b16 %v476, %v475
        %vm481 = vcmask 261120
        %v483 = vsel %vm481, %v457, 0
        %485 = vmatprep.subr.bf16.mxu0 0
        %486 = vmatpush1.bf16.msra.mxu0 0
        %487 = vmatprep.subr.bf16.mxu0 0
        %488 = vmatpush1.bf16.msra.mxu0 0
        %489 = vmatprep.subr.bf16.mxu0 0
        %490 = vmatpush1.bf16.msra.mxu0 0
        %491 = vmatprep.subr.bf16.mxu0 0
        %492 = vmatpush1.bf16.msra.mxu0 0
        %493 = vmatprep.subr.bf16.mxu0 0
        %494 = vmatpush1.bf16.msra.mxu0 0
        %495 = vmatprep.subr.bf16.mxu0 0
        %496 = vmatpush1.bf16.msra.mxu0 0
        %497 = vmatprep.subr.bf16.mxu0 0
        %498 = vmatpush1.bf16.msra.mxu0 %v478
        %499 = vmatprep.subr.bf16.mxu0 0
        %500 = vmatpush1.bf16.msra.mxu0 %v477
        %501 = vmatprep.subr.bf16.mxu0 0
        %502 = vmatpush2.bf16.msra.mxu0 0
        %503 = vmatprep.subr.bf16.mxu0 0
        %504 = vmatpush2.bf16.msra.mxu0 0
        %505 = vmatprep.subr.bf16.mxu0 0
        %506 = vmatpush2.bf16.msra.mxu0 0
        %507 = vmatprep.subr.bf16.mxu0 0
        %508 = vmatpush2.bf16.msra.mxu0 0
        %509 = vmatprep.subr.bf16.mxu0 0
        %510 = vmatpush2.bf16.msra.mxu0 0
        %511 = vmatprep.subr.bf16.mxu0 0
        %512 = vmatpush2.bf16.msra.mxu0 0
        %513 = vmatprep.subr.bf16.mxu0 0
        %514 = vmatpush2.bf16.msra.mxu0 0
        %515 = vmatprep.subr.bf16.mxu0 0
        %516 = vmatpush2.bf16.msra.mxu0 0
        %517 = vmatprep.mubr.bf16.mxu0 0
        %518 = vmatmul.mubr.bf16.gmra.mxu0 %v483
        %v519 = vpop.f32.mrf.mxu0
        %v520 = vadd.f32 %v467, %v519
        %v521 = vpop.f32.mrf.mxu0
        %v522 = vpop.f32.mrf.mxu0
        %v523 = vadd.f32 %v467, %v522
        %v524 = vpop.f32.mrf.mxu0
        %525 = vdwg.mxu0
        %v526 = vld [vmem:[%s372] sm:$0xff]
        %v527 = vld [vmem:[%s372 + $0x8] sm:$0xff]
        %v528 = vpack.c.bf16 %v527, %v526
        %v529 = vld [vmem:[#allocation7] sm:$0xf]
        %v530 = vld [vmem:[#allocation7 + $0x4] sm:$0xf]
        %v531 = vld [vmem:[#allocation7 + $0x8] sm:$0xf]
        %v532 = vld [vmem:[#allocation7 + $0xc] sm:$0xf]
        %v533 = vld [vmem:[#allocation9] sm:$0x1]
        %v535 = vlaneseq
        %v536 = vshrl.u32 %v535, 7
        %v537 = vsub.s32 0, %v536
        %v538 = vrot.slane %v533, %v537
        %v544 = vunpack.c.l.b16 %v529
        %v545 = vunpack.c.l.b16 %v530
        %v546 = vunpack.c.l.b16 %v531
        %v547 = vunpack.c.l.b16 %v532
        %v548 = vpack.c.b16 %v545, %v544
        %v549 = vpack.c.b16 %v547, %v546
        %v553 = vsel %vm481, %v528, 0
        %555 = vmatprep.subr.bf16.mxu0 0
        %556 = vmatpush1.bf16.msra.mxu0 0
        %557 = vmatprep.subr.bf16.mxu0 0
        %558 = vmatpush1.bf16.msra.mxu0 0
        %559 = vmatprep.subr.bf16.mxu0 0
        %560 = vmatpush1.bf16.msra.mxu0 0
        %561 = vmatprep.subr.bf16.mxu0 0
        %562 = vmatpush1.bf16.msra.mxu0 0
        %563 = vmatprep.subr.bf16.mxu0 0
        %564 = vmatpush1.bf16.msra.mxu0 0
        %565 = vmatprep.subr.bf16.mxu0 0
        %566 = vmatpush1.bf16.msra.mxu0 0
        %567 = vmatprep.subr.bf16.mxu0 0
        %568 = vmatpush1.bf16.msra.mxu0 %v549
        %569 = vmatprep.subr.bf16.mxu0 0
        %570 = vmatpush1.bf16.msra.mxu0 %v548
        %571 = vmatprep.subr.bf16.mxu0 0
        %572 = vmatpush2.bf16.msra.mxu0 0
        %573 = vmatprep.subr.bf16.mxu0 0
        %574 = vmatpush2.bf16.msra.mxu0 0
        %575 = vmatprep.subr.bf16.mxu0 0
        %576 = vmatpush2.bf16.msra.mxu0 0
        %577 = vmatprep.subr.bf16.mxu0 0
        %578 = vmatpush2.bf16.msra.mxu0 0
        %579 = vmatprep.subr.bf16.mxu0 0
        %580 = vmatpush2.bf16.msra.mxu0 0
        %581 = vmatprep.subr.bf16.mxu0 0
        %582 = vmatpush2.bf16.msra.mxu0 0
        %583 = vmatprep.subr.bf16.mxu0 0
        %584 = vmatpush2.bf16.msra.mxu0 0
        %585 = vmatprep.subr.bf16.mxu0 0
        %586 = vmatpush2.bf16.msra.mxu0 0
        %587 = vmatprep.mubr.bf16.mxu0 0
        %588 = vmatmul.mubr.bf16.gmra.mxu0 %v553
        %v589 = vpop.f32.mrf.mxu0
        %v590 = vadd.f32 %v538, %v589
        %v591 = vpop.f32.mrf.mxu0
        %v592 = vpop.f32.mrf.mxu0
        %v593 = vadd.f32 %v538, %v592
        %v594 = vpop.f32.mrf.mxu0
        %595 = vdwg.mxu0
        %v596 = vadd.f32 %v590, %v520
        %v597 = vadd.f32 %v593, %v523
        %v598 = vld [vmem:[%s2] sm:$0xff]
        %v599 = vld [vmem:[%s2 + $0x8] sm:$0xff]
        %v600 = vadd.f32 %v596, %v598
        %v601 = vadd.f32 %v597, %v599
        %v602 = vld [vmem:[%s443] sm:$0x1]
        %v604 = vlaneseq
        %v605 = vshrl.u32 %v604, 7
        %v606 = vsub.s32 0, %v605
        %v607 = vrot.slane %v602, %v606
        %v609 = vadd.f32 %v600, %v607
        %v610 = vadd.f32 %v601, %v607
        %611 = vst [vmem:[%s448] sm:$0xff] %v609
        %612 = vst [vmem:[%s448 + $0x8] sm:$0xff] %v610
        %613 = vst [vmem:[%s453] sm:$0xff] %v590
        %614 = vst [vmem:[%s453 + $0x8] sm:$0xff] %v593
        %p615 = scmp.lt.s32.totalorder %s26, 1
        %s616 = scalar_select %p615, %s26, 1
        %s617 = smul.addr %s616, 2
        %s618 = smul.addr %s617, 8
        %s619 = scalar_lea.vmem %s8, %s618
        %p620 = scmp.lt.s32.totalorder %s26, 1
        %s621 = scalar_select %p620, %s26, 1
        %s622 = smul.addr %s621, 2
        %s623 = smul.addr %s622, 8
        %s624 = scalar_lea.vmem %s9, %s623
        // Predicated region
        $region73: #{sm_diffusion_forward.6} parent=51 // pred_check
          %p625 = pneg %p227
        $region74: #{sm_diffusion_forward.6} parent=51 // pred_check_branch
          %627 = sbr.rel (%p625) target = $region76
        $region75: #{sm_diffusion_forward.6} parent=51 // pred_region
          _
        $region76: #{sm_diffusion_forward.6} parent=51 // pred_fallthru
          _
        // Predicated region
        $region77: #{sm_diffusion_forward.6} parent=51 // pred_check
          %p628 = pneg %p253
        $region78: #{sm_diffusion_forward.6} parent=51 // pred_check_branch
          %630 = sbr.rel (%p628) target = $region80
        $region79: #{sm_diffusion_forward.6} parent=51 // pred_region
          _
        $region80: #{sm_diffusion_forward.6} parent=51 // pred_fallthru
          _
      $region52: #{sm_diffusion_forward.6} parent=5 // pred_fallthru
        _
      %p631 = scmp.le.s32.totalorder 2, %s21
      // Predicated region
      $region81: #{sm_diffusion_forward.6} parent=5 // pred_check
        %p632 = pneg %p631
      $region82: #{sm_diffusion_forward.6} parent=5 // pred_check_branch
        %634 = sbr.rel (%p632) target = $region84
      $region83: #{sm_diffusion_forward.6} parent=5 // pred_region
        %s635 = ssub.s32 %s21, 2
        // Predicated region
        $region85: #{sm_diffusion_forward.6} parent=83 // pred_check
          %p636 = pneg %p233
        $region86: #{sm_diffusion_forward.6} parent=83 // pred_check_branch
          %638 = sbr.rel (%p636) target = $region88
        $region87: #{sm_diffusion_forward.6} parent=83 // pred_region
          %p639 = scmp.lt.s32.totalorder %s27, 1
          %s640 = scalar_select %p639, %s27, 1
          %s641 = smul.addr %s640, 2
          %s642 = smul.addr %s641, 8
          %s643 = scalar_lea.vmem %s8, %s642
        $region88: #{sm_diffusion_forward.6} parent=83 // pred_fallthru
          _
        // Predicated region
        $region89: #{sm_diffusion_forward.6} parent=83 // pred_check
          %p644 = pneg %p259
        $region90: #{sm_diffusion_forward.6} parent=83 // pred_check_branch
          %646 = sbr.rel (%p644) target = $region92
        $region91: #{sm_diffusion_forward.6} parent=83 // pred_region
          %p647 = scmp.lt.s32.totalorder %s27, 1
          %s648 = scalar_select %p647, %s27, 1
          %s649 = smul.addr %s648, 2
          %s650 = smul.addr %s649, 8
          %s651 = scalar_lea.vmem %s9, %s650
        $region92: #{sm_diffusion_forward.6} parent=83 // pred_fallthru
          _
      $region84: #{sm_diffusion_forward.6} parent=5 // pred_fallthru
        _
    $region6: #{sm_diffusion_forward.6} parent=1 // loop_footer
      %s25 = sadd.s32 1, %s21
    $region7: #{sm_diffusion_forward.6} parent=1 // loop_footer_branch
      %20 = sbr.rel target = $region3
    $region8: #{sm_diffusion_forward.6} parent=1 // loop_exit
      _
    %652 = vsyncpa [#allocation3], 1
    %s653 = scalar_lea.sflag [#allocation3], 1
    %654 = vsyncpa %s653, 1
    %655 = vsyncpa [#allocation5], 1
    %656 = vsyncpa [#allocation8], 1

// kernel: sm_diffusion_forward.9
$region0: #{sm_diffusion_forward.9}
  #allocation0 [shape = 'u32[]', space=smem, size = 0x4, offset = 0x4, fixed_abs, tag = 'smem constant byte address 0x4 - core index']
  #allocation1 [shape = 'u32[144,128]{1,0:T(1,128)}', space=vmem, size = 0x12000, scoped, tag = 'internal scratch']
  %s0 = inlined_call_operand.vmem [shape: f32[2,16,128], index: 0, kind: input, shape index: {}]
  %s1 = inlined_call_operand.vmem [shape: bf16[128,128], index: 1, kind: input, shape index: {}]
  %s2 = inlined_call_operand.vmem [shape: f32[1,128], index: 2, kind: input, shape index: {}]
  %s3 = inlined_call_operand.vmem [shape: bf16[128,128], index: 3, kind: input, shape index: {}]
  %s4 = inlined_call_operand.vmem [shape: f32[1,128], index: 4, kind: input, shape index: {}]
  %s5 = inlined_call_operand.vmem [shape: bf16[128,32], index: 5, kind: input, shape index: {}]
  %s6 = inlined_call_operand.vmem [shape: f32[1,32], index: 6, kind: input, shape index: {}]
  %s7 = inlined_call_operand.hbm [shape: f32[2,16,32], index: 7, kind: output, shape index: {}]
  %s8 = sld [smem:[#allocation0]]
  $region61: #{sm_diffusion_forward.9} parent=0
    _
  %s10 = ssub.s32 1, %s8
  %s11 = scalar_select 0, %s10, %s8
  $region1: #{sm_diffusion_forward.9} parent=0
    #allocation2 [shape = 'u8[16384]{0}', space=vmem, size = 0x4000, scoped, tag = 'output window, operand 0']
    #allocation3 [shape = 's32[2]{0}', space=sflag, size = 0x8, scoped, tag = 'scoped memory for sm_diffusion_forward.9']
    %12 = vsyncpa [#allocation3], 0
    %s13 = scalar_lea.sflag [#allocation3], 1
    %14 = vsyncpa %s13, 0
    loop: start=0, step=1, limit=4
    $region2: #{sm_diffusion_forward.9} parent=1 // loop_pre_header
      _
    $region3: #{sm_diffusion_forward.9} parent=1 // loop_header
      %s16 = sphi 0, %s20
      %p17 = scmp.ge.s32.totalorder %s16, 4
      %s26 = sphi 0, %s28
      %s29 = sphi 0, %s26
      %s30 = sphi 0, %s29
      %s46 = sphi 0, %s30
      %s50 = sphi 0, %s50
      %s52 = sphi 0, %s50
      %s53 = sphi 0, %s52
      %s67 = sphi 0, %s53
      %s71 = sphi 0, %s71
      %s73 = sphi 0, %s71
      %s74 = sphi 0, %s73
      %s88 = sphi 0, %s74
      %s92 = sphi 0, %s92
      %s94 = sphi 0, %s92
      %s95 = sphi 0, %s94
      %s109 = sphi 0, %s95
      %s113 = sphi 0, %s113
      %s115 = sphi 0, %s113
      %s116 = sphi 0, %s115
      %s130 = sphi 0, %s116
      %s134 = sphi 0, %s134
      %s136 = sphi 0, %s134
      %s137 = sphi 0, %s136
      %s151 = sphi 0, %s137
      %s155 = sphi 0, %s155
      %s157 = sphi 0, %s155
      %s158 = sphi 0, %s157
      %s172 = sphi 0, %s158
      %s178 = sphi 0, %s180
      %s181 = sphi 0, %s178
      %s182 = sphi 0, %s181
      %s198 = sphi 0, %s182
    $region4: #{sm_diffusion_forward.9} parent=1 // loop_header_branch
      %19 = sbr.rel (%p17) target = $region8
    $region5: #{sm_diffusion_forward.9} parent=1 // loop_body
      %s21 = ssub.s32 %s16, 1
      %s22 = ssub.s32 %s16, 2
      %s23 = sadd.s32 %s16, 1
      %s24 = ssub.s32 %s16, %s23
      %p25 = scmp.eq.s32.totalorder %s24, 0
      %s27 = sadd.s32 %s26, 1
      %s28 = scalar_select %p25, %s26, %s27
      %p31 = pneg %p25
      %p32 = scmp.eq.s32.totalorder %s16, 1
      %p33 = por %p31, %p32
      %p34 = scmp.ne.s32.totalorder %s26, %s29
      %p35 = scmp.eq.s32.totalorder %s16, 0
      %p36 = por %p34, %p35
      %p37 = scmp.ne.s32.totalorder %s26, %s29
      %p38 = scmp.eq.s32.totalorder %s21, 1
      %p39 = por %p37, %p38
      %p40 = scmp.ne.s32.totalorder %s29, %s30
      %p41 = scmp.eq.s32.totalorder %s21, 0
      %p42 = por %p40, %p41
      %p43 = scmp.ne.s32.totalorder %s29, %s30
      %p44 = scmp.eq.s32.totalorder %s22, 1
      %p45 = por %p43, %p44
      %p47 = scmp.ne.s32.totalorder %s30, %s46
      %p48 = scmp.eq.s32.totalorder %s22, 0
      %p49 = por %p47, %p48
      %s51 = sadd.s32 %s50, 1
      %p54 = scmp.eq.s32.totalorder %s16, 1
      %p55 = scmp.ne.s32.totalorder %s50, %s52
      %p56 = scmp.eq.s32.totalorder %s16, 0
      %p57 = por %p55, %p56
      %p58 = scmp.ne.s32.totalorder %s50, %s52
      %p59 = scmp.eq.s32.totalorder %s21, 1
      %p60 = por %p58, %p59
      %p61 = scmp.ne.s32.totalorder %s52, %s53
      %p62 = scmp.eq.s32.totalorder %s21, 0
      %p63 = por %p61, %p62
      %p64 = scmp.ne.s32.totalorder %s52, %s53
      %p65 = scmp.eq.s32.totalorder %s22, 1
      %p66 = por %p64, %p65
      %p68 = scmp.ne.s32.totalorder %s53, %s67
      %p69 = scmp.eq.s32.totalorder %s22, 0
      %p70 = por %p68, %p69
      %s72 = sadd.s32 %s71, 1
      %p75 = scmp.eq.s32.totalorder %s16, 1
      %p76 = scmp.ne.s32.totalorder %s71, %s73
      %p77 = scmp.eq.s32.totalorder %s16, 0
      %p78 = por %p76, %p77
      %p79 = scmp.ne.s32.totalorder %s71, %s73
      %p80 = scmp.eq.s32.totalorder %s21, 1
      %p81 = por %p79, %p80
      %p82 = scmp.ne.s32.totalorder %s73, %s74
      %p83 = scmp.eq.s32.totalorder %s21, 0
      %p84 = por %p82, %p83
      %p85 = scmp.ne.s32.totalorder %s73, %s74
      %p86 = scmp.eq.s32.totalorder %s22, 1
      %p87 = por %p85, %p86
      %p89 = scmp.ne.s32.totalorder %s74, %s88
      %p90 = scmp.eq.s32.totalorder %s22, 0
      %p91 = por %p89, %p90
      %s93 = sadd.s32 %s92, 1
      %p96 = scmp.eq.s32.totalorder %s16, 1
      %p97 = scmp.ne.s32.totalorder %s92, %s94
      %p98 = scmp.eq.s32.totalorder %s16, 0
      %p99 = por %p97, %p98
      %p100 = scmp.ne.s32.totalorder %s92, %s94
      %p101 = scmp.eq.s32.totalorder %s21, 1
      %p102 = por %p100, %p101
      %p103 = scmp.ne.s32.totalorder %s94, %s95
      %p104 = scmp.eq.s32.totalorder %s21, 0
      %p105 = por %p103, %p104
      %p106 = scmp.ne.s32.totalorder %s94, %s95
      %p107 = scmp.eq.s32.totalorder %s22, 1
      %p108 = por %p106, %p107
      %p110 = scmp.ne.s32.totalorder %s95, %s109
      %p111 = scmp.eq.s32.totalorder %s22, 0
      %p112 = por %p110, %p111
      %s114 = sadd.s32 %s113, 1
      %p117 = scmp.eq.s32.totalorder %s16, 1
      %p118 = scmp.ne.s32.totalorder %s113, %s115
      %p119 = scmp.eq.s32.totalorder %s16, 0
      %p120 = por %p118, %p119
      %p121 = scmp.ne.s32.totalorder %s113, %s115
      %p122 = scmp.eq.s32.totalorder %s21, 1
      %p123 = por %p121, %p122
      %p124 = scmp.ne.s32.totalorder %s115, %s116
      %p125 = scmp.eq.s32.totalorder %s21, 0
      %p126 = por %p124, %p125
      %p127 = scmp.ne.s32.totalorder %s115, %s116
      %p128 = scmp.eq.s32.totalorder %s22, 1
      %p129 = por %p127, %p128
      %p131 = scmp.ne.s32.totalorder %s116, %s130
      %p132 = scmp.eq.s32.totalorder %s22, 0
      %p133 = por %p131, %p132
      %s135 = sadd.s32 %s134, 1
      %p138 = scmp.eq.s32.totalorder %s16, 1
      %p139 = scmp.ne.s32.totalorder %s134, %s136
      %p140 = scmp.eq.s32.totalorder %s16, 0
      %p141 = por %p139, %p140
      %p142 = scmp.ne.s32.totalorder %s134, %s136
      %p143 = scmp.eq.s32.totalorder %s21, 1
      %p144 = por %p142, %p143
      %p145 = scmp.ne.s32.totalorder %s136, %s137
      %p146 = scmp.eq.s32.totalorder %s21, 0
      %p147 = por %p145, %p146
      %p148 = scmp.ne.s32.totalorder %s136, %s137
      %p149 = scmp.eq.s32.totalorder %s22, 1
      %p150 = por %p148, %p149
      %p152 = scmp.ne.s32.totalorder %s137, %s151
      %p153 = scmp.eq.s32.totalorder %s22, 0
      %p154 = por %p152, %p153
      %s156 = sadd.s32 %s155, 1
      %p159 = scmp.eq.s32.totalorder %s16, 1
      %p160 = scmp.ne.s32.totalorder %s155, %s157
      %p161 = scmp.eq.s32.totalorder %s16, 0
      %p162 = por %p160, %p161
      %p163 = scmp.ne.s32.totalorder %s155, %s157
      %p164 = scmp.eq.s32.totalorder %s21, 1
      %p165 = por %p163, %p164
      %p166 = scmp.ne.s32.totalorder %s157, %s158
      %p167 = scmp.eq.s32.totalorder %s21, 0
      %p168 = por %p166, %p167
      %p169 = scmp.ne.s32.totalorder %s157, %s158
      %p170 = scmp.eq.s32.totalorder %s22, 1
      %p171 = por %p169, %p170
      %p173 = scmp.ne.s32.totalorder %s158, %s172
      %p174 = scmp.eq.s32.totalorder %s22, 0
      %p175 = por %p173, %p174
      %s176 = ssub.s32 %s16, %s23
      %p177 = scmp.eq.s32.totalorder %s176, 0
      %s179 = sadd.s32 %s178, 1
      %s180 = scalar_select %p177, %s178, %s179
      %p183 = pneg %p177
      %p184 = scmp.eq.s32.totalorder %s16, 1
      %p185 = por %p183, %p184
      %p186 = scmp.ne.s32.totalorder %s178, %s181
      %p187 = scmp.eq.s32.totalorder %s16, 0
      %p188 = por %p186, %p187
      %p189 = scmp.ne.s32.totalorder %s178, %s181
      %p190 = scmp.eq.s32.totalorder %s21, 1
      %p191 = por %p189, %p190
      %p192 = scmp.ne.s32.totalorder %s181, %s182
      %p193 = scmp.eq.s32.totalorder %s21, 0
      %p194 = por %p192, %p193
      %p195 = scmp.ne.s32.totalorder %s181, %s182
      %p196 = scmp.eq.s32.totalorder %s22, 1
      %p197 = por %p195, %p196
      %p199 = scmp.ne.s32.totalorder %s182, %s198
      %p200 = scmp.eq.s32.totalorder %s22, 0
      %p201 = por %p199, %p200
      %p202 = scmp.le.s32.totalorder 1, %s16
      %p203 = scmp.lt.s32.totalorder %s16, 3
      %p204 = pnand %p202, %p203
      %p205 = pneg %p204
      // Predicated region
      $region9: #{sm_diffusion_forward.9} parent=5 // pred_check
        _
      $region10: #{sm_diffusion_forward.9} parent=5 // pred_check_branch
        %207 = sbr.rel (%p204) target = $region12
      $region11: #{sm_diffusion_forward.9} parent=5 // pred_region
        %s208 = ssub.s32 %s16, 1
        // Predicated region
        $region13: #{sm_diffusion_forward.9} parent=11 // pred_check
          %p209 = pneg %p63
        $region14: #{sm_diffusion_forward.9} parent=11 // pred_check_branch
          %211 = sbr.rel (%p209) target = $region16
        $region15: #{sm_diffusion_forward.9} parent=11 // pred_region
          _
        $region16: #{sm_diffusion_forward.9} parent=11 // pred_fallthru
          _
        // Predicated region
        $region17: #{sm_diffusion_forward.9} parent=11 // pred_check
          %p212 = pneg %p84
        $region18: #{sm_diffusion_forward.9} parent=11 // pred_check_branch
          %214 = sbr.rel (%p212) target = $region20
        $region19: #{sm_diffusion_forward.9} parent=11 // pred_region
          _
        $region20: #{sm_diffusion_forward.9} parent=11 // pred_fallthru
          _
        // Predicated region
        $region21: #{sm_diffusion_forward.9} parent=11 // pred_check
          %p215 = pneg %p105
        $region22: #{sm_diffusion_forward.9} parent=11 // pred_check_branch
          %217 = sbr.rel (%p215) target = $region24
        $region23: #{sm_diffusion_forward.9} parent=11 // pred_region
          _
        $region24: #{sm_diffusion_forward.9} parent=11 // pred_fallthru
          _
        // Predicated region
        $region25: #{sm_diffusion_forward.9} parent=11 // pred_check
          %p218 = pneg %p126
        $region26: #{sm_diffusion_forward.9} parent=11 // pred_check_branch
          %220 = sbr.rel (%p218) target = $region28
        $region27: #{sm_diffusion_forward.9} parent=11 // pred_region
          _
        $region28: #{sm_diffusion_forward.9} parent=11 // pred_fallthru
          _
        // Predicated region
        $region29: #{sm_diffusion_forward.9} parent=11 // pred_check
          %p221 = pneg %p147
        $region30: #{sm_diffusion_forward.9} parent=11 // pred_check_branch
          %223 = sbr.rel (%p221) target = $region32
        $region31: #{sm_diffusion_forward.9} parent=11 // pred_region
          _
        $region32: #{sm_diffusion_forward.9} parent=11 // pred_fallthru
          _
        // Predicated region
        $region33: #{sm_diffusion_forward.9} parent=11 // pred_check
          %p224 = pneg %p168
        $region34: #{sm_diffusion_forward.9} parent=11 // pred_check_branch
          %226 = sbr.rel (%p224) target = $region36
        $region35: #{sm_diffusion_forward.9} parent=11 // pred_region
          _
        $region36: #{sm_diffusion_forward.9} parent=11 // pred_fallthru
          _
      $region12: #{sm_diffusion_forward.9} parent=5 // pred_fallthru
        _
      %p227 = scmp.lt.s32.totalorder %s16, 2
      // Predicated region
      $region37: #{sm_diffusion_forward.9} parent=5 // pred_check
        %p228 = pneg %p227
      $region38: #{sm_diffusion_forward.9} parent=5 // pred_check_branch
        %230 = sbr.rel (%p228) target = $region40
      $region39: #{sm_diffusion_forward.9} parent=5 // pred_region
        // Predicated region
        $region41: #{sm_diffusion_forward.9} parent=39 // pred_check
          %p231 = pneg %p36
        $region42: #{sm_diffusion_forward.9} parent=39 // pred_check_branch
          %233 = sbr.rel (%p231) target = $region44
        $region43: #{sm_diffusion_forward.9} parent=39 // pred_region
          %p234 = scmp.lt.s32.totalorder %s16, 1
          %s235 = scalar_select %p234, %s16, 1
          %s236 = smul.addr %s235, 2
          %s237 = smul.addr %s236, 8
          %s238 = scalar_lea.vmem %s0, %s237
        $region44: #{sm_diffusion_forward.9} parent=39 // pred_fallthru
          _
      $region40: #{sm_diffusion_forward.9} parent=5 // pred_fallthru
        _
      %p239 = scmp.le.s32.totalorder 1, %s16
      %p240 = scmp.lt.s32.totalorder %s16, 3
      %p241 = pnand %p239, %p240
      %p242 = pneg %p241
      // Predicated region
      $region45: #{sm_diffusion_forward.9} parent=5 // pred_check
        _
      $region46: #{sm_diffusion_forward.9} parent=5 // pred_check_branch
        %244 = sbr.rel (%p241) target = $region48
      $region47: #{sm_diffusion_forward.9} parent=5 // pred_region
        %s245 = ssub.s32 %s16, 1
        %p246 = scmp.lt.s32.totalorder %s21, 1
        %s247 = scalar_select %p246, %s21, 1
        %s248 = smul.addr %s247, 2
        %s249 = smul.addr %s248, 8
        %s250 = scalar_lea.vmem %s0, %s249
        %p251 = pneg %p42
        %p252 = pneg %p39
        %p253 = pneg %p63
        %p254 = pneg %p60
        %p255 = pneg %p84
        %p256 = pneg %p81
        %p257 = pneg %p105
        %p258 = pneg %p102
        %p259 = pneg %p126
        %p260 = pneg %p123
        %p261 = pneg %p147
        %p262 = pneg %p144
        %p263 = pneg %p168
        %p264 = pneg %p165
        %p265 = pneg %p194
        %p266 = pneg %p191
        %s267 = sand.u32 %s181, 1
        %s268 = scalar_lea.sflag [#allocation3], %s267
        %s269 = sand.u32 %s181, 1
        %s270 = smul.addr %s269, 16
        %s271 = scalar_lea.vmem [#allocation2], %s270
        %p272 = scmp.lt.s32.totalorder %s21, 1
        %s273 = scalar_select %p272, %s21, 1
        %s274 = smul.addr %s273, 2
        %s275 = smul.addr %s274, 8
        %s276 = scalar_lea.vmem %s0, %s275
        %v278 = vld [vmem:[%s276] sm:$0xff]
        %v279 = vld [vmem:[%s276 + $0x8] sm:$0xff]
        %v280 = vpack.c.bf16 %v279, %v278
        %v281 = vld [vmem:[%s1] sm:$0xf]
        %v282 = vld [vmem:[%s1 + $0x4] sm:$0xf]
        %v283 = vld [vmem:[%s1 + $0x8] sm:$0xf]
        %v284 = vld [vmem:[%s1 + $0xc] sm:$0xf]
        %v285 = vld [vmem:[%s1 + $0x10] sm:$0xf]
        %v286 = vld [vmem:[%s1 + $0x14] sm:$0xf]
        %v287 = vld [vmem:[%s1 + $0x18] sm:$0xf]
        %v288 = vld [vmem:[%s1 + $0x1c] sm:$0xf]
        %v289 = vld [vmem:[%s1 + $0x20] sm:$0xf]
        %v290 = vld [vmem:[%s1 + $0x24] sm:$0xf]
        %v291 = vld [vmem:[%s1 + $0x28] sm:$0xf]
        %v292 = vld [vmem:[%s1 + $0x2c] sm:$0xf]
        %v293 = vld [vmem:[%s1 + $0x30] sm:$0xf]
        %v294 = vld [vmem:[%s1 + $0x34] sm:$0xf]
        %v295 = vld [vmem:[%s1 + $0x38] sm:$0xf]
        %v296 = vld [vmem:[%s1 + $0x3c] sm:$0xf]
        %v297 = vld [vmem:[%s2] sm:$0x1]
        %v299 = vlaneseq
        %v300 = vshrl.u32 %v299, 7
        %v301 = vsub.s32 0, %v300
        %v302 = vrot.slane %v297, %v301
        %v320 = vunpack.c.l.b16 %v281
        %v321 = vunpack.c.l.b16 %v282
        %v322 = vunpack.c.l.b16 %v283
        %v323 = vunpack.c.l.b16 %v284
        %v324 = vunpack.c.l.b16 %v285
        %v325 = vunpack.c.l.b16 %v286
        %v326 = vunpack.c.l.b16 %v287
        %v327 = vunpack.c.l.b16 %v288
        %v328 = vunpack.c.l.b16 %v289
        %v329 = vunpack.c.l.b16 %v290
        %v330 = vunpack.c.l.b16 %v291
        %v331 = vunpack.c.l.b16 %v292
        %v332 = vunpack.c.l.b16 %v293
        %v333 = vunpack.c.l.b16 %v294
        %v334 = vunpack.c.l.b16 %v295
        %v335 = vunpack.c.l.b16 %v296
        %v336 = vpack.c.b16 %v321, %v320
        %v337 = vpack.c.b16 %v323, %v322
        %v338 = vpack.c.b16 %v325, %v324
        %v339 = vpack.c.b16 %v327, %v326
        %v340 = vpack.c.b16 %v329, %v328
        %v341 = vpack.c.b16 %v331, %v330
        %v342 = vpack.c.b16 %v333, %v332
        %v343 = vpack.c.b16 %v335, %v334
        %352 = vmatprep.subr.bf16.mxu0 0
        %353 = vmatpush1.bf16.msra.mxu0 %v343
        %354 = vmatprep.subr.bf16.mxu0 0
        %355 = vmatpush1.bf16.msra.mxu0 %v342
        %356 = vmatprep.subr.bf16.mxu0 0
        %357 = vmatpush1.bf16.msra.mxu0 %v341
        %358 = vmatprep.subr.bf16.mxu0 0
        %359 = vmatpush1.bf16.msra.mxu0 %v340
        %360 = vmatprep.subr.bf16.mxu0 0
        %361 = vmatpush1.bf16.msra.mxu0 %v339
        %362 = vmatprep.subr.bf16.mxu0 0
        %363 = vmatpush1.bf16.msra.mxu0 %v338
        %364 = vmatprep.subr.bf16.mxu0 0
        %365 = vmatpush1.bf16.msra.mxu0 %v337
        %366 = vmatprep.subr.bf16.mxu0 0
        %367 = vmatpush1.bf16.msra.mxu0 %v336
        %368 = vmatprep.subr.bf16.mxu0 0
        %369 = vmatpush2.bf16.msra.mxu0 0
        %370 = vmatprep.subr.bf16.mxu0 0
        %371 = vmatpush2.bf16.msra.mxu0 0
        %372 = vmatprep.subr.bf16.mxu0 0
        %373 = vmatpush2.bf16.msra.mxu0 0
        %374 = vmatprep.subr.bf16.mxu0 0
        %375 = vmatpush2.bf16.msra.mxu0 0
        %376 = vmatprep.subr.bf16.mxu0 0
        %377 = vmatpush2.bf16.msra.mxu0 0
        %378 = vmatprep.subr.bf16.mxu0 0
        %379 = vmatpush2.bf16.msra.mxu0 0
        %380 = vmatprep.subr.bf16.mxu0 0
        %381 = vmatpush2.bf16.msra.mxu0 0
        %382 = vmatprep.subr.bf16.mxu0 0
        %383 = vmatpush2.bf16.msra.mxu0 0
        %384 = vmatprep.mubr.bf16.mxu0 0
        %385 = vmatmul.mubr.bf16.gmra.mxu0 %v280
        %v386 = vpop.f32.mrf.mxu0
        %v387 = vadd.f32 %v302, %v386
        %v388 = vpop.f32.mrf.mxu0
        %v389 = vpop.f32.mrf.mxu0
        %v390 = vadd.f32 %v302, %v389
        %v391 = vpop.f32.mrf.mxu0
        %392 = vdwg.mxu0
        %v393 = vmul.f32 %v387, %v387
        %v394 = vmul.f32 %v390, %v390
        %v395 = vmul.f32 %v387, %v393
        %v396 = vmul.f32 %v390, %v394
        %v397 = vmul.f32 %v395, 0.044715
        %v398 = vmul.f32 %v396, 0.044715
        %v399 = vadd.f32 %v387, %v397
        %v400 = vadd.f32 %v390, %v398
        %v401 = vmul.f32 %v399, 0.7978846
        %v402 = vmul.f32 %v400, 0.7978846
        %v403 = vtanh.pop %v401
        %v404 = vtanh.pop %v402
        %v405 = vadd.f32 %v403, 1.0
        %v406 = vadd.f32 %v404, 1.0
        %v407 = vmul.f32 %v405, 0.5
        %v408 = vmul.f32 %v406, 0.5
        %v409 = vmul.f32 %v387, %v407
        %v410 = vmul.f32 %v390, %v408
        %v411 = vpack.c.bf16 %v410, %v409
        %v412 = vld [vmem:[%s3] sm:$0xf]
        %v413 = vld [vmem:[%s3 + $0x4] sm:$0xf]
        %v414 = vld [vmem:[%s3 + $0x8] sm:$0xf]
        %v415 = vld [vmem:[%s3 + $0xc] sm:$0xf]
        %v416 = vld [vmem:[%s3 + $0x10] sm:$0xf]
        %v417 = vld [vmem:[%s3 + $0x14] sm:$0xf]
        %v418 = vld [vmem:[%s3 + $0x18] sm:$0xf]
        %v419 = vld [vmem:[%s3 + $0x1c] sm:$0xf]
        %v420 = vld [vmem:[%s3 + $0x20] sm:$0xf]
        %v421 = vld [vmem:[%s3 + $0x24] sm:$0xf]
        %v422 = vld [vmem:[%s3 + $0x28] sm:$0xf]
        %v423 = vld [vmem:[%s3 + $0x2c] sm:$0xf]
        %v424 = vld [vmem:[%s3 + $0x30] sm:$0xf]
        %v425 = vld [vmem:[%s3 + $0x34] sm:$0xf]
        %v426 = vld [vmem:[%s3 + $0x38] sm:$0xf]
        %v427 = vld [vmem:[%s3 + $0x3c] sm:$0xf]
        %v428 = vld [vmem:[%s4] sm:$0x1]
        %v430 = vlaneseq
        %v431 = vshrl.u32 %v430, 7
        %v432 = vsub.s32 0, %v431
        %v433 = vrot.slane %v428, %v432
        %v451 = vunpack.c.l.b16 %v412
        %v452 = vunpack.c.l.b16 %v413
        %v453 = vunpack.c.l.b16 %v414
        %v454 = vunpack.c.l.b16 %v415
        %v455 = vunpack.c.l.b16 %v416
        %v456 = vunpack.c.l.b16 %v417
        %v457 = vunpack.c.l.b16 %v418
        %v458 = vunpack.c.l.b16 %v419
        %v459 = vunpack.c.l.b16 %v420
        %v460 = vunpack.c.l.b16 %v421
        %v461 = vunpack.c.l.b16 %v422
        %v462 = vunpack.c.l.b16 %v423
        %v463 = vunpack.c.l.b16 %v424
        %v464 = vunpack.c.l.b16 %v425
        %v465 = vunpack.c.l.b16 %v426
        %v466 = vunpack.c.l.b16 %v427
        %v467 = vpack.c.b16 %v452, %v451
        %v468 = vpack.c.b16 %v454, %v453
        %v469 = vpack.c.b16 %v456, %v455
        %v470 = vpack.c.b16 %v458, %v457
        %v471 = vpack.c.b16 %v460, %v459
        %v472 = vpack.c.b16 %v462, %v461
        %v473 = vpack.c.b16 %v464, %v463
        %v474 = vpack.c.b16 %v466, %v465
        %483 = vmatprep.subr.bf16.mxu0 0
        %484 = vmatpush1.bf16.msra.mxu0 %v474
        %485 = vmatprep.subr.bf16.mxu0 0
        %486 = vmatpush1.bf16.msra.mxu0 %v473
        %487 = vmatprep.subr.bf16.mxu0 0
        %488 = vmatpush1.bf16.msra.mxu0 %v472
        %489 = vmatprep.subr.bf16.mxu0 0
        %490 = vmatpush1.bf16.msra.mxu0 %v471
        %491 = vmatprep.subr.bf16.mxu0 0
        %492 = vmatpush1.bf16.msra.mxu0 %v470
        %493 = vmatprep.subr.bf16.mxu0 0
        %494 = vmatpush1.bf16.msra.mxu0 %v469
        %495 = vmatprep.subr.bf16.mxu0 0
        %496 = vmatpush1.bf16.msra.mxu0 %v468
        %497 = vmatprep.subr.bf16.mxu0 0
        %498 = vmatpush1.bf16.msra.mxu0 %v467
        %499 = vmatprep.subr.bf16.mxu0 0
        %500 = vmatpush2.bf16.msra.mxu0 0
        %501 = vmatprep.subr.bf16.mxu0 0
        %502 = vmatpush2.bf16.msra.mxu0 0
        %503 = vmatprep.subr.bf16.mxu0 0
        %504 = vmatpush2.bf16.msra.mxu0 0
        %505 = vmatprep.subr.bf16.mxu0 0
        %506 = vmatpush2.bf16.msra.mxu0 0
        %507 = vmatprep.subr.bf16.mxu0 0
        %508 = vmatpush2.bf16.msra.mxu0 0
        %509 = vmatprep.subr.bf16.mxu0 0
        %510 = vmatpush2.bf16.msra.mxu0 0
        %511 = vmatprep.subr.bf16.mxu0 0
        %512 = vmatpush2.bf16.msra.mxu0 0
        %513 = vmatprep.subr.bf16.mxu0 0
        %514 = vmatpush2.bf16.msra.mxu0 0
        %515 = vmatprep.mubr.bf16.mxu0 0
        %516 = vmatmul.mubr.bf16.gmra.mxu0 %v411
        %v517 = vpop.f32.mrf.mxu0
        %v518 = vadd.f32 %v433, %v517
        %v519 = vpop.f32.mrf.mxu0
        %v520 = vpop.f32.mrf.mxu0
        %v521 = vadd.f32 %v433, %v520
        %v522 = vpop.f32.mrf.mxu0
        %523 = vdwg.mxu0
        %v524 = vmul.f32 %v518, %v518
        %v525 = vmul.f32 %v521, %v521
        %v526 = vmul.f32 %v518, %v524
        %v527 = vmul.f32 %v521, %v525
        %v528 = vmul.f32 %v526, 0.044715
        %v529 = vmul.f32 %v527, 0.044715
        %v530 = vadd.f32 %v518, %v528
        %v531 = vadd.f32 %v521, %v529
        %v532 = vmul.f32 %v530, 0.7978846
        %v533 = vmul.f32 %v531, 0.7978846
        %v534 = vtanh.pop %v532
        %v535 = vtanh.pop %v533
        %v536 = vadd.f32 %v534, 1.0
        %v537 = vadd.f32 %v535, 1.0
        %v538 = vmul.f32 %v536, 0.5
        %v539 = vmul.f32 %v537, 0.5
        %v540 = vmul.f32 %v518, %v538
        %v541 = vmul.f32 %v521, %v539
        %v542 = vpack.c.bf16 %v541, %v540
        %v543 = vld [vmem:[%s5] sm:$0xf]
        %v544 = vld [vmem:[%s5 + $0x4] sm:$0xf]
        %v545 = vld [vmem:[%s5 + $0x8] sm:$0xf]
        %v546 = vld [vmem:[%s5 + $0xc] sm:$0xf]
        %v547 = vld [vmem:[%s5 + $0x10] sm:$0xf]
        %v548 = vld [vmem:[%s5 + $0x14] sm:$0xf]
        %v549 = vld [vmem:[%s5 + $0x18] sm:$0xf]
        %v550 = vld [vmem:[%s5 + $0x1c] sm:$0xf]
        %v551 = vld [vmem:[%s5 + $0x20] sm:$0xf]
        %v552 = vld [vmem:[%s5 + $0x24] sm:$0xf]
        %v553 = vld [vmem:[%s5 + $0x28] sm:$0xf]
        %v554 = vld [vmem:[%s5 + $0x2c] sm:$0xf]
        %v555 = vld [vmem:[%s5 + $0x30] sm:$0xf]
        %v556 = vld [vmem:[%s5 + $0x34] sm:$0xf]
        %v557 = vld [vmem:[%s5 + $0x38] sm:$0xf]
        %v558 = vld [vmem:[%s5 + $0x3c] sm:$0xf]
        %v559 = vld [vmem:[%s6] sm:$0x1]
        %v561 = vlaneseq
        %v562 = vshrl.u32 %v561, 7
        %v563 = vsub.s32 0, %v562
        %v564 = vrot.slane %v559, %v563
        %v582 = vunpack.c.l.b16 %v543
        %v583 = vunpack.c.l.b16 %v544
        %v584 = vunpack.c.l.b16 %v545
        %v585 = vunpack.c.l.b16 %v546
        %v586 = vunpack.c.l.b16 %v547
        %v587 = vunpack.c.l.b16 %v548
        %v588 = vunpack.c.l.b16 %v549
        %v589 = vunpack.c.l.b16 %v550
        %v590 = vunpack.c.l.b16 %v551
        %v591 = vunpack.c.l.b16 %v552
        %v592 = vunpack.c.l.b16 %v553
        %v593 = vunpack.c.l.b16 %v554
        %v594 = vunpack.c.l.b16 %v555
        %v595 = vunpack.c.l.b16 %v556
        %v596 = vunpack.c.l.b16 %v557
        %v597 = vunpack.c.l.b16 %v558
        %v598 = vpack.c.b16 %v583, %v582
        %v599 = vpack.c.b16 %v585, %v584
        %v600 = vpack.c.b16 %v587, %v586
        %v601 = vpack.c.b16 %v589, %v588
        %v602 = vpack.c.b16 %v591, %v590
        %v603 = vpack.c.b16 %v593, %v592
        %v604 = vpack.c.b16 %v595, %v594
        %v605 = vpack.c.b16 %v597, %v596
        %614 = vmatprep.subr.bf16.mxu0 0
        %615 = vmatpush1.bf16.msra.mxu0 %v605
        %616 = vmatprep.subr.bf16.mxu0 0
        %617 = vmatpush1.bf16.msra.mxu0 %v604
        %618 = vmatprep.subr.bf16.mxu0 0
        %619 = vmatpush1.bf16.msra.mxu0 %v603
        %620 = vmatprep.subr.bf16.mxu0 0
        %621 = vmatpush1.bf16.msra.mxu0 %v602
        %622 = vmatprep.subr.bf16.mxu0 0
        %623 = vmatpush1.bf16.msra.mxu0 %v601
        %624 = vmatprep.subr.bf16.mxu0 0
        %625 = vmatpush1.bf16.msra.mxu0 %v600
        %626 = vmatprep.subr.bf16.mxu0 0
        %627 = vmatpush1.bf16.msra.mxu0 %v599
        %628 = vmatprep.subr.bf16.mxu0 0
        %629 = vmatpush1.bf16.msra.mxu0 %v598
        %630 = vmatprep.subr.bf16.mxu0 0
        %631 = vmatpush2.bf16.msra.mxu0 0
        %632 = vmatprep.subr.bf16.mxu0 0
        %633 = vmatpush2.bf16.msra.mxu0 0
        %634 = vmatprep.subr.bf16.mxu0 0
        %635 = vmatpush2.bf16.msra.mxu0 0
        %636 = vmatprep.subr.bf16.mxu0 0
        %637 = vmatpush2.bf16.msra.mxu0 0
        %638 = vmatprep.subr.bf16.mxu0 0
        %639 = vmatpush2.bf16.msra.mxu0 0
        %640 = vmatprep.subr.bf16.mxu0 0
        %641 = vmatpush2.bf16.msra.mxu0 0
        %642 = vmatprep.subr.bf16.mxu0 0
        %643 = vmatpush2.bf16.msra.mxu0 0
        %644 = vmatprep.subr.bf16.mxu0 0
        %645 = vmatpush2.bf16.msra.mxu0 0
        %646 = vmatprep.mubr.bf16.mxu0 0
        %647 = vmatmul.mubr.bf16.gmra.mxu0 %v542
        %v648 = vpop.f32.mrf.mxu0
        %v649 = vadd.f32 %v564, %v648
        %v650 = vpop.f32.mrf.mxu0
        %v651 = vpop.f32.mrf.mxu0
        %v652 = vadd.f32 %v564, %v651
        %v653 = vpop.f32.mrf.mxu0
        %654 = vdwg.mxu0
        %vm655 = vcmask 261120
        %656 = vst.msk [vmem:[%s271] sm:$0xff] %vm655, %v649
        %657 = vst.msk [vmem:[%s271 + $0x8] sm:$0xff] %vm655, %v652
        %s658 = sand.u32 %s181, 1
        %s659 = scalar_lea.sflag [#allocation3], %s658
        %s660 = sand.u32 %s181, 1
        %s661 = smul.addr %s660, 16
        %s662 = scalar_lea.vmem [#allocation2], %s661
        // Predicated region
        $region49: #{sm_diffusion_forward.9} parent=47 // pred_check
          %p663 = pneg %p191
        $region50: #{sm_diffusion_forward.9} parent=47 // pred_check_branch
          %665 = sbr.rel (%p663) target = $region52
        $region51: #{sm_diffusion_forward.9} parent=47 // pred_region
          %s667 = ssub.s32 256, 256
          %668 = vsyncadd %s659, %s667
          %s669 = smul.addr %s21, 2
          %s670 = smul.addr %s669, 128
          %s671 = scalar_lea.hbm %s7, %s670
          %s672 = sshll.u32 %s662, 4
          %s673 = int_to_ptr.vmem [resolvable:$true] %s672
          %678 = dma.vmem_to_hbm [thread:$0]  %s673, 256, %s671, %s659, 128, 128, 8
        $region52: #{sm_diffusion_forward.9} parent=47 // pred_fallthru
          _
      $region48: #{sm_diffusion_forward.9} parent=5 // pred_fallthru
        _
      %p679 = scmp.le.s32.totalorder 2, %s16
      // Predicated region
      $region53: #{sm_diffusion_forward.9} parent=5 // pred_check
        %p680 = pneg %p679
      $region54: #{sm_diffusion_forward.9} parent=5 // pred_check_branch
        %682 = sbr.rel (%p680) target = $region56
      $region55: #{sm_diffusion_forward.9} parent=5 // pred_region
        %s683 = ssub.s32 %s16, 2
        // Predicated region
        $region57: #{sm_diffusion_forward.9} parent=55 // pred_check
          %p684 = pneg %p197
        $region58: #{sm_diffusion_forward.9} parent=55 // pred_check_branch
          %686 = sbr.rel (%p684) target = $region60
        $region59: #{sm_diffusion_forward.9} parent=55 // pred_region
          %s687 = sand.u32 %s182, 1
          %s688 = scalar_lea.sflag [#allocation3], %s687
          %s689 = sand.u32 %s182, 1
          %s690 = smul.addr %s689, 16
          %s691 = scalar_lea.vmem [#allocation2], %s690
          %692 = dma.done %s688, 256
        $region60: #{sm_diffusion_forward.9} parent=55 // pred_fallthru
          _
      $region56: #{sm_diffusion_forward.9} parent=5 // pred_fallthru
        _
    $region6: #{sm_diffusion_forward.9} parent=1 // loop_footer
      %s20 = sadd.s32 1, %s16
    $region7: #{sm_diffusion_forward.9} parent=1 // loop_footer_branch
      %15 = sbr.rel target = $region3
    $region8: #{sm_diffusion_forward.9} parent=1 // loop_exit
      _
    %693 = vsyncpa [#allocation3], 1
    %s694 = scalar_lea.sflag [#allocation3], 1
    %695 = vsyncpa %s694, 1

// kernel: sm_diffusion_forward.7
$region0: #{sm_diffusion_forward.7}
  #allocation0 [shape = 'u32[]', space=smem, size = 0x4, offset = 0x4, fixed_abs, tag = 'smem constant byte address 0x4 - core index']
  #allocation1 [shape = 'u32[144,128]{1,0:T(1,128)}', space=vmem, size = 0x12000, scoped, tag = 'internal scratch']
  %s0 = inlined_call_operand.vmem [shape: f32[2,16,128], index: 0, kind: input, shape index: {}]
  %s1 = inlined_call_operand.vmem [shape: f32[2,16,128], index: 1, kind: input, shape index: {}]
  %s2 = inlined_call_operand.vmem [shape: bf16[128,384], index: 2, kind: input, shape index: {}]
  %s3 = inlined_call_operand.hbm [shape: f32[1,384], index: 3, kind: input, shape index: {}]
  %s4 = inlined_call_operand.vmem [shape: bf16[128,128], index: 4, kind: input, shape index: {}]
  %s5 = inlined_call_operand.vmem [shape: f32[1,128], index: 5, kind: input, shape index: {}]
  %s6 = inlined_call_operand.hbm [shape: f32[1,128], index: 6, kind: input, shape index: {}]
  %s7 = inlined_call_operand.hbm [shape: f32[1,128], index: 7, kind: input, shape index: {}]
  %s8 = inlined_call_operand.hbm [shape: f32[3,128], index: 8, kind: input, shape index: {}]
  %s9 = inlined_call_operand.hbm [shape: f32[1,128], index: 9, kind: input, shape index: {}]
  %s10 = inlined_call_operand.vmem [shape: bf16[128,256], index: 10, kind: input, shape index: {}]
  %s11 = inlined_call_operand.hbm [shape: f32[1,256], index: 11, kind: input, shape index: {}]
  %s12 = inlined_call_operand.vmem [shape: bf16[256,128], index: 12, kind: input, shape index: {}]
  %s13 = inlined_call_operand.hbm [shape: f32[1,128], index: 13, kind: input, shape index: {}]
  %s14 = inlined_call_operand.hbm [shape: f32[1,128], index: 14, kind: input, shape index: {}]
  %s15 = inlined_call_operand.hbm [shape: f32[1,128], index: 15, kind: input, shape index: {}]
  %s16 = inlined_call_operand.vmem [shape: bf16[128,256], index: 16, kind: input, shape index: {}]
  %s17 = inlined_call_operand.hbm [shape: f32[1,256], index: 17, kind: input, shape index: {}]
  %s18 = inlined_call_operand.hbm [shape: bf16[256,128], index: 18, kind: input, shape index: {}]
  %s19 = inlined_call_operand.hbm [shape: f32[1,128], index: 19, kind: input, shape index: {}]
  %s20 = inlined_call_operand.hbm [shape: f32[1,128], index: 20, kind: input, shape index: {}]
  %s21 = inlined_call_operand.hbm [shape: f32[1,128], index: 21, kind: input, shape index: {}]
  %s22 = inlined_call_operand.vmem [shape: f32[2,16,128], index: 22, kind: output, shape index: {}]
  %s23 = sld [smem:[#allocation0]]
  $region177: #{sm_diffusion_forward.7} parent=0
    _
  %s25 = ssub.s32 1, %s23
  %s26 = scalar_select 0, %s25, %s23
  $region1: #{sm_diffusion_forward.7} parent=0
    #allocation2 [shape = 'u8[1536]{0}', space=vmem, size = 0x800, scoped, tag = 'input window, operand 3, single buffered']
    #allocation3 [shape = 's32[2]{0}', space=sflag, size = 0x8, scoped, tag = 'scoped memory for sm_diffusion_forward.7']
    #allocation4 [shape = 'u8[512]{0}', space=vmem, size = 0x400, scoped, tag = 'input window, operand 6, single buffered']
    #allocation5 [shape = 's32[1]{0}', space=sflag, size = 0x4, scoped, tag = 'scoped memory for sm_diffusion_forward.7']
    #allocation6 [shape = 'u8[512]{0}', space=vmem, size = 0x400, scoped, tag = 'input window, operand 7, single buffered']
    #allocation7 [shape = 'u8[2048]{0}', space=vmem, size = 0x800, scoped, tag = 'input window, operand 8, single buffered']
    #allocation8 [shape = 's32[1]{0}', space=sflag, size = 0x4, scoped, tag = 'scoped memory for sm_diffusion_forward.7']
    #allocation9 [shape = 'u8[512]{0}', space=vmem, size = 0x400, scoped, tag = 'input window, operand 9, single buffered']
    #allocation10 [shape = 'u8[1024]{0}', space=vmem, size = 0x400, scoped, tag = 'input window, operand 11, single buffered']
    #allocation11 [shape = 's32[1]{0}', space=sflag, size = 0x4, scoped, tag = 'scoped memory for sm_diffusion_forward.7']
    #allocation12 [shape = 'u8[512]{0}', space=vmem, size = 0x400, scoped, tag = 'input window, operand 13, single buffered']
    #allocation13 [shape = 'u8[512]{0}', space=vmem, size = 0x400, scoped, tag = 'input window, operand 14, single buffered']
    #allocation14 [shape = 's32[1]{0}', space=sflag, size = 0x4, scoped, tag = 'scoped memory for sm_diffusion_forward.7']
    #allocation15 [shape = 'u8[512]{0}', space=vmem, size = 0x400, scoped, tag = 'input window, operand 15, single buffered']
    #allocation16 [shape = 'u8[1024]{0}', space=vmem, size = 0x400, scoped, tag = 'input window, operand 17, single buffered']
    #allocation17 [shape = 's32[1]{0}', space=sflag, size = 0x4, scoped, tag = 'scoped memory for sm_diffusion_forward.7']
    #allocation18 [shape = 'u8[65536]{0}', space=vmem, size = 0x10000, scoped, tag = 'input window, operand 18, single buffered']
    #allocation19 [shape = 'u8[512]{0}', space=vmem, size = 0x400, scoped, tag = 'input window, operand 19, single buffered']
    #allocation20 [shape = 's32[1]{0}', space=sflag, size = 0x4, scoped, tag = 'scoped memory for sm_diffusion_forward.7']
    #allocation21 [shape = 'u8[512]{0}', space=vmem, size = 0x400, scoped, tag = 'input window, operand 20, single buffered']
    #allocation22 [shape = 'u8[512]{0}', space=vmem, size = 0x400, scoped, tag = 'input window, operand 21, single buffered']
    #allocation23 [shape = 's32[1]{0}', space=sflag, size = 0x4, scoped, tag = 'scoped memory for sm_diffusion_forward.7']
    %27 = vsyncpa [#allocation3], 0
    %28 = vsyncpa [#allocation5], 0
    %29 = vsyncpa [#allocation8], 0
    %30 = vsyncpa [#allocation11], 0
    %31 = vsyncpa [#allocation14], 0
    %32 = vsyncpa [#allocation17], 0
    %33 = vsyncpa [#allocation20], 0
    %34 = vsyncpa [#allocation23], 0
    loop: start=0, step=1, limit=4
    $region2: #{sm_diffusion_forward.7} parent=1 // loop_pre_header
      _
    $region3: #{sm_diffusion_forward.7} parent=1 // loop_header
      %s36 = sphi 0, %s40
      %p37 = scmp.ge.s32.totalorder %s36, 4
      %s46 = sphi 0, %s48
      %s49 = sphi 0, %s46
      %s50 = sphi 0, %s49
      %s66 = sphi 0, %s50
      %s72 = sphi 0, %s74
      %s75 = sphi 0, %s72
      %s76 = sphi 0, %s75
      %s92 = sphi 0, %s76
      %s96 = sphi 0, %s96
      %s98 = sphi 0, %s96
      %s99 = sphi 0, %s98
      %s113 = sphi 0, %s99
      %s117 = sphi 0, %s117
      %s119 = sphi 0, %s117
      %s120 = sphi 0, %s119
      %s134 = sphi 0, %s120
      %s138 = sphi 0, %s138
      %s140 = sphi 0, %s138
      %s141 = sphi 0, %s140
      %s155 = sphi 0, %s141
      %s159 = sphi 0, %s159
      %s161 = sphi 0, %s159
      %s162 = sphi 0, %s161
      %s176 = sphi 0, %s162
      %s180 = sphi 0, %s180
      %s182 = sphi 0, %s180
      %s183 = sphi 0, %s182
      %s197 = sphi 0, %s183
      %s201 = sphi 0, %s201
      %s203 = sphi 0, %s201
      %s204 = sphi 0, %s203
      %s218 = sphi 0, %s204
      %s222 = sphi 0, %s222
      %s224 = sphi 0, %s222
      %s225 = sphi 0, %s224
      %s239 = sphi 0, %s225
      %s243 = sphi 0, %s243
      %s245 = sphi 0, %s243
      %s246 = sphi 0, %s245
      %s260 = sphi 0, %s246
      %s264 = sphi 0, %s264
      %s266 = sphi 0, %s264
      %s267 = sphi 0, %s266
      %s281 = sphi 0, %s267
      %s285 = sphi 0, %s285
      %s287 = sphi 0, %s285
      %s288 = sphi 0, %s287
      %s302 = sphi 0, %s288
      %s306 = sphi 0, %s306
      %s308 = sphi 0, %s306
      %s309 = sphi 0, %s308
      %s323 = sphi 0, %s309
      %s327 = sphi 0, %s327
      %s329 = sphi 0, %s327
      %s330 = sphi 0, %s329
      %s344 = sphi 0, %s330
      %s348 = sphi 0, %s348
      %s350 = sphi 0, %s348
      %s351 = sphi 0, %s350
      %s365 = sphi 0, %s351
      %s369 = sphi 0, %s369
      %s371 = sphi 0, %s369
      %s372 = sphi 0, %s371
      %s386 = sphi 0, %s372
      %s390 = sphi 0, %s390
      %s392 = sphi 0, %s390
      %s393 = sphi 0, %s392
      %s407 = sphi 0, %s393
      %s411 = sphi 0, %s411
      %s413 = sphi 0, %s411
      %s414 = sphi 0, %s413
      %s428 = sphi 0, %s414
      %s432 = sphi 0, %s432
      %s434 = sphi 0, %s432
      %s435 = sphi 0, %s434
      %s449 = sphi 0, %s435
      %s453 = sphi 0, %s453
      %s455 = sphi 0, %s453
      %s456 = sphi 0, %s455
      %s470 = sphi 0, %s456
      %s474 = sphi 0, %s474
      %s476 = sphi 0, %s474
      %s477 = sphi 0, %s476
      %s491 = sphi 0, %s477
      %s495 = sphi 0, %s495
      %s497 = sphi 0, %s495
      %s498 = sphi 0, %s497
      %s512 = sphi 0, %s498
      %s518 = sphi 0, %s520
      %s521 = sphi 0, %s518
      %s522 = sphi 0, %s521
      %s538 = sphi 0, %s522
    $region4: #{sm_diffusion_forward.7} parent=1 // loop_header_branch
      %39 = sbr.rel (%p37) target = $region8
    $region5: #{sm_diffusion_forward.7} parent=1 // loop_body
      %s41 = ssub.s32 %s36, 1
      %s42 = ssub.s32 %s36, 2
      %s43 = sadd.s32 %s36, 1
      %s44 = ssub.s32 %s36, %s43
      %p45 = scmp.eq.s32.totalorder %s44, 0
      %s47 = sadd.s32 %s46, 1
      %s48 = scalar_select %p45, %s46, %s47
      %p51 = pneg %p45
      %p52 = scmp.eq.s32.totalorder %s36, 1
      %p53 = por %p51, %p52
      %p54 = scmp.ne.s32.totalorder %s46, %s49
      %p55 = scmp.eq.s32.totalorder %s36, 0
      %p56 = por %p54, %p55
      %p57 = scmp.ne.s32.totalorder %s46, %s49
      %p58 = scmp.eq.s32.totalorder %s41, 1
      %p59 = por %p57, %p58
      %p60 = scmp.ne.s32.totalorder %s49, %s50
      %p61 = scmp.eq.s32.totalorder %s41, 0
      %p62 = por %p60, %p61
      %p63 = scmp.ne.s32.totalorder %s49, %s50
      %p64 = scmp.eq.s32.totalorder %s42, 1
      %p65 = por %p63, %p64
      %p67 = scmp.ne.s32.totalorder %s50, %s66
      %p68 = scmp.eq.s32.totalorder %s42, 0
      %p69 = por %p67, %p68
      %s70 = ssub.s32 %s36, %s43
      %p71 = scmp.eq.s32.totalorder %s70, 0
      %s73 = sadd.s32 %s72, 1
      %s74 = scalar_select %p71, %s72, %s73
      %p77 = pneg %p71
      %p78 = scmp.eq.s32.totalorder %s36, 1
      %p79 = por %p77, %p78
      %p80 = scmp.ne.s32.totalorder %s72, %s75
      %p81 = scmp.eq.s32.totalorder %s36, 0
      %p82 = por %p80, %p81
      %p83 = scmp.ne.s32.totalorder %s72, %s75
      %p84 = scmp.eq.s32.totalorder %s41, 1
      %p85 = por %p83, %p84
      %p86 = scmp.ne.s32.totalorder %s75, %s76
      %p87 = scmp.eq.s32.totalorder %s41, 0
      %p88 = por %p86, %p87
      %p89 = scmp.ne.s32.totalorder %s75, %s76
      %p90 = scmp.eq.s32.totalorder %s42, 1
      %p91 = por %p89, %p90
      %p93 = scmp.ne.s32.totalorder %s76, %s92
      %p94 = scmp.eq.s32.totalorder %s42, 0
      %p95 = por %p93, %p94
      %s97 = sadd.s32 %s96, 1
      %p100 = scmp.eq.s32.totalorder %s36, 1
      %p101 = scmp.ne.s32.totalorder %s96, %s98
      %p102 = scmp.eq.s32.totalorder %s36, 0
      %p103 = por %p101, %p102
      %p104 = scmp.ne.s32.totalorder %s96, %s98
      %p105 = scmp.eq.s32.totalorder %s41, 1
      %p106 = por %p104, %p105
      %p107 = scmp.ne.s32.totalorder %s98, %s99
      %p108 = scmp.eq.s32.totalorder %s41, 0
      %p109 = por %p107, %p108
      %p110 = scmp.ne.s32.totalorder %s98, %s99
      %p111 = scmp.eq.s32.totalorder %s42, 1
      %p112 = por %p110, %p111
      %p114 = scmp.ne.s32.totalorder %s99, %s113
      %p115 = scmp.eq.s32.totalorder %s42, 0
      %p116 = por %p114, %p115
      %s118 = sadd.s32 %s117, 1
      %p121 = scmp.eq.s32.totalorder %s36, 1
      %p122 = scmp.ne.s32.totalorder %s117, %s119
      %p123 = scmp.eq.s32.totalorder %s36, 0
      %p124 = por %p122, %p123
      %p125 = scmp.ne.s32.totalorder %s117, %s119
      %p126 = scmp.eq.s32.totalorder %s41, 1
      %p127 = por %p125, %p126
      %p128 = scmp.ne.s32.totalorder %s119, %s120
      %p129 = scmp.eq.s32.totalorder %s41, 0
      %p130 = por %p128, %p129
      %p131 = scmp.ne.s32.totalorder %s119, %s120
      %p132 = scmp.eq.s32.totalorder %s42, 1
      %p133 = por %p131, %p132
      %p135 = scmp.ne.s32.totalorder %s120, %s134
      %p136 = scmp.eq.s32.totalorder %s42, 0
      %p137 = por %p135, %p136
      %s139 = sadd.s32 %s138, 1
      %p142 = scmp.eq.s32.totalorder %s36, 1
      %p143 = scmp.ne.s32.totalorder %s138, %s140
      %p144 = scmp.eq.s32.totalorder %s36, 0
      %p145 = por %p143, %p144
      %p146 = scmp.ne.s32.totalorder %s138, %s140
      %p147 = scmp.eq.s32.totalorder %s41, 1
      %p148 = por %p146, %p147
      %p149 = scmp.ne.s32.totalorder %s140, %s141
      %p150 = scmp.eq.s32.totalorder %s41, 0
      %p151 = por %p149, %p150
      %p152 = scmp.ne.s32.totalorder %s140, %s141
      %p153 = scmp.eq.s32.totalorder %s42, 1
      %p154 = por %p152, %p153
      %p156 = scmp.ne.s32.totalorder %s141, %s155
      %p157 = scmp.eq.s32.totalorder %s42, 0
      %p158 = por %p156, %p157
      %s160 = sadd.s32 %s159, 1
      %p163 = scmp.eq.s32.totalorder %s36, 1
      %p164 = scmp.ne.s32.totalorder %s159, %s161
      %p165 = scmp.eq.s32.totalorder %s36, 0
      %p166 = por %p164, %p165
      %p167 = scmp.ne.s32.totalorder %s159, %s161
      %p168 = scmp.eq.s32.totalorder %s41, 1
      %p169 = por %p167, %p168
      %p170 = scmp.ne.s32.totalorder %s161, %s162
      %p171 = scmp.eq.s32.totalorder %s41, 0
      %p172 = por %p170, %p171
      %p173 = scmp.ne.s32.totalorder %s161, %s162
      %p174 = scmp.eq.s32.totalorder %s42, 1
      %p175 = por %p173, %p174
      %p177 = scmp.ne.s32.totalorder %s162, %s176
      %p178 = scmp.eq.s32.totalorder %s42, 0
      %p179 = por %p177, %p178
      %s181 = sadd.s32 %s180, 1
      %p184 = scmp.eq.s32.totalorder %s36, 1
      %p185 = scmp.ne.s32.totalorder %s180, %s182
      %p186 = scmp.eq.s32.totalorder %s36, 0
      %p187 = por %p185, %p186
      %p188 = scmp.ne.s32.totalorder %s180, %s182
      %p189 = scmp.eq.s32.totalorder %s41, 1
      %p190 = por %p188, %p189
      %p191 = scmp.ne.s32.totalorder %s182, %s183
      %p192 = scmp.eq.s32.totalorder %s41, 0
      %p193 = por %p191, %p192
      %p194 = scmp.ne.s32.totalorder %s182, %s183
      %p195 = scmp.eq.s32.totalorder %s42, 1
      %p196 = por %p194, %p195
      %p198 = scmp.ne.s32.totalorder %s183, %s197
      %p199 = scmp.eq.s32.totalorder %s42, 0
      %p200 = por %p198, %p199
      %s202 = sadd.s32 %s201, 1
      %p205 = scmp.eq.s32.totalorder %s36, 1
      %p206 = scmp.ne.s32.totalorder %s201, %s203
      %p207 = scmp.eq.s32.totalorder %s36, 0
      %p208 = por %p206, %p207
      %p209 = scmp.ne.s32.totalorder %s201, %s203
      %p210 = scmp.eq.s32.totalorder %s41, 1
      %p211 = por %p209, %p210
      %p212 = scmp.ne.s32.totalorder %s203, %s204
      %p213 = scmp.eq.s32.totalorder %s41, 0
      %p214 = por %p212, %p213
      %p215 = scmp.ne.s32.totalorder %s203, %s204
      %p216 = scmp.eq.s32.totalorder %s42, 1
      %p217 = por %p215, %p216
      %p219 = scmp.ne.s32.totalorder %s204, %s218
      %p220 = scmp.eq.s32.totalorder %s42, 0
      %p221 = por %p219, %p220
      %s223 = sadd.s32 %s222, 1
      %p226 = scmp.eq.s32.totalorder %s36, 1
      %p227 = scmp.ne.s32.totalorder %s222, %s224
      %p228 = scmp.eq.s32.totalorder %s36, 0
      %p229 = por %p227, %p228
      %p230 = scmp.ne.s32.totalorder %s222, %s224
      %p231 = scmp.eq.s32.totalorder %s41, 1
      %p232 = por %p230, %p231
      %p233 = scmp.ne.s32.totalorder %s224, %s225
      %p234 = scmp.eq.s32.totalorder %s41, 0
      %p235 = por %p233, %p234
      %p236 = scmp.ne.s32.totalorder %s224, %s225
      %p237 = scmp.eq.s32.totalorder %s42, 1
      %p238 = por %p236, %p237
      %p240 = scmp.ne.s32.totalorder %s225, %s239
      %p241 = scmp.eq.s32.totalorder %s42, 0
      %p242 = por %p240, %p241
      %s244 = sadd.s32 %s243, 1
      %p247 = scmp.eq.s32.totalorder %s36, 1
      %p248 = scmp.ne.s32.totalorder %s243, %s245
      %p249 = scmp.eq.s32.totalorder %s36, 0
      %p250 = por %p248, %p249
      %p251 = scmp.ne.s32.totalorder %s243, %s245
      %p252 = scmp.eq.s32.totalorder %s41, 1
      %p253 = por %p251, %p252
      %p254 = scmp.ne.s32.totalorder %s245, %s246
      %p255 = scmp.eq.s32.totalorder %s41, 0
      %p256 = por %p254, %p255
      %p257 = scmp.ne.s32.totalorder %s245, %s246
      %p258 = scmp.eq.s32.totalorder %s42, 1
      %p259 = por %p257, %p258
      %p261 = scmp.ne.s32.totalorder %s246, %s260
      %p262 = scmp.eq.s32.totalorder %s42, 0
      %p263 = por %p261, %p262
      %s265 = sadd.s32 %s264, 1
      %p268 = scmp.eq.s32.totalorder %s36, 1
      %p269 = scmp.ne.s32.totalorder %s264, %s266
      %p270 = scmp.eq.s32.totalorder %s36, 0
      %p271 = por %p269, %p270
      %p272 = scmp.ne.s32.totalorder %s264, %s266
      %p273 = scmp.eq.s32.totalorder %s41, 1
      %p274 = por %p272, %p273
      %p275 = scmp.ne.s32.totalorder %s266, %s267
      %p276 = scmp.eq.s32.totalorder %s41, 0
      %p277 = por %p275, %p276
      %p278 = scmp.ne.s32.totalorder %s266, %s267
      %p279 = scmp.eq.s32.totalorder %s42, 1
      %p280 = por %p278, %p279
      %p282 = scmp.ne.s32.totalorder %s267, %s281
      %p283 = scmp.eq.s32.totalorder %s42, 0
      %p284 = por %p282, %p283
      %s286 = sadd.s32 %s285, 1
      %p289 = scmp.eq.s32.totalorder %s36, 1
      %p290 = scmp.ne.s32.totalorder %s285, %s287
      %p291 = scmp.eq.s32.totalorder %s36, 0
      %p292 = por %p290, %p291
      %p293 = scmp.ne.s32.totalorder %s285, %s287
      %p294 = scmp.eq.s32.totalorder %s41, 1
      %p295 = por %p293, %p294
      %p296 = scmp.ne.s32.totalorder %s287, %s288
      %p297 = scmp.eq.s32.totalorder %s41, 0
      %p298 = por %p296, %p297
      %p299 = scmp.ne.s32.totalorder %s287, %s288
      %p300 = scmp.eq.s32.totalorder %s42, 1
      %p301 = por %p299, %p300
      %p303 = scmp.ne.s32.totalorder %s288, %s302
      %p304 = scmp.eq.s32.totalorder %s42, 0
      %p305 = por %p303, %p304
      %s307 = sadd.s32 %s306, 1
      %p310 = scmp.eq.s32.totalorder %s36, 1
      %p311 = scmp.ne.s32.totalorder %s306, %s308
      %p312 = scmp.eq.s32.totalorder %s36, 0
      %p313 = por %p311, %p312
      %p314 = scmp.ne.s32.totalorder %s306, %s308
      %p315 = scmp.eq.s32.totalorder %s41, 1
      %p316 = por %p314, %p315
      %p317 = scmp.ne.s32.totalorder %s308, %s309
      %p318 = scmp.eq.s32.totalorder %s41, 0
      %p319 = por %p317, %p318
      %p320 = scmp.ne.s32.totalorder %s308, %s309
      %p321 = scmp.eq.s32.totalorder %s42, 1
      %p322 = por %p320, %p321
      %p324 = scmp.ne.s32.totalorder %s309, %s323
      %p325 = scmp.eq.s32.totalorder %s42, 0
      %p326 = por %p324, %p325
      %s328 = sadd.s32 %s327, 1
      %p331 = scmp.eq.s32.totalorder %s36, 1
      %p332 = scmp.ne.s32.totalorder %s327, %s329
      %p333 = scmp.eq.s32.totalorder %s36, 0
      %p334 = por %p332, %p333
      %p335 = scmp.ne.s32.totalorder %s327, %s329
      %p336 = scmp.eq.s32.totalorder %s41, 1
      %p337 = por %p335, %p336
      %p338 = scmp.ne.s32.totalorder %s329, %s330
      %p339 = scmp.eq.s32.totalorder %s41, 0
      %p340 = por %p338, %p339
      %p341 = scmp.ne.s32.totalorder %s329, %s330
      %p342 = scmp.eq.s32.totalorder %s42, 1
      %p343 = por %p341, %p342
      %p345 = scmp.ne.s32.totalorder %s330, %s344
      %p346 = scmp.eq.s32.totalorder %s42, 0
      %p347 = por %p345, %p346
      %s349 = sadd.s32 %s348, 1
      %p352 = scmp.eq.s32.totalorder %s36, 1
      %p353 = scmp.ne.s32.totalorder %s348, %s350
      %p354 = scmp.eq.s32.totalorder %s36, 0
      %p355 = por %p353, %p354
      %p356 = scmp.ne.s32.totalorder %s348, %s350
      %p357 = scmp.eq.s32.totalorder %s41, 1
      %p358 = por %p356, %p357
      %p359 = scmp.ne.s32.totalorder %s350, %s351
      %p360 = scmp.eq.s32.totalorder %s41, 0
      %p361 = por %p359, %p360
      %p362 = scmp.ne.s32.totalorder %s350, %s351
      %p363 = scmp.eq.s32.totalorder %s42, 1
      %p364 = por %p362, %p363
      %p366 = scmp.ne.s32.totalorder %s351, %s365
      %p367 = scmp.eq.s32.totalorder %s42, 0
      %p368 = por %p366, %p367
      %s370 = sadd.s32 %s369, 1
      %p373 = scmp.eq.s32.totalorder %s36, 1
      %p374 = scmp.ne.s32.totalorder %s369, %s371
      %p375 = scmp.eq.s32.totalorder %s36, 0
      %p376 = por %p374, %p375
      %p377 = scmp.ne.s32.totalorder %s369, %s371
      %p378 = scmp.eq.s32.totalorder %s41, 1
      %p379 = por %p377, %p378
      %p380 = scmp.ne.s32.totalorder %s371, %s372
      %p381 = scmp.eq.s32.totalorder %s41, 0
      %p382 = por %p380, %p381
      %p383 = scmp.ne.s32.totalorder %s371, %s372
      %p384 = scmp.eq.s32.totalorder %s42, 1
      %p385 = por %p383, %p384
      %p387 = scmp.ne.s32.totalorder %s372, %s386
      %p388 = scmp.eq.s32.totalorder %s42, 0
      %p389 = por %p387, %p388
      %s391 = sadd.s32 %s390, 1
      %p394 = scmp.eq.s32.totalorder %s36, 1
      %p395 = scmp.ne.s32.totalorder %s390, %s392
      %p396 = scmp.eq.s32.totalorder %s36, 0
      %p397 = por %p395, %p396
      %p398 = scmp.ne.s32.totalorder %s390, %s392
      %p399 = scmp.eq.s32.totalorder %s41, 1
      %p400 = por %p398, %p399
      %p401 = scmp.ne.s32.totalorder %s392, %s393
      %p402 = scmp.eq.s32.totalorder %s41, 0
      %p403 = por %p401, %p402
      %p404 = scmp.ne.s32.totalorder %s392, %s393
      %p405 = scmp.eq.s32.totalorder %s42, 1
      %p406 = por %p404, %p405
      %p408 = scmp.ne.s32.totalorder %s393, %s407
      %p409 = scmp.eq.s32.totalorder %s42, 0
      %p410 = por %p408, %p409
      %s412 = sadd.s32 %s411, 1
      %p415 = scmp.eq.s32.totalorder %s36, 1
      %p416 = scmp.ne.s32.totalorder %s411, %s413
      %p417 = scmp.eq.s32.totalorder %s36, 0
      %p418 = por %p416, %p417
      %p419 = scmp.ne.s32.totalorder %s411, %s413
      %p420 = scmp.eq.s32.totalorder %s41, 1
      %p421 = por %p419, %p420
      %p422 = scmp.ne.s32.totalorder %s413, %s414
      %p423 = scmp.eq.s32.totalorder %s41, 0
      %p424 = por %p422, %p423
      %p425 = scmp.ne.s32.totalorder %s413, %s414
      %p426 = scmp.eq.s32.totalorder %s42, 1
      %p427 = por %p425, %p426
      %p429 = scmp.ne.s32.totalorder %s414, %s428
      %p430 = scmp.eq.s32.totalorder %s42, 0
      %p431 = por %p429, %p430
      %s433 = sadd.s32 %s432, 1
      %p436 = scmp.eq.s32.totalorder %s36, 1
      %p437 = scmp.ne.s32.totalorder %s432, %s434
      %p438 = scmp.eq.s32.totalorder %s36, 0
      %p439 = por %p437, %p438
      %p440 = scmp.ne.s32.totalorder %s432, %s434
      %p441 = scmp.eq.s32.totalorder %s41, 1
      %p442 = por %p440, %p441
      %p443 = scmp.ne.s32.totalorder %s434, %s435
      %p444 = scmp.eq.s32.totalorder %s41, 0
      %p445 = por %p443, %p444
      %p446 = scmp.ne.s32.totalorder %s434, %s435
      %p447 = scmp.eq.s32.totalorder %s42, 1
      %p448 = por %p446, %p447
      %p450 = scmp.ne.s32.totalorder %s435, %s449
      %p451 = scmp.eq.s32.totalorder %s42, 0
      %p452 = por %p450, %p451
      %s454 = sadd.s32 %s453, 1
      %p457 = scmp.eq.s32.totalorder %s36, 1
      %p458 = scmp.ne.s32.totalorder %s453, %s455
      %p459 = scmp.eq.s32.totalorder %s36, 0
      %p460 = por %p458, %p459
      %p461 = scmp.ne.s32.totalorder %s453, %s455
      %p462 = scmp.eq.s32.totalorder %s41, 1
      %p463 = por %p461, %p462
      %p464 = scmp.ne.s32.totalorder %s455, %s456
      %p465 = scmp.eq.s32.totalorder %s41, 0
      %p466 = por %p464, %p465
      %p467 = scmp.ne.s32.totalorder %s455, %s456
      %p468 = scmp.eq.s32.totalorder %s42, 1
      %p469 = por %p467, %p468
      %p471 = scmp.ne.s32.totalorder %s456, %s470
      %p472 = scmp.eq.s32.totalorder %s42, 0
      %p473 = por %p471, %p472
      %s475 = sadd.s32 %s474, 1
      %p478 = scmp.eq.s32.totalorder %s36, 1
      %p479 = scmp.ne.s32.totalorder %s474, %s476
      %p480 = scmp.eq.s32.totalorder %s36, 0
      %p481 = por %p479, %p480
      %p482 = scmp.ne.s32.totalorder %s474, %s476
      %p483 = scmp.eq.s32.totalorder %s41, 1
      %p484 = por %p482, %p483
      %p485 = scmp.ne.s32.totalorder %s476, %s477
      %p486 = scmp.eq.s32.totalorder %s41, 0
      %p487 = por %p485, %p486
      %p488 = scmp.ne.s32.totalorder %s476, %s477
      %p489 = scmp.eq.s32.totalorder %s42, 1
      %p490 = por %p488, %p489
      %p492 = scmp.ne.s32.totalorder %s477, %s491
      %p493 = scmp.eq.s32.totalorder %s42, 0
      %p494 = por %p492, %p493
      %s496 = sadd.s32 %s495, 1
      %p499 = scmp.eq.s32.totalorder %s36, 1
      %p500 = scmp.ne.s32.totalorder %s495, %s497
      %p501 = scmp.eq.s32.totalorder %s36, 0
      %p502 = por %p500, %p501
      %p503 = scmp.ne.s32.totalorder %s495, %s497
      %p504 = scmp.eq.s32.totalorder %s41, 1
      %p505 = por %p503, %p504
      %p506 = scmp.ne.s32.totalorder %s497, %s498
      %p507 = scmp.eq.s32.totalorder %s41, 0
      %p508 = por %p506, %p507
      %p509 = scmp.ne.s32.totalorder %s497, %s498
      %p510 = scmp.eq.s32.totalorder %s42, 1
      %p511 = por %p509, %p510
      %p513 = scmp.ne.s32.totalorder %s498, %s512
      %p514 = scmp.eq.s32.totalorder %s42, 0
      %p515 = por %p513, %p514
      %s516 = ssub.s32 %s36, %s43
      %p517 = scmp.eq.s32.totalorder %s516, 0
      %s519 = sadd.s32 %s518, 1
      %s520 = scalar_select %p517, %s518, %s519
      %p523 = pneg %p517
      %p524 = scmp.eq.s32.totalorder %s36, 1
      %p525 = por %p523, %p524
      %p526 = scmp.ne.s32.totalorder %s518, %s521
      %p527 = scmp.eq.s32.totalorder %s36, 0
      %p528 = por %p526, %p527
      %p529 = scmp.ne.s32.totalorder %s518, %s521
      %p530 = scmp.eq.s32.totalorder %s41, 1
      %p531 = por %p529, %p530
      %p532 = scmp.ne.s32.totalorder %s521, %s522
      %p533 = scmp.eq.s32.totalorder %s41, 0
      %p534 = por %p532, %p533
      %p535 = scmp.ne.s32.totalorder %s521, %s522
      %p536 = scmp.eq.s32.totalorder %s42, 1
      %p537 = por %p535, %p536
      %p539 = scmp.ne.s32.totalorder %s522, %s538
      %p540 = scmp.eq.s32.totalorder %s42, 0
      %p541 = por %p539, %p540
      %p542 = scmp.le.s32.totalorder 1, %s36
      %p543 = scmp.lt.s32.totalorder %s36, 3
      %p544 = pnand %p542, %p543
      %p545 = pneg %p544
      // Predicated region
      $region9: #{sm_diffusion_forward.7} parent=5 // pred_check
        _
      $region10: #{sm_diffusion_forward.7} parent=5 // pred_check_branch
        %547 = sbr.rel (%p544) target = $region12
      $region11: #{sm_diffusion_forward.7} parent=5 // pred_region
        %s548 = ssub.s32 %s36, 1
        // Predicated region
        $region13: #{sm_diffusion_forward.7} parent=11 // pred_check
          %p549 = pneg %p109
        $region14: #{sm_diffusion_forward.7} parent=11 // pred_check_branch
          %551 = sbr.rel (%p549) target = $region16
        $region15: #{sm_diffusion_forward.7} parent=11 // pred_region
          _
        $region16: #{sm_diffusion_forward.7} parent=11 // pred_fallthru
          _
        // Predicated region
        $region17: #{sm_diffusion_forward.7} parent=11 // pred_check
          %p552 = pneg %p130
        $region18: #{sm_diffusion_forward.7} parent=11 // pred_check_branch
          %554 = sbr.rel (%p552) target = $region20
        $region19: #{sm_diffusion_forward.7} parent=11 // pred_region
          %s556 = ssub.s32 48, 48
          %557 = vsyncadd [#allocation3], %s556
          %s559 = sshll.u32 [#allocation2], 4
          %s560 = int_to_ptr.vmem [resolvable:$true] %s559
          %562 = dma.hbm_to_vmem [thread:$0]  %s3, 48, %s560, [#allocation3]
        $region20: #{sm_diffusion_forward.7} parent=11 // pred_fallthru
          _
        // Predicated region
        $region21: #{sm_diffusion_forward.7} parent=11 // pred_check
          %p563 = pneg %p151
        $region22: #{sm_diffusion_forward.7} parent=11 // pred_check_branch
          %565 = sbr.rel (%p563) target = $region24
        $region23: #{sm_diffusion_forward.7} parent=11 // pred_region
          _
        $region24: #{sm_diffusion_forward.7} parent=11 // pred_fallthru
          _
        // Predicated region
        $region25: #{sm_diffusion_forward.7} parent=11 // pred_check
          %p566 = pneg %p172
        $region26: #{sm_diffusion_forward.7} parent=11 // pred_check_branch
          %568 = sbr.rel (%p566) target = $region28
        $region27: #{sm_diffusion_forward.7} parent=11 // pred_region
          _
        $region28: #{sm_diffusion_forward.7} parent=11 // pred_fallthru
          _
        // Predicated region
        $region29: #{sm_diffusion_forward.7} parent=11 // pred_check
          %p569 = pneg %p193
        $region30: #{sm_diffusion_forward.7} parent=11 // pred_check_branch
          %571 = sbr.rel (%p569) target = $region32
        $region31: #{sm_diffusion_forward.7} parent=11 // pred_region
          %s573 = ssub.s32 16, 16
          %574 = vsyncadd [#allocation5], %s573
          %s576 = sshll.u32 [#allocation4], 4
          %s577 = int_to_ptr.vmem [resolvable:$true] %s576
          %579 = dma.hbm_to_vmem [thread:$0]  %s6, 16, %s577, [#allocation5]
        $region32: #{sm_diffusion_forward.7} parent=11 // pred_fallthru
          _
        // Predicated region
        $region33: #{sm_diffusion_forward.7} parent=11 // pred_check
          %p580 = pneg %p214
        $region34: #{sm_diffusion_forward.7} parent=11 // pred_check_branch
          %582 = sbr.rel (%p580) target = $region36
        $region35: #{sm_diffusion_forward.7} parent=11 // pred_region
          %s584 = ssub.s32 16, 16
          %585 = vsyncadd [#allocation5], %s584
          %s587 = sshll.u32 [#allocation6], 4
          %s588 = int_to_ptr.vmem [resolvable:$true] %s587
          %590 = dma.hbm_to_vmem [thread:$0]  %s7, 16, %s588, [#allocation5]
        $region36: #{sm_diffusion_forward.7} parent=11 // pred_fallthru
          _
        // Predicated region
        $region37: #{sm_diffusion_forward.7} parent=11 // pred_check
          %p591 = pneg %p235
        $region38: #{sm_diffusion_forward.7} parent=11 // pred_check_branch
          %593 = sbr.rel (%p591) target = $region40
        $region39: #{sm_diffusion_forward.7} parent=11 // pred_region
          %s595 = ssub.s32 64, 64
          %596 = vsyncadd [#allocation8], %s595
          %s598 = sshll.u32 [#allocation7], 4
          %s599 = int_to_ptr.vmem [resolvable:$true] %s598
          %601 = dma.hbm_to_vmem [thread:$0]  %s8, 64, %s599, [#allocation8]
        $region40: #{sm_diffusion_forward.7} parent=11 // pred_fallthru
          _
        // Predicated region
        $region41: #{sm_diffusion_forward.7} parent=11 // pred_check
          %p602 = pneg %p256
        $region42: #{sm_diffusion_forward.7} parent=11 // pred_check_branch
          %604 = sbr.rel (%p602) target = $region44
        $region43: #{sm_diffusion_forward.7} parent=11 // pred_region
          %s606 = ssub.s32 16, 16
          %607 = vsyncadd [#allocation8], %s606
          %s609 = sshll.u32 [#allocation9], 4
          %s610 = int_to_ptr.vmem [resolvable:$true] %s609
          %612 = dma.hbm_to_vmem [thread:$0]  %s9, 16, %s610, [#allocation8]
        $region44: #{sm_diffusion_forward.7} parent=11 // pred_fallthru
          _
        // Predicated region
        $region45: #{sm_diffusion_forward.7} parent=11 // pred_check
          %p613 = pneg %p277
        $region46: #{sm_diffusion_forward.7} parent=11 // pred_check_branch
          %615 = sbr.rel (%p613) target = $region48
        $region47: #{sm_diffusion_forward.7} parent=11 // pred_region
          _
        $region48: #{sm_diffusion_forward.7} parent=11 // pred_fallthru
          _
        // Predicated region
        $region49: #{sm_diffusion_forward.7} parent=11 // pred_check
          %p616 = pneg %p298
        $region50: #{sm_diffusion_forward.7} parent=11 // pred_check_branch
          %618 = sbr.rel (%p616) target = $region52
        $region51: #{sm_diffusion_forward.7} parent=11 // pred_region
          %s620 = ssub.s32 32, 32
          %621 = vsyncadd [#allocation11], %s620
          %s623 = sshll.u32 [#allocation10], 4
          %s624 = int_to_ptr.vmem [resolvable:$true] %s623
          %626 = dma.hbm_to_vmem [thread:$0]  %s11, 32, %s624, [#allocation11]
        $region52: #{sm_diffusion_forward.7} parent=11 // pred_fallthru
          _
        // Predicated region
        $region53: #{sm_diffusion_forward.7} parent=11 // pred_check
          %p627 = pneg %p319
        $region54: #{sm_diffusion_forward.7} parent=11 // pred_check_branch
          %629 = sbr.rel (%p627) target = $region56
        $region55: #{sm_diffusion_forward.7} parent=11 // pred_region
          _
        $region56: #{sm_diffusion_forward.7} parent=11 // pred_fallthru
          _
        // Predicated region
        $region57: #{sm_diffusion_forward.7} parent=11 // pred_check
          %p630 = pneg %p340
        $region58: #{sm_diffusion_forward.7} parent=11 // pred_check_branch
          %632 = sbr.rel (%p630) target = $region60
        $region59: #{sm_diffusion_forward.7} parent=11 // pred_region
          %s634 = ssub.s32 16, 16
          %635 = vsyncadd [#allocation11], %s634
          %s637 = sshll.u32 [#allocation12], 4
          %s638 = int_to_ptr.vmem [resolvable:$true] %s637
          %640 = dma.hbm_to_vmem [thread:$0]  %s13, 16, %s638, [#allocation11]
        $region60: #{sm_diffusion_forward.7} parent=11 // pred_fallthru
          _
        // Predicated region
        $region61: #{sm_diffusion_forward.7} parent=11 // pred_check
          %p641 = pneg %p361
        $region62: #{sm_diffusion_forward.7} parent=11 // pred_check_branch
          %643 = sbr.rel (%p641) target = $region64
        $region63: #{sm_diffusion_forward.7} parent=11 // pred_region
          %s645 = ssub.s32 16, 16
          %646 = vsyncadd [#allocation14], %s645
          %s648 = sshll.u32 [#allocation13], 4
          %s649 = int_to_ptr.vmem [resolvable:$true] %s648
          %651 = dma.hbm_to_vmem [thread:$0]  %s14, 16, %s649, [#allocation14]
        $region64: #{sm_diffusion_forward.7} parent=11 // pred_fallthru
          _
        // Predicated region
        $region65: #{sm_diffusion_forward.7} parent=11 // pred_check
          %p652 = pneg %p382
        $region66: #{sm_diffusion_forward.7} parent=11 // pred_check_branch
          %654 = sbr.rel (%p652) target = $region68
        $region67: #{sm_diffusion_forward.7} parent=11 // pred_region
          %s656 = ssub.s32 16, 16
          %657 = vsyncadd [#allocation14], %s656
          %s659 = sshll.u32 [#allocation15], 4
          %s660 = int_to_ptr.vmem [resolvable:$true] %s659
          %662 = dma.hbm_to_vmem [thread:$0]  %s15, 16, %s660, [#allocation14]
        $region68: #{sm_diffusion_forward.7} parent=11 // pred_fallthru
          _
        // Predicated region
        $region69: #{sm_diffusion_forward.7} parent=11 // pred_check
          %p663 = pneg %p403
        $region70: #{sm_diffusion_forward.7} parent=11 // pred_check_branch
          %665 = sbr.rel (%p663) target = $region72
        $region71: #{sm_diffusion_forward.7} parent=11 // pred_region
          _
        $region72: #{sm_diffusion_forward.7} parent=11 // pred_fallthru
          _
        // Predicated region
        $region73: #{sm_diffusion_forward.7} parent=11 // pred_check
          %p666 = pneg %p424
        $region74: #{sm_diffusion_forward.7} parent=11 // pred_check_branch
          %668 = sbr.rel (%p666) target = $region76
        $region75: #{sm_diffusion_forward.7} parent=11 // pred_region
          %s670 = ssub.s32 32, 32
          %671 = vsyncadd [#allocation17], %s670
          %s673 = sshll.u32 [#allocation16], 4
          %s674 = int_to_ptr.vmem [resolvable:$true] %s673
          %676 = dma.hbm_to_vmem [thread:$0]  %s17, 32, %s674, [#allocation17]
        $region76: #{sm_diffusion_forward.7} parent=11 // pred_fallthru
          _
        // Predicated region
        $region77: #{sm_diffusion_forward.7} parent=11 // pred_check
          %p677 = pneg %p445
        $region78: #{sm_diffusion_forward.7} parent=11 // pred_check_branch
          %679 = sbr.rel (%p677) target = $region80
        $region79: #{sm_diffusion_forward.7} parent=11 // pred_region
          %s681 = ssub.s32 2048, 2048
          %682 = vsyncadd [#allocation17], %s681
          %s683 = sshll.u32 [#allocation18], 4
          %s684 = int_to_ptr.vmem [resolvable:$true] %s683
          %689 = dma.hbm_to_vmem [thread:$0]  %s18, 2048, %s684, [#allocation17], 64, 64, 4
        $region80: #{sm_diffusion_forward.7} parent=11 // pred_fallthru
          _
        // Predicated region
        $region81: #{sm_diffusion_forward.7} parent=11 // pred_check
          %p690 = pneg %p466
        $region82: #{sm_diffusion_forward.7} parent=11 // pred_check_branch
          %692 = sbr.rel (%p690) target = $region84
        $region83: #{sm_diffusion_forward.7} parent=11 // pred_region
          %s694 = ssub.s32 16, 16
          %695 = vsyncadd [#allocation20], %s694
          %s697 = sshll.u32 [#allocation19], 4
          %s698 = int_to_ptr.vmem [resolvable:$true] %s697
          %700 = dma.hbm_to_vmem [thread:$0]  %s19, 16, %s698, [#allocation20]
        $region84: #{sm_diffusion_forward.7} parent=11 // pred_fallthru
          _
        // Predicated region
        $region85: #{sm_diffusion_forward.7} parent=11 // pred_check
          %p701 = pneg %p487
        $region86: #{sm_diffusion_forward.7} parent=11 // pred_check_branch
          %703 = sbr.rel (%p701) target = $region88
        $region87: #{sm_diffusion_forward.7} parent=11 // pred_region
          %s705 = ssub.s32 16, 16
          %706 = vsyncadd [#allocation20], %s705
          %s708 = sshll.u32 [#allocation21], 4
          %s709 = int_to_ptr.vmem [resolvable:$true] %s708
          %711 = dma.hbm_to_vmem [thread:$0]  %s20, 16, %s709, [#allocation20]
        $region88: #{sm_diffusion_forward.7} parent=11 // pred_fallthru
          _
        // Predicated region
        $region89: #{sm_diffusion_forward.7} parent=11 // pred_check
          %p712 = pneg %p508
        $region90: #{sm_diffusion_forward.7} parent=11 // pred_check_branch
          %714 = sbr.rel (%p712) target = $region92
        $region91: #{sm_diffusion_forward.7} parent=11 // pred_region
          %s716 = ssub.s32 16, 16
          %717 = vsyncadd [#allocation23], %s716
          %s719 = sshll.u32 [#allocation22], 4
          %s720 = int_to_ptr.vmem [resolvable:$true] %s719
          %722 = dma.hbm_to_vmem [thread:$0]  %s21, 16, %s720, [#allocation23]
        $region92: #{sm_diffusion_forward.7} parent=11 // pred_fallthru
          _
      $region12: #{sm_diffusion_forward.7} parent=5 // pred_fallthru
        _
      %p723 = scmp.lt.s32.totalorder %s36, 2
      // Predicated region
      $region93: #{sm_diffusion_forward.7} parent=5 // pred_check
        %p724 = pneg %p723
      $region94: #{sm_diffusion_forward.7} parent=5 // pred_check_branch
        %726 = sbr.rel (%p724) target = $region96
      $region95: #{sm_diffusion_forward.7} parent=5 // pred_region
        // Predicated region
        $region97: #{sm_diffusion_forward.7} parent=95 // pred_check
          %p727 = pneg %p56
        $region98: #{sm_diffusion_forward.7} parent=95 // pred_check_branch
          %729 = sbr.rel (%p727) target = $region100
        $region99: #{sm_diffusion_forward.7} parent=95 // pred_region
          %p730 = scmp.lt.s32.totalorder %s36, 1
          %s731 = scalar_select %p730, %s36, 1
          %s732 = smul.addr %s731, 2
          %s733 = smul.addr %s732, 8
          %s734 = scalar_lea.vmem %s0, %s733
        $region100: #{sm_diffusion_forward.7} parent=95 // pred_fallthru
          _
        // Predicated region
        $region101: #{sm_diffusion_forward.7} parent=95 // pred_check
          %p735 = pneg %p82
        $region102: #{sm_diffusion_forward.7} parent=95 // pred_check_branch
          %737 = sbr.rel (%p735) target = $region104
        $region103: #{sm_diffusion_forward.7} parent=95 // pred_region
          %p738 = scmp.lt.s32.totalorder %s36, 1
          %s739 = scalar_select %p738, %s36, 1
          %s740 = smul.addr %s739, 2
          %s741 = smul.addr %s740, 8
          %s742 = scalar_lea.vmem %s1, %s741
        $region104: #{sm_diffusion_forward.7} parent=95 // pred_fallthru
          _
      $region96: #{sm_diffusion_forward.7} parent=5 // pred_fallthru
        _
      %p743 = scmp.le.s32.totalorder 1, %s36
      %p744 = scmp.lt.s32.totalorder %s36, 3
      %p745 = pnand %p743, %p744
      %p746 = pneg %p745
      // Predicated region
      $region105: #{sm_diffusion_forward.7} parent=5 // pred_check
        _
      $region106: #{sm_diffusion_forward.7} parent=5 // pred_check_branch
        %748 = sbr.rel (%p745) target = $region108
      $region107: #{sm_diffusion_forward.7} parent=5 // pred_region
        %s749 = ssub.s32 %s36, 1
        // Predicated region
        $region109: #{sm_diffusion_forward.7} parent=107 // pred_check
          %p750 = pneg %p130
        $region110: #{sm_diffusion_forward.7} parent=107 // pred_check_branch
          %752 = sbr.rel (%p750) target = $region112
        $region111: #{sm_diffusion_forward.7} parent=107 // pred_region
          %753 = dma.done [#allocation3], 48
        $region112: #{sm_diffusion_forward.7} parent=107 // pred_fallthru
          _
        // Predicated region
        $region113: #{sm_diffusion_forward.7} parent=107 // pred_check
          %p754 = pneg %p193
        $region114: #{sm_diffusion_forward.7} parent=107 // pred_check_branch
          %756 = sbr.rel (%p754) target = $region116
        $region115: #{sm_diffusion_forward.7} parent=107 // pred_region
          %757 = dma.done [#allocation5], 16
        $region116: #{sm_diffusion_forward.7} parent=107 // pred_fallthru
          _
        // Predicated region
        $region117: #{sm_diffusion_forward.7} parent=107 // pred_check
          %p758 = pneg %p214
        $region118: #{sm_diffusion_forward.7} parent=107 // pred_check_branch
          %760 = sbr.rel (%p758) target = $region120
        $region119: #{sm_diffusion_forward.7} parent=107 // pred_region
          %761 = dma.done [#allocation5], 16
        $region120: #{sm_diffusion_forward.7} parent=107 // pred_fallthru
          _
        // Predicated region
        $region121: #{sm_diffusion_forward.7} parent=107 // pred_check
          %p762 = pneg %p235
        $region122: #{sm_diffusion_forward.7} parent=107 // pred_check_branch
          %764 = sbr.rel (%p762) target = $region124
        $region123: #{sm_diffusion_forward.7} parent=107 // pred_region
          %765 = dma.done [#allocation8], 64
        $region124: #{sm_diffusion_forward.7} parent=107 // pred_fallthru
          _
        // Predicated region
        $region125: #{sm_diffusion_forward.7} parent=107 // pred_check
          %p766 = pneg %p256
        $region126: #{sm_diffusion_forward.7} parent=107 // pred_check_branch
          %768 = sbr.rel (%p766) target = $region128
        $region127: #{sm_diffusion_forward.7} parent=107 // pred_region
          %769 = dma.done [#allocation8], 16
        $region128: #{sm_diffusion_forward.7} parent=107 // pred_fallthru
          _
        // Predicated region
        $region129: #{sm_diffusion_forward.7} parent=107 // pred_check
          %p770 = pneg %p298
        $region130: #{sm_diffusion_forward.7} parent=107 // pred_check_branch
          %772 = sbr.rel (%p770) target = $region132
        $region131: #{sm_diffusion_forward.7} parent=107 // pred_region
          %773 = dma.done [#allocation11], 32
        $region132: #{sm_diffusion_forward.7} parent=107 // pred_fallthru
          _
        // Predicated region
        $region133: #{sm_diffusion_forward.7} parent=107 // pred_check
          %p774 = pneg %p340
        $region134: #{sm_diffusion_forward.7} parent=107 // pred_check_branch
          %776 = sbr.rel (%p774) target = $region136
        $region135: #{sm_diffusion_forward.7} parent=107 // pred_region
          %777 = dma.done [#allocation11], 16
        $region136: #{sm_diffusion_forward.7} parent=107 // pred_fallthru
          _
        // Predicated region
        $region137: #{sm_diffusion_forward.7} parent=107 // pred_check
          %p778 = pneg %p361
        $region138: #{sm_diffusion_forward.7} parent=107 // pred_check_branch
          %780 = sbr.rel (%p778) target = $region140
        $region139: #{sm_diffusion_forward.7} parent=107 // pred_region
          %781 = dma.done [#allocation14], 16
        $region140: #{sm_diffusion_forward.7} parent=107 // pred_fallthru
          _
        // Predicated region
        $region141: #{sm_diffusion_forward.7} parent=107 // pred_check
          %p782 = pneg %p382
        $region142: #{sm_diffusion_forward.7} parent=107 // pred_check_branch
          %784 = sbr.rel (%p782) target = $region144
        $region143: #{sm_diffusion_forward.7} parent=107 // pred_region
          %785 = dma.done [#allocation14], 16
        $region144: #{sm_diffusion_forward.7} parent=107 // pred_fallthru
          _
        // Predicated region
        $region145: #{sm_diffusion_forward.7} parent=107 // pred_check
          %p786 = pneg %p424
        $region146: #{sm_diffusion_forward.7} parent=107 // pred_check_branch
          %788 = sbr.rel (%p786) target = $region148
        $region147: #{sm_diffusion_forward.7} parent=107 // pred_region
          %789 = dma.done [#allocation17], 32
        $region148: #{sm_diffusion_forward.7} parent=107 // pred_fallthru
          _
        // Predicated region
        $region149: #{sm_diffusion_forward.7} parent=107 // pred_check
          %p790 = pneg %p445
        $region150: #{sm_diffusion_forward.7} parent=107 // pred_check_branch
          %792 = sbr.rel (%p790) target = $region152
        $region151: #{sm_diffusion_forward.7} parent=107 // pred_region
          %793 = dma.done [#allocation17], 2048
        $region152: #{sm_diffusion_forward.7} parent=107 // pred_fallthru
          _
        // Predicated region
        $region153: #{sm_diffusion_forward.7} parent=107 // pred_check
          %p794 = pneg %p466
        $region154: #{sm_diffusion_forward.7} parent=107 // pred_check_branch
          %796 = sbr.rel (%p794) target = $region156
        $region155: #{sm_diffusion_forward.7} parent=107 // pred_region
          %797 = dma.done [#allocation20], 16
        $region156: #{sm_diffusion_forward.7} parent=107 // pred_fallthru
          _
        // Predicated region
        $region157: #{sm_diffusion_forward.7} parent=107 // pred_check
          %p798 = pneg %p487
        $region158: #{sm_diffusion_forward.7} parent=107 // pred_check_branch
          %800 = sbr.rel (%p798) target = $region160
        $region159: #{sm_diffusion_forward.7} parent=107 // pred_region
          %801 = dma.done [#allocation20], 16
        $region160: #{sm_diffusion_forward.7} parent=107 // pred_fallthru
          _
        // Predicated region
        $region161: #{sm_diffusion_forward.7} parent=107 // pred_check
          %p802 = pneg %p508
        $region162: #{sm_diffusion_forward.7} parent=107 // pred_check_branch
          %804 = sbr.rel (%p802) target = $region164
        $region163: #{sm_diffusion_forward.7} parent=107 // pred_region
          %805 = dma.done [#allocation23], 16
        $region164: #{sm_diffusion_forward.7} parent=107 // pred_fallthru
          _
        %p806 = scmp.lt.s32.totalorder %s41, 1
        %s807 = scalar_select %p806, %s41, 1
        %s808 = smul.addr %s807, 2
        %s809 = smul.addr %s808, 8
        %s810 = scalar_lea.vmem %s0, %s809
        %p811 = pneg %p62
        %p812 = pneg %p59
        %p813 = scmp.lt.s32.totalorder %s41, 1
        %s814 = scalar_select %p813, %s41, 1
        %s815 = smul.addr %s814, 2
        %s816 = smul.addr %s815, 8
        %s817 = scalar_lea.vmem %s1, %s816
        %p818 = pneg %p88
        %p819 = pneg %p85
        %p820 = pneg %p109
        %p821 = pneg %p106
        %p822 = pneg %p130
        %p823 = pneg %p127
        %p824 = pneg %p151
        %p825 = pneg %p148
        %p826 = pneg %p172
        %p827 = pneg %p169
        %p828 = pneg %p193
        %p829 = pneg %p190
        %p830 = pneg %p214
        %p831 = pneg %p211
        %p832 = pneg %p235
        %p833 = pneg %p232
        %p834 = pneg %p256
        %p835 = pneg %p253
        %p836 = pneg %p277
        %p837 = pneg %p274
        %p838 = pneg %p298
        %p839 = pneg %p295
        %p840 = pneg %p319
        %p841 = pneg %p316
        %p842 = pneg %p340
        %p843 = pneg %p337
        %p844 = pneg %p361
        %p845 = pneg %p358
        %p846 = pneg %p382
        %p847 = pneg %p379
        %p848 = pneg %p403
        %p849 = pneg %p400
        %p850 = pneg %p424
        %p851 = pneg %p421
        %p852 = pneg %p445
        %p853 = pneg %p442
        %p854 = pneg %p466
        %p855 = pneg %p463
        %p856 = pneg %p487
        %p857 = pneg %p484
        %p858 = pneg %p508
        %p859 = pneg %p505
        %p860 = pneg %p534
        %p861 = pneg %p531
        %p862 = scmp.lt.s32.totalorder %s41, 1
        %s863 = scalar_select %p862, %s41, 1
        %s864 = smul.addr %s863, 2
        %s865 = smul.addr %s864, 8
        %s866 = scalar_lea.vmem %s22, %s865
        %p867 = scmp.lt.s32.totalorder %s41, 1
        %s868 = scalar_select %p867, %s41, 1
        %s869 = smul.addr %s868, 2
        %s870 = smul.addr %s869, 8
        %s871 = scalar_lea.vmem %s0, %s870
        %p872 = scmp.lt.s32.totalorder %s41, 1
        %s873 = scalar_select %p872, %s41, 1
        %s874 = smul.addr %s873, 2
        %s875 = smul.addr %s874, 8
        %s876 = scalar_lea.vmem %s1, %s875
        %p877 = scmp.lt.s32.totalorder %s41, 1
        %s878 = scalar_select %p877, %s41, 1
        %s879 = smul.addr %s878, 2
        %s880 = smul.addr %s879, 8
        %s881 = scalar_lea.vmem %s22, %s880
        %v883 = vld [vmem:[%s871] sm:$0xff]
        %v884 = vld [vmem:[%s871 + $0x8] sm:$0xff]
        %v885 = vld [vmem:[%s876] sm:$0xff]
        %v886 = vld [vmem:[%s876 + $0x8] sm:$0xff]
        %v887 = vadd.f32 %v883, %v885
        %v888 = vadd.f32 %v884, %v886
        %v889 = vpack.c.bf16 %v888, %v887
        %v890 = vld [vmem:[%s2] sm:$0xff]
        %v891 = vld [vmem:[%s2 + $0x8] sm:$0xf]
        %v892 = vld [vmem:[%s2 + $0xc] sm:$0xff]
        %v893 = vld [vmem:[%s2 + $0x14] sm:$0xf]
        %v894 = vld [vmem:[%s2 + $0x18] sm:$0xff]
        %v895 = vld [vmem:[%s2 + $0x20] sm:$0xf]
        %v896 = vld [vmem:[%s2 + $0x24] sm:$0xff]
        %v897 = vld [vmem:[%s2 + $0x2c] sm:$0xf]
        %v898 = vld [vmem:[%s2 + $0x30] sm:$0xff]
        %v899 = vld [vmem:[%s2 + $0x38] sm:$0xf]
        %v900 = vld [vmem:[%s2 + $0x3c] sm:$0xff]
        %v901 = vld [vmem:[%s2 + $0x44] sm:$0xf]
        %v902 = vld [vmem:[%s2 + $0x48] sm:$0xff]
        %v903 = vld [vmem:[%s2 + $0x50] sm:$0xf]
        %v904 = vld [vmem:[%s2 + $0x54] sm:$0xff]
        %v905 = vld [vmem:[%s2 + $0x5c] sm:$0xf]
        %v906 = vld [vmem:[%s2 + $0x60] sm:$0xff]
        %v907 = vld [vmem:[%s2 + $0x68] sm:$0xf]
        %v908 = vld [vmem:[%s2 + $0x6c] sm:$0xff]
        %v909 = vld [vmem:[%s2 + $0x74] sm:$0xf]
        %v910 = vld [vmem:[%s2 + $0x78] sm:$0xff]
        %v911 = vld [vmem:[%s2 + $0x80] sm:$0xf]
        %v912 = vld [vmem:[%s2 + $0x84] sm:$0xff]
        %v913 = vld [vmem:[%s2 + $0x8c] sm:$0xf]
        %v914 = vld [vmem:[%s2 + $0x90] sm:$0xff]
        %v915 = vld [vmem:[%s2 + $0x98] sm:$0xf]
        %v916 = vld [vmem:[%s2 + $0x9c] sm:$0xff]
        %v917 = vld [vmem:[%s2 + $0xa4] sm:$0xf]
        %v918 = vld [vmem:[%s2 + $0xa8] sm:$0xff]
        %v919 = vld [vmem:[%s2 + $0xb0] sm:$0xf]
        %v920 = vld [vmem:[%s2 + $0xb4] sm:$0xff]
        %v921 = vld [vmem:[%s2 + $0xbc] sm:$0xf]
        %v922 = vld [vmem:[#allocation2] sm:$0x7]
        %v924 = vlaneseq
        %v925 = vshrl.u32 %v924, 7
        %v926 = vsub.s32 0, %v925
        %v927 = vrot.slane %v922, %v926
        %v928 = vlaneseq
        %v929 = vshrl.u32 %v928, 7
        %v930 = vsub.s32 1, %v929
        %v931 = vrot.slane %v922, %v930
        %v932 = vlaneseq
        %v933 = vshrl.u32 %v932, 7
        %v934 = vsub.s32 2, %v933
        %v935 = vrot.slane %v922, %v934
        %v971 = vunpack.c.l.b16 %v890
        %v972 = vunpack.c.h.b16 %v890
        %v973 = vunpack.c.l.b16 %v891
        %v974 = vunpack.c.l.b16 %v892
        %v975 = vunpack.c.h.b16 %v892
        %v976 = vunpack.c.l.b16 %v893
        %v977 = vunpack.c.l.b16 %v894
        %v978 = vunpack.c.h.b16 %v894
        %v979 = vunpack.c.l.b16 %v895
        %v980 = vunpack.c.l.b16 %v896
        %v981 = vunpack.c.h.b16 %v896
        %v982 = vunpack.c.l.b16 %v897
        %v983 = vunpack.c.l.b16 %v898
        %v984 = vunpack.c.h.b16 %v898
        %v985 = vunpack.c.l.b16 %v899
        %v986 = vunpack.c.l.b16 %v900
        %v987 = vunpack.c.h.b16 %v900
        %v988 = vunpack.c.l.b16 %v901
        %v989 = vunpack.c.l.b16 %v902
        %v990 = vunpack.c.h.b16 %v902
        %v991 = vunpack.c.l.b16 %v903
        %v992 = vunpack.c.l.b16 %v904
        %v993 = vunpack.c.h.b16 %v904
        %v994 = vunpack.c.l.b16 %v905
        %v995 = vunpack.c.l.b16 %v906
        %v996 = vunpack.c.h.b16 %v906
        %v997 = vunpack.c.l.b16 %v907
        %v998 = vunpack.c.l.b16 %v908
        %v999 = vunpack.c.h.b16 %v908
        %v1000 = vunpack.c.l.b16 %v909
        %v1001 = vunpack.c.l.b16 %v910
        %v1002 = vunpack.c.h.b16 %v910
        %v1003 = vunpack.c.l.b16 %v911
        %v1004 = vunpack.c.l.b16 %v912
        %v1005 = vunpack.c.h.b16 %v912
        %v1006 = vunpack.c.l.b16 %v913
        %v1007 = vunpack.c.l.b16 %v914
        %v1008 = vunpack.c.h.b16 %v914
        %v1009 = vunpack.c.l.b16 %v915
        %v1010 = vunpack.c.l.b16 %v916
        %v1011 = vunpack.c.h.b16 %v916
        %v1012 = vunpack.c.l.b16 %v917
        %v1013 = vunpack.c.l.b16 %v918
        %v1014 = vunpack.c.h.b16 %v918
        %v1015 = vunpack.c.l.b16 %v919
        %v1016 = vunpack.c.l.b16 %v920
        %v1017 = vunpack.c.h.b16 %v920
        %v1018 = vunpack.c.l.b16 %v921
        %v1019 = vpack.c.b16 %v974, %v971
        %v1020 = vpack.c.b16 %v975, %v972
        %v1021 = vpack.c.b16 %v976, %v973
        %v1022 = vpack.c.b16 %v980, %v977
        %v1023 = vpack.c.b16 %v981, %v978
        %v1024 = vpack.c.b16 %v982, %v979
        %v1025 = vpack.c.b16 %v986, %v983
        %v1026 = vpack.c.b16 %v987, %v984
        %v1027 = vpack.c.b16 %v988, %v985
        %v1028 = vpack.c.b16 %v992, %v989
        %v1029 = vpack.c.b16 %v993, %v990
        %v1030 = vpack.c.b16 %v994, %v991
        %v1031 = vpack.c.b16 %v998, %v995
        %v1032 = vpack.c.b16 %v999, %v996
        %v1033 = vpack.c.b16 %v1000, %v997
        %v1034 = vpack.c.b16 %v1004, %v1001
        %v1035 = vpack.c.b16 %v1005, %v1002
        %v1036 = vpack.c.b16 %v1006, %v1003
        %v1037 = vpack.c.b16 %v1010, %v1007
        %v1038 = vpack.c.b16 %v1011, %v1008
        %v1039 = vpack.c.b16 %v1012, %v1009
        %v1040 = vpack.c.b16 %v1016, %v1013
        %v1041 = vpack.c.b16 %v1017, %v1014
        %v1042 = vpack.c.b16 %v1018, %v1015
        %1067 = vmatprep.subr.bf16.mxu0 %v1041
        %1068 = vmatpush1.bf16.msra.mxu0 %v1040
        %1069 = vmatprep.subr.bf16.mxu0 %v1038
        %1070 = vmatpush1.bf16.msra.mxu0 %v1037
        %1071 = vmatprep.subr.bf16.mxu0 %v1035
        %1072 = vmatpush1.bf16.msra.mxu0 %v1034
        %1073 = vmatprep.subr.bf16.mxu0 %v1032
        %1074 = vmatpush1.bf16.msra.mxu0 %v1031
        %1075 = vmatprep.subr.bf16.mxu0 %v1029
        %1076 = vmatpush1.bf16.msra.mxu0 %v1028
        %1077 = vmatprep.subr.bf16.mxu0 %v1026
        %1078 = vmatpush1.bf16.msra.mxu0 %v1025
        %1079 = vmatprep.subr.bf16.mxu0 %v1023
        %1080 = vmatpush1.bf16.msra.mxu0 %v1022
        %1081 = vmatprep.subr.bf16.mxu0 %v1020
        %1082 = vmatpush1.bf16.msra.mxu0 %v1019
        %1083 = vmatprep.subr.bf16.mxu0 0
        %1084 = vmatpush2.bf16.msra.mxu0 0
        %1085 = vmatprep.subr.bf16.mxu0 0
        %1086 = vmatpush2.bf16.msra.mxu0 0
        %1087 = vmatprep.subr.bf16.mxu0 0
        %1088 = vmatpush2.bf16.msra.mxu0 0
        %1089 = vmatprep.subr.bf16.mxu0 0
        %1090 = vmatpush2.bf16.msra.mxu0 0
        %1091 = vmatprep.subr.bf16.mxu0 0
        %1092 = vmatpush2.bf16.msra.mxu0 0
        %1093 = vmatprep.subr.bf16.mxu0 0
        %1094 = vmatpush2.bf16.msra.mxu0 0
        %1095 = vmatprep.subr.bf16.mxu0 0
        %1096 = vmatpush2.bf16.msra.mxu0 0
        %1097 = vmatprep.subr.bf16.mxu0 0
        %1098 = vmatpush2.bf16.msra.mxu0 0
        %1099 = vmatprep.mubr.bf16.mxu0 0
        %1100 = vmatmul.mubr.bf16.gmra.mxu0 %v889
        %v1101 = vpop.f32.mrf.mxu0
        %v1102 = vadd.f32 %v927, %v1101
        %v1103 = vpop.f32.mrf.mxu0
        %v1104 = vadd.f32 %v931, %v1103
        %v1105 = vpop.f32.mrf.mxu0
        %v1106 = vadd.f32 %v927, %v1105
        %v1107 = vpop.f32.mrf.mxu0
        %v1108 = vadd.f32 %v931, %v1107
        %1109 = vdwg.mxu0
        %1110 = vmatprep.subr.bf16.mxu0 0
        %1111 = vmatpush1.bf16.msra.mxu0 %v1042
        %1112 = vmatprep.subr.bf16.mxu0 0
        %1113 = vmatpush1.bf16.msra.mxu0 %v1039
        %1114 = vmatprep.subr.bf16.mxu0 0
        %1115 = vmatpush1.bf16.msra.mxu0 %v1036
        %1116 = vmatprep.subr.bf16.mxu0 0
        %1117 = vmatpush1.bf16.msra.mxu0 %v1033
        %1118 = vmatprep.subr.bf16.mxu0 0
        %1119 = vmatpush1.bf16.msra.mxu0 %v1030
        %1120 = vmatprep.subr.bf16.mxu0 0
        %1121 = vmatpush1.bf16.msra.mxu0 %v1027
        %1122 = vmatprep.subr.bf16.mxu0 0
        %1123 = vmatpush1.bf16.msra.mxu0 %v1024
        %1124 = vmatprep.subr.bf16.mxu0 0
        %1125 = vmatpush1.bf16.msra.mxu0 %v1021
        %1126 = vmatprep.subr.bf16.mxu0 0
        %1127 = vmatpush2.bf16.msra.mxu0 0
        %1128 = vmatprep.subr.bf16.mxu0 0
        %1129 = vmatpush2.bf16.msra.mxu0 0
        %1130 = vmatprep.subr.bf16.mxu0 0
        %1131 = vmatpush2.bf16.msra.mxu0 0
        %1132 = vmatprep.subr.bf16.mxu0 0
        %1133 = vmatpush2.bf16.msra.mxu0 0
        %1134 = vmatprep.subr.bf16.mxu0 0
        %1135 = vmatpush2.bf16.msra.mxu0 0
        %1136 = vmatprep.subr.bf16.mxu0 0
        %1137 = vmatpush2.bf16.msra.mxu0 0
        %1138 = vmatprep.subr.bf16.mxu0 0
        %1139 = vmatpush2.bf16.msra.mxu0 0
        %1140 = vmatprep.subr.bf16.mxu0 0
        %1141 = vmatpush2.bf16.msra.mxu0 0
        %1142 = vmatprep.mubr.bf16.mxu0 0
        %1143 = vmatmul.mubr.bf16.gmra.mxu0 %v889
        %v1144 = vpop.f32.mrf.mxu0
        %v1145 = vadd.f32 %v935, %v1144
        %v1146 = vpop.f32.mrf.mxu0
        %v1147 = vpop.f32.mrf.mxu0
        %v1148 = vadd.f32 %v935, %v1147
        %v1149 = vpop.f32.mrf.mxu0
        %1150 = vdwg.mxu0
        %v1151 = vpack.c.bf16 %v1106, %v1102
        %v1152 = vpack.c.bf16 %v1108, %v1104
        %vm1153 = vcmask 261120
        %v1155 = vsel %vm1153, %v1151, 0
        %v1158 = vsel %vm1153, %v1152, 0
        %1160 = vmatprep.subr.bf16.mxu0 0
        %1161 = vmatpush1.bf16.xpose.msra.mxu0 0
        %1162 = vmatprep.subr.bf16.mxu0 0
        %1163 = vmatpush1.bf16.xpose.msra.mxu0 0
        %1164 = vmatprep.subr.bf16.mxu0 0
        %1165 = vmatpush1.bf16.xpose.msra.mxu0 0
        %1166 = vmatprep.subr.bf16.mxu0 0
        %1167 = vmatpush1.bf16.xpose.msra.mxu0 0
        %1168 = vmatprep.subr.bf16.mxu0 0
        %1169 = vmatpush1.bf16.xpose.msra.mxu0 0
        %1170 = vmatprep.subr.bf16.mxu0 0
        %1171 = vmatpush1.bf16.xpose.msra.mxu0 0
        %1172 = vmatprep.subr.bf16.mxu0 0
        %1173 = vmatpush1.bf16.xpose.msra.mxu0 0
        %1174 = vmatprep.subr.bf16.mxu0 0
        %1175 = vmatpush1.bf16.xpose.msra.mxu0 %v1158
        %1176 = vmatprep.subr.bf16.mxu0 0
        %1177 = vmatpush2.bf16.xpose.msra.mxu0 0
        %1178 = vmatprep.subr.bf16.mxu0 0
        %1179 = vmatpush2.bf16.xpose.msra.mxu0 0
        %1180 = vmatprep.subr.bf16.mxu0 0
        %1181 = vmatpush2.bf16.xpose.msra.mxu0 0
        %1182 = vmatprep.subr.bf16.mxu0 0
        %1183 = vmatpush2.bf16.xpose.msra.mxu0 0
        %1184 = vmatprep.subr.bf16.mxu0 0
        %1185 = vmatpush2.bf16.xpose.msra.mxu0 0
        %1186 = vmatprep.subr.bf16.mxu0 0
        %1187 = vmatpush2.bf16.xpose.msra.mxu0 0
        %1188 = vmatprep.subr.bf16.mxu0 0
        %1189 = vmatpush2.bf16.xpose.msra.mxu0 0
        %1190 = vmatprep.subr.bf16.mxu0 0
        %1191 = vmatpush2.bf16.xpose.msra.mxu0 0
        %1192 = vmatprep.mubr.bf16.mxu0 0
        %1193 = vmatmul.mubr.bf16.gmra.mxu0 %v1155
        %v1194 = vpop.f32.mrf.mxu0
        %v1195 = vadd.f32 0.0, %v1194
        %v1196 = vpop.f32.mrf.mxu0
        %v1197 = vpop.f32.mrf.mxu0
        %v1198 = vadd.f32 0.0, %v1197
        %v1199 = vpop.f32.mrf.mxu0
        %1200 = vdwg.mxu0
        %v1201 = vmul.f32 %v1195, 0.17677669
        %v1202 = vmul.f32 %v1198, 0.17677669
        %vm1203 = vcmask 130048
        %v1204 = vsel %vm1203, %v1201, -inf
        %1205 = vmax.xlane.f32.xlu0 %v1204
        %v1206 = vpop.xlane.xlu0 %1205
        %v1207 = vsel %vm1203, %v1202, -inf
        %1208 = vmax.xlane.f32.xlu0 %v1207
        %v1209 = vpop.xlane.xlu0 %1208
        %v1210 = vsub.f32 %v1201, %v1206
        %v1211 = vsub.f32 %v1202, %v1209
        %v1212 = vmul.f32 %v1210, 1.442695
        %v1213 = vpow.pop %v1212
        %v1214 = vmul.f32 %v1211, 1.442695
        %v1215 = vpow.pop %v1214
        %v1216 = vsel %vm1203, %v1213, 0.0
        %1217 = vadd.xlane.f32.xlu0 %v1216
        %v1218 = vpop.xlane.xlu0 %1217
        %v1219 = vsel %vm1203, %v1215, 0.0
        %1220 = vadd.xlane.f32.xlu0 %v1219
        %v1221 = vpop.xlane.xlu0 %1220
        %v1222 = vrcp.pop %v1218
        %v1223 = vrcp.pop %v1221
        %v1224 = vmul.f32 %v1213, %v1222
        %v1225 = vmul.f32 %v1215, %v1223
        %v1226 = vpack.c.bf16 %v1225, %v1224
        %v1227 = vpack.c.bf16 %v1148, %v1145
        %v1229 = vsel %vm1203, %v1226, 0
        %1231 = vmatprep.subr.bf16.mxu0 0
        %1232 = vmatpush1.bf16.msra.mxu0 0
        %1233 = vmatprep.subr.bf16.mxu0 0
        %1234 = vmatpush1.bf16.msra.mxu0 0
        %1235 = vmatprep.subr.bf16.mxu0 0
        %1236 = vmatpush1.bf16.msra.mxu0 0
        %1237 = vmatprep.subr.bf16.mxu0 0
        %1238 = vmatpush1.bf16.msra.mxu0 0
        %1239 = vmatprep.subr.bf16.mxu0 0
        %1240 = vmatpush1.bf16.msra.mxu0 0
        %1241 = vmatprep.subr.bf16.mxu0 0
        %1242 = vmatpush1.bf16.msra.mxu0 0
        %1243 = vmatprep.subr.bf16.mxu0 0
        %1244 = vmatpush1.bf16.msra.mxu0 0
        %1245 = vmatprep.subr.bf16.mxu0 0
        %1246 = vmatpush1.bf16.msra.mxu0 %v1227
        %1247 = vmatprep.subr.bf16.mxu0 0
        %1248 = vmatpush2.bf16.msra.mxu0 0
        %1249 = vmatprep.subr.bf16.mxu0 0
        %1250 = vmatpush2.bf16.msra.mxu0 0
        %1251 = vmatprep.subr.bf16.mxu0 0
        %1252 = vmatpush2.bf16.msra.mxu0 0
        %1253 = vmatprep.subr.bf16.mxu0 0
        %1254 = vmatpush2.bf16.msra.mxu0 0
        %1255 = vmatprep.subr.bf16.mxu0 0
        %1256 = vmatpush2.bf16.msra.mxu0 0
        %1257 = vmatprep.subr.bf16.mxu0 0
        %1258 = vmatpush2.bf16.msra.mxu0 0
        %1259 = vmatprep.subr.bf16.mxu0 0
        %1260 = vmatpush2.bf16.msra.mxu0 0
        %1261 = vmatprep.subr.bf16.mxu0 0
        %1262 = vmatpush2.bf16.msra.mxu0 0
        %1263 = vmatprep.mubr.bf16.mxu0 0
        %1264 = vmatmul.mubr.bf16.gmra.mxu0 %v1229
        %v1265 = vpop.f32.mrf.mxu0
        %v1266 = vadd.f32 0.0, %v1265
        %v1267 = vpop.f32.mrf.mxu0
        %v1268 = vpop.f32.mrf.mxu0
        %v1269 = vadd.f32 0.0, %v1268
        %v1270 = vpop.f32.mrf.mxu0
        %1271 = vdwg.mxu0
        %1273 = vrot.lane.b32.xlu0 %v1151, 96
        %v1274 = vpop.permute.xlu0 %1273
        %1276 = vrot.lane.b32.xlu0 %v1152, 96
        %v1277 = vpop.permute.xlu0 %1276
        %v1279 = vsel %vm1153, %v1274, 0
        %v1282 = vsel %vm1153, %v1277, 0
        %1284 = vmatprep.subr.bf16.mxu0 0
        %1285 = vmatpush1.bf16.xpose.msra.mxu0 0
        %1286 = vmatprep.subr.bf16.mxu0 0
        %1287 = vmatpush1.bf16.xpose.msra.mxu0 0
        %1288 = vmatprep.subr.bf16.mxu0 0
        %1289 = vmatpush1.bf16.xpose.msra.mxu0 0
        %1290 = vmatprep.subr.bf16.mxu0 0
        %1291 = vmatpush1.bf16.xpose.msra.mxu0 0
        %1292 = vmatprep.subr.bf16.mxu0 0
        %1293 = vmatpush1.bf16.xpose.msra.mxu0 0
        %1294 = vmatprep.subr.bf16.mxu0 0
        %1295 = vmatpush1.bf16.xpose.msra.mxu0 0
        %1296 = vmatprep.subr.bf16.mxu0 0
        %1297 = vmatpush1.bf16.xpose.msra.mxu0 0
        %1298 = vmatprep.subr.bf16.mxu0 0
        %1299 = vmatpush1.bf16.xpose.msra.mxu0 %v1282
        %1300 = vmatprep.subr.bf16.mxu0 0
        %1301 = vmatpush2.bf16.xpose.msra.mxu0 0
        %1302 = vmatprep.subr.bf16.mxu0 0
        %1303 = vmatpush2.bf16.xpose.msra.mxu0 0
        %1304 = vmatprep.subr.bf16.mxu0 0
        %1305 = vmatpush2.bf16.xpose.msra.mxu0 0
        %1306 = vmatprep.subr.bf16.mxu0 0
        %1307 = vmatpush2.bf16.xpose.msra.mxu0 0
        %1308 = vmatprep.subr.bf16.mxu0 0
        %1309 = vmatpush2.bf16.xpose.msra.mxu0 0
        %1310 = vmatprep.subr.bf16.mxu0 0
        %1311 = vmatpush2.bf16.xpose.msra.mxu0 0
        %1312 = vmatprep.subr.bf16.mxu0 0
        %1313 = vmatpush2.bf16.xpose.msra.mxu0 0
        %1314 = vmatprep.subr.bf16.mxu0 0
        %1315 = vmatpush2.bf16.xpose.msra.mxu0 0
        %1316 = vmatprep.mubr.bf16.mxu0 0
        %1317 = vmatmul.mubr.bf16.gmra.mxu0 %v1279
        %v1318 = vpop.f32.mrf.mxu0
        %v1319 = vadd.f32 0.0, %v1318
        %v1320 = vpop.f32.mrf.mxu0
        %v1321 = vpop.f32.mrf.mxu0
        %v1322 = vadd.f32 0.0, %v1321
        %v1323 = vpop.f32.mrf.mxu0
        %1324 = vdwg.mxu0
        %v1325 = vmul.f32 %v1319, 0.17677669
        %v1326 = vmul.f32 %v1322, 0.17677669
        %v1327 = vsel %vm1203, %v1325, -inf
        %1328 = vmax.xlane.f32.xlu0 %v1327
        %v1329 = vpop.xlane.xlu0 %1328
        %v1330 = vsel %vm1203, %v1326, -inf
        %1331 = vmax.xlane.f32.xlu0 %v1330
        %v1332 = vpop.xlane.xlu0 %1331
        %v1333 = vsub.f32 %v1325, %v1329
        %v1334 = vsub.f32 %v1326, %v1332
        %v1335 = vmul.f32 %v1333, 1.442695
        %v1336 = vpow.pop %v1335
        %v1337 = vmul.f32 %v1334, 1.442695
        %v1338 = vpow.pop %v1337
        %v1339 = vsel %vm1203, %v1336, 0.0
        %1340 = vadd.xlane.f32.xlu0 %v1339
        %v1341 = vpop.xlane.xlu0 %1340
        %v1342 = vsel %vm1203, %v1338, 0.0
        %1343 = vadd.xlane.f32.xlu0 %v1342
        %v1344 = vpop.xlane.xlu0 %1343
        %v1345 = vrcp.pop %v1341
        %v1346 = vrcp.pop %v1344
        %v1347 = vmul.f32 %v1336, %v1345
        %v1348 = vmul.f32 %v1338, %v1346
        %v1349 = vpack.c.bf16 %v1348, %v1347
        %1351 = vrot.lane.b32.xlu0 %v1227, 96
        %v1352 = vpop.permute.xlu0 %1351
        %v1355 = vsel %vm1203, %v1349, 0
        %1357 = vmatprep.subr.bf16.mxu0 0
        %1358 = vmatpush1.bf16.msra.mxu0 0
        %1359 = vmatprep.subr.bf16.mxu0 0
        %1360 = vmatpush1.bf16.msra.mxu0 0
        %1361 = vmatprep.subr.bf16.mxu0 0
        %1362 = vmatpush1.bf16.msra.mxu0 0
        %1363 = vmatprep.subr.bf16.mxu0 0
        %1364 = vmatpush1.bf16.msra.mxu0 0
        %1365 = vmatprep.subr.bf16.mxu0 0
        %1366 = vmatpush1.bf16.msra.mxu0 0
        %1367 = vmatprep.subr.bf16.mxu0 0
        %1368 = vmatpush1.bf16.msra.mxu0 0
        %1369 = vmatprep.subr.bf16.mxu0 0
        %1370 = vmatpush1.bf16.msra.mxu0 0
        %1371 = vmatprep.subr.bf16.mxu0 0
        %1372 = vmatpush1.bf16.msra.mxu0 %v1352
        %1373 = vmatprep.subr.bf16.mxu0 0
        %1374 = vmatpush2.bf16.msra.mxu0 0
        %1375 = vmatprep.subr.bf16.mxu0 0
        %1376 = vmatpush2.bf16.msra.mxu0 0
        %1377 = vmatprep.subr.bf16.mxu0 0
        %1378 = vmatpush2.bf16.msra.mxu0 0
        %1379 = vmatprep.subr.bf16.mxu0 0
        %1380 = vmatpush2.bf16.msra.mxu0 0
        %1381 = vmatprep.subr.bf16.mxu0 0
        %1382 = vmatpush2.bf16.msra.mxu0 0
        %1383 = vmatprep.subr.bf16.mxu0 0
        %1384 = vmatpush2.bf16.msra.mxu0 0
        %1385 = vmatprep.subr.bf16.mxu0 0
        %1386 = vmatpush2.bf16.msra.mxu0 0
        %1387 = vmatprep.subr.bf16.mxu0 0
        %1388 = vmatpush2.bf16.msra.mxu0 0
        %1389 = vmatprep.mubr.bf16.mxu0 0
        %1390 = vmatmul.mubr.bf16.gmra.mxu0 %v1355
        %v1391 = vpop.f32.mrf.mxu0
        %v1392 = vadd.f32 0.0, %v1391
        %v1393 = vpop.f32.mrf.mxu0
        %v1394 = vpop.f32.mrf.mxu0
        %v1395 = vadd.f32 0.0, %v1394
        %v1396 = vpop.f32.mrf.mxu0
        %1397 = vdwg.mxu0
        %1398 = vrot.lane.b32.xlu0 %v1151, 64
        %v1399 = vpop.permute.xlu0 %1398
        %1400 = vrot.lane.b32.xlu0 %v1152, 64
        %v1401 = vpop.permute.xlu0 %1400
        %v1403 = vsel %vm1153, %v1399, 0
        %v1406 = vsel %vm1153, %v1401, 0
        %1408 = vmatprep.subr.bf16.mxu0 0
        %1409 = vmatpush1.bf16.xpose.msra.mxu0 0
        %1410 = vmatprep.subr.bf16.mxu0 0
        %1411 = vmatpush1.bf16.xpose.msra.mxu0 0
        %1412 = vmatprep.subr.bf16.mxu0 0
        %1413 = vmatpush1.bf16.xpose.msra.mxu0 0
        %1414 = vmatprep.subr.bf16.mxu0 0
        %1415 = vmatpush1.bf16.xpose.msra.mxu0 0
        %1416 = vmatprep.subr.bf16.mxu0 0
        %1417 = vmatpush1.bf16.xpose.msra.mxu0 0
        %1418 = vmatprep.subr.bf16.mxu0 0
        %1419 = vmatpush1.bf16.xpose.msra.mxu0 0
        %1420 = vmatprep.subr.bf16.mxu0 0
        %1421 = vmatpush1.bf16.xpose.msra.mxu0 0
        %1422 = vmatprep.subr.bf16.mxu0 0
        %1423 = vmatpush1.bf16.xpose.msra.mxu0 %v1406
        %1424 = vmatprep.subr.bf16.mxu0 0
        %1425 = vmatpush2.bf16.xpose.msra.mxu0 0
        %1426 = vmatprep.subr.bf16.mxu0 0
        %1427 = vmatpush2.bf16.xpose.msra.mxu0 0
        %1428 = vmatprep.subr.bf16.mxu0 0
        %1429 = vmatpush2.bf16.xpose.msra.mxu0 0
        %1430 = vmatprep.subr.bf16.mxu0 0
        %1431 = vmatpush2.bf16.xpose.msra.mxu0 0
        %1432 = vmatprep.subr.bf16.mxu0 0
        %1433 = vmatpush2.bf16.xpose.msra.mxu0 0
        %1434 = vmatprep.subr.bf16.mxu0 0
        %1435 = vmatpush2.bf16.xpose.msra.mxu0 0
        %1436 = vmatprep.subr.bf16.mxu0 0
        %1437 = vmatpush2.bf16.xpose.msra.mxu0 0
        %1438 = vmatprep.subr.bf16.mxu0 0
        %1439 = vmatpush2.bf16.xpose.msra.mxu0 0
        %1440 = vmatprep.mubr.bf16.mxu0 0
        %1441 = vmatmul.mubr.bf16.gmra.mxu0 %v1403
        %v1442 = vpop.f32.mrf.mxu0
        %v1443 = vadd.f32 0.0, %v1442
        %v1444 = vpop.f32.mrf.mxu0
        %v1445 = vpop.f32.mrf.mxu0
        %v1446 = vadd.f32 0.0, %v1445
        %v1447 = vpop.f32.mrf.mxu0
        %1448 = vdwg.mxu0
        %v1449 = vmul.f32 %v1443, 0.17677669
        %v1450 = vmul.f32 %v1446, 0.17677669
        %v1451 = vsel %vm1203, %v1449, -inf
        %1452 = vmax.xlane.f32.xlu0 %v1451
        %v1453 = vpop.xlane.xlu0 %1452
        %v1454 = vsel %vm1203, %v1450, -inf
        %1455 = vmax.xlane.f32.xlu0 %v1454
        %v1456 = vpop.xlane.xlu0 %1455
        %v1457 = vsub.f32 %v1449, %v1453
        %v1458 = vsub.f32 %v1450, %v1456
        %v1459 = vmul.f32 %v1457, 1.442695
        %v1460 = vpow.pop %v1459
        %v1461 = vmul.f32 %v1458, 1.442695
        %v1462 = vpow.pop %v1461
        %v1463 = vsel %vm1203, %v1460, 0.0
        %1464 = vadd.xlane.f32.xlu0 %v1463
        %v1465 = vpop.xlane.xlu0 %1464
        %v1466 = vsel %vm1203, %v1462, 0.0
        %1467 = vadd.xlane.f32.xlu0 %v1466
        %v1468 = vpop.xlane.xlu0 %1467
        %v1469 = vrcp.pop %v1465
        %v1470 = vrcp.pop %v1468
        %v1471 = vmul.f32 %v1460, %v1469
        %v1472 = vmul.f32 %v1462, %v1470
        %v1473 = vpack.c.bf16 %v1472, %v1471
        %1474 = vrot.lane.b32.xlu0 %v1227, 64
        %v1475 = vpop.permute.xlu0 %1474
        %v1478 = vsel %vm1203, %v1473, 0
        %1480 = vmatprep.subr.bf16.mxu0 0
        %1481 = vmatpush1.bf16.msra.mxu0 0
        %1482 = vmatprep.subr.bf16.mxu0 0
        %1483 = vmatpush1.bf16.msra.mxu0 0
        %1484 = vmatprep.subr.bf16.mxu0 0
        %1485 = vmatpush1.bf16.msra.mxu0 0
        %1486 = vmatprep.subr.bf16.mxu0 0
        %1487 = vmatpush1.bf16.msra.mxu0 0
        %1488 = vmatprep.subr.bf16.mxu0 0
        %1489 = vmatpush1.bf16.msra.mxu0 0
        %1490 = vmatprep.subr.bf16.mxu0 0
        %1491 = vmatpush1.bf16.msra.mxu0 0
        %1492 = vmatprep.subr.bf16.mxu0 0
        %1493 = vmatpush1.bf16.msra.mxu0 0
        %1494 = vmatprep.subr.bf16.mxu0 0
        %1495 = vmatpush1.bf16.msra.mxu0 %v1475
        %1496 = vmatprep.subr.bf16.mxu0 0
        %1497 = vmatpush2.bf16.msra.mxu0 0
        %1498 = vmatprep.subr.bf16.mxu0 0
        %1499 = vmatpush2.bf16.msra.mxu0 0
        %1500 = vmatprep.subr.bf16.mxu0 0
        %1501 = vmatpush2.bf16.msra.mxu0 0
        %1502 = vmatprep.subr.bf16.mxu0 0
        %1503 = vmatpush2.bf16.msra.mxu0 0
        %1504 = vmatprep.subr.bf16.mxu0 0
        %1505 = vmatpush2.bf16.msra.mxu0 0
        %1506 = vmatprep.subr.bf16.mxu0 0
        %1507 = vmatpush2.bf16.msra.mxu0 0
        %1508 = vmatprep.subr.bf16.mxu0 0
        %1509 = vmatpush2.bf16.msra.mxu0 0
        %1510 = vmatprep.subr.bf16.mxu0 0
        %1511 = vmatpush2.bf16.msra.mxu0 0
        %1512 = vmatprep.mubr.bf16.mxu0 0
        %1513 = vmatmul.mubr.bf16.gmra.mxu0 %v1478
        %v1514 = vpop.f32.mrf.mxu0
        %v1515 = vadd.f32 0.0, %v1514
        %v1516 = vpop.f32.mrf.mxu0
        %v1517 = vpop.f32.mrf.mxu0
        %v1518 = vadd.f32 0.0, %v1517
        %v1519 = vpop.f32.mrf.mxu0
        %1520 = vdwg.mxu0
        %1521 = vrot.lane.b32.xlu0 %v1151, 32
        %v1522 = vpop.permute.xlu0 %1521
        %1523 = vrot.lane.b32.xlu0 %v1152, 32
        %v1524 = vpop.permute.xlu0 %1523
        %v1526 = vsel %vm1153, %v1522, 0
        %v1529 = vsel %vm1153, %v1524, 0
        %1531 = vmatprep.subr.bf16.mxu0 0
        %1532 = vmatpush1.bf16.xpose.msra.mxu0 0
        %1533 = vmatprep.subr.bf16.mxu0 0
        %1534 = vmatpush1.bf16.xpose.msra.mxu0 0
        %1535 = vmatprep.subr.bf16.mxu0 0
        %1536 = vmatpush1.bf16.xpose.msra.mxu0 0
        %1537 = vmatprep.subr.bf16.mxu0 0
        %1538 = vmatpush1.bf16.xpose.msra.mxu0 0
        %1539 = vmatprep.subr.bf16.mxu0 0
        %1540 = vmatpush1.bf16.xpose.msra.mxu0 0
        %1541 = vmatprep.subr.bf16.mxu0 0
        %1542 = vmatpush1.bf16.xpose.msra.mxu0 0
        %1543 = vmatprep.subr.bf16.mxu0 0
        %1544 = vmatpush1.bf16.xpose.msra.mxu0 0
        %1545 = vmatprep.subr.bf16.mxu0 0
        %1546 = vmatpush1.bf16.xpose.msra.mxu0 %v1529
        %1547 = vmatprep.subr.bf16.mxu0 0
        %1548 = vmatpush2.bf16.xpose.msra.mxu0 0
        %1549 = vmatprep.subr.bf16.mxu0 0
        %1550 = vmatpush2.bf16.xpose.msra.mxu0 0
        %1551 = vmatprep.subr.bf16.mxu0 0
        %1552 = vmatpush2.bf16.xpose.msra.mxu0 0
        %1553 = vmatprep.subr.bf16.mxu0 0
        %1554 = vmatpush2.bf16.xpose.msra.mxu0 0
        %1555 = vmatprep.subr.bf16.mxu0 0
        %1556 = vmatpush2.bf16.xpose.msra.mxu0 0
        %1557 = vmatprep.subr.bf16.mxu0 0
        %1558 = vmatpush2.bf16.xpose.msra.mxu0 0
        %1559 = vmatprep.subr.bf16.mxu0 0
        %1560 = vmatpush2.bf16.xpose.msra.mxu0 0
        %1561 = vmatprep.subr.bf16.mxu0 0
        %1562 = vmatpush2.bf16.xpose.msra.mxu0 0
        %1563 = vmatprep.mubr.bf16.mxu0 0
        %1564 = vmatmul.mubr.bf16.gmra.mxu0 %v1526
        %v1565 = vpop.f32.mrf.mxu0
        %v1566 = vadd.f32 0.0, %v1565
        %v1567 = vpop.f32.mrf.mxu0
        %v1568 = vpop.f32.mrf.mxu0
        %v1569 = vadd.f32 0.0, %v1568
        %v1570 = vpop.f32.mrf.mxu0
        %1571 = vdwg.mxu0
        %v1572 = vmul.f32 %v1566, 0.17677669
        %v1573 = vmul.f32 %v1569, 0.17677669
        %v1574 = vsel %vm1203, %v1572, -inf
        %1575 = vmax.xlane.f32.xlu0 %v1574
        %v1576 = vpop.xlane.xlu0 %1575
        %v1577 = vsel %vm1203, %v1573, -inf
        %1578 = vmax.xlane.f32.xlu0 %v1577
        %v1579 = vpop.xlane.xlu0 %1578
        %v1580 = vsub.f32 %v1572, %v1576
        %v1581 = vsub.f32 %v1573, %v1579
        %v1582 = vmul.f32 %v1580, 1.442695
        %v1583 = vpow.pop %v1582
        %v1584 = vmul.f32 %v1581, 1.442695
        %v1585 = vpow.pop %v1584
        %v1586 = vsel %vm1203, %v1583, 0.0
        %1587 = vadd.xlane.f32.xlu0 %v1586
        %v1588 = vpop.xlane.xlu0 %1587
        %v1589 = vsel %vm1203, %v1585, 0.0
        %1590 = vadd.xlane.f32.xlu0 %v1589
        %v1591 = vpop.xlane.xlu0 %1590
        %v1592 = vrcp.pop %v1588
        %v1593 = vrcp.pop %v1591
        %v1594 = vmul.f32 %v1583, %v1592
        %v1595 = vmul.f32 %v1585, %v1593
        %v1596 = vpack.c.bf16 %v1595, %v1594
        %1597 = vrot.lane.b32.xlu0 %v1227, 32
        %v1598 = vpop.permute.xlu0 %1597
        %v1601 = vsel %vm1203, %v1596, 0
        %1603 = vmatprep.subr.bf16.mxu0 0
        %1604 = vmatpush1.bf16.msra.mxu0 0
        %1605 = vmatprep.subr.bf16.mxu0 0
        %1606 = vmatpush1.bf16.msra.mxu0 0
        %1607 = vmatprep.subr.bf16.mxu0 0
        %1608 = vmatpush1.bf16.msra.mxu0 0
        %1609 = vmatprep.subr.bf16.mxu0 0
        %1610 = vmatpush1.bf16.msra.mxu0 0
        %1611 = vmatprep.subr.bf16.mxu0 0
        %1612 = vmatpush1.bf16.msra.mxu0 0
        %1613 = vmatprep.subr.bf16.mxu0 0
        %1614 = vmatpush1.bf16.msra.mxu0 0
        %1615 = vmatprep.subr.bf16.mxu0 0
        %1616 = vmatpush1.bf16.msra.mxu0 0
        %1617 = vmatprep.subr.bf16.mxu0 0
        %1618 = vmatpush1.bf16.msra.mxu0 %v1598
        %1619 = vmatprep.subr.bf16.mxu0 0
        %1620 = vmatpush2.bf16.msra.mxu0 0
        %1621 = vmatprep.subr.bf16.mxu0 0
        %1622 = vmatpush2.bf16.msra.mxu0 0
        %1623 = vmatprep.subr.bf16.mxu0 0
        %1624 = vmatpush2.bf16.msra.mxu0 0
        %1625 = vmatprep.subr.bf16.mxu0 0
        %1626 = vmatpush2.bf16.msra.mxu0 0
        %1627 = vmatprep.subr.bf16.mxu0 0
        %1628 = vmatpush2.bf16.msra.mxu0 0
        %1629 = vmatprep.subr.bf16.mxu0 0
        %1630 = vmatpush2.bf16.msra.mxu0 0
        %1631 = vmatprep.subr.bf16.mxu0 0
        %1632 = vmatpush2.bf16.msra.mxu0 0
        %1633 = vmatprep.subr.bf16.mxu0 0
        %1634 = vmatpush2.bf16.msra.mxu0 0
        %1635 = vmatprep.mubr.bf16.mxu0 0
        %1636 = vmatmul.mubr.bf16.gmra.mxu0 %v1601
        %v1637 = vpop.f32.mrf.mxu0
        %v1638 = vadd.f32 0.0, %v1637
        %v1639 = vpop.f32.mrf.mxu0
        %v1640 = vpop.f32.mrf.mxu0
        %v1641 = vadd.f32 0.0, %v1640
        %v1642 = vpop.f32.mrf.mxu0
        %1643 = vdwg.mxu0
        %1646 = vrot.lane.b32.xlu0 %v1392, 32
        %v1647 = vpop.permute.xlu0 %1646
        %1648 = vrot.lane.b32.xlu0 %v1395, 32
        %v1649 = vpop.permute.xlu0 %1648
        %1654 = vrot.lane.b32.xlu0 %v1515, 64
        %v1655 = vpop.permute.xlu0 %1654
        %1656 = vrot.lane.b32.xlu0 %v1518, 64
        %v1657 = vpop.permute.xlu0 %1656
        %1662 = vrot.lane.b32.xlu0 %v1638, 96
        %v1663 = vpop.permute.xlu0 %1662
        %1664 = vrot.lane.b32.xlu0 %v1641, 96
        %v1665 = vpop.permute.xlu0 %1664
        %v1668 = vsel %vm1153, %v1266, %v1647
        %v1669 = vsel %vm1153, %v1269, %v1649
        %vm1670 = vcmask 523264
        %v1671 = vsel %vm1670, %v1668, %v1655
        %v1672 = vsel %vm1670, %v1669, %v1657
        %vm1673 = vcmask 785408
        %v1674 = vsel %vm1673, %v1671, %v1663
        %v1675 = vsel %vm1673, %v1672, %v1665
        %v1676 = vpack.c.bf16 %v1675, %v1674
        %v1677 = vld [vmem:[%s4] sm:$0xf]
        %v1678 = vld [vmem:[%s4 + $0x4] sm:$0xf]
        %v1679 = vld [vmem:[%s4 + $0x8] sm:$0xf]
        %v1680 = vld [vmem:[%s4 + $0xc] sm:$0xf]
        %v1681 = vld [vmem:[%s4 + $0x10] sm:$0xf]
        %v1682 = vld [vmem:[%s4 + $0x14] sm:$0xf]
        %v1683 = vld [vmem:[%s4 + $0x18] sm:$0xf]
        %v1684 = vld [vmem:[%s4 + $0x1c] sm:$0xf]
        %v1685 = vld [vmem:[%s4 + $0x20] sm:$0xf]
        %v1686 = vld [vmem:[%s4 + $0x24] sm:$0xf]
        %v1687 = vld [vmem:[%s4 + $0x28] sm:$0xf]
        %v1688 = vld [vmem:[%s4 + $0x2c] sm:$0xf]
        %v1689 = vld [vmem:[%s4 + $0x30] sm:$0xf]
        %v1690 = vld [vmem:[%s4 + $0x34] sm:$0xf]
        %v1691 = vld [vmem:[%s4 + $0x38] sm:$0xf]
        %v1692 = vld [vmem:[%s4 + $0x3c] sm:$0xf]
        %v1693 = vld [vmem:[%s5] sm:$0x1]
        %v1695 = vlaneseq
        %v1696 = vshrl.u32 %v1695, 7
        %v1697 = vsub.s32 0, %v1696
        %v1698 = vrot.slane %v1693, %v1697
        %v1716 = vunpack.c.l.b16 %v1677
        %v1717 = vunpack.c.l.b16 %v1678
        %v1718 = vunpack.c.l.b16 %v1679
        %v1719 = vunpack.c.l.b16 %v1680
        %v1720 = vunpack.c.l.b16 %v1681
        %v1721 = vunpack.c.l.b16 %v1682
        %v1722 = vunpack.c.l.b16 %v1683
        %v1723 = vunpack.c.l.b16 %v1684
        %v1724 = vunpack.c.l.b16 %v1685
        %v1725 = vunpack.c.l.b16 %v1686
        %v1726 = vunpack.c.l.b16 %v1687
        %v1727 = vunpack.c.l.b16 %v1688
        %v1728 = vunpack.c.l.b16 %v1689
        %v1729 = vunpack.c.l.b16 %v1690
        %v1730 = vunpack.c.l.b16 %v1691
        %v1731 = vunpack.c.l.b16 %v1692
        %v1732 = vpack.c.b16 %v1717, %v1716
        %v1733 = vpack.c.b16 %v1719, %v1718
        %v1734 = vpack.c.b16 %v1721, %v1720
        %v1735 = vpack.c.b16 %v1723, %v1722
        %v1736 = vpack.c.b16 %v1725, %v1724
        %v1737 = vpack.c.b16 %v1727, %v1726
        %v1738 = vpack.c.b16 %v1729, %v1728
        %v1739 = vpack.c.b16 %v1731, %v1730
        %1748 = vmatprep.subr.bf16.mxu0 0
        %1749 = vmatpush1.bf16.msra.mxu0 %v1739
        %1750 = vmatprep.subr.bf16.mxu0 0
        %1751 = vmatpush1.bf16.msra.mxu0 %v1738
        %1752 = vmatprep.subr.bf16.mxu0 0
        %1753 = vmatpush1.bf16.msra.mxu0 %v1737
        %1754 = vmatprep.subr.bf16.mxu0 0
        %1755 = vmatpush1.bf16.msra.mxu0 %v1736
        %1756 = vmatprep.subr.bf16.mxu0 0
        %1757 = vmatpush1.bf16.msra.mxu0 %v1735
        %1758 = vmatprep.subr.bf16.mxu0 0
        %1759 = vmatpush1.bf16.msra.mxu0 %v1734
        %1760 = vmatprep.subr.bf16.mxu0 0
        %1761 = vmatpush1.bf16.msra.mxu0 %v1733
        %1762 = vmatprep.subr.bf16.mxu0 0
        %1763 = vmatpush1.bf16.msra.mxu0 %v1732
        %1764 = vmatprep.subr.bf16.mxu0 0
        %1765 = vmatpush2.bf16.msra.mxu0 0
        %1766 = vmatprep.subr.bf16.mxu0 0
        %1767 = vmatpush2.bf16.msra.mxu0 0
        %1768 = vmatprep.subr.bf16.mxu0 0
        %1769 = vmatpush2.bf16.msra.mxu0 0
        %1770 = vmatprep.subr.bf16.mxu0 0
        %1771 = vmatpush2.bf16.msra.mxu0 0
        %1772 = vmatprep.subr.bf16.mxu0 0
        %1773 = vmatpush2.bf16.msra.mxu0 0
        %1774 = vmatprep.subr.bf16.mxu0 0
        %1775 = vmatpush2.bf16.msra.mxu0 0
        %1776 = vmatprep.subr.bf16.mxu0 0
        %1777 = vmatpush2.bf16.msra.mxu0 0
        %1778 = vmatprep.subr.bf16.mxu0 0
        %1779 = vmatpush2.bf16.msra.mxu0 0
        %1780 = vmatprep.mubr.bf16.mxu0 0
        %1781 = vmatmul.mubr.bf16.gmra.mxu0 %v1676
        %v1782 = vpop.f32.mrf.mxu0
        %v1783 = vadd.f32 %v1698, %v1782
        %v1784 = vpop.f32.mrf.mxu0
        %v1785 = vpop.f32.mrf.mxu0
        %v1786 = vadd.f32 %v1698, %v1785
        %v1787 = vpop.f32.mrf.mxu0
        %1788 = vdwg.mxu0
        %v1789 = vadd.f32 %v887, %v1783
        %v1790 = vadd.f32 %v888, %v1786
        %1791 = vadd.xlane.f32.xlu0 %v1789
        %v1792 = vpop.xlane.xlu0 %1791
        %1793 = vadd.xlane.f32.xlu0 %v1790
        %v1794 = vpop.xlane.xlu0 %1793
        %v1795 = vrcp.pop 128.0
        %v1796 = vmul.f32 %v1792, %v1795
        %v1797 = vmul.f32 %v1794, %v1795
        %v1798 = vsub.f32 %v1789, %v1796
        %v1799 = vsub.f32 %v1790, %v1797
        %v1800 = vmul.f32 %v1798, %v1798
        %v1801 = vmul.f32 %v1799, %v1799
        %1802 = vadd.xlane.f32.xlu0 %v1800
        %v1803 = vpop.xlane.xlu0 %1802
        %1804 = vadd.xlane.f32.xlu0 %v1801
        %v1805 = vpop.xlane.xlu0 %1804
        %v1806 = vmul.f32 %v1803, %v1795
        %v1807 = vmul.f32 %v1805, %v1795
        %v1808 = vadd.f32 %v1806, 1e-05
        %v1809 = vadd.f32 %v1807, 1e-05
        %v1810 = vrsqrt.pop %v1808
        %v1811 = vrsqrt.pop %v1809
        %v1812 = vmul.f32 %v1798, %v1810
        %v1813 = vmul.f32 %v1799, %v1811
        %v1814 = vld [vmem:[#allocation4] sm:$0x1]
        %v1816 = vlaneseq
        %v1817 = vshrl.u32 %v1816, 7
        %v1818 = vsub.s32 0, %v1817
        %v1819 = vrot.slane %v1814, %v1818
        %v1821 = vmul.f32 %v1812, %v1819
        %v1822 = vmul.f32 %v1813, %v1819
        %v1823 = vld [vmem:[#allocation6] sm:$0x1]
        %v1825 = vlaneseq
        %v1826 = vshrl.u32 %v1825, 7
        %v1827 = vsub.s32 0, %v1826
        %v1828 = vrot.slane %v1823, %v1827
        %v1830 = vadd.f32 %v1821, %v1828
        %v1831 = vadd.f32 %v1822, %v1828
        %v1832 = vld [vmem:[#allocation7] sm:$0x7]
        %v1833 = vlaneseq
        %v1834 = vshrl.u32 %v1833, 7
        %v1835 = vadd.s32 %v1834, 8
        %v1836 = vrot.slane %v1830, 7
        %v1837 = vrot.slane %v1831, 7
        %vm1838 = vcmp.lt.s32.totalorder %v1834, 1
        %v1839 = vsel %vm1838, %v1836, %v1837
        %v1840 = vsel %vm1838, %v1837, %v1836
        %vm1841 = vcmp.lt.s32.totalorder %v1835, 1
        %v1842 = vsel %vm1838, 0.0, %v1840
        %v1843 = vsel %vm1841, 0.0, %v1839
        %v1844 = vlaneseq
        %v1845 = vshrl.u32 %v1844, 7
        %v1846 = vsub.s32 0, %v1845
        %v1847 = vrot.slane %v1832, %v1846
        %v1848 = vmul.f32 %v1842, %v1847
        %v1849 = vmul.f32 %v1843, %v1847
        %v1850 = vadd.f32 %v1848, 0.0
        %v1851 = vadd.f32 %v1849, 0.0
        %v1852 = vlaneseq
        %v1853 = vshrl.u32 %v1852, 7
        %v1854 = vsub.s32 1, %v1853
        %v1855 = vrot.slane %v1832, %v1854
        %v1856 = vmul.f32 %v1830, %v1855
        %v1857 = vmul.f32 %v1831, %v1855
        %v1858 = vadd.f32 %v1850, %v1856
        %v1859 = vadd.f32 %v1851, %v1857
        %v1860 = vrot.slane %v1830, 1
        %v1861 = vrot.slane %v1831, 1
        %vm1862 = vcmp.lt.s32.totalorder %v1834, 7
        %v1863 = vsel %vm1862, %v1860, %v1861
        %v1864 = vsel %vm1862, %v1861, %v1860
        %vm1865 = vcmp.ge.s32.totalorder %v1834, 15
        %vm1866 = vcmp.ge.s32.totalorder %v1835, 15
        %v1867 = vsel %vm1865, 0.0, %v1863
        %v1868 = vsel %vm1866, 0.0, %v1864
        %v1869 = vlaneseq
        %v1870 = vshrl.u32 %v1869, 7
        %v1871 = vsub.s32 2, %v1870
        %v1872 = vrot.slane %v1832, %v1871
        %v1873 = vmul.f32 %v1867, %v1872
        %v1874 = vmul.f32 %v1868, %v1872
        %v1875 = vadd.f32 %v1858, %v1873
        %v1876 = vadd.f32 %v1859, %v1874
        %v1877 = vld [vmem:[#allocation9] sm:$0x1]
        %v1879 = vlaneseq
        %v1880 = vshrl.u32 %v1879, 7
        %v1881 = vsub.s32 0, %v1880
        %v1882 = vrot.slane %v1877, %v1881
        %v1884 = vadd.f32 %v1875, %v1882
        %v1885 = vadd.f32 %v1876, %v1882
        %v1886 = vpack.c.bf16 %v1885, %v1884
        %v1887 = vld [vmem:[%s10] sm:$0xff]
        %v1888 = vld [vmem:[%s10 + $0x8] sm:$0xff]
        %v1889 = vld [vmem:[%s10 + $0x10] sm:$0xff]
        %v1890 = vld [vmem:[%s10 + $0x18] sm:$0xff]
        %v1891 = vld [vmem:[%s10 + $0x20] sm:$0xff]
        %v1892 = vld [vmem:[%s10 + $0x28] sm:$0xff]
        %v1893 = vld [vmem:[%s10 + $0x30] sm:$0xff]
        %v1894 = vld [vmem:[%s10 + $0x38] sm:$0xff]
        %v1895 = vld [vmem:[%s10 + $0x40] sm:$0xff]
        %v1896 = vld [vmem:[%s10 + $0x48] sm:$0xff]
        %v1897 = vld [vmem:[%s10 + $0x50] sm:$0xff]
        %v1898 = vld [vmem:[%s10 + $0x58] sm:$0xff]
        %v1899 = vld [vmem:[%s10 + $0x60] sm:$0xff]
        %v1900 = vld [vmem:[%s10 + $0x68] sm:$0xff]
        %v1901 = vld [vmem:[%s10 + $0x70] sm:$0xff]
        %v1902 = vld [vmem:[%s10 + $0x78] sm:$0xff]
        %v1903 = vld [vmem:[#allocation10] sm:$0x3]
        %v1905 = vlaneseq
        %v1906 = vshrl.u32 %v1905, 7
        %v1907 = vsub.s32 0, %v1906
        %v1908 = vrot.slane %v1903, %v1907
        %v1909 = vlaneseq
        %v1910 = vshrl.u32 %v1909, 7
        %v1911 = vsub.s32 1, %v1910
        %v1912 = vrot.slane %v1903, %v1911
        %v1931 = vunpack.c.l.b16 %v1887
        %v1932 = vunpack.c.h.b16 %v1887
        %v1933 = vunpack.c.l.b16 %v1888
        %v1934 = vunpack.c.h.b16 %v1888
        %v1935 = vunpack.c.l.b16 %v1889
        %v1936 = vunpack.c.h.b16 %v1889
        %v1937 = vunpack.c.l.b16 %v1890
        %v1938 = vunpack.c.h.b16 %v1890
        %v1939 = vunpack.c.l.b16 %v1891
        %v1940 = vunpack.c.h.b16 %v1891
        %v1941 = vunpack.c.l.b16 %v1892
        %v1942 = vunpack.c.h.b16 %v1892
        %v1943 = vunpack.c.l.b16 %v1893
        %v1944 = vunpack.c.h.b16 %v1893
        %v1945 = vunpack.c.l.b16 %v1894
        %v1946 = vunpack.c.h.b16 %v1894
        %v1947 = vunpack.c.l.b16 %v1895
        %v1948 = vunpack.c.h.b16 %v1895
        %v1949 = vunpack.c.l.b16 %v1896
        %v1950 = vunpack.c.h.b16 %v1896
        %v1951 = vunpack.c.l.b16 %v1897
        %v1952 = vunpack.c.h.b16 %v1897
        %v1953 = vunpack.c.l.b16 %v1898
        %v1954 = vunpack.c.h.b16 %v1898
        %v1955 = vunpack.c.l.b16 %v1899
        %v1956 = vunpack.c.h.b16 %v1899
        %v1957 = vunpack.c.l.b16 %v1900
        %v1958 = vunpack.c.h.b16 %v1900
        %v1959 = vunpack.c.l.b16 %v1901
        %v1960 = vunpack.c.h.b16 %v1901
        %v1961 = vunpack.c.l.b16 %v1902
        %v1962 = vunpack.c.h.b16 %v1902
        %v1963 = vpack.c.b16 %v1933, %v1931
        %v1964 = vpack.c.b16 %v1934, %v1932
        %v1965 = vpack.c.b16 %v1937, %v1935
        %v1966 = vpack.c.b16 %v1938, %v1936
        %v1967 = vpack.c.b16 %v1941, %v1939
        %v1968 = vpack.c.b16 %v1942, %v1940
        %v1969 = vpack.c.b16 %v1945, %v1943
        %v1970 = vpack.c.b16 %v1946, %v1944
        %v1971 = vpack.c.b16 %v1949, %v1947
        %v1972 = vpack.c.b16 %v1950, %v1948
        %v1973 = vpack.c.b16 %v1953, %v1951
        %v1974 = vpack.c.b16 %v1954, %v1952
        %v1975 = vpack.c.b16 %v1957, %v1955
        %v1976 = vpack.c.b16 %v1958, %v1956
        %v1977 = vpack.c.b16 %v1961, %v1959
        %v1978 = vpack.c.b16 %v1962, %v1960
        %1995 = vmatprep.subr.bf16.mxu0 %v1978
        %1996 = vmatpush1.bf16.msra.mxu0 %v1977
        %1997 = vmatprep.subr.bf16.mxu0 %v1976
        %1998 = vmatpush1.bf16.msra.mxu0 %v1975
        %1999 = vmatprep.subr.bf16.mxu0 %v1974
        %2000 = vmatpush1.bf16.msra.mxu0 %v1973
        %2001 = vmatprep.subr.bf16.mxu0 %v1972
        %2002 = vmatpush1.bf16.msra.mxu0 %v1971
        %2003 = vmatprep.subr.bf16.mxu0 %v1970
        %2004 = vmatpush1.bf16.msra.mxu0 %v1969
        %2005 = vmatprep.subr.bf16.mxu0 %v1968
        %2006 = vmatpush1.bf16.msra.mxu0 %v1967
        %2007 = vmatprep.subr.bf16.mxu0 %v1966
        %2008 = vmatpush1.bf16.msra.mxu0 %v1965
        %2009 = vmatprep.subr.bf16.mxu0 %v1964
        %2010 = vmatpush1.bf16.msra.mxu0 %v1963
        %2011 = vmatprep.subr.bf16.mxu0 0
        %2012 = vmatpush2.bf16.msra.mxu0 0
        %2013 = vmatprep.subr.bf16.mxu0 0
        %2014 = vmatpush2.bf16.msra.mxu0 0
        %2015 = vmatprep.subr.bf16.mxu0 0
        %2016 = vmatpush2.bf16.msra.mxu0 0
        %2017 = vmatprep.subr.bf16.mxu0 0
        %2018 = vmatpush2.bf16.msra.mxu0 0
        %2019 = vmatprep.subr.bf16.mxu0 0
        %2020 = vmatpush2.bf16.msra.mxu0 0
        %2021 = vmatprep.subr.bf16.mxu0 0
        %2022 = vmatpush2.bf16.msra.mxu0 0
        %2023 = vmatprep.subr.bf16.mxu0 0
        %2024 = vmatpush2.bf16.msra.mxu0 0
        %2025 = vmatprep.subr.bf16.mxu0 0
        %2026 = vmatpush2.bf16.msra.mxu0 0
        %2027 = vmatprep.mubr.bf16.mxu0 0
        %2028 = vmatmul.mubr.bf16.gmra.mxu0 %v1886
        %v2029 = vpop.f32.mrf.mxu0
        %v2030 = vadd.f32 %v1908, %v2029
        %v2031 = vpop.f32.mrf.mxu0
        %v2032 = vadd.f32 %v1912, %v2031
        %v2033 = vpop.f32.mrf.mxu0
        %v2034 = vadd.f32 %v1908, %v2033
        %v2035 = vpop.f32.mrf.mxu0
        %v2036 = vadd.f32 %v1912, %v2035
        %2037 = vdwg.mxu0
        %v2038 = vmul.f32 %v2030, %v2030
        %v2039 = vmul.f32 %v2032, %v2032
        %v2040 = vmul.f32 %v2034, %v2034
        %v2041 = vmul.f32 %v2036, %v2036
        %v2042 = vmul.f32 %v2030, %v2038
        %v2043 = vmul.f32 %v2032, %v2039
        %v2044 = vmul.f32 %v2034, %v2040
        %v2045 = vmul.f32 %v2036, %v2041
        %v2046 = vmul.f32 %v2042, 0.044715
        %v2047 = vmul.f32 %v2043, 0.044715
        %v2048 = vmul.f32 %v2044, 0.044715
        %v2049 = vmul.f32 %v2045, 0.044715
        %v2050 = vadd.f32 %v2030, %v2046
        %v2051 = vadd.f32 %v2032, %v2047
        %v2052 = vadd.f32 %v2034, %v2048
        %v2053 = vadd.f32 %v2036, %v2049
        %v2054 = vmul.f32 %v2050, 0.7978846
        %v2055 = vmul.f32 %v2051, 0.7978846
        %v2056 = vmul.f32 %v2052, 0.7978846
        %v2057 = vmul.f32 %v2053, 0.7978846
        %v2058 = vtanh.pop %v2054
        %v2059 = vtanh.pop %v2055
        %v2060 = vtanh.pop %v2056
        %v2061 = vtanh.pop %v2057
        %v2062 = vadd.f32 %v2058, 1.0
        %v2063 = vadd.f32 %v2059, 1.0
        %v2064 = vadd.f32 %v2060, 1.0
        %v2065 = vadd.f32 %v2061, 1.0
        %v2066 = vmul.f32 %v2062, 0.5
        %v2067 = vmul.f32 %v2063, 0.5
        %v2068 = vmul.f32 %v2064, 0.5
        %v2069 = vmul.f32 %v2065, 0.5
        %v2070 = vmul.f32 %v2030, %v2066
        %v2071 = vmul.f32 %v2032, %v2067
        %v2072 = vmul.f32 %v2034, %v2068
        %v2073 = vmul.f32 %v2036, %v2069
        %v2074 = vpack.c.bf16 %v2072, %v2070
        %v2075 = vpack.c.bf16 %v2073, %v2071
        %v2076 = vld [vmem:[%s12] sm:$0xf]
        %v2077 = vld [vmem:[%s12 + $0x4] sm:$0xf]
        %v2078 = vld [vmem:[%s12 + $0x8] sm:$0xf]
        %v2079 = vld [vmem:[%s12 + $0xc] sm:$0xf]
        %v2080 = vld [vmem:[%s12 + $0x10] sm:$0xf]
        %v2081 = vld [vmem:[%s12 + $0x14] sm:$0xf]
        %v2082 = vld [vmem:[%s12 + $0x18] sm:$0xf]
        %v2083 = vld [vmem:[%s12 + $0x1c] sm:$0xf]
        %v2084 = vld [vmem:[%s12 + $0x20] sm:$0xf]
        %v2085 = vld [vmem:[%s12 + $0x24] sm:$0xf]
        %v2086 = vld [vmem:[%s12 + $0x28] sm:$0xf]
        %v2087 = vld [vmem:[%s12 + $0x2c] sm:$0xf]
        %v2088 = vld [vmem:[%s12 + $0x30] sm:$0xf]
        %v2089 = vld [vmem:[%s12 + $0x34] sm:$0xf]
        %v2090 = vld [vmem:[%s12 + $0x38] sm:$0xf]
        %v2091 = vld [vmem:[%s12 + $0x3c] sm:$0xf]
        %v2092 = vld [vmem:[%s12 + $0x40] sm:$0xf]
        %v2093 = vld [vmem:[%s12 + $0x44] sm:$0xf]
        %v2094 = vld [vmem:[%s12 + $0x48] sm:$0xf]
        %v2095 = vld [vmem:[%s12 + $0x4c] sm:$0xf]
        %v2096 = vld [vmem:[%s12 + $0x50] sm:$0xf]
        %v2097 = vld [vmem:[%s12 + $0x54] sm:$0xf]
        %v2098 = vld [vmem:[%s12 + $0x58] sm:$0xf]
        %v2099 = vld [vmem:[%s12 + $0x5c] sm:$0xf]
        %v2100 = vld [vmem:[%s12 + $0x60] sm:$0xf]
        %v2101 = vld [vmem:[%s12 + $0x64] sm:$0xf]
        %v2102 = vld [vmem:[%s12 + $0x68] sm:$0xf]
        %v2103 = vld [vmem:[%s12 + $0x6c] sm:$0xf]
        %v2104 = vld [vmem:[%s12 + $0x70] sm:$0xf]
        %v2105 = vld [vmem:[%s12 + $0x74] sm:$0xf]
        %v2106 = vld [vmem:[%s12 + $0x78] sm:$0xf]
        %v2107 = vld [vmem:[%s12 + $0x7c] sm:$0xf]
        %v2108 = vld [vmem:[#allocation12] sm:$0x1]
        %v2110 = vlaneseq
        %v2111 = vshrl.u32 %v2110, 7
        %v2112 = vsub.s32 0, %v2111
        %v2113 = vrot.slane %v2108, %v2112
        %v2147 = vunpack.c.l.b16 %v2076
        %v2148 = vunpack.c.l.b16 %v2077
        %v2149 = vunpack.c.l.b16 %v2078
        %v2150 = vunpack.c.l.b16 %v2079
        %v2151 = vunpack.c.l.b16 %v2080
        %v2152 = vunpack.c.l.b16 %v2081
        %v2153 = vunpack.c.l.b16 %v2082
        %v2154 = vunpack.c.l.b16 %v2083
        %v2155 = vunpack.c.l.b16 %v2084
        %v2156 = vunpack.c.l.b16 %v2085
        %v2157 = vunpack.c.l.b16 %v2086
        %v2158 = vunpack.c.l.b16 %v2087
        %v2159 = vunpack.c.l.b16 %v2088
        %v2160 = vunpack.c.l.b16 %v2089
        %v2161 = vunpack.c.l.b16 %v2090
        %v2162 = vunpack.c.l.b16 %v2091
        %v2163 = vunpack.c.l.b16 %v2092
        %v2164 = vunpack.c.l.b16 %v2093
        %v2165 = vunpack.c.l.b16 %v2094
        %v2166 = vunpack.c.l.b16 %v2095
        %v2167 = vunpack.c.l.b16 %v2096
        %v2168 = vunpack.c.l.b16 %v2097
        %v2169 = vunpack.c.l.b16 %v2098
        %v2170 = vunpack.c.l.b16 %v2099
        %v2171 = vunpack.c.l.b16 %v2100
        %v2172 = vunpack.c.l.b16 %v2101
        %v2173 = vunpack.c.l.b16 %v2102
        %v2174 = vunpack.c.l.b16 %v2103
        %v2175 = vunpack.c.l.b16 %v2104
        %v2176 = vunpack.c.l.b16 %v2105
        %v2177 = vunpack.c.l.b16 %v2106
        %v2178 = vunpack.c.l.b16 %v2107
        %v2179 = vpack.c.b16 %v2148, %v2147
        %v2180 = vpack.c.b16 %v2150, %v2149
        %v2181 = vpack.c.b16 %v2152, %v2151
        %v2182 = vpack.c.b16 %v2154, %v2153
        %v2183 = vpack.c.b16 %v2156, %v2155
        %v2184 = vpack.c.b16 %v2158, %v2157
        %v2185 = vpack.c.b16 %v2160, %v2159
        %v2186 = vpack.c.b16 %v2162, %v2161
        %v2187 = vpack.c.b16 %v2164, %v2163
        %v2188 = vpack.c.b16 %v2166, %v2165
        %v2189 = vpack.c.b16 %v2168, %v2167
        %v2190 = vpack.c.b16 %v2170, %v2169
        %v2191 = vpack.c.b16 %v2172, %v2171
        %v2192 = vpack.c.b16 %v2174, %v2173
        %v2193 = vpack.c.b16 %v2176, %v2175
        %v2194 = vpack.c.b16 %v2178, %v2177
        %2211 = vmatprep.subr.bf16.mxu0 0
        %2212 = vmatpush1.bf16.msra.mxu0 %v2186
        %2213 = vmatprep.subr.bf16.mxu0 0
        %2214 = vmatpush1.bf16.msra.mxu0 %v2185
        %2215 = vmatprep.subr.bf16.mxu0 0
        %2216 = vmatpush1.bf16.msra.mxu0 %v2184
        %2217 = vmatprep.subr.bf16.mxu0 0
        %2218 = vmatpush1.bf16.msra.mxu0 %v2183
        %2219 = vmatprep.subr.bf16.mxu0 0
        %2220 = vmatpush1.bf16.msra.mxu0 %v2182
        %2221 = vmatprep.subr.bf16.mxu0 0
        %2222 = vmatpush1.bf16.msra.mxu0 %v2181
        %2223 = vmatprep.subr.bf16.mxu0 0
        %2224 = vmatpush1.bf16.msra.mxu0 %v2180
        %2225 = vmatprep.subr.bf16.mxu0 0
        %2226 = vmatpush1.bf16.msra.mxu0 %v2179
        %2227 = vmatprep.subr.bf16.mxu0 0
        %2228 = vmatpush2.bf16.msra.mxu0 %v2194
        %2229 = vmatprep.subr.bf16.mxu0 0
        %2230 = vmatpush2.bf16.msra.mxu0 %v2193
        %2231 = vmatprep.subr.bf16.mxu0 0
        %2232 = vmatpush2.bf16.msra.mxu0 %v2192
        %2233 = vmatprep.subr.bf16.mxu0 0
        %2234 = vmatpush2.bf16.msra.mxu0 %v2191
        %2235 = vmatprep.subr.bf16.mxu0 0
        %2236 = vmatpush2.bf16.msra.mxu0 %v2190
        %2237 = vmatprep.subr.bf16.mxu0 0
        %2238 = vmatpush2.bf16.msra.mxu0 %v2189
        %2239 = vmatprep.subr.bf16.mxu0 0
        %2240 = vmatpush2.bf16.msra.mxu0 %v2188
        %2241 = vmatprep.subr.bf16.mxu0 0
        %2242 = vmatpush2.bf16.msra.mxu0 %v2187
        %2243 = vmatprep.mubr.bf16.mxu0 %v2075
        %2244 = vmatmul.mubr.bf16.gmra.mxu0 %v2074
        %v2245 = vpop.f32.mrf.mxu0
        %v2246 = vadd.f32 %v2113, %v2245
        %v2247 = vpop.f32.mrf.mxu0
        %v2248 = vpop.f32.mrf.mxu0
        %v2249 = vadd.f32 %v2113, %v2248
        %v2250 = vpop.f32.mrf.mxu0
        %2251 = vdwg.mxu0
        %v2252 = vadd.f32 %v1830, %v2246
        %v2253 = vadd.f32 %v1831, %v2249
        %2254 = vadd.xlane.f32.xlu0 %v2252
        %v2255 = vpop.xlane.xlu0 %2254
        %2256 = vadd.xlane.f32.xlu0 %v2253
        %v2257 = vpop.xlane.xlu0 %2256
        %v2258 = vmul.f32 %v2255, %v1795
        %v2259 = vmul.f32 %v2257, %v1795
        %v2260 = vsub.f32 %v2252, %v2258
        %v2261 = vsub.f32 %v2253, %v2259
        %v2262 = vmul.f32 %v2260, %v2260
        %v2263 = vmul.f32 %v2261, %v2261
        %2264 = vadd.xlane.f32.xlu0 %v2262
        %v2265 = vpop.xlane.xlu0 %2264
        %2266 = vadd.xlane.f32.xlu0 %v2263
        %v2267 = vpop.xlane.xlu0 %2266
        %v2268 = vmul.f32 %v2265, %v1795
        %v2269 = vmul.f32 %v2267, %v1795
        %v2270 = vadd.f32 %v2268, 1e-05
        %v2271 = vadd.f32 %v2269, 1e-05
        %v2272 = vrsqrt.pop %v2270
        %v2273 = vrsqrt.pop %v2271
        %v2274 = vmul.f32 %v2260, %v2272
        %v2275 = vmul.f32 %v2261, %v2273
        %v2276 = vld [vmem:[#allocation13] sm:$0x1]
        %v2278 = vlaneseq
        %v2279 = vshrl.u32 %v2278, 7
        %v2280 = vsub.s32 0, %v2279
        %v2281 = vrot.slane %v2276, %v2280
        %v2283 = vmul.f32 %v2274, %v2281
        %v2284 = vmul.f32 %v2275, %v2281
        %v2285 = vld [vmem:[#allocation15] sm:$0x1]
        %v2287 = vlaneseq
        %v2288 = vshrl.u32 %v2287, 7
        %v2289 = vsub.s32 0, %v2288
        %v2290 = vrot.slane %v2285, %v2289
        %v2292 = vadd.f32 %v2283, %v2290
        %v2293 = vadd.f32 %v2284, %v2290
        %v2294 = vpack.c.bf16 %v2293, %v2292
        %v2295 = vld [vmem:[%s16] sm:$0xff]
        %v2296 = vld [vmem:[%s16 + $0x8] sm:$0xff]
        %v2297 = vld [vmem:[%s16 + $0x10] sm:$0xff]
        %v2298 = vld [vmem:[%s16 + $0x18] sm:$0xff]
        %v2299 = vld [vmem:[%s16 + $0x20] sm:$0xff]
        %v2300 = vld [vmem:[%s16 + $0x28] sm:$0xff]
        %v2301 = vld [vmem:[%s16 + $0x30] sm:$0xff]
        %v2302 = vld [vmem:[%s16 + $0x38] sm:$0xff]
        %v2303 = vld [vmem:[%s16 + $0x40] sm:$0xff]
        %v2304 = vld [vmem:[%s16 + $0x48] sm:$0xff]
        %v2305 = vld [vmem:[%s16 + $0x50] sm:$0xff]
        %v2306 = vld [vmem:[%s16 + $0x58] sm:$0xff]
        %v2307 = vld [vmem:[%s16 + $0x60] sm:$0xff]
        %v2308 = vld [vmem:[%s16 + $0x68] sm:$0xff]
        %v2309 = vld [vmem:[%s16 + $0x70] sm:$0xff]
        %v2310 = vld [vmem:[%s16 + $0x78] sm:$0xff]
        %v2311 = vld [vmem:[#allocation16] sm:$0x3]
        %v2313 = vlaneseq
        %v2314 = vshrl.u32 %v2313, 7
        %v2315 = vsub.s32 0, %v2314
        %v2316 = vrot.slane %v2311, %v2315
        %v2317 = vlaneseq
        %v2318 = vshrl.u32 %v2317, 7
        %v2319 = vsub.s32 1, %v2318
        %v2320 = vrot.slane %v2311, %v2319
        %v2339 = vunpack.c.l.b16 %v2295
        %v2340 = vunpack.c.h.b16 %v2295
        %v2341 = vunpack.c.l.b16 %v2296
        %v2342 = vunpack.c.h.b16 %v2296
        %v2343 = vunpack.c.l.b16 %v2297
        %v2344 = vunpack.c.h.b16 %v2297
        %v2345 = vunpack.c.l.b16 %v2298
        %v2346 = vunpack.c.h.b16 %v2298
        %v2347 = vunpack.c.l.b16 %v2299
        %v2348 = vunpack.c.h.b16 %v2299
        %v2349 = vunpack.c.l.b16 %v2300
        %v2350 = vunpack.c.h.b16 %v2300
        %v2351 = vunpack.c.l.b16 %v2301
        %v2352 = vunpack.c.h.b16 %v2301
        %v2353 = vunpack.c.l.b16 %v2302
        %v2354 = vunpack.c.h.b16 %v2302
        %v2355 = vunpack.c.l.b16 %v2303
        %v2356 = vunpack.c.h.b16 %v2303
        %v2357 = vunpack.c.l.b16 %v2304
        %v2358 = vunpack.c.h.b16 %v2304
        %v2359 = vunpack.c.l.b16 %v2305
        %v2360 = vunpack.c.h.b16 %v2305
        %v2361 = vunpack.c.l.b16 %v2306
        %v2362 = vunpack.c.h.b16 %v2306
        %v2363 = vunpack.c.l.b16 %v2307
        %v2364 = vunpack.c.h.b16 %v2307
        %v2365 = vunpack.c.l.b16 %v2308
        %v2366 = vunpack.c.h.b16 %v2308
        %v2367 = vunpack.c.l.b16 %v2309
        %v2368 = vunpack.c.h.b16 %v2309
        %v2369 = vunpack.c.l.b16 %v2310
        %v2370 = vunpack.c.h.b16 %v2310
        %v2371 = vpack.c.b16 %v2341, %v2339
        %v2372 = vpack.c.b16 %v2342, %v2340
        %v2373 = vpack.c.b16 %v2345, %v2343
        %v2374 = vpack.c.b16 %v2346, %v2344
        %v2375 = vpack.c.b16 %v2349, %v2347
        %v2376 = vpack.c.b16 %v2350, %v2348
        %v2377 = vpack.c.b16 %v2353, %v2351
        %v2378 = vpack.c.b16 %v2354, %v2352
        %v2379 = vpack.c.b16 %v2357, %v2355
        %v2380 = vpack.c.b16 %v2358, %v2356
        %v2381 = vpack.c.b16 %v2361, %v2359
        %v2382 = vpack.c.b16 %v2362, %v2360
        %v2383 = vpack.c.b16 %v2365, %v2363
        %v2384 = vpack.c.b16 %v2366, %v2364
        %v2385 = vpack.c.b16 %v2369, %v2367
        %v2386 = vpack.c.b16 %v2370, %v2368
        %2403 = vmatprep.subr.bf16.mxu0 %v2386
        %2404 = vmatpush1.bf16.msra.mxu0 %v2385
        %2405 = vmatprep.subr.bf16.mxu0 %v2384
        %2406 = vmatpush1.bf16.msra.mxu0 %v2383
        %2407 = vmatprep.subr.bf16.mxu0 %v2382
        %2408 = vmatpush1.bf16.msra.mxu0 %v2381
        %2409 = vmatprep.subr.bf16.mxu0 %v2380
        %2410 = vmatpush1.bf16.msra.mxu0 %v2379
        %2411 = vmatprep.subr.bf16.mxu0 %v2378
        %2412 = vmatpush1.bf16.msra.mxu0 %v2377
        %2413 = vmatprep.subr.bf16.mxu0 %v2376
        %2414 = vmatpush1.bf16.msra.mxu0 %v2375
        %2415 = vmatprep.subr.bf16.mxu0 %v2374
        %2416 = vmatpush1.bf16.msra.mxu0 %v2373
        %2417 = vmatprep.subr.bf16.mxu0 %v2372
        %2418 = vmatpush1.bf16.msra.mxu0 %v2371
        %2419 = vmatprep.subr.bf16.mxu0 0
        %2420 = vmatpush2.bf16.msra.mxu0 0
        %2421 = vmatprep.subr.bf16.mxu0 0
        %2422 = vmatpush2.bf16.msra.mxu0 0
        %2423 = vmatprep.subr.bf16.mxu0 0
        %2424 = vmatpush2.bf16.msra.mxu0 0
        %2425 = vmatprep.subr.bf16.mxu0 0
        %2426 = vmatpush2.bf16.msra.mxu0 0
        %2427 = vmatprep.subr.bf16.mxu0 0
        %2428 = vmatpush2.bf16.msra.mxu0 0
        %2429 = vmatprep.subr.bf16.mxu0 0
        %2430 = vmatpush2.bf16.msra.mxu0 0
        %2431 = vmatprep.subr.bf16.mxu0 0
        %2432 = vmatpush2.bf16.msra.mxu0 0
        %2433 = vmatprep.subr.bf16.mxu0 0
        %2434 = vmatpush2.bf16.msra.mxu0 0
        %2435 = vmatprep.mubr.bf16.mxu0 0
        %2436 = vmatmul.mubr.bf16.gmra.mxu0 %v2294
        %v2437 = vpop.f32.mrf.mxu0
        %v2438 = vadd.f32 %v2316, %v2437
        %v2439 = vpop.f32.mrf.mxu0
        %v2440 = vadd.f32 %v2320, %v2439
        %v2441 = vpop.f32.mrf.mxu0
        %v2442 = vadd.f32 %v2316, %v2441
        %v2443 = vpop.f32.mrf.mxu0
        %v2444 = vadd.f32 %v2320, %v2443
        %2445 = vdwg.mxu0
        %v2446 = vmul.f32 %v2438, %v2438
        %v2447 = vmul.f32 %v2440, %v2440
        %v2448 = vmul.f32 %v2442, %v2442
        %v2449 = vmul.f32 %v2444, %v2444
        %v2450 = vmul.f32 %v2438, %v2446
        %v2451 = vmul.f32 %v2440, %v2447
        %v2452 = vmul.f32 %v2442, %v2448
        %v2453 = vmul.f32 %v2444, %v2449
        %v2454 = vmul.f32 %v2450, 0.044715
        %v2455 = vmul.f32 %v2451, 0.044715
        %v2456 = vmul.f32 %v2452, 0.044715
        %v2457 = vmul.f32 %v2453, 0.044715
        %v2458 = vadd.f32 %v2438, %v2454
        %v2459 = vadd.f32 %v2440, %v2455
        %v2460 = vadd.f32 %v2442, %v2456
        %v2461 = vadd.f32 %v2444, %v2457
        %v2462 = vmul.f32 %v2458, 0.7978846
        %v2463 = vmul.f32 %v2459, 0.7978846
        %v2464 = vmul.f32 %v2460, 0.7978846
        %v2465 = vmul.f32 %v2461, 0.7978846
        %v2466 = vtanh.pop %v2462
        %v2467 = vtanh.pop %v2463
        %v2468 = vtanh.pop %v2464
        %v2469 = vtanh.pop %v2465
        %v2470 = vadd.f32 %v2466, 1.0
        %v2471 = vadd.f32 %v2467, 1.0
        %v2472 = vadd.f32 %v2468, 1.0
        %v2473 = vadd.f32 %v2469, 1.0
        %v2474 = vmul.f32 %v2470, 0.5
        %v2475 = vmul.f32 %v2471, 0.5
        %v2476 = vmul.f32 %v2472, 0.5
        %v2477 = vmul.f32 %v2473, 0.5
        %v2478 = vmul.f32 %v2438, %v2474
        %v2479 = vmul.f32 %v2440, %v2475
        %v2480 = vmul.f32 %v2442, %v2476
        %v2481 = vmul.f32 %v2444, %v2477
        %v2482 = vpack.c.bf16 %v2480, %v2478
        %v2483 = vpack.c.bf16 %v2481, %v2479
        %v2484 = vld [vmem:[#allocation18] sm:$0xf]
        %v2485 = vld [vmem:[#allocation18 + $0x4] sm:$0xf]
        %v2486 = vld [vmem:[#allocation18 + $0x8] sm:$0xf]
        %v2487 = vld [vmem:[#allocation18 + $0xc] sm:$0xf]
        %v2488 = vld [vmem:[#allocation18 + $0x10] sm:$0xf]
        %v2489 = vld [vmem:[#allocation18 + $0x14] sm:$0xf]
        %v2490 = vld [vmem:[#allocation18 + $0x18] sm:$0xf]
        %v2491 = vld [vmem:[#allocation18 + $0x1c] sm:$0xf]
        %v2492 = vld [vmem:[#allocation18 + $0x20] sm:$0xf]
        %v2493 = vld [vmem:[#allocation18 + $0x24] sm:$0xf]
        %v2494 = vld [vmem:[#allocation18 + $0x28] sm:$0xf]
        %v2495 = vld [vmem:[#allocation18 + $0x2c] sm:$0xf]
        %v2496 = vld [vmem:[#allocation18 + $0x30] sm:$0xf]
        %v2497 = vld [vmem:[#allocation18 + $0x34] sm:$0xf]
        %v2498 = vld [vmem:[#allocation18 + $0x38] sm:$0xf]
        %v2499 = vld [vmem:[#allocation18 + $0x3c] sm:$0xf]
        %v2500 = vld [vmem:[#allocation18 + $0x40] sm:$0xf]
        %v2501 = vld [vmem:[#allocation18 + $0x44] sm:$0xf]
        %v2502 = vld [vmem:[#allocation18 + $0x48] sm:$0xf]
        %v2503 = vld [vmem:[#allocation18 + $0x4c] sm:$0xf]
        %v2504 = vld [vmem:[#allocation18 + $0x50] sm:$0xf]
        %v2505 = vld [vmem:[#allocation18 + $0x54] sm:$0xf]
        %v2506 = vld [vmem:[#allocation18 + $0x58] sm:$0xf]
        %v2507 = vld [vmem:[#allocation18 + $0x5c] sm:$0xf]
        %v2508 = vld [vmem:[#allocation18 + $0x60] sm:$0xf]
        %v2509 = vld [vmem:[#allocation18 + $0x64] sm:$0xf]
        %v2510 = vld [vmem:[#allocation18 + $0x68] sm:$0xf]
        %v2511 = vld [vmem:[#allocation18 + $0x6c] sm:$0xf]
        %v2512 = vld [vmem:[#allocation18 + $0x70] sm:$0xf]
        %v2513 = vld [vmem:[#allocation18 + $0x74] sm:$0xf]
        %v2514 = vld [vmem:[#allocation18 + $0x78] sm:$0xf]
        %v2515 = vld [vmem:[#allocation18 + $0x7c] sm:$0xf]
        %v2516 = vld [vmem:[#allocation19] sm:$0x1]
        %v2518 = vlaneseq
        %v2519 = vshrl.u32 %v2518, 7
        %v2520 = vsub.s32 0, %v2519
        %v2521 = vrot.slane %v2516, %v2520
        %v2555 = vunpack.c.l.b16 %v2484
        %v2556 = vunpack.c.l.b16 %v2485
        %v2557 = vunpack.c.l.b16 %v2486
        %v2558 = vunpack.c.l.b16 %v2487
        %v2559 = vunpack.c.l.b16 %v2488
        %v2560 = vunpack.c.l.b16 %v2489
        %v2561 = vunpack.c.l.b16 %v2490
        %v2562 = vunpack.c.l.b16 %v2491
        %v2563 = vunpack.c.l.b16 %v2492
        %v2564 = vunpack.c.l.b16 %v2493
        %v2565 = vunpack.c.l.b16 %v2494
        %v2566 = vunpack.c.l.b16 %v2495
        %v2567 = vunpack.c.l.b16 %v2496
        %v2568 = vunpack.c.l.b16 %v2497
        %v2569 = vunpack.c.l.b16 %v2498
        %v2570 = vunpack.c.l.b16 %v2499
        %v2571 = vunpack.c.l.b16 %v2500
        %v2572 = vunpack.c.l.b16 %v2501
        %v2573 = vunpack.c.l.b16 %v2502
        %v2574 = vunpack.c.l.b16 %v2503
        %v2575 = vunpack.c.l.b16 %v2504
        %v2576 = vunpack.c.l.b16 %v2505
        %v2577 = vunpack.c.l.b16 %v2506
        %v2578 = vunpack.c.l.b16 %v2507
        %v2579 = vunpack.c.l.b16 %v2508
        %v2580 = vunpack.c.l.b16 %v2509
        %v2581 = vunpack.c.l.b16 %v2510
        %v2582 = vunpack.c.l.b16 %v2511
        %v2583 = vunpack.c.l.b16 %v2512
        %v2584 = vunpack.c.l.b16 %v2513
        %v2585 = vunpack.c.l.b16 %v2514
        %v2586 = vunpack.c.l.b16 %v2515
        %v2587 = vpack.c.b16 %v2556, %v2555
        %v2588 = vpack.c.b16 %v2558, %v2557
        %v2589 = vpack.c.b16 %v2560, %v2559
        %v2590 = vpack.c.b16 %v2562, %v2561
        %v2591 = vpack.c.b16 %v2564, %v2563
        %v2592 = vpack.c.b16 %v2566, %v2565
        %v2593 = vpack.c.b16 %v2568, %v2567
        %v2594 = vpack.c.b16 %v2570, %v2569
        %v2595 = vpack.c.b16 %v2572, %v2571
        %v2596 = vpack.c.b16 %v2574, %v2573
        %v2597 = vpack.c.b16 %v2576, %v2575
        %v2598 = vpack.c.b16 %v2578, %v2577
        %v2599 = vpack.c.b16 %v2580, %v2579
        %v2600 = vpack.c.b16 %v2582, %v2581
        %v2601 = vpack.c.b16 %v2584, %v2583
        %v2602 = vpack.c.b16 %v2586, %v2585
        %2619 = vmatprep.subr.bf16.mxu0 0
        %2620 = vmatpush1.bf16.msra.mxu0 %v2594
        %2621 = vmatprep.subr.bf16.mxu0 0
        %2622 = vmatpush1.bf16.msra.mxu0 %v2593
        %2623 = vmatprep.subr.bf16.mxu0 0
        %2624 = vmatpush1.bf16.msra.mxu0 %v2592
        %2625 = vmatprep.subr.bf16.mxu0 0
        %2626 = vmatpush1.bf16.msra.mxu0 %v2591
        %2627 = vmatprep.subr.bf16.mxu0 0
        %2628 = vmatpush1.bf16.msra.mxu0 %v2590
        %2629 = vmatprep.subr.bf16.mxu0 0
        %2630 = vmatpush1.bf16.msra.mxu0 %v2589
        %2631 = vmatprep.subr.bf16.mxu0 0
        %2632 = vmatpush1.bf16.msra.mxu0 %v2588
        %2633 = vmatprep.subr.bf16.mxu0 0
        %2634 = vmatpush1.bf16.msra.mxu0 %v2587
        %2635 = vmatprep.subr.bf16.mxu0 0
        %2636 = vmatpush2.bf16.msra.mxu0 %v2602
        %2637 = vmatprep.subr.bf16.mxu0 0
        %2638 = vmatpush2.bf16.msra.mxu0 %v2601
        %2639 = vmatprep.subr.bf16.mxu0 0
        %2640 = vmatpush2.bf16.msra.mxu0 %v2600
        %2641 = vmatprep.subr.bf16.mxu0 0
        %2642 = vmatpush2.bf16.msra.mxu0 %v2599
        %2643 = vmatprep.subr.bf16.mxu0 0
        %2644 = vmatpush2.bf16.msra.mxu0 %v2598
        %2645 = vmatprep.subr.bf16.mxu0 0
        %2646 = vmatpush2.bf16.msra.mxu0 %v2597
        %2647 = vmatprep.subr.bf16.mxu0 0
        %2648 = vmatpush2.bf16.msra.mxu0 %v2596
        %2649 = vmatprep.subr.bf16.mxu0 0
        %2650 = vmatpush2.bf16.msra.mxu0 %v2595
        %2651 = vmatprep.mubr.bf16.mxu0 %v2483
        %2652 = vmatmul.mubr.bf16.gmra.mxu0 %v2482
        %v2653 = vpop.f32.mrf.mxu0
        %v2654 = vadd.f32 %v2521, %v2653
        %v2655 = vpop.f32.mrf.mxu0
        %v2656 = vpop.f32.mrf.mxu0
        %v2657 = vadd.f32 %v2521, %v2656
        %v2658 = vpop.f32.mrf.mxu0
        %2659 = vdwg.mxu0
        %v2660 = vadd.f32 %v2292, %v2654
        %v2661 = vadd.f32 %v2293, %v2657
        %2662 = vadd.xlane.f32.xlu0 %v2660
        %v2663 = vpop.xlane.xlu0 %2662
        %2664 = vadd.xlane.f32.xlu0 %v2661
        %v2665 = vpop.xlane.xlu0 %2664
        %v2666 = vmul.f32 %v2663, %v1795
        %v2667 = vmul.f32 %v2665, %v1795
        %v2668 = vsub.f32 %v2660, %v2666
        %v2669 = vsub.f32 %v2661, %v2667
        %v2670 = vmul.f32 %v2668, %v2668
        %v2671 = vmul.f32 %v2669, %v2669
        %2672 = vadd.xlane.f32.xlu0 %v2670
        %v2673 = vpop.xlane.xlu0 %2672
        %2674 = vadd.xlane.f32.xlu0 %v2671
        %v2675 = vpop.xlane.xlu0 %2674
        %v2676 = vmul.f32 %v2673, %v1795
        %v2677 = vmul.f32 %v2675, %v1795
        %v2678 = vadd.f32 %v2676, 1e-05
        %v2679 = vadd.f32 %v2677, 1e-05
        %v2680 = vrsqrt.pop %v2678
        %v2681 = vrsqrt.pop %v2679
        %v2682 = vmul.f32 %v2668, %v2680
        %v2683 = vmul.f32 %v2669, %v2681
        %v2684 = vld [vmem:[#allocation21] sm:$0x1]
        %v2686 = vlaneseq
        %v2687 = vshrl.u32 %v2686, 7
        %v2688 = vsub.s32 0, %v2687
        %v2689 = vrot.slane %v2684, %v2688
        %v2691 = vmul.f32 %v2682, %v2689
        %v2692 = vmul.f32 %v2683, %v2689
        %v2693 = vld [vmem:[#allocation22] sm:$0x1]
        %v2695 = vlaneseq
        %v2696 = vshrl.u32 %v2695, 7
        %v2697 = vsub.s32 0, %v2696
        %v2698 = vrot.slane %v2693, %v2697
        %v2700 = vadd.f32 %v2691, %v2698
        %v2701 = vadd.f32 %v2692, %v2698
        %2702 = vst [vmem:[%s881] sm:$0xff] %v2700
        %2703 = vst [vmem:[%s881 + $0x8] sm:$0xff] %v2701
        %p2704 = scmp.lt.s32.totalorder %s41, 1
        %s2705 = scalar_select %p2704, %s41, 1
        %s2706 = smul.addr %s2705, 2
        %s2707 = smul.addr %s2706, 8
        %s2708 = scalar_lea.vmem %s22, %s2707
        // Predicated region
        $region165: #{sm_diffusion_forward.7} parent=107 // pred_check
          %p2709 = pneg %p531
        $region166: #{sm_diffusion_forward.7} parent=107 // pred_check_branch
          %2711 = sbr.rel (%p2709) target = $region168
        $region167: #{sm_diffusion_forward.7} parent=107 // pred_region
          _
        $region168: #{sm_diffusion_forward.7} parent=107 // pred_fallthru
          _
      $region108: #{sm_diffusion_forward.7} parent=5 // pred_fallthru
        _
      %p2712 = scmp.le.s32.totalorder 2, %s36
      // Predicated region
      $region169: #{sm_diffusion_forward.7} parent=5 // pred_check
        %p2713 = pneg %p2712
      $region170: #{sm_diffusion_forward.7} parent=5 // pred_check_branch
        %2715 = sbr.rel (%p2713) target = $region172
      $region171: #{sm_diffusion_forward.7} parent=5 // pred_region
        %s2716 = ssub.s32 %s36, 2
        // Predicated region
        $region173: #{sm_diffusion_forward.7} parent=171 // pred_check
          %p2717 = pneg %p537
        $region174: #{sm_diffusion_forward.7} parent=171 // pred_check_branch
          %2719 = sbr.rel (%p2717) target = $region176
        $region175: #{sm_diffusion_forward.7} parent=171 // pred_region
          %p2720 = scmp.lt.s32.totalorder %s42, 1
          %s2721 = scalar_select %p2720, %s42, 1
          %s2722 = smul.addr %s2721, 2
          %s2723 = smul.addr %s2722, 8
          %s2724 = scalar_lea.vmem %s22, %s2723
        $region176: #{sm_diffusion_forward.7} parent=171 // pred_fallthru
          _
      $region172: #{sm_diffusion_forward.7} parent=5 // pred_fallthru
        _
    $region6: #{sm_diffusion_forward.7} parent=1 // loop_footer
      %s40 = sadd.s32 1, %s36
    $region7: #{sm_diffusion_forward.7} parent=1 // loop_footer_branch
      %35 = sbr.rel target = $region3
    $region8: #{sm_diffusion_forward.7} parent=1 // loop_exit
      _
    %2725 = vsyncpa [#allocation3], 1
    %s2726 = scalar_lea.sflag [#allocation3], 1
    %2727 = vsyncpa %s2726, 1
    %2728 = vsyncpa [#allocation5], 1
    %2729 = vsyncpa [#allocation8], 1
    %2730 = vsyncpa [#allocation11], 1
    %2731 = vsyncpa [#allocation14], 1
    %2732 = vsyncpa [#allocation17], 1
    %2733 = vsyncpa [#allocation20], 1
    %2734 = vsyncpa [#allocation23], 1

// kernel: sm_diffusion_forward.8
$region0: #{sm_diffusion_forward.8}
  #allocation0 [shape = 'u32[]', space=smem, size = 0x4, offset = 0x4, fixed_abs, tag = 'smem constant byte address 0x4 - core index']
  #allocation1 [shape = 'u32[144,128]{1,0:T(1,128)}', space=vmem, size = 0x12000, scoped, tag = 'internal scratch']
  %s0 = inlined_call_operand.vmem [shape: f32[2,16,128], index: 0, kind: input, shape index: {}]
  %s1 = inlined_call_operand.vmem [shape: f32[2,16,128], index: 1, kind: input, shape index: {}]
  %s2 = inlined_call_operand.vmem [shape: bf16[128,384], index: 2, kind: input, shape index: {}]
  %s3 = inlined_call_operand.vmem [shape: f32[1,384], index: 3, kind: input, shape index: {}]
  %s4 = inlined_call_operand.vmem [shape: bf16[128,128], index: 4, kind: input, shape index: {}]
  %s5 = inlined_call_operand.vmem [shape: f32[1,128], index: 5, kind: input, shape index: {}]
  %s6 = inlined_call_operand.vmem [shape: f32[1,128], index: 6, kind: input, shape index: {}]
  %s7 = inlined_call_operand.vmem [shape: f32[1,128], index: 7, kind: input, shape index: {}]
  %s8 = inlined_call_operand.vmem [shape: f32[3,128], index: 8, kind: input, shape index: {}]
  %s9 = inlined_call_operand.vmem [shape: f32[1,128], index: 9, kind: input, shape index: {}]
  %s10 = inlined_call_operand.vmem [shape: bf16[128,256], index: 10, kind: input, shape index: {}]
  %s11 = inlined_call_operand.vmem [shape: f32[1,256], index: 11, kind: input, shape index: {}]
  %s12 = inlined_call_operand.vmem [shape: bf16[256,128], index: 12, kind: input, shape index: {}]
  %s13 = inlined_call_operand.vmem [shape: f32[1,128], index: 13, kind: input, shape index: {}]
  %s14 = inlined_call_operand.vmem [shape: f32[1,128], index: 14, kind: input, shape index: {}]
  %s15 = inlined_call_operand.vmem [shape: f32[1,128], index: 15, kind: input, shape index: {}]
  %s16 = inlined_call_operand.vmem [shape: bf16[128,256], index: 16, kind: input, shape index: {}]
  %s17 = inlined_call_operand.vmem [shape: f32[1,256], index: 17, kind: input, shape index: {}]
  %s18 = inlined_call_operand.vmem [shape: bf16[256,128], index: 18, kind: input, shape index: {}]
  %s19 = inlined_call_operand.vmem [shape: f32[1,128], index: 19, kind: input, shape index: {}]
  %s20 = inlined_call_operand.vmem [shape: f32[1,128], index: 20, kind: input, shape index: {}]
  %s21 = inlined_call_operand.vmem [shape: f32[1,128], index: 21, kind: input, shape index: {}]
  %s22 = inlined_call_operand.vmem [shape: f32[2,16,128], index: 22, kind: output, shape index: {}]
  %s23 = sld [smem:[#allocation0]]
  $region121: #{sm_diffusion_forward.8} parent=0
    _
  %s25 = ssub.s32 1, %s23
  %s26 = scalar_select 0, %s25, %s23
  loop: start=0, step=1, limit=4
  $region2: #{sm_diffusion_forward.8} parent=0 // loop_pre_header
    _
  $region3: #{sm_diffusion_forward.8} parent=0 // loop_header
    %s28 = sphi 0, %s32
    %p29 = scmp.ge.s32.totalorder %s28, 4
    %s38 = sphi 0, %s40
    %s41 = sphi 0, %s38
    %s42 = sphi 0, %s41
    %s58 = sphi 0, %s42
    %s64 = sphi 0, %s66
    %s67 = sphi 0, %s64
    %s68 = sphi 0, %s67
    %s84 = sphi 0, %s68
    %s88 = sphi 0, %s88
    %s90 = sphi 0, %s88
    %s91 = sphi 0, %s90
    %s105 = sphi 0, %s91
    %s109 = sphi 0, %s109
    %s111 = sphi 0, %s109
    %s112 = sphi 0, %s111
    %s126 = sphi 0, %s112
    %s130 = sphi 0, %s130
    %s132 = sphi 0, %s130
    %s133 = sphi 0, %s132
    %s147 = sphi 0, %s133
    %s151 = sphi 0, %s151
    %s153 = sphi 0, %s151
    %s154 = sphi 0, %s153
    %s168 = sphi 0, %s154
    %s172 = sphi 0, %s172
    %s174 = sphi 0, %s172
    %s175 = sphi 0, %s174
    %s189 = sphi 0, %s175
    %s193 = sphi 0, %s193
    %s195 = sphi 0, %s193
    %s196 = sphi 0, %s195
    %s210 = sphi 0, %s196
    %s214 = sphi 0, %s214
    %s216 = sphi 0, %s214
    %s217 = sphi 0, %s216
    %s231 = sphi 0, %s217
    %s235 = sphi 0, %s235
    %s237 = sphi 0, %s235
    %s238 = sphi 0, %s237
    %s252 = sphi 0, %s238
    %s256 = sphi 0, %s256
    %s258 = sphi 0, %s256
    %s259 = sphi 0, %s258
    %s273 = sphi 0, %s259
    %s277 = sphi 0, %s277
    %s279 = sphi 0, %s277
    %s280 = sphi 0, %s279
    %s294 = sphi 0, %s280
    %s298 = sphi 0, %s298
    %s300 = sphi 0, %s298
    %s301 = sphi 0, %s300
    %s315 = sphi 0, %s301
    %s319 = sphi 0, %s319
    %s321 = sphi 0, %s319
    %s322 = sphi 0, %s321
    %s336 = sphi 0, %s322
    %s340 = sphi 0, %s340
    %s342 = sphi 0, %s340
    %s343 = sphi 0, %s342
    %s357 = sphi 0, %s343
    %s361 = sphi 0, %s361
    %s363 = sphi 0, %s361
    %s364 = sphi 0, %s363
    %s378 = sphi 0, %s364
    %s382 = sphi 0, %s382
    %s384 = sphi 0, %s382
    %s385 = sphi 0, %s384
    %s399 = sphi 0, %s385
    %s403 = sphi 0, %s403
    %s405 = sphi 0, %s403
    %s406 = sphi 0, %s405
    %s420 = sphi 0, %s406
    %s424 = sphi 0, %s424
    %s426 = sphi 0, %s424
    %s427 = sphi 0, %s426
    %s441 = sphi 0, %s427
    %s445 = sphi 0, %s445
    %s447 = sphi 0, %s445
    %s448 = sphi 0, %s447
    %s462 = sphi 0, %s448
    %s466 = sphi 0, %s466
    %s468 = sphi 0, %s466
    %s469 = sphi 0, %s468
    %s483 = sphi 0, %s469
    %s487 = sphi 0, %s487
    %s489 = sphi 0, %s487
    %s490 = sphi 0, %s489
    %s504 = sphi 0, %s490
    %s510 = sphi 0, %s512
    %s513 = sphi 0, %s510
    %s514 = sphi 0, %s513
    %s530 = sphi 0, %s514
  $region4: #{sm_diffusion_forward.8} parent=0 // loop_header_branch
    %31 = sbr.rel (%p29) target = $region8
  $region5: #{sm_diffusion_forward.8} parent=0 // loop_body
    %s33 = ssub.s32 %s28, 1
    %s34 = ssub.s32 %s28, 2
    %s35 = sadd.s32 %s28, 1
    %s36 = ssub.s32 %s28, %s35
    %p37 = scmp.eq.s32.totalorder %s36, 0
    %s39 = sadd.s32 %s38, 1
    %s40 = scalar_select %p37, %s38, %s39
    %p43 = pneg %p37
    %p44 = scmp.eq.s32.totalorder %s28, 1
    %p45 = por %p43, %p44
    %p46 = scmp.ne.s32.totalorder %s38, %s41
    %p47 = scmp.eq.s32.totalorder %s28, 0
    %p48 = por %p46, %p47
    %p49 = scmp.ne.s32.totalorder %s38, %s41
    %p50 = scmp.eq.s32.totalorder %s33, 1
    %p51 = por %p49, %p50
    %p52 = scmp.ne.s32.totalorder %s41, %s42
    %p53 = scmp.eq.s32.totalorder %s33, 0
    %p54 = por %p52, %p53
    %p55 = scmp.ne.s32.totalorder %s41, %s42
    %p56 = scmp.eq.s32.totalorder %s34, 1
    %p57 = por %p55, %p56
    %p59 = scmp.ne.s32.totalorder %s42, %s58
    %p60 = scmp.eq.s32.totalorder %s34, 0
    %p61 = por %p59, %p60
    %s62 = ssub.s32 %s28, %s35
    %p63 = scmp.eq.s32.totalorder %s62, 0
    %s65 = sadd.s32 %s64, 1
    %s66 = scalar_select %p63, %s64, %s65
    %p69 = pneg %p63
    %p70 = scmp.eq.s32.totalorder %s28, 1
    %p71 = por %p69, %p70
    %p72 = scmp.ne.s32.totalorder %s64, %s67
    %p73 = scmp.eq.s32.totalorder %s28, 0
    %p74 = por %p72, %p73
    %p75 = scmp.ne.s32.totalorder %s64, %s67
    %p76 = scmp.eq.s32.totalorder %s33, 1
    %p77 = por %p75, %p76
    %p78 = scmp.ne.s32.totalorder %s67, %s68
    %p79 = scmp.eq.s32.totalorder %s33, 0
    %p80 = por %p78, %p79
    %p81 = scmp.ne.s32.totalorder %s67, %s68
    %p82 = scmp.eq.s32.totalorder %s34, 1
    %p83 = por %p81, %p82
    %p85 = scmp.ne.s32.totalorder %s68, %s84
    %p86 = scmp.eq.s32.totalorder %s34, 0
    %p87 = por %p85, %p86
    %s89 = sadd.s32 %s88, 1
    %p92 = scmp.eq.s32.totalorder %s28, 1
    %p93 = scmp.ne.s32.totalorder %s88, %s90
    %p94 = scmp.eq.s32.totalorder %s28, 0
    %p95 = por %p93, %p94
    %p96 = scmp.ne.s32.totalorder %s88, %s90
    %p97 = scmp.eq.s32.totalorder %s33, 1
    %p98 = por %p96, %p97
    %p99 = scmp.ne.s32.totalorder %s90, %s91
    %p100 = scmp.eq.s32.totalorder %s33, 0
    %p101 = por %p99, %p100
    %p102 = scmp.ne.s32.totalorder %s90, %s91
    %p103 = scmp.eq.s32.totalorder %s34, 1
    %p104 = por %p102, %p103
    %p106 = scmp.ne.s32.totalorder %s91, %s105
    %p107 = scmp.eq.s32.totalorder %s34, 0
    %p108 = por %p106, %p107
    %s110 = sadd.s32 %s109, 1
    %p113 = scmp.eq.s32.totalorder %s28, 1
    %p114 = scmp.ne.s32.totalorder %s109, %s111
    %p115 = scmp.eq.s32.totalorder %s28, 0
    %p116 = por %p114, %p115
    %p117 = scmp.ne.s32.totalorder %s109, %s111
    %p118 = scmp.eq.s32.totalorder %s33, 1
    %p119 = por %p117, %p118
    %p120 = scmp.ne.s32.totalorder %s111, %s112
    %p121 = scmp.eq.s32.totalorder %s33, 0
    %p122 = por %p120, %p121
    %p123 = scmp.ne.s32.totalorder %s111, %s112
    %p124 = scmp.eq.s32.totalorder %s34, 1
    %p125 = por %p123, %p124
    %p127 = scmp.ne.s32.totalorder %s112, %s126
    %p128 = scmp.eq.s32.totalorder %s34, 0
    %p129 = por %p127, %p128
    %s131 = sadd.s32 %s130, 1
    %p134 = scmp.eq.s32.totalorder %s28, 1
    %p135 = scmp.ne.s32.totalorder %s130, %s132
    %p136 = scmp.eq.s32.totalorder %s28, 0
    %p137 = por %p135, %p136
    %p138 = scmp.ne.s32.totalorder %s130, %s132
    %p139 = scmp.eq.s32.totalorder %s33, 1
    %p140 = por %p138, %p139
    %p141 = scmp.ne.s32.totalorder %s132, %s133
    %p142 = scmp.eq.s32.totalorder %s33, 0
    %p143 = por %p141, %p142
    %p144 = scmp.ne.s32.totalorder %s132, %s133
    %p145 = scmp.eq.s32.totalorder %s34, 1
    %p146 = por %p144, %p145
    %p148 = scmp.ne.s32.totalorder %s133, %s147
    %p149 = scmp.eq.s32.totalorder %s34, 0
    %p150 = por %p148, %p149
    %s152 = sadd.s32 %s151, 1
    %p155 = scmp.eq.s32.totalorder %s28, 1
    %p156 = scmp.ne.s32.totalorder %s151, %s153
    %p157 = scmp.eq.s32.totalorder %s28, 0
    %p158 = por %p156, %p157
    %p159 = scmp.ne.s32.totalorder %s151, %s153
    %p160 = scmp.eq.s32.totalorder %s33, 1
    %p161 = por %p159, %p160
    %p162 = scmp.ne.s32.totalorder %s153, %s154
    %p163 = scmp.eq.s32.totalorder %s33, 0
    %p164 = por %p162, %p163
    %p165 = scmp.ne.s32.totalorder %s153, %s154
    %p166 = scmp.eq.s32.totalorder %s34, 1
    %p167 = por %p165, %p166
    %p169 = scmp.ne.s32.totalorder %s154, %s168
    %p170 = scmp.eq.s32.totalorder %s34, 0
    %p171 = por %p169, %p170
    %s173 = sadd.s32 %s172, 1
    %p176 = scmp.eq.s32.totalorder %s28, 1
    %p177 = scmp.ne.s32.totalorder %s172, %s174
    %p178 = scmp.eq.s32.totalorder %s28, 0
    %p179 = por %p177, %p178
    %p180 = scmp.ne.s32.totalorder %s172, %s174
    %p181 = scmp.eq.s32.totalorder %s33, 1
    %p182 = por %p180, %p181
    %p183 = scmp.ne.s32.totalorder %s174, %s175
    %p184 = scmp.eq.s32.totalorder %s33, 0
    %p185 = por %p183, %p184
    %p186 = scmp.ne.s32.totalorder %s174, %s175
    %p187 = scmp.eq.s32.totalorder %s34, 1
    %p188 = por %p186, %p187
    %p190 = scmp.ne.s32.totalorder %s175, %s189
    %p191 = scmp.eq.s32.totalorder %s34, 0
    %p192 = por %p190, %p191
    %s194 = sadd.s32 %s193, 1
    %p197 = scmp.eq.s32.totalorder %s28, 1
    %p198 = scmp.ne.s32.totalorder %s193, %s195
    %p199 = scmp.eq.s32.totalorder %s28, 0
    %p200 = por %p198, %p199
    %p201 = scmp.ne.s32.totalorder %s193, %s195
    %p202 = scmp.eq.s32.totalorder %s33, 1
    %p203 = por %p201, %p202
    %p204 = scmp.ne.s32.totalorder %s195, %s196
    %p205 = scmp.eq.s32.totalorder %s33, 0
    %p206 = por %p204, %p205
    %p207 = scmp.ne.s32.totalorder %s195, %s196
    %p208 = scmp.eq.s32.totalorder %s34, 1
    %p209 = por %p207, %p208
    %p211 = scmp.ne.s32.totalorder %s196, %s210
    %p212 = scmp.eq.s32.totalorder %s34, 0
    %p213 = por %p211, %p212
    %s215 = sadd.s32 %s214, 1
    %p218 = scmp.eq.s32.totalorder %s28, 1
    %p219 = scmp.ne.s32.totalorder %s214, %s216
    %p220 = scmp.eq.s32.totalorder %s28, 0
    %p221 = por %p219, %p220
    %p222 = scmp.ne.s32.totalorder %s214, %s216
    %p223 = scmp.eq.s32.totalorder %s33, 1
    %p224 = por %p222, %p223
    %p225 = scmp.ne.s32.totalorder %s216, %s217
    %p226 = scmp.eq.s32.totalorder %s33, 0
    %p227 = por %p225, %p226
    %p228 = scmp.ne.s32.totalorder %s216, %s217
    %p229 = scmp.eq.s32.totalorder %s34, 1
    %p230 = por %p228, %p229
    %p232 = scmp.ne.s32.totalorder %s217, %s231
    %p233 = scmp.eq.s32.totalorder %s34, 0
    %p234 = por %p232, %p233
    %s236 = sadd.s32 %s235, 1
    %p239 = scmp.eq.s32.totalorder %s28, 1
    %p240 = scmp.ne.s32.totalorder %s235, %s237
    %p241 = scmp.eq.s32.totalorder %s28, 0
    %p242 = por %p240, %p241
    %p243 = scmp.ne.s32.totalorder %s235, %s237
    %p244 = scmp.eq.s32.totalorder %s33, 1
    %p245 = por %p243, %p244
    %p246 = scmp.ne.s32.totalorder %s237, %s238
    %p247 = scmp.eq.s32.totalorder %s33, 0
    %p248 = por %p246, %p247
    %p249 = scmp.ne.s32.totalorder %s237, %s238
    %p250 = scmp.eq.s32.totalorder %s34, 1
    %p251 = por %p249, %p250
    %p253 = scmp.ne.s32.totalorder %s238, %s252
    %p254 = scmp.eq.s32.totalorder %s34, 0
    %p255 = por %p253, %p254
    %s257 = sadd.s32 %s256, 1
    %p260 = scmp.eq.s32.totalorder %s28, 1
    %p261 = scmp.ne.s32.totalorder %s256, %s258
    %p262 = scmp.eq.s32.totalorder %s28, 0
    %p263 = por %p261, %p262
    %p264 = scmp.ne.s32.totalorder %s256, %s258
    %p265 = scmp.eq.s32.totalorder %s33, 1
    %p266 = por %p264, %p265
    %p267 = scmp.ne.s32.totalorder %s258, %s259
    %p268 = scmp.eq.s32.totalorder %s33, 0
    %p269 = por %p267, %p268
    %p270 = scmp.ne.s32.totalorder %s258, %s259
    %p271 = scmp.eq.s32.totalorder %s34, 1
    %p272 = por %p270, %p271
    %p274 = scmp.ne.s32.totalorder %s259, %s273
    %p275 = scmp.eq.s32.totalorder %s34, 0
    %p276 = por %p274, %p275
    %s278 = sadd.s32 %s277, 1
    %p281 = scmp.eq.s32.totalorder %s28, 1
    %p282 = scmp.ne.s32.totalorder %s277, %s279
    %p283 = scmp.eq.s32.totalorder %s28, 0
    %p284 = por %p282, %p283
    %p285 = scmp.ne.s32.totalorder %s277, %s279
    %p286 = scmp.eq.s32.totalorder %s33, 1
    %p287 = por %p285, %p286
    %p288 = scmp.ne.s32.totalorder %s279, %s280
    %p289 = scmp.eq.s32.totalorder %s33, 0
    %p290 = por %p288, %p289
    %p291 = scmp.ne.s32.totalorder %s279, %s280
    %p292 = scmp.eq.s32.totalorder %s34, 1
    %p293 = por %p291, %p292
    %p295 = scmp.ne.s32.totalorder %s280, %s294
    %p296 = scmp.eq.s32.totalorder %s34, 0
    %p297 = por %p295, %p296
    %s299 = sadd.s32 %s298, 1
    %p302 = scmp.eq.s32.totalorder %s28, 1
    %p303 = scmp.ne.s32.totalorder %s298, %s300
    %p304 = scmp.eq.s32.totalorder %s28, 0
    %p305 = por %p303, %p304
    %p306 = scmp.ne.s32.totalorder %s298, %s300
    %p307 = scmp.eq.s32.totalorder %s33, 1
    %p308 = por %p306, %p307
    %p309 = scmp.ne.s32.totalorder %s300, %s301
    %p310 = scmp.eq.s32.totalorder %s33, 0
    %p311 = por %p309, %p310
    %p312 = scmp.ne.s32.totalorder %s300, %s301
    %p313 = scmp.eq.s32.totalorder %s34, 1
    %p314 = por %p312, %p313
    %p316 = scmp.ne.s32.totalorder %s301, %s315
    %p317 = scmp.eq.s32.totalorder %s34, 0
    %p318 = por %p316, %p317
    %s320 = sadd.s32 %s319, 1
    %p323 = scmp.eq.s32.totalorder %s28, 1
    %p324 = scmp.ne.s32.totalorder %s319, %s321
    %p325 = scmp.eq.s32.totalorder %s28, 0
    %p326 = por %p324, %p325
    %p327 = scmp.ne.s32.totalorder %s319, %s321
    %p328 = scmp.eq.s32.totalorder %s33, 1
    %p329 = por %p327, %p328
    %p330 = scmp.ne.s32.totalorder %s321, %s322
    %p331 = scmp.eq.s32.totalorder %s33, 0
    %p332 = por %p330, %p331
    %p333 = scmp.ne.s32.totalorder %s321, %s322
    %p334 = scmp.eq.s32.totalorder %s34, 1
    %p335 = por %p333, %p334
    %p337 = scmp.ne.s32.totalorder %s322, %s336
    %p338 = scmp.eq.s32.totalorder %s34, 0
    %p339 = por %p337, %p338
    %s341 = sadd.s32 %s340, 1
    %p344 = scmp.eq.s32.totalorder %s28, 1
    %p345 = scmp.ne.s32.totalorder %s340, %s342
    %p346 = scmp.eq.s32.totalorder %s28, 0
    %p347 = por %p345, %p346
    %p348 = scmp.ne.s32.totalorder %s340, %s342
    %p349 = scmp.eq.s32.totalorder %s33, 1
    %p350 = por %p348, %p349
    %p351 = scmp.ne.s32.totalorder %s342, %s343
    %p352 = scmp.eq.s32.totalorder %s33, 0
    %p353 = por %p351, %p352
    %p354 = scmp.ne.s32.totalorder %s342, %s343
    %p355 = scmp.eq.s32.totalorder %s34, 1
    %p356 = por %p354, %p355
    %p358 = scmp.ne.s32.totalorder %s343, %s357
    %p359 = scmp.eq.s32.totalorder %s34, 0
    %p360 = por %p358, %p359
    %s362 = sadd.s32 %s361, 1
    %p365 = scmp.eq.s32.totalorder %s28, 1
    %p366 = scmp.ne.s32.totalorder %s361, %s363
    %p367 = scmp.eq.s32.totalorder %s28, 0
    %p368 = por %p366, %p367
    %p369 = scmp.ne.s32.totalorder %s361, %s363
    %p370 = scmp.eq.s32.totalorder %s33, 1
    %p371 = por %p369, %p370
    %p372 = scmp.ne.s32.totalorder %s363, %s364
    %p373 = scmp.eq.s32.totalorder %s33, 0
    %p374 = por %p372, %p373
    %p375 = scmp.ne.s32.totalorder %s363, %s364
    %p376 = scmp.eq.s32.totalorder %s34, 1
    %p377 = por %p375, %p376
    %p379 = scmp.ne.s32.totalorder %s364, %s378
    %p380 = scmp.eq.s32.totalorder %s34, 0
    %p381 = por %p379, %p380
    %s383 = sadd.s32 %s382, 1
    %p386 = scmp.eq.s32.totalorder %s28, 1
    %p387 = scmp.ne.s32.totalorder %s382, %s384
    %p388 = scmp.eq.s32.totalorder %s28, 0
    %p389 = por %p387, %p388
    %p390 = scmp.ne.s32.totalorder %s382, %s384
    %p391 = scmp.eq.s32.totalorder %s33, 1
    %p392 = por %p390, %p391
    %p393 = scmp.ne.s32.totalorder %s384, %s385
    %p394 = scmp.eq.s32.totalorder %s33, 0
    %p395 = por %p393, %p394
    %p396 = scmp.ne.s32.totalorder %s384, %s385
    %p397 = scmp.eq.s32.totalorder %s34, 1
    %p398 = por %p396, %p397
    %p400 = scmp.ne.s32.totalorder %s385, %s399
    %p401 = scmp.eq.s32.totalorder %s34, 0
    %p402 = por %p400, %p401
    %s404 = sadd.s32 %s403, 1
    %p407 = scmp.eq.s32.totalorder %s28, 1
    %p408 = scmp.ne.s32.totalorder %s403, %s405
    %p409 = scmp.eq.s32.totalorder %s28, 0
    %p410 = por %p408, %p409
    %p411 = scmp.ne.s32.totalorder %s403, %s405
    %p412 = scmp.eq.s32.totalorder %s33, 1
    %p413 = por %p411, %p412
    %p414 = scmp.ne.s32.totalorder %s405, %s406
    %p415 = scmp.eq.s32.totalorder %s33, 0
    %p416 = por %p414, %p415
    %p417 = scmp.ne.s32.totalorder %s405, %s406
    %p418 = scmp.eq.s32.totalorder %s34, 1
    %p419 = por %p417, %p418
    %p421 = scmp.ne.s32.totalorder %s406, %s420
    %p422 = scmp.eq.s32.totalorder %s34, 0
    %p423 = por %p421, %p422
    %s425 = sadd.s32 %s424, 1
    %p428 = scmp.eq.s32.totalorder %s28, 1
    %p429 = scmp.ne.s32.totalorder %s424, %s426
    %p430 = scmp.eq.s32.totalorder %s28, 0
    %p431 = por %p429, %p430
    %p432 = scmp.ne.s32.totalorder %s424, %s426
    %p433 = scmp.eq.s32.totalorder %s33, 1
    %p434 = por %p432, %p433
    %p435 = scmp.ne.s32.totalorder %s426, %s427
    %p436 = scmp.eq.s32.totalorder %s33, 0
    %p437 = por %p435, %p436
    %p438 = scmp.ne.s32.totalorder %s426, %s427
    %p439 = scmp.eq.s32.totalorder %s34, 1
    %p440 = por %p438, %p439
    %p442 = scmp.ne.s32.totalorder %s427, %s441
    %p443 = scmp.eq.s32.totalorder %s34, 0
    %p444 = por %p442, %p443
    %s446 = sadd.s32 %s445, 1
    %p449 = scmp.eq.s32.totalorder %s28, 1
    %p450 = scmp.ne.s32.totalorder %s445, %s447
    %p451 = scmp.eq.s32.totalorder %s28, 0
    %p452 = por %p450, %p451
    %p453 = scmp.ne.s32.totalorder %s445, %s447
    %p454 = scmp.eq.s32.totalorder %s33, 1
    %p455 = por %p453, %p454
    %p456 = scmp.ne.s32.totalorder %s447, %s448
    %p457 = scmp.eq.s32.totalorder %s33, 0
    %p458 = por %p456, %p457
    %p459 = scmp.ne.s32.totalorder %s447, %s448
    %p460 = scmp.eq.s32.totalorder %s34, 1
    %p461 = por %p459, %p460
    %p463 = scmp.ne.s32.totalorder %s448, %s462
    %p464 = scmp.eq.s32.totalorder %s34, 0
    %p465 = por %p463, %p464
    %s467 = sadd.s32 %s466, 1
    %p470 = scmp.eq.s32.totalorder %s28, 1
    %p471 = scmp.ne.s32.totalorder %s466, %s468
    %p472 = scmp.eq.s32.totalorder %s28, 0
    %p473 = por %p471, %p472
    %p474 = scmp.ne.s32.totalorder %s466, %s468
    %p475 = scmp.eq.s32.totalorder %s33, 1
    %p476 = por %p474, %p475
    %p477 = scmp.ne.s32.totalorder %s468, %s469
    %p478 = scmp.eq.s32.totalorder %s33, 0
    %p479 = por %p477, %p478
    %p480 = scmp.ne.s32.totalorder %s468, %s469
    %p481 = scmp.eq.s32.totalorder %s34, 1
    %p482 = por %p480, %p481
    %p484 = scmp.ne.s32.totalorder %s469, %s483
    %p485 = scmp.eq.s32.totalorder %s34, 0
    %p486 = por %p484, %p485
    %s488 = sadd.s32 %s487, 1
    %p491 = scmp.eq.s32.totalorder %s28, 1
    %p492 = scmp.ne.s32.totalorder %s487, %s489
    %p493 = scmp.eq.s32.totalorder %s28, 0
    %p494 = por %p492, %p493
    %p495 = scmp.ne.s32.totalorder %s487, %s489
    %p496 = scmp.eq.s32.totalorder %s33, 1
    %p497 = por %p495, %p496
    %p498 = scmp.ne.s32.totalorder %s489, %s490
    %p499 = scmp.eq.s32.totalorder %s33, 0
    %p500 = por %p498, %p499
    %p501 = scmp.ne.s32.totalorder %s489, %s490
    %p502 = scmp.eq.s32.totalorder %s34, 1
    %p503 = por %p501, %p502
    %p505 = scmp.ne.s32.totalorder %s490, %s504
    %p506 = scmp.eq.s32.totalorder %s34, 0
    %p507 = por %p505, %p506
    %s508 = ssub.s32 %s28, %s35
    %p509 = scmp.eq.s32.totalorder %s508, 0
    %s511 = sadd.s32 %s510, 1
    %s512 = scalar_select %p509, %s510, %s511
    %p515 = pneg %p509
    %p516 = scmp.eq.s32.totalorder %s28, 1
    %p517 = por %p515, %p516
    %p518 = scmp.ne.s32.totalorder %s510, %s513
    %p519 = scmp.eq.s32.totalorder %s28, 0
    %p520 = por %p518, %p519
    %p521 = scmp.ne.s32.totalorder %s510, %s513
    %p522 = scmp.eq.s32.totalorder %s33, 1
    %p523 = por %p521, %p522
    %p524 = scmp.ne.s32.totalorder %s513, %s514
    %p525 = scmp.eq.s32.totalorder %s33, 0
    %p526 = por %p524, %p525
    %p527 = scmp.ne.s32.totalorder %s513, %s514
    %p528 = scmp.eq.s32.totalorder %s34, 1
    %p529 = por %p527, %p528
    %p531 = scmp.ne.s32.totalorder %s514, %s530
    %p532 = scmp.eq.s32.totalorder %s34, 0
    %p533 = por %p531, %p532
    %p534 = scmp.le.s32.totalorder 1, %s28
    %p535 = scmp.lt.s32.totalorder %s28, 3
    %p536 = pnand %p534, %p535
    %p537 = pneg %p536
    // Predicated region
    $region9: #{sm_diffusion_forward.8} parent=5 // pred_check
      _
    $region10: #{sm_diffusion_forward.8} parent=5 // pred_check_branch
      %539 = sbr.rel (%p536) target = $region12
    $region11: #{sm_diffusion_forward.8} parent=5 // pred_region
      %s540 = ssub.s32 %s28, 1
      // Predicated region
      $region13: #{sm_diffusion_forward.8} parent=11 // pred_check
        %p541 = pneg %p101
      $region14: #{sm_diffusion_forward.8} parent=11 // pred_check_branch
        %543 = sbr.rel (%p541) target = $region16
      $region15: #{sm_diffusion_forward.8} parent=11 // pred_region
        _
      $region16: #{sm_diffusion_forward.8} parent=11 // pred_fallthru
        _
      // Predicated region
      $region17: #{sm_diffusion_forward.8} parent=11 // pred_check
        %p544 = pneg %p122
      $region18: #{sm_diffusion_forward.8} parent=11 // pred_check_branch
        %546 = sbr.rel (%p544) target = $region20
      $region19: #{sm_diffusion_forward.8} parent=11 // pred_region
        _
      $region20: #{sm_diffusion_forward.8} parent=11 // pred_fallthru
        _
      // Predicated region
      $region21: #{sm_diffusion_forward.8} parent=11 // pred_check
        %p547 = pneg %p143
      $region22: #{sm_diffusion_forward.8} parent=11 // pred_check_branch
        %549 = sbr.rel (%p547) target = $region24
      $region23: #{sm_diffusion_forward.8} parent=11 // pred_region
        _
      $region24: #{sm_diffusion_forward.8} parent=11 // pred_fallthru
        _
      // Predicated region
      $region25: #{sm_diffusion_forward.8} parent=11 // pred_check
        %p550 = pneg %p164
      $region26: #{sm_diffusion_forward.8} parent=11 // pred_check_branch
        %552 = sbr.rel (%p550) target = $region28
      $region27: #{sm_diffusion_forward.8} parent=11 // pred_region
        _
      $region28: #{sm_diffusion_forward.8} parent=11 // pred_fallthru
        _
      // Predicated region
      $region29: #{sm_diffusion_forward.8} parent=11 // pred_check
        %p553 = pneg %p185
      $region30: #{sm_diffusion_forward.8} parent=11 // pred_check_branch
        %555 = sbr.rel (%p553) target = $region32
      $region31: #{sm_diffusion_forward.8} parent=11 // pred_region
        _
      $region32: #{sm_diffusion_forward.8} parent=11 // pred_fallthru
        _
      // Predicated region
      $region33: #{sm_diffusion_forward.8} parent=11 // pred_check
        %p556 = pneg %p206
      $region34: #{sm_diffusion_forward.8} parent=11 // pred_check_branch
        %558 = sbr.rel (%p556) target = $region36
      $region35: #{sm_diffusion_forward.8} parent=11 // pred_region
        _
      $region36: #{sm_diffusion_forward.8} parent=11 // pred_fallthru
        _
      // Predicated region
      $region37: #{sm_diffusion_forward.8} parent=11 // pred_check
        %p559 = pneg %p227
      $region38: #{sm_diffusion_forward.8} parent=11 // pred_check_branch
        %561 = sbr.rel (%p559) target = $region40
      $region39: #{sm_diffusion_forward.8} parent=11 // pred_region
        _
      $region40: #{sm_diffusion_forward.8} parent=11 // pred_fallthru
        _
      // Predicated region
      $region41: #{sm_diffusion_forward.8} parent=11 // pred_check
        %p562 = pneg %p248
      $region42: #{sm_diffusion_forward.8} parent=11 // pred_check_branch
        %564 = sbr.rel (%p562) target = $region44
      $region43: #{sm_diffusion_forward.8} parent=11 // pred_region
        _
      $region44: #{sm_diffusion_forward.8} parent=11 // pred_fallthru
        _
      // Predicated region
      $region45: #{sm_diffusion_forward.8} parent=11 // pred_check
        %p565 = pneg %p269
      $region46: #{sm_diffusion_forward.8} parent=11 // pred_check_branch
        %567 = sbr.rel (%p565) target = $region48
      $region47: #{sm_diffusion_forward.8} parent=11 // pred_region
        _
      $region48: #{sm_diffusion_forward.8} parent=11 // pred_fallthru
        _
      // Predicated region
      $region49: #{sm_diffusion_forward.8} parent=11 // pred_check
        %p568 = pneg %p290
      $region50: #{sm_diffusion_forward.8} parent=11 // pred_check_branch
        %570 = sbr.rel (%p568) target = $region52
      $region51: #{sm_diffusion_forward.8} parent=11 // pred_region
        _
      $region52: #{sm_diffusion_forward.8} parent=11 // pred_fallthru
        _
      // Predicated region
      $region53: #{sm_diffusion_forward.8} parent=11 // pred_check
        %p571 = pneg %p311
      $region54: #{sm_diffusion_forward.8} parent=11 // pred_check_branch
        %573 = sbr.rel (%p571) target = $region56
      $region55: #{sm_diffusion_forward.8} parent=11 // pred_region
        _
      $region56: #{sm_diffusion_forward.8} parent=11 // pred_fallthru
        _
      // Predicated region
      $region57: #{sm_diffusion_forward.8} parent=11 // pred_check
        %p574 = pneg %p332
      $region58: #{sm_diffusion_forward.8} parent=11 // pred_check_branch
        %576 = sbr.rel (%p574) target = $region60
      $region59: #{sm_diffusion_forward.8} parent=11 // pred_region
        _
      $region60: #{sm_diffusion_forward.8} parent=11 // pred_fallthru
        _
      // Predicated region
      $region61: #{sm_diffusion_forward.8} parent=11 // pred_check
        %p577 = pneg %p353
      $region62: #{sm_diffusion_forward.8} parent=11 // pred_check_branch
        %579 = sbr.rel (%p577) target = $region64
      $region63: #{sm_diffusion_forward.8} parent=11 // pred_region
        _
      $region64: #{sm_diffusion_forward.8} parent=11 // pred_fallthru
        _
      // Predicated region
      $region65: #{sm_diffusion_forward.8} parent=11 // pred_check
        %p580 = pneg %p374
      $region66: #{sm_diffusion_forward.8} parent=11 // pred_check_branch
        %582 = sbr.rel (%p580) target = $region68
      $region67: #{sm_diffusion_forward.8} parent=11 // pred_region
        _
      $region68: #{sm_diffusion_forward.8} parent=11 // pred_fallthru
        _
      // Predicated region
      $region69: #{sm_diffusion_forward.8} parent=11 // pred_check
        %p583 = pneg %p395
      $region70: #{sm_diffusion_forward.8} parent=11 // pred_check_branch
        %585 = sbr.rel (%p583) target = $region72
      $region71: #{sm_diffusion_forward.8} parent=11 // pred_region
        _
      $region72: #{sm_diffusion_forward.8} parent=11 // pred_fallthru
        _
      // Predicated region
      $region73: #{sm_diffusion_forward.8} parent=11 // pred_check
        %p586 = pneg %p416
      $region74: #{sm_diffusion_forward.8} parent=11 // pred_check_branch
        %588 = sbr.rel (%p586) target = $region76
      $region75: #{sm_diffusion_forward.8} parent=11 // pred_region
        _
      $region76: #{sm_diffusion_forward.8} parent=11 // pred_fallthru
        _
      // Predicated region
      $region77: #{sm_diffusion_forward.8} parent=11 // pred_check
        %p589 = pneg %p437
      $region78: #{sm_diffusion_forward.8} parent=11 // pred_check_branch
        %591 = sbr.rel (%p589) target = $region80
      $region79: #{sm_diffusion_forward.8} parent=11 // pred_region
        _
      $region80: #{sm_diffusion_forward.8} parent=11 // pred_fallthru
        _
      // Predicated region
      $region81: #{sm_diffusion_forward.8} parent=11 // pred_check
        %p592 = pneg %p458
      $region82: #{sm_diffusion_forward.8} parent=11 // pred_check_branch
        %594 = sbr.rel (%p592) target = $region84
      $region83: #{sm_diffusion_forward.8} parent=11 // pred_region
        _
      $region84: #{sm_diffusion_forward.8} parent=11 // pred_fallthru
        _
      // Predicated region
      $region85: #{sm_diffusion_forward.8} parent=11 // pred_check
        %p595 = pneg %p479
      $region86: #{sm_diffusion_forward.8} parent=11 // pred_check_branch
        %597 = sbr.rel (%p595) target = $region88
      $region87: #{sm_diffusion_forward.8} parent=11 // pred_region
        _
      $region88: #{sm_diffusion_forward.8} parent=11 // pred_fallthru
        _
      // Predicated region
      $region89: #{sm_diffusion_forward.8} parent=11 // pred_check
        %p598 = pneg %p500
      $region90: #{sm_diffusion_forward.8} parent=11 // pred_check_branch
        %600 = sbr.rel (%p598) target = $region92
      $region91: #{sm_diffusion_forward.8} parent=11 // pred_region
        _
      $region92: #{sm_diffusion_forward.8} parent=11 // pred_fallthru
        _
    $region12: #{sm_diffusion_forward.8} parent=5 // pred_fallthru
      _
    %p601 = scmp.lt.s32.totalorder %s28, 2
    // Predicated region
    $region93: #{sm_diffusion_forward.8} parent=5 // pred_check
      %p602 = pneg %p601
    $region94: #{sm_diffusion_forward.8} parent=5 // pred_check_branch
      %604 = sbr.rel (%p602) target = $region96
    $region95: #{sm_diffusion_forward.8} parent=5 // pred_region
      // Predicated region
      $region97: #{sm_diffusion_forward.8} parent=95 // pred_check
        %p605 = pneg %p48
      $region98: #{sm_diffusion_forward.8} parent=95 // pred_check_branch
        %607 = sbr.rel (%p605) target = $region100
      $region99: #{sm_diffusion_forward.8} parent=95 // pred_region
        %p608 = scmp.lt.s32.totalorder %s28, 1
        %s609 = scalar_select %p608, %s28, 1
        %s610 = smul.addr %s609, 2
        %s611 = smul.addr %s610, 8
        %s612 = scalar_lea.vmem %s0, %s611
      $region100: #{sm_diffusion_forward.8} parent=95 // pred_fallthru
        _
      // Predicated region
      $region101: #{sm_diffusion_forward.8} parent=95 // pred_check
        %p613 = pneg %p74
      $region102: #{sm_diffusion_forward.8} parent=95 // pred_check_branch
        %615 = sbr.rel (%p613) target = $region104
      $region103: #{sm_diffusion_forward.8} parent=95 // pred_region
        %p616 = scmp.lt.s32.totalorder %s28, 1
        %s617 = scalar_select %p616, %s28, 1
        %s618 = smul.addr %s617, 2
        %s619 = smul.addr %s618, 8
        %s620 = scalar_lea.vmem %s1, %s619
      $region104: #{sm_diffusion_forward.8} parent=95 // pred_fallthru
        _
    $region96: #{sm_diffusion_forward.8} parent=5 // pred_fallthru
      _
    %p621 = scmp.le.s32.totalorder 1, %s28
    %p622 = scmp.lt.s32.totalorder %s28, 3
    %p623 = pnand %p621, %p622
    %p624 = pneg %p623
    // Predicated region
    $region105: #{sm_diffusion_forward.8} parent=5 // pred_check
      _
    $region106: #{sm_diffusion_forward.8} parent=5 // pred_check_branch
      %626 = sbr.rel (%p623) target = $region108
    $region107: #{sm_diffusion_forward.8} parent=5 // pred_region
      %s627 = ssub.s32 %s28, 1
      %p628 = scmp.lt.s32.totalorder %s33, 1
      %s629 = scalar_select %p628, %s33, 1
      %s630 = smul.addr %s629, 2
      %s631 = smul.addr %s630, 8
      %s632 = scalar_lea.vmem %s0, %s631
      %p633 = pneg %p54
      %p634 = pneg %p51
      %p635 = scmp.lt.s32.totalorder %s33, 1
      %s636 = scalar_select %p635, %s33, 1
      %s637 = smul.addr %s636, 2
      %s638 = smul.addr %s637, 8
      %s639 = scalar_lea.vmem %s1, %s638
      %p640 = pneg %p80
      %p641 = pneg %p77
      %p642 = pneg %p101
      %p643 = pneg %p98
      %p644 = pneg %p122
      %p645 = pneg %p119
      %p646 = pneg %p143
      %p647 = pneg %p140
      %p648 = pneg %p164
      %p649 = pneg %p161
      %p650 = pneg %p185
      %p651 = pneg %p182
      %p652 = pneg %p206
      %p653 = pneg %p203
      %p654 = pneg %p227
      %p655 = pneg %p224
      %p656 = pneg %p248
      %p657 = pneg %p245
      %p658 = pneg %p269
      %p659 = pneg %p266
      %p660 = pneg %p290
      %p661 = pneg %p287
      %p662 = pneg %p311
      %p663 = pneg %p308
      %p664 = pneg %p332
      %p665 = pneg %p329
      %p666 = pneg %p353
      %p667 = pneg %p350
      %p668 = pneg %p374
      %p669 = pneg %p371
      %p670 = pneg %p395
      %p671 = pneg %p392
      %p672 = pneg %p416
      %p673 = pneg %p413
      %p674 = pneg %p437
      %p675 = pneg %p434
      %p676 = pneg %p458
      %p677 = pneg %p455
      %p678 = pneg %p479
      %p679 = pneg %p476
      %p680 = pneg %p500
      %p681 = pneg %p497
      %p682 = pneg %p526
      %p683 = pneg %p523
      %p684 = scmp.lt.s32.totalorder %s33, 1
      %s685 = scalar_select %p684, %s33, 1
      %s686 = smul.addr %s685, 2
      %s687 = smul.addr %s686, 8
      %s688 = scalar_lea.vmem %s22, %s687
      %p689 = scmp.lt.s32.totalorder %s33, 1
      %s690 = scalar_select %p689, %s33, 1
      %s691 = smul.addr %s690, 2
      %s692 = smul.addr %s691, 8
      %s693 = scalar_lea.vmem %s0, %s692
      %p694 = scmp.lt.s32.totalorder %s33, 1
      %s695 = scalar_select %p694, %s33, 1
      %s696 = smul.addr %s695, 2
      %s697 = smul.addr %s696, 8
      %s698 = scalar_lea.vmem %s1, %s697
      %p699 = scmp.lt.s32.totalorder %s33, 1
      %s700 = scalar_select %p699, %s33, 1
      %s701 = smul.addr %s700, 2
      %s702 = smul.addr %s701, 8
      %s703 = scalar_lea.vmem %s22, %s702
      %v705 = vld [vmem:[%s693] sm:$0xff]
      %v706 = vld [vmem:[%s693 + $0x8] sm:$0xff]
      %v707 = vld [vmem:[%s698] sm:$0xff]
      %v708 = vld [vmem:[%s698 + $0x8] sm:$0xff]
      %v709 = vadd.f32 %v705, %v707
      %v710 = vadd.f32 %v706, %v708
      %v711 = vpack.c.bf16 %v710, %v709
      %v712 = vld [vmem:[%s2] sm:$0xff]
      %v713 = vld [vmem:[%s2 + $0x8] sm:$0xf]
      %v714 = vld [vmem:[%s2 + $0xc] sm:$0xff]
      %v715 = vld [vmem:[%s2 + $0x14] sm:$0xf]
      %v716 = vld [vmem:[%s2 + $0x18] sm:$0xff]
      %v717 = vld [vmem:[%s2 + $0x20] sm:$0xf]
      %v718 = vld [vmem:[%s2 + $0x24] sm:$0xff]
      %v719 = vld [vmem:[%s2 + $0x2c] sm:$0xf]
      %v720 = vld [vmem:[%s2 + $0x30] sm:$0xff]
      %v721 = vld [vmem:[%s2 + $0x38] sm:$0xf]
      %v722 = vld [vmem:[%s2 + $0x3c] sm:$0xff]
      %v723 = vld [vmem:[%s2 + $0x44] sm:$0xf]
      %v724 = vld [vmem:[%s2 + $0x48] sm:$0xff]
      %v725 = vld [vmem:[%s2 + $0x50] sm:$0xf]
      %v726 = vld [vmem:[%s2 + $0x54] sm:$0xff]
      %v727 = vld [vmem:[%s2 + $0x5c] sm:$0xf]
      %v728 = vld [vmem:[%s2 + $0x60] sm:$0xff]
      %v729 = vld [vmem:[%s2 + $0x68] sm:$0xf]
      %v730 = vld [vmem:[%s2 + $0x6c] sm:$0xff]
      %v731 = vld [vmem:[%s2 + $0x74] sm:$0xf]
      %v732 = vld [vmem:[%s2 + $0x78] sm:$0xff]
      %v733 = vld [vmem:[%s2 + $0x80] sm:$0xf]
      %v734 = vld [vmem:[%s2 + $0x84] sm:$0xff]
      %v735 = vld [vmem:[%s2 + $0x8c] sm:$0xf]
      %v736 = vld [vmem:[%s2 + $0x90] sm:$0xff]
      %v737 = vld [vmem:[%s2 + $0x98] sm:$0xf]
      %v738 = vld [vmem:[%s2 + $0x9c] sm:$0xff]
      %v739 = vld [vmem:[%s2 + $0xa4] sm:$0xf]
      %v740 = vld [vmem:[%s2 + $0xa8] sm:$0xff]
      %v741 = vld [vmem:[%s2 + $0xb0] sm:$0xf]
      %v742 = vld [vmem:[%s2 + $0xb4] sm:$0xff]
      %v743 = vld [vmem:[%s2 + $0xbc] sm:$0xf]
      %v744 = vld [vmem:[%s3] sm:$0x7]
      %v746 = vlaneseq
      %v747 = vshrl.u32 %v746, 7
      %v748 = vsub.s32 0, %v747
      %v749 = vrot.slane %v744, %v748
      %v750 = vlaneseq
      %v751 = vshrl.u32 %v750, 7
      %v752 = vsub.s32 1, %v751
      %v753 = vrot.slane %v744, %v752
      %v754 = vlaneseq
      %v755 = vshrl.u32 %v754, 7
      %v756 = vsub.s32 2, %v755
      %v757 = vrot.slane %v744, %v756
      %v793 = vunpack.c.l.b16 %v712
      %v794 = vunpack.c.h.b16 %v712
      %v795 = vunpack.c.l.b16 %v713
      %v796 = vunpack.c.l.b16 %v714
      %v797 = vunpack.c.h.b16 %v714
      %v798 = vunpack.c.l.b16 %v715
      %v799 = vunpack.c.l.b16 %v716
      %v800 = vunpack.c.h.b16 %v716
      %v801 = vunpack.c.l.b16 %v717
      %v802 = vunpack.c.l.b16 %v718
      %v803 = vunpack.c.h.b16 %v718
      %v804 = vunpack.c.l.b16 %v719
      %v805 = vunpack.c.l.b16 %v720
      %v806 = vunpack.c.h.b16 %v720
      %v807 = vunpack.c.l.b16 %v721
      %v808 = vunpack.c.l.b16 %v722
      %v809 = vunpack.c.h.b16 %v722
      %v810 = vunpack.c.l.b16 %v723
      %v811 = vunpack.c.l.b16 %v724
      %v812 = vunpack.c.h.b16 %v724
      %v813 = vunpack.c.l.b16 %v725
      %v814 = vunpack.c.l.b16 %v726
      %v815 = vunpack.c.h.b16 %v726
      %v816 = vunpack.c.l.b16 %v727
      %v817 = vunpack.c.l.b16 %v728
      %v818 = vunpack.c.h.b16 %v728
      %v819 = vunpack.c.l.b16 %v729
      %v820 = vunpack.c.l.b16 %v730
      %v821 = vunpack.c.h.b16 %v730
      %v822 = vunpack.c.l.b16 %v731
      %v823 = vunpack.c.l.b16 %v732
      %v824 = vunpack.c.h.b16 %v732
      %v825 = vunpack.c.l.b16 %v733
      %v826 = vunpack.c.l.b16 %v734
      %v827 = vunpack.c.h.b16 %v734
      %v828 = vunpack.c.l.b16 %v735
      %v829 = vunpack.c.l.b16 %v736
      %v830 = vunpack.c.h.b16 %v736
      %v831 = vunpack.c.l.b16 %v737
      %v832 = vunpack.c.l.b16 %v738
      %v833 = vunpack.c.h.b16 %v738
      %v834 = vunpack.c.l.b16 %v739
      %v835 = vunpack.c.l.b16 %v740
      %v836 = vunpack.c.h.b16 %v740
      %v837 = vunpack.c.l.b16 %v741
      %v838 = vunpack.c.l.b16 %v742
      %v839 = vunpack.c.h.b16 %v742
      %v840 = vunpack.c.l.b16 %v743
      %v841 = vpack.c.b16 %v796, %v793
      %v842 = vpack.c.b16 %v797, %v794
      %v843 = vpack.c.b16 %v798, %v795
      %v844 = vpack.c.b16 %v802, %v799
      %v845 = vpack.c.b16 %v803, %v800
      %v846 = vpack.c.b16 %v804, %v801
      %v847 = vpack.c.b16 %v808, %v805
      %v848 = vpack.c.b16 %v809, %v806
      %v849 = vpack.c.b16 %v810, %v807
      %v850 = vpack.c.b16 %v814, %v811
      %v851 = vpack.c.b16 %v815, %v812
      %v852 = vpack.c.b16 %v816, %v813
      %v853 = vpack.c.b16 %v820, %v817
      %v854 = vpack.c.b16 %v821, %v818
      %v855 = vpack.c.b16 %v822, %v819
      %v856 = vpack.c.b16 %v826, %v823
      %v857 = vpack.c.b16 %v827, %v824
      %v858 = vpack.c.b16 %v828, %v825
      %v859 = vpack.c.b16 %v832, %v829
      %v860 = vpack.c.b16 %v833, %v830
      %v861 = vpack.c.b16 %v834, %v831
      %v862 = vpack.c.b16 %v838, %v835
      %v863 = vpack.c.b16 %v839, %v836
      %v864 = vpack.c.b16 %v840, %v837
      %889 = vmatprep.subr.bf16.mxu0 %v863
      %890 = vmatpush1.bf16.msra.mxu0 %v862
      %891 = vmatprep.subr.bf16.mxu0 %v860
      %892 = vmatpush1.bf16.msra.mxu0 %v859
      %893 = vmatprep.subr.bf16.mxu0 %v857
      %894 = vmatpush1.bf16.msra.mxu0 %v856
      %895 = vmatprep.subr.bf16.mxu0 %v854
      %896 = vmatpush1.bf16.msra.mxu0 %v853
      %897 = vmatprep.subr.bf16.mxu0 %v851
      %898 = vmatpush1.bf16.msra.mxu0 %v850
      %899 = vmatprep.subr.bf16.mxu0 %v848
      %900 = vmatpush1.bf16.msra.mxu0 %v847
      %901 = vmatprep.subr.bf16.mxu0 %v845
      %902 = vmatpush1.bf16.msra.mxu0 %v844
      %903 = vmatprep.subr.bf16.mxu0 %v842
      %904 = vmatpush1.bf16.msra.mxu0 %v841
      %905 = vmatprep.subr.bf16.mxu0 0
      %906 = vmatpush2.bf16.msra.mxu0 0
      %907 = vmatprep.subr.bf16.mxu0 0
      %908 = vmatpush2.bf16.msra.mxu0 0
      %909 = vmatprep.subr.bf16.mxu0 0
      %910 = vmatpush2.bf16.msra.mxu0 0
      %911 = vmatprep.subr.bf16.mxu0 0
      %912 = vmatpush2.bf16.msra.mxu0 0
      %913 = vmatprep.subr.bf16.mxu0 0
      %914 = vmatpush2.bf16.msra.mxu0 0
      %915 = vmatprep.subr.bf16.mxu0 0
      %916 = vmatpush2.bf16.msra.mxu0 0
      %917 = vmatprep.subr.bf16.mxu0 0
      %918 = vmatpush2.bf16.msra.mxu0 0
      %919 = vmatprep.subr.bf16.mxu0 0
      %920 = vmatpush2.bf16.msra.mxu0 0
      %921 = vmatprep.mubr.bf16.mxu0 0
      %922 = vmatmul.mubr.bf16.gmra.mxu0 %v711
      %v923 = vpop.f32.mrf.mxu0
      %v924 = vadd.f32 %v749, %v923
      %v925 = vpop.f32.mrf.mxu0
      %v926 = vadd.f32 %v753, %v925
      %v927 = vpop.f32.mrf.mxu0
      %v928 = vadd.f32 %v749, %v927
      %v929 = vpop.f32.mrf.mxu0
      %v930 = vadd.f32 %v753, %v929
      %931 = vdwg.mxu0
      %932 = vmatprep.subr.bf16.mxu0 0
      %933 = vmatpush1.bf16.msra.mxu0 %v864
      %934 = vmatprep.subr.bf16.mxu0 0
      %935 = vmatpush1.bf16.msra.mxu0 %v861
      %936 = vmatprep.subr.bf16.mxu0 0
      %937 = vmatpush1.bf16.msra.mxu0 %v858
      %938 = vmatprep.subr.bf16.mxu0 0
      %939 = vmatpush1.bf16.msra.mxu0 %v855
      %940 = vmatprep.subr.bf16.mxu0 0
      %941 = vmatpush1.bf16.msra.mxu0 %v852
      %942 = vmatprep.subr.bf16.mxu0 0
      %943 = vmatpush1.bf16.msra.mxu0 %v849
      %944 = vmatprep.subr.bf16.mxu0 0
      %945 = vmatpush1.bf16.msra.mxu0 %v846
      %946 = vmatprep.subr.bf16.mxu0 0
      %947 = vmatpush1.bf16.msra.mxu0 %v843
      %948 = vmatprep.subr.bf16.mxu0 0
      %949 = vmatpush2.bf16.msra.mxu0 0
      %950 = vmatprep.subr.bf16.mxu0 0
      %951 = vmatpush2.bf16.msra.mxu0 0
      %952 = vmatprep.subr.bf16.mxu0 0
      %953 = vmatpush2.bf16.msra.mxu0 0
      %954 = vmatprep.subr.bf16.mxu0 0
      %955 = vmatpush2.bf16.msra.mxu0 0
      %956 = vmatprep.subr.bf16.mxu0 0
      %957 = vmatpush2.bf16.msra.mxu0 0
      %958 = vmatprep.subr.bf16.mxu0 0
      %959 = vmatpush2.bf16.msra.mxu0 0
      %960 = vmatprep.subr.bf16.mxu0 0
      %961 = vmatpush2.bf16.msra.mxu0 0
      %962 = vmatprep.subr.bf16.mxu0 0
      %963 = vmatpush2.bf16.msra.mxu0 0
      %964 = vmatprep.mubr.bf16.mxu0 0
      %965 = vmatmul.mubr.bf16.gmra.mxu0 %v711
      %v966 = vpop.f32.mrf.mxu0
      %v967 = vadd.f32 %v757, %v966
      %v968 = vpop.f32.mrf.mxu0
      %v969 = vpop.f32.mrf.mxu0
      %v970 = vadd.f32 %v757, %v969
      %v971 = vpop.f32.mrf.mxu0
      %972 = vdwg.mxu0
      %v973 = vpack.c.bf16 %v928, %v924
      %v974 = vpack.c.bf16 %v930, %v926
      %vm975 = vcmask 261120
      %v977 = vsel %vm975, %v973, 0
      %v980 = vsel %vm975, %v974, 0
      %982 = vmatprep.subr.bf16.mxu0 0
      %983 = vmatpush1.bf16.xpose.msra.mxu0 0
      %984 = vmatprep.subr.bf16.mxu0 0
      %985 = vmatpush1.bf16.xpose.msra.mxu0 0
      %986 = vmatprep.subr.bf16.mxu0 0
      %987 = vmatpush1.bf16.xpose.msra.mxu0 0
      %988 = vmatprep.subr.bf16.mxu0 0
      %989 = vmatpush1.bf16.xpose.msra.mxu0 0
      %990 = vmatprep.subr.bf16.mxu0 0
      %991 = vmatpush1.bf16.xpose.msra.mxu0 0
      %992 = vmatprep.subr.bf16.mxu0 0
      %993 = vmatpush1.bf16.xpose.msra.mxu0 0
      %994 = vmatprep.subr.bf16.mxu0 0
      %995 = vmatpush1.bf16.xpose.msra.mxu0 0
      %996 = vmatprep.subr.bf16.mxu0 0
      %997 = vmatpush1.bf16.xpose.msra.mxu0 %v980
      %998 = vmatprep.subr.bf16.mxu0 0
      %999 = vmatpush2.bf16.xpose.msra.mxu0 0
      %1000 = vmatprep.subr.bf16.mxu0 0
      %1001 = vmatpush2.bf16.xpose.msra.mxu0 0
      %1002 = vmatprep.subr.bf16.mxu0 0
      %1003 = vmatpush2.bf16.xpose.msra.mxu0 0
      %1004 = vmatprep.subr.bf16.mxu0 0
      %1005 = vmatpush2.bf16.xpose.msra.mxu0 0
      %1006 = vmatprep.subr.bf16.mxu0 0
      %1007 = vmatpush2.bf16.xpose.msra.mxu0 0
      %1008 = vmatprep.subr.bf16.mxu0 0
      %1009 = vmatpush2.bf16.xpose.msra.mxu0 0
      %1010 = vmatprep.subr.bf16.mxu0 0
      %1011 = vmatpush2.bf16.xpose.msra.mxu0 0
      %1012 = vmatprep.subr.bf16.mxu0 0
      %1013 = vmatpush2.bf16.xpose.msra.mxu0 0
      %1014 = vmatprep.mubr.bf16.mxu0 0
      %1015 = vmatmul.mubr.bf16.gmra.mxu0 %v977
      %v1016 = vpop.f32.mrf.mxu0
      %v1017 = vadd.f32 0.0, %v1016
      %v1018 = vpop.f32.mrf.mxu0
      %v1019 = vpop.f32.mrf.mxu0
      %v1020 = vadd.f32 0.0, %v1019
      %v1021 = vpop.f32.mrf.mxu0
      %1022 = vdwg.mxu0
      %v1023 = vmul.f32 %v1017, 0.17677669
      %v1024 = vmul.f32 %v1020, 0.17677669
      %vm1025 = vcmask 130048
      %v1026 = vsel %vm1025, %v1023, -inf
      %1027 = vmax.xlane.f32.xlu0 %v1026
      %v1028 = vpop.xlane.xlu0 %1027
      %v1029 = vsel %vm1025, %v1024, -inf
      %1030 = vmax.xlane.f32.xlu0 %v1029
      %v1031 = vpop.xlane.xlu0 %1030
      %v1032 = vsub.f32 %v1023, %v1028
      %v1033 = vsub.f32 %v1024, %v1031
      %v1034 = vmul.f32 %v1032, 1.442695
      %v1035 = vpow.pop %v1034
      %v1036 = vmul.f32 %v1033, 1.442695
      %v1037 = vpow.pop %v1036
      %v1038 = vsel %vm1025, %v1035, 0.0
      %1039 = vadd.xlane.f32.xlu0 %v1038
      %v1040 = vpop.xlane.xlu0 %1039
      %v1041 = vsel %vm1025, %v1037, 0.0
      %1042 = vadd.xlane.f32.xlu0 %v1041
      %v1043 = vpop.xlane.xlu0 %1042
      %v1044 = vrcp.pop %v1040
      %v1045 = vrcp.pop %v1043
      %v1046 = vmul.f32 %v1035, %v1044
      %v1047 = vmul.f32 %v1037, %v1045
      %v1048 = vpack.c.bf16 %v1047, %v1046
      %v1049 = vpack.c.bf16 %v970, %v967
      %v1051 = vsel %vm1025, %v1048, 0
      %1053 = vmatprep.subr.bf16.mxu0 0
      %1054 = vmatpush1.bf16.msra.mxu0 0
      %1055 = vmatprep.subr.bf16.mxu0 0
      %1056 = vmatpush1.bf16.msra.mxu0 0
      %1057 = vmatprep.subr.bf16.mxu0 0
      %1058 = vmatpush1.bf16.msra.mxu0 0
      %1059 = vmatprep.subr.bf16.mxu0 0
      %1060 = vmatpush1.bf16.msra.mxu0 0
      %1061 = vmatprep.subr.bf16.mxu0 0
      %1062 = vmatpush1.bf16.msra.mxu0 0
      %1063 = vmatprep.subr.bf16.mxu0 0
      %1064 = vmatpush1.bf16.msra.mxu0 0
      %1065 = vmatprep.subr.bf16.mxu0 0
      %1066 = vmatpush1.bf16.msra.mxu0 0
      %1067 = vmatprep.subr.bf16.mxu0 0
      %1068 = vmatpush1.bf16.msra.mxu0 %v1049
      %1069 = vmatprep.subr.bf16.mxu0 0
      %1070 = vmatpush2.bf16.msra.mxu0 0
      %1071 = vmatprep.subr.bf16.mxu0 0
      %1072 = vmatpush2.bf16.msra.mxu0 0
      %1073 = vmatprep.subr.bf16.mxu0 0
      %1074 = vmatpush2.bf16.msra.mxu0 0
      %1075 = vmatprep.subr.bf16.mxu0 0
      %1076 = vmatpush2.bf16.msra.mxu0 0
      %1077 = vmatprep.subr.bf16.mxu0 0
      %1078 = vmatpush2.bf16.msra.mxu0 0
      %1079 = vmatprep.subr.bf16.mxu0 0
      %1080 = vmatpush2.bf16.msra.mxu0 0
      %1081 = vmatprep.subr.bf16.mxu0 0
      %1082 = vmatpush2.bf16.msra.mxu0 0
      %1083 = vmatprep.subr.bf16.mxu0 0
      %1084 = vmatpush2.bf16.msra.mxu0 0
      %1085 = vmatprep.mubr.bf16.mxu0 0
      %1086 = vmatmul.mubr.bf16.gmra.mxu0 %v1051
      %v1087 = vpop.f32.mrf.mxu0
      %v1088 = vadd.f32 0.0, %v1087
      %v1089 = vpop.f32.mrf.mxu0
      %v1090 = vpop.f32.mrf.mxu0
      %v1091 = vadd.f32 0.0, %v1090
      %v1092 = vpop.f32.mrf.mxu0
      %1093 = vdwg.mxu0
      %1095 = vrot.lane.b32.xlu0 %v973, 96
      %v1096 = vpop.permute.xlu0 %1095
      %1098 = vrot.lane.b32.xlu0 %v974, 96
      %v1099 = vpop.permute.xlu0 %1098
      %v1101 = vsel %vm975, %v1096, 0
      %v1104 = vsel %vm975, %v1099, 0
      %1106 = vmatprep.subr.bf16.mxu0 0
      %1107 = vmatpush1.bf16.xpose.msra.mxu0 0
      %1108 = vmatprep.subr.bf16.mxu0 0
      %1109 = vmatpush1.bf16.xpose.msra.mxu0 0
      %1110 = vmatprep.subr.bf16.mxu0 0
      %1111 = vmatpush1.bf16.xpose.msra.mxu0 0
      %1112 = vmatprep.subr.bf16.mxu0 0
      %1113 = vmatpush1.bf16.xpose.msra.mxu0 0
      %1114 = vmatprep.subr.bf16.mxu0 0
      %1115 = vmatpush1.bf16.xpose.msra.mxu0 0
      %1116 = vmatprep.subr.bf16.mxu0 0
      %1117 = vmatpush1.bf16.xpose.msra.mxu0 0
      %1118 = vmatprep.subr.bf16.mxu0 0
      %1119 = vmatpush1.bf16.xpose.msra.mxu0 0
      %1120 = vmatprep.subr.bf16.mxu0 0
      %1121 = vmatpush1.bf16.xpose.msra.mxu0 %v1104
      %1122 = vmatprep.subr.bf16.mxu0 0
      %1123 = vmatpush2.bf16.xpose.msra.mxu0 0
      %1124 = vmatprep.subr.bf16.mxu0 0
      %1125 = vmatpush2.bf16.xpose.msra.mxu0 0
      %1126 = vmatprep.subr.bf16.mxu0 0
      %1127 = vmatpush2.bf16.xpose.msra.mxu0 0
      %1128 = vmatprep.subr.bf16.mxu0 0
      %1129 = vmatpush2.bf16.xpose.msra.mxu0 0
      %1130 = vmatprep.subr.bf16.mxu0 0
      %1131 = vmatpush2.bf16.xpose.msra.mxu0 0
      %1132 = vmatprep.subr.bf16.mxu0 0
      %1133 = vmatpush2.bf16.xpose.msra.mxu0 0
      %1134 = vmatprep.subr.bf16.mxu0 0
      %1135 = vmatpush2.bf16.xpose.msra.mxu0 0
      %1136 = vmatprep.subr.bf16.mxu0 0
      %1137 = vmatpush2.bf16.xpose.msra.mxu0 0
      %1138 = vmatprep.mubr.bf16.mxu0 0
      %1139 = vmatmul.mubr.bf16.gmra.mxu0 %v1101
      %v1140 = vpop.f32.mrf.mxu0
      %v1141 = vadd.f32 0.0, %v1140
      %v1142 = vpop.f32.mrf.mxu0
      %v1143 = vpop.f32.mrf.mxu0
      %v1144 = vadd.f32 0.0, %v1143
      %v1145 = vpop.f32.mrf.mxu0
      %1146 = vdwg.mxu0
      %v1147 = vmul.f32 %v1141, 0.17677669
      %v1148 = vmul.f32 %v1144, 0.17677669
      %v1149 = vsel %vm1025, %v1147, -inf
      %1150 = vmax.xlane.f32.xlu0 %v1149
      %v1151 = vpop.xlane.xlu0 %1150
      %v1152 = vsel %vm1025, %v1148, -inf
      %1153 = vmax.xlane.f32.xlu0 %v1152
      %v1154 = vpop.xlane.xlu0 %1153
      %v1155 = vsub.f32 %v1147, %v1151
      %v1156 = vsub.f32 %v1148, %v1154
      %v1157 = vmul.f32 %v1155, 1.442695
      %v1158 = vpow.pop %v1157
      %v1159 = vmul.f32 %v1156, 1.442695
      %v1160 = vpow.pop %v1159
      %v1161 = vsel %vm1025, %v1158, 0.0
      %1162 = vadd.xlane.f32.xlu0 %v1161
      %v1163 = vpop.xlane.xlu0 %1162
      %v1164 = vsel %vm1025, %v1160, 0.0
      %1165 = vadd.xlane.f32.xlu0 %v1164
      %v1166 = vpop.xlane.xlu0 %1165
      %v1167 = vrcp.pop %v1163
      %v1168 = vrcp.pop %v1166
      %v1169 = vmul.f32 %v1158, %v1167
      %v1170 = vmul.f32 %v1160, %v1168
      %v1171 = vpack.c.bf16 %v1170, %v1169
      %1173 = vrot.lane.b32.xlu0 %v1049, 96
      %v1174 = vpop.permute.xlu0 %1173
      %v1177 = vsel %vm1025, %v1171, 0
      %1179 = vmatprep.subr.bf16.mxu0 0
      %1180 = vmatpush1.bf16.msra.mxu0 0
      %1181 = vmatprep.subr.bf16.mxu0 0
      %1182 = vmatpush1.bf16.msra.mxu0 0
      %1183 = vmatprep.subr.bf16.mxu0 0
      %1184 = vmatpush1.bf16.msra.mxu0 0
      %1185 = vmatprep.subr.bf16.mxu0 0
      %1186 = vmatpush1.bf16.msra.mxu0 0
      %1187 = vmatprep.subr.bf16.mxu0 0
      %1188 = vmatpush1.bf16.msra.mxu0 0
      %1189 = vmatprep.subr.bf16.mxu0 0
      %1190 = vmatpush1.bf16.msra.mxu0 0
      %1191 = vmatprep.subr.bf16.mxu0 0
      %1192 = vmatpush1.bf16.msra.mxu0 0
      %1193 = vmatprep.subr.bf16.mxu0 0
      %1194 = vmatpush1.bf16.msra.mxu0 %v1174
      %1195 = vmatprep.subr.bf16.mxu0 0
      %1196 = vmatpush2.bf16.msra.mxu0 0
      %1197 = vmatprep.subr.bf16.mxu0 0
      %1198 = vmatpush2.bf16.msra.mxu0 0
      %1199 = vmatprep.subr.bf16.mxu0 0
      %1200 = vmatpush2.bf16.msra.mxu0 0
      %1201 = vmatprep.subr.bf16.mxu0 0
      %1202 = vmatpush2.bf16.msra.mxu0 0
      %1203 = vmatprep.subr.bf16.mxu0 0
      %1204 = vmatpush2.bf16.msra.mxu0 0
      %1205 = vmatprep.subr.bf16.mxu0 0
      %1206 = vmatpush2.bf16.msra.mxu0 0
      %1207 = vmatprep.subr.bf16.mxu0 0
      %1208 = vmatpush2.bf16.msra.mxu0 0
      %1209 = vmatprep.subr.bf16.mxu0 0
      %1210 = vmatpush2.bf16.msra.mxu0 0
      %1211 = vmatprep.mubr.bf16.mxu0 0
      %1212 = vmatmul.mubr.bf16.gmra.mxu0 %v1177
      %v1213 = vpop.f32.mrf.mxu0
      %v1214 = vadd.f32 0.0, %v1213
      %v1215 = vpop.f32.mrf.mxu0
      %v1216 = vpop.f32.mrf.mxu0
      %v1217 = vadd.f32 0.0, %v1216
      %v1218 = vpop.f32.mrf.mxu0
      %1219 = vdwg.mxu0
      %1220 = vrot.lane.b32.xlu0 %v973, 64
      %v1221 = vpop.permute.xlu0 %1220
      %1222 = vrot.lane.b32.xlu0 %v974, 64
      %v1223 = vpop.permute.xlu0 %1222
      %v1225 = vsel %vm975, %v1221, 0
      %v1228 = vsel %vm975, %v1223, 0
      %1230 = vmatprep.subr.bf16.mxu0 0
      %1231 = vmatpush1.bf16.xpose.msra.mxu0 0
      %1232 = vmatprep.subr.bf16.mxu0 0
      %1233 = vmatpush1.bf16.xpose.msra.mxu0 0
      %1234 = vmatprep.subr.bf16.mxu0 0
      %1235 = vmatpush1.bf16.xpose.msra.mxu0 0
      %1236 = vmatprep.subr.bf16.mxu0 0
      %1237 = vmatpush1.bf16.xpose.msra.mxu0 0
      %1238 = vmatprep.subr.bf16.mxu0 0
      %1239 = vmatpush1.bf16.xpose.msra.mxu0 0
      %1240 = vmatprep.subr.bf16.mxu0 0
      %1241 = vmatpush1.bf16.xpose.msra.mxu0 0
      %1242 = vmatprep.subr.bf16.mxu0 0
      %1243 = vmatpush1.bf16.xpose.msra.mxu0 0
      %1244 = vmatprep.subr.bf16.mxu0 0
      %1245 = vmatpush1.bf16.xpose.msra.mxu0 %v1228
      %1246 = vmatprep.subr.bf16.mxu0 0
      %1247 = vmatpush2.bf16.xpose.msra.mxu0 0
      %1248 = vmatprep.subr.bf16.mxu0 0
      %1249 = vmatpush2.bf16.xpose.msra.mxu0 0
      %1250 = vmatprep.subr.bf16.mxu0 0
      %1251 = vmatpush2.bf16.xpose.msra.mxu0 0
      %1252 = vmatprep.subr.bf16.mxu0 0
      %1253 = vmatpush2.bf16.xpose.msra.mxu0 0
      %1254 = vmatprep.subr.bf16.mxu0 0
      %1255 = vmatpush2.bf16.xpose.msra.mxu0 0
      %1256 = vmatprep.subr.bf16.mxu0 0
      %1257 = vmatpush2.bf16.xpose.msra.mxu0 0
      %1258 = vmatprep.subr.bf16.mxu0 0
      %1259 = vmatpush2.bf16.xpose.msra.mxu0 0
      %1260 = vmatprep.subr.bf16.mxu0 0
      %1261 = vmatpush2.bf16.xpose.msra.mxu0 0
      %1262 = vmatprep.mubr.bf16.mxu0 0
      %1263 = vmatmul.mubr.bf16.gmra.mxu0 %v1225
      %v1264 = vpop.f32.mrf.mxu0
      %v1265 = vadd.f32 0.0, %v1264
      %v1266 = vpop.f32.mrf.mxu0
      %v1267 = vpop.f32.mrf.mxu0
      %v1268 = vadd.f32 0.0, %v1267
      %v1269 = vpop.f32.mrf.mxu0
      %1270 = vdwg.mxu0
      %v1271 = vmul.f32 %v1265, 0.17677669
      %v1272 = vmul.f32 %v1268, 0.17677669
      %v1273 = vsel %vm1025, %v1271, -inf
      %1274 = vmax.xlane.f32.xlu0 %v1273
      %v1275 = vpop.xlane.xlu0 %1274
      %v1276 = vsel %vm1025, %v1272, -inf
      %1277 = vmax.xlane.f32.xlu0 %v1276
      %v1278 = vpop.xlane.xlu0 %1277
      %v1279 = vsub.f32 %v1271, %v1275
      %v1280 = vsub.f32 %v1272, %v1278
      %v1281 = vmul.f32 %v1279, 1.442695
      %v1282 = vpow.pop %v1281
      %v1283 = vmul.f32 %v1280, 1.442695
      %v1284 = vpow.pop %v1283
      %v1285 = vsel %vm1025, %v1282, 0.0
      %1286 = vadd.xlane.f32.xlu0 %v1285
      %v1287 = vpop.xlane.xlu0 %1286
      %v1288 = vsel %vm1025, %v1284, 0.0
      %1289 = vadd.xlane.f32.xlu0 %v1288
      %v1290 = vpop.xlane.xlu0 %1289
      %v1291 = vrcp.pop %v1287
      %v1292 = vrcp.pop %v1290
      %v1293 = vmul.f32 %v1282, %v1291
      %v1294 = vmul.f32 %v1284, %v1292
      %v1295 = vpack.c.bf16 %v1294, %v1293
      %1296 = vrot.lane.b32.xlu0 %v1049, 64
      %v1297 = vpop.permute.xlu0 %1296
      %v1300 = vsel %vm1025, %v1295, 0
      %1302 = vmatprep.subr.bf16.mxu0 0
      %1303 = vmatpush1.bf16.msra.mxu0 0
      %1304 = vmatprep.subr.bf16.mxu0 0
      %1305 = vmatpush1.bf16.msra.mxu0 0
      %1306 = vmatprep.subr.bf16.mxu0 0
      %1307 = vmatpush1.bf16.msra.mxu0 0
      %1308 = vmatprep.subr.bf16.mxu0 0
      %1309 = vmatpush1.bf16.msra.mxu0 0
      %1310 = vmatprep.subr.bf16.mxu0 0
      %1311 = vmatpush1.bf16.msra.mxu0 0
      %1312 = vmatprep.subr.bf16.mxu0 0
      %1313 = vmatpush1.bf16.msra.mxu0 0
      %1314 = vmatprep.subr.bf16.mxu0 0
      %1315 = vmatpush1.bf16.msra.mxu0 0
      %1316 = vmatprep.subr.bf16.mxu0 0
      %1317 = vmatpush1.bf16.msra.mxu0 %v1297
      %1318 = vmatprep.subr.bf16.mxu0 0
      %1319 = vmatpush2.bf16.msra.mxu0 0
      %1320 = vmatprep.subr.bf16.mxu0 0
      %1321 = vmatpush2.bf16.msra.mxu0 0
      %1322 = vmatprep.subr.bf16.mxu0 0
      %1323 = vmatpush2.bf16.msra.mxu0 0
      %1324 = vmatprep.subr.bf16.mxu0 0
      %1325 = vmatpush2.bf16.msra.mxu0 0
      %1326 = vmatprep.subr.bf16.mxu0 0
      %1327 = vmatpush2.bf16.msra.mxu0 0
      %1328 = vmatprep.subr.bf16.mxu0 0
      %1329 = vmatpush2.bf16.msra.mxu0 0
      %1330 = vmatprep.subr.bf16.mxu0 0
      %1331 = vmatpush2.bf16.msra.mxu0 0
      %1332 = vmatprep.subr.bf16.mxu0 0
      %1333 = vmatpush2.bf16.msra.mxu0 0
      %1334 = vmatprep.mubr.bf16.mxu0 0
      %1335 = vmatmul.mubr.bf16.gmra.mxu0 %v1300
      %v1336 = vpop.f32.mrf.mxu0
      %v1337 = vadd.f32 0.0, %v1336
      %v1338 = vpop.f32.mrf.mxu0
      %v1339 = vpop.f32.mrf.mxu0
      %v1340 = vadd.f32 0.0, %v1339
      %v1341 = vpop.f32.mrf.mxu0
      %1342 = vdwg.mxu0
      %1343 = vrot.lane.b32.xlu0 %v973, 32
      %v1344 = vpop.permute.xlu0 %1343
      %1345 = vrot.lane.b32.xlu0 %v974, 32
      %v1346 = vpop.permute.xlu0 %1345
      %v1348 = vsel %vm975, %v1344, 0
      %v1351 = vsel %vm975, %v1346, 0
      %1353 = vmatprep.subr.bf16.mxu0 0
      %1354 = vmatpush1.bf16.xpose.msra.mxu0 0
      %1355 = vmatprep.subr.bf16.mxu0 0
      %1356 = vmatpush1.bf16.xpose.msra.mxu0 0
      %1357 = vmatprep.subr.bf16.mxu0 0
      %1358 = vmatpush1.bf16.xpose.msra.mxu0 0
      %1359 = vmatprep.subr.bf16.mxu0 0
      %1360 = vmatpush1.bf16.xpose.msra.mxu0 0
      %1361 = vmatprep.subr.bf16.mxu0 0
      %1362 = vmatpush1.bf16.xpose.msra.mxu0 0
      %1363 = vmatprep.subr.bf16.mxu0 0
      %1364 = vmatpush1.bf16.xpose.msra.mxu0 0
      %1365 = vmatprep.subr.bf16.mxu0 0
      %1366 = vmatpush1.bf16.xpose.msra.mxu0 0
      %1367 = vmatprep.subr.bf16.mxu0 0
      %1368 = vmatpush1.bf16.xpose.msra.mxu0 %v1351
      %1369 = vmatprep.subr.bf16.mxu0 0
      %1370 = vmatpush2.bf16.xpose.msra.mxu0 0
      %1371 = vmatprep.subr.bf16.mxu0 0
      %1372 = vmatpush2.bf16.xpose.msra.mxu0 0
      %1373 = vmatprep.subr.bf16.mxu0 0
      %1374 = vmatpush2.bf16.xpose.msra.mxu0 0
      %1375 = vmatprep.subr.bf16.mxu0 0
      %1376 = vmatpush2.bf16.xpose.msra.mxu0 0
      %1377 = vmatprep.subr.bf16.mxu0 0
      %1378 = vmatpush2.bf16.xpose.msra.mxu0 0
      %1379 = vmatprep.subr.bf16.mxu0 0
      %1380 = vmatpush2.bf16.xpose.msra.mxu0 0
      %1381 = vmatprep.subr.bf16.mxu0 0
      %1382 = vmatpush2.bf16.xpose.msra.mxu0 0
      %1383 = vmatprep.subr.bf16.mxu0 0
      %1384 = vmatpush2.bf16.xpose.msra.mxu0 0
      %1385 = vmatprep.mubr.bf16.mxu0 0
      %1386 = vmatmul.mubr.bf16.gmra.mxu0 %v1348
      %v1387 = vpop.f32.mrf.mxu0
      %v1388 = vadd.f32 0.0, %v1387
      %v1389 = vpop.f32.mrf.mxu0
      %v1390 = vpop.f32.mrf.mxu0
      %v1391 = vadd.f32 0.0, %v1390
      %v1392 = vpop.f32.mrf.mxu0
      %1393 = vdwg.mxu0
      %v1394 = vmul.f32 %v1388, 0.17677669
      %v1395 = vmul.f32 %v1391, 0.17677669
      %v1396 = vsel %vm1025, %v1394, -inf
      %1397 = vmax.xlane.f32.xlu0 %v1396
      %v1398 = vpop.xlane.xlu0 %1397
      %v1399 = vsel %vm1025, %v1395, -inf
      %1400 = vmax.xlane.f32.xlu0 %v1399
      %v1401 = vpop.xlane.xlu0 %1400
      %v1402 = vsub.f32 %v1394, %v1398
      %v1403 = vsub.f32 %v1395, %v1401
      %v1404 = vmul.f32 %v1402, 1.442695
      %v1405 = vpow.pop %v1404
      %v1406 = vmul.f32 %v1403, 1.442695
      %v1407 = vpow.pop %v1406
      %v1408 = vsel %vm1025, %v1405, 0.0
      %1409 = vadd.xlane.f32.xlu0 %v1408
      %v1410 = vpop.xlane.xlu0 %1409
      %v1411 = vsel %vm1025, %v1407, 0.0
      %1412 = vadd.xlane.f32.xlu0 %v1411
      %v1413 = vpop.xlane.xlu0 %1412
      %v1414 = vrcp.pop %v1410
      %v1415 = vrcp.pop %v1413
      %v1416 = vmul.f32 %v1405, %v1414
      %v1417 = vmul.f32 %v1407, %v1415
      %v1418 = vpack.c.bf16 %v1417, %v1416
      %1419 = vrot.lane.b32.xlu0 %v1049, 32
      %v1420 = vpop.permute.xlu0 %1419
      %v1423 = vsel %vm1025, %v1418, 0
      %1425 = vmatprep.subr.bf16.mxu0 0
      %1426 = vmatpush1.bf16.msra.mxu0 0
      %1427 = vmatprep.subr.bf16.mxu0 0
      %1428 = vmatpush1.bf16.msra.mxu0 0
      %1429 = vmatprep.subr.bf16.mxu0 0
      %1430 = vmatpush1.bf16.msra.mxu0 0
      %1431 = vmatprep.subr.bf16.mxu0 0
      %1432 = vmatpush1.bf16.msra.mxu0 0
      %1433 = vmatprep.subr.bf16.mxu0 0
      %1434 = vmatpush1.bf16.msra.mxu0 0
      %1435 = vmatprep.subr.bf16.mxu0 0
      %1436 = vmatpush1.bf16.msra.mxu0 0
      %1437 = vmatprep.subr.bf16.mxu0 0
      %1438 = vmatpush1.bf16.msra.mxu0 0
      %1439 = vmatprep.subr.bf16.mxu0 0
      %1440 = vmatpush1.bf16.msra.mxu0 %v1420
      %1441 = vmatprep.subr.bf16.mxu0 0
      %1442 = vmatpush2.bf16.msra.mxu0 0
      %1443 = vmatprep.subr.bf16.mxu0 0
      %1444 = vmatpush2.bf16.msra.mxu0 0
      %1445 = vmatprep.subr.bf16.mxu0 0
      %1446 = vmatpush2.bf16.msra.mxu0 0
      %1447 = vmatprep.subr.bf16.mxu0 0
      %1448 = vmatpush2.bf16.msra.mxu0 0
      %1449 = vmatprep.subr.bf16.mxu0 0
      %1450 = vmatpush2.bf16.msra.mxu0 0
      %1451 = vmatprep.subr.bf16.mxu0 0
      %1452 = vmatpush2.bf16.msra.mxu0 0
      %1453 = vmatprep.subr.bf16.mxu0 0
      %1454 = vmatpush2.bf16.msra.mxu0 0
      %1455 = vmatprep.subr.bf16.mxu0 0
      %1456 = vmatpush2.bf16.msra.mxu0 0
      %1457 = vmatprep.mubr.bf16.mxu0 0
      %1458 = vmatmul.mubr.bf16.gmra.mxu0 %v1423
      %v1459 = vpop.f32.mrf.mxu0
      %v1460 = vadd.f32 0.0, %v1459
      %v1461 = vpop.f32.mrf.mxu0
      %v1462 = vpop.f32.mrf.mxu0
      %v1463 = vadd.f32 0.0, %v1462
      %v1464 = vpop.f32.mrf.mxu0
      %1465 = vdwg.mxu0
      %1468 = vrot.lane.b32.xlu0 %v1214, 32
      %v1469 = vpop.permute.xlu0 %1468
      %1470 = vrot.lane.b32.xlu0 %v1217, 32
      %v1471 = vpop.permute.xlu0 %1470
      %1476 = vrot.lane.b32.xlu0 %v1337, 64
      %v1477 = vpop.permute.xlu0 %1476
      %1478 = vrot.lane.b32.xlu0 %v1340, 64
      %v1479 = vpop.permute.xlu0 %1478
      %1484 = vrot.lane.b32.xlu0 %v1460, 96
      %v1485 = vpop.permute.xlu0 %1484
      %1486 = vrot.lane.b32.xlu0 %v1463, 96
      %v1487 = vpop.permute.xlu0 %1486
      %v1490 = vsel %vm975, %v1088, %v1469
      %v1491 = vsel %vm975, %v1091, %v1471
      %vm1492 = vcmask 523264
      %v1493 = vsel %vm1492, %v1490, %v1477
      %v1494 = vsel %vm1492, %v1491, %v1479
      %vm1495 = vcmask 785408
      %v1496 = vsel %vm1495, %v1493, %v1485
      %v1497 = vsel %vm1495, %v1494, %v1487
      %v1498 = vpack.c.bf16 %v1497, %v1496
      %v1499 = vld [vmem:[%s4] sm:$0xf]
      %v1500 = vld [vmem:[%s4 + $0x4] sm:$0xf]
      %v1501 = vld [vmem:[%s4 + $0x8] sm:$0xf]
      %v1502 = vld [vmem:[%s4 + $0xc] sm:$0xf]
      %v1503 = vld [vmem:[%s4 + $0x10] sm:$0xf]
      %v1504 = vld [vmem:[%s4 + $0x14] sm:$0xf]
      %v1505 = vld [vmem:[%s4 + $0x18] sm:$0xf]
      %v1506 = vld [vmem:[%s4 + $0x1c] sm:$0xf]
      %v1507 = vld [vmem:[%s4 + $0x20] sm:$0xf]
      %v1508 = vld [vmem:[%s4 + $0x24] sm:$0xf]
      %v1509 = vld [vmem:[%s4 + $0x28] sm:$0xf]
      %v1510 = vld [vmem:[%s4 + $0x2c] sm:$0xf]
      %v1511 = vld [vmem:[%s4 + $0x30] sm:$0xf]
      %v1512 = vld [vmem:[%s4 + $0x34] sm:$0xf]
      %v1513 = vld [vmem:[%s4 + $0x38] sm:$0xf]
      %v1514 = vld [vmem:[%s4 + $0x3c] sm:$0xf]
      %v1515 = vld [vmem:[%s5] sm:$0x1]
      %v1517 = vlaneseq
      %v1518 = vshrl.u32 %v1517, 7
      %v1519 = vsub.s32 0, %v1518
      %v1520 = vrot.slane %v1515, %v1519
      %v1538 = vunpack.c.l.b16 %v1499
      %v1539 = vunpack.c.l.b16 %v1500
      %v1540 = vunpack.c.l.b16 %v1501
      %v1541 = vunpack.c.l.b16 %v1502
      %v1542 = vunpack.c.l.b16 %v1503
      %v1543 = vunpack.c.l.b16 %v1504
      %v1544 = vunpack.c.l.b16 %v1505
      %v1545 = vunpack.c.l.b16 %v1506
      %v1546 = vunpack.c.l.b16 %v1507
      %v1547 = vunpack.c.l.b16 %v1508
      %v1548 = vunpack.c.l.b16 %v1509
      %v1549 = vunpack.c.l.b16 %v1510
      %v1550 = vunpack.c.l.b16 %v1511
      %v1551 = vunpack.c.l.b16 %v1512
      %v1552 = vunpack.c.l.b16 %v1513
      %v1553 = vunpack.c.l.b16 %v1514
      %v1554 = vpack.c.b16 %v1539, %v1538
      %v1555 = vpack.c.b16 %v1541, %v1540
      %v1556 = vpack.c.b16 %v1543, %v1542
      %v1557 = vpack.c.b16 %v1545, %v1544
      %v1558 = vpack.c.b16 %v1547, %v1546
      %v1559 = vpack.c.b16 %v1549, %v1548
      %v1560 = vpack.c.b16 %v1551, %v1550
      %v1561 = vpack.c.b16 %v1553, %v1552
      %1570 = vmatprep.subr.bf16.mxu0 0
      %1571 = vmatpush1.bf16.msra.mxu0 %v1561
      %1572 = vmatprep.subr.bf16.mxu0 0
      %1573 = vmatpush1.bf16.msra.mxu0 %v1560
      %1574 = vmatprep.subr.bf16.mxu0 0
      %1575 = vmatpush1.bf16.msra.mxu0 %v1559
      %1576 = vmatprep.subr.bf16.mxu0 0
      %1577 = vmatpush1.bf16.msra.mxu0 %v1558
      %1578 = vmatprep.subr.bf16.mxu0 0
      %1579 = vmatpush1.bf16.msra.mxu0 %v1557
      %1580 = vmatprep.subr.bf16.mxu0 0
      %1581 = vmatpush1.bf16.msra.mxu0 %v1556
      %1582 = vmatprep.subr.bf16.mxu0 0
      %1583 = vmatpush1.bf16.msra.mxu0 %v1555
      %1584 = vmatprep.subr.bf16.mxu0 0
      %1585 = vmatpush1.bf16.msra.mxu0 %v1554
      %1586 = vmatprep.subr.bf16.mxu0 0
      %1587 = vmatpush2.bf16.msra.mxu0 0
      %1588 = vmatprep.subr.bf16.mxu0 0
      %1589 = vmatpush2.bf16.msra.mxu0 0
      %1590 = vmatprep.subr.bf16.mxu0 0
      %1591 = vmatpush2.bf16.msra.mxu0 0
      %1592 = vmatprep.subr.bf16.mxu0 0
      %1593 = vmatpush2.bf16.msra.mxu0 0
      %1594 = vmatprep.subr.bf16.mxu0 0
      %1595 = vmatpush2.bf16.msra.mxu0 0
      %1596 = vmatprep.subr.bf16.mxu0 0
      %1597 = vmatpush2.bf16.msra.mxu0 0
      %1598 = vmatprep.subr.bf16.mxu0 0
      %1599 = vmatpush2.bf16.msra.mxu0 0
      %1600 = vmatprep.subr.bf16.mxu0 0
      %1601 = vmatpush2.bf16.msra.mxu0 0
      %1602 = vmatprep.mubr.bf16.mxu0 0
      %1603 = vmatmul.mubr.bf16.gmra.mxu0 %v1498
      %v1604 = vpop.f32.mrf.mxu0
      %v1605 = vadd.f32 %v1520, %v1604
      %v1606 = vpop.f32.mrf.mxu0
      %v1607 = vpop.f32.mrf.mxu0
      %v1608 = vadd.f32 %v1520, %v1607
      %v1609 = vpop.f32.mrf.mxu0
      %1610 = vdwg.mxu0
      %v1611 = vadd.f32 %v709, %v1605
      %v1612 = vadd.f32 %v710, %v1608
      %1613 = vadd.xlane.f32.xlu0 %v1611
      %v1614 = vpop.xlane.xlu0 %1613
      %1615 = vadd.xlane.f32.xlu0 %v1612
      %v1616 = vpop.xlane.xlu0 %1615
      %v1617 = vrcp.pop 128.0
      %v1618 = vmul.f32 %v1614, %v1617
      %v1619 = vmul.f32 %v1616, %v1617
      %v1620 = vsub.f32 %v1611, %v1618
      %v1621 = vsub.f32 %v1612, %v1619
      %v1622 = vmul.f32 %v1620, %v1620
      %v1623 = vmul.f32 %v1621, %v1621
      %1624 = vadd.xlane.f32.xlu0 %v1622
      %v1625 = vpop.xlane.xlu0 %1624
      %1626 = vadd.xlane.f32.xlu0 %v1623
      %v1627 = vpop.xlane.xlu0 %1626
      %v1628 = vmul.f32 %v1625, %v1617
      %v1629 = vmul.f32 %v1627, %v1617
      %v1630 = vadd.f32 %v1628, 1e-05
      %v1631 = vadd.f32 %v1629, 1e-05
      %v1632 = vrsqrt.pop %v1630
      %v1633 = vrsqrt.pop %v1631
      %v1634 = vmul.f32 %v1620, %v1632
      %v1635 = vmul.f32 %v1621, %v1633
      %v1636 = vld [vmem:[%s6] sm:$0x1]
      %v1638 = vlaneseq
      %v1639 = vshrl.u32 %v1638, 7
      %v1640 = vsub.s32 0, %v1639
      %v1641 = vrot.slane %v1636, %v1640
      %v1643 = vmul.f32 %v1634, %v1641
      %v1644 = vmul.f32 %v1635, %v1641
      %v1645 = vld [vmem:[%s7] sm:$0x1]
      %v1647 = vlaneseq
      %v1648 = vshrl.u32 %v1647, 7
      %v1649 = vsub.s32 0, %v1648
      %v1650 = vrot.slane %v1645, %v1649
      %v1652 = vadd.f32 %v1643, %v1650
      %v1653 = vadd.f32 %v1644, %v1650
      %v1654 = vld [vmem:[%s8] sm:$0x7]
      %v1655 = vlaneseq
      %v1656 = vshrl.u32 %v1655, 7
      %v1657 = vadd.s32 %v1656, 8
      %v1658 = vrot.slane %v1652, 7
      %v1659 = vrot.slane %v1653, 7
      %vm1660 = vcmp.lt.s32.totalorder %v1656, 1
      %v1661 = vsel %vm1660, %v1658, %v1659
      %v1662 = vsel %vm1660, %v1659, %v1658
      %vm1663 = vcmp.lt.s32.totalorder %v1657, 1
      %v1664 = vsel %vm1660, 0.0, %v1662
      %v1665 = vsel %vm1663, 0.0, %v1661
      %v1666 = vlaneseq
      %v1667 = vshrl.u32 %v1666, 7
      %v1668 = vsub.s32 0, %v1667
      %v1669 = vrot.slane %v1654, %v1668
      %v1670 = vmul.f32 %v1664, %v1669
      %v1671 = vmul.f32 %v1665, %v1669
      %v1672 = vadd.f32 %v1670, 0.0
      %v1673 = vadd.f32 %v1671, 0.0
      %v1674 = vlaneseq
      %v1675 = vshrl.u32 %v1674, 7
      %v1676 = vsub.s32 1, %v1675
      %v1677 = vrot.slane %v1654, %v1676
      %v1678 = vmul.f32 %v1652, %v1677
      %v1679 = vmul.f32 %v1653, %v1677
      %v1680 = vadd.f32 %v1672, %v1678
      %v1681 = vadd.f32 %v1673, %v1679
      %v1682 = vrot.slane %v1652, 1
      %v1683 = vrot.slane %v1653, 1
      %vm1684 = vcmp.lt.s32.totalorder %v1656, 7
      %v1685 = vsel %vm1684, %v1682, %v1683
      %v1686 = vsel %vm1684, %v1683, %v1682
      %vm1687 = vcmp.ge.s32.totalorder %v1656, 15
      %vm1688 = vcmp.ge.s32.totalorder %v1657, 15
      %v1689 = vsel %vm1687, 0.0, %v1685
      %v1690 = vsel %vm1688, 0.0, %v1686
      %v1691 = vlaneseq
      %v1692 = vshrl.u32 %v1691, 7
      %v1693 = vsub.s32 2, %v1692
      %v1694 = vrot.slane %v1654, %v1693
      %v1695 = vmul.f32 %v1689, %v1694
      %v1696 = vmul.f32 %v1690, %v1694
      %v1697 = vadd.f32 %v1680, %v1695
      %v1698 = vadd.f32 %v1681, %v1696
      %v1699 = vld [vmem:[%s9] sm:$0x1]
      %v1701 = vlaneseq
      %v1702 = vshrl.u32 %v1701, 7
      %v1703 = vsub.s32 0, %v1702
      %v1704 = vrot.slane %v1699, %v1703
      %v1706 = vadd.f32 %v1697, %v1704
      %v1707 = vadd.f32 %v1698, %v1704
      %v1708 = vpack.c.bf16 %v1707, %v1706
      %v1709 = vld [vmem:[%s10] sm:$0xff]
      %v1710 = vld [vmem:[%s10 + $0x8] sm:$0xff]
      %v1711 = vld [vmem:[%s10 + $0x10] sm:$0xff]
      %v1712 = vld [vmem:[%s10 + $0x18] sm:$0xff]
      %v1713 = vld [vmem:[%s10 + $0x20] sm:$0xff]
      %v1714 = vld [vmem:[%s10 + $0x28] sm:$0xff]
      %v1715 = vld [vmem:[%s10 + $0x30] sm:$0xff]
      %v1716 = vld [vmem:[%s10 + $0x38] sm:$0xff]
      %v1717 = vld [vmem:[%s10 + $0x40] sm:$0xff]
      %v1718 = vld [vmem:[%s10 + $0x48] sm:$0xff]
      %v1719 = vld [vmem:[%s10 + $0x50] sm:$0xff]
      %v1720 = vld [vmem:[%s10 + $0x58] sm:$0xff]
      %v1721 = vld [vmem:[%s10 + $0x60] sm:$0xff]
      %v1722 = vld [vmem:[%s10 + $0x68] sm:$0xff]
      %v1723 = vld [vmem:[%s10 + $0x70] sm:$0xff]
      %v1724 = vld [vmem:[%s10 + $0x78] sm:$0xff]
      %v1725 = vld [vmem:[%s11] sm:$0x3]
      %v1727 = vlaneseq
      %v1728 = vshrl.u32 %v1727, 7
      %v1729 = vsub.s32 0, %v1728
      %v1730 = vrot.slane %v1725, %v1729
      %v1731 = vlaneseq
      %v1732 = vshrl.u32 %v1731, 7
      %v1733 = vsub.s32 1, %v1732
      %v1734 = vrot.slane %v1725, %v1733
      %v1753 = vunpack.c.l.b16 %v1709
      %v1754 = vunpack.c.h.b16 %v1709
      %v1755 = vunpack.c.l.b16 %v1710
      %v1756 = vunpack.c.h.b16 %v1710
      %v1757 = vunpack.c.l.b16 %v1711
      %v1758 = vunpack.c.h.b16 %v1711
      %v1759 = vunpack.c.l.b16 %v1712
      %v1760 = vunpack.c.h.b16 %v1712
      %v1761 = vunpack.c.l.b16 %v1713
      %v1762 = vunpack.c.h.b16 %v1713
      %v1763 = vunpack.c.l.b16 %v1714
      %v1764 = vunpack.c.h.b16 %v1714
      %v1765 = vunpack.c.l.b16 %v1715
      %v1766 = vunpack.c.h.b16 %v1715
      %v1767 = vunpack.c.l.b16 %v1716
      %v1768 = vunpack.c.h.b16 %v1716
      %v1769 = vunpack.c.l.b16 %v1717
      %v1770 = vunpack.c.h.b16 %v1717
      %v1771 = vunpack.c.l.b16 %v1718
      %v1772 = vunpack.c.h.b16 %v1718
      %v1773 = vunpack.c.l.b16 %v1719
      %v1774 = vunpack.c.h.b16 %v1719
      %v1775 = vunpack.c.l.b16 %v1720
      %v1776 = vunpack.c.h.b16 %v1720
      %v1777 = vunpack.c.l.b16 %v1721
      %v1778 = vunpack.c.h.b16 %v1721
      %v1779 = vunpack.c.l.b16 %v1722
      %v1780 = vunpack.c.h.b16 %v1722
      %v1781 = vunpack.c.l.b16 %v1723
      %v1782 = vunpack.c.h.b16 %v1723
      %v1783 = vunpack.c.l.b16 %v1724
      %v1784 = vunpack.c.h.b16 %v1724
      %v1785 = vpack.c.b16 %v1755, %v1753
      %v1786 = vpack.c.b16 %v1756, %v1754
      %v1787 = vpack.c.b16 %v1759, %v1757
      %v1788 = vpack.c.b16 %v1760, %v1758
      %v1789 = vpack.c.b16 %v1763, %v1761
      %v1790 = vpack.c.b16 %v1764, %v1762
      %v1791 = vpack.c.b16 %v1767, %v1765
      %v1792 = vpack.c.b16 %v1768, %v1766
      %v1793 = vpack.c.b16 %v1771, %v1769
      %v1794 = vpack.c.b16 %v1772, %v1770
      %v1795 = vpack.c.b16 %v1775, %v1773
      %v1796 = vpack.c.b16 %v1776, %v1774
      %v1797 = vpack.c.b16 %v1779, %v1777
      %v1798 = vpack.c.b16 %v1780, %v1778
      %v1799 = vpack.c.b16 %v1783, %v1781
      %v1800 = vpack.c.b16 %v1784, %v1782
      %1817 = vmatprep.subr.bf16.mxu0 %v1800
      %1818 = vmatpush1.bf16.msra.mxu0 %v1799
      %1819 = vmatprep.subr.bf16.mxu0 %v1798
      %1820 = vmatpush1.bf16.msra.mxu0 %v1797
      %1821 = vmatprep.subr.bf16.mxu0 %v1796
      %1822 = vmatpush1.bf16.msra.mxu0 %v1795
      %1823 = vmatprep.subr.bf16.mxu0 %v1794
      %1824 = vmatpush1.bf16.msra.mxu0 %v1793
      %1825 = vmatprep.subr.bf16.mxu0 %v1792
      %1826 = vmatpush1.bf16.msra.mxu0 %v1791
      %1827 = vmatprep.subr.bf16.mxu0 %v1790
      %1828 = vmatpush1.bf16.msra.mxu0 %v1789
      %1829 = vmatprep.subr.bf16.mxu0 %v1788
      %1830 = vmatpush1.bf16.msra.mxu0 %v1787
      %1831 = vmatprep.subr.bf16.mxu0 %v1786
      %1832 = vmatpush1.bf16.msra.mxu0 %v1785
      %1833 = vmatprep.subr.bf16.mxu0 0
      %1834 = vmatpush2.bf16.msra.mxu0 0
      %1835 = vmatprep.subr.bf16.mxu0 0
      %1836 = vmatpush2.bf16.msra.mxu0 0
      %1837 = vmatprep.subr.bf16.mxu0 0
      %1838 = vmatpush2.bf16.msra.mxu0 0
      %1839 = vmatprep.subr.bf16.mxu0 0
      %1840 = vmatpush2.bf16.msra.mxu0 0
      %1841 = vmatprep.subr.bf16.mxu0 0
      %1842 = vmatpush2.bf16.msra.mxu0 0
      %1843 = vmatprep.subr.bf16.mxu0 0
      %1844 = vmatpush2.bf16.msra.mxu0 0
      %1845 = vmatprep.subr.bf16.mxu0 0
      %1846 = vmatpush2.bf16.msra.mxu0 0
      %1847 = vmatprep.subr.bf16.mxu0 0
      %1848 = vmatpush2.bf16.msra.mxu0 0
      %1849 = vmatprep.mubr.bf16.mxu0 0
      %1850 = vmatmul.mubr.bf16.gmra.mxu0 %v1708
      %v1851 = vpop.f32.mrf.mxu0
      %v1852 = vadd.f32 %v1730, %v1851
      %v1853 = vpop.f32.mrf.mxu0
      %v1854 = vadd.f32 %v1734, %v1853
      %v1855 = vpop.f32.mrf.mxu0
      %v1856 = vadd.f32 %v1730, %v1855
      %v1857 = vpop.f32.mrf.mxu0
      %v1858 = vadd.f32 %v1734, %v1857
      %1859 = vdwg.mxu0
      %v1860 = vmul.f32 %v1852, %v1852
      %v1861 = vmul.f32 %v1854, %v1854
      %v1862 = vmul.f32 %v1856, %v1856
      %v1863 = vmul.f32 %v1858, %v1858
      %v1864 = vmul.f32 %v1852, %v1860
      %v1865 = vmul.f32 %v1854, %v1861
      %v1866 = vmul.f32 %v1856, %v1862
      %v1867 = vmul.f32 %v1858, %v1863
      %v1868 = vmul.f32 %v1864, 0.044715
      %v1869 = vmul.f32 %v1865, 0.044715
      %v1870 = vmul.f32 %v1866, 0.044715
      %v1871 = vmul.f32 %v1867, 0.044715
      %v1872 = vadd.f32 %v1852, %v1868
      %v1873 = vadd.f32 %v1854, %v1869
      %v1874 = vadd.f32 %v1856, %v1870
      %v1875 = vadd.f32 %v1858, %v1871
      %v1876 = vmul.f32 %v1872, 0.7978846
      %v1877 = vmul.f32 %v1873, 0.7978846
      %v1878 = vmul.f32 %v1874, 0.7978846
      %v1879 = vmul.f32 %v1875, 0.7978846
      %v1880 = vtanh.pop %v1876
      %v1881 = vtanh.pop %v1877
      %v1882 = vtanh.pop %v1878
      %v1883 = vtanh.pop %v1879
      %v1884 = vadd.f32 %v1880, 1.0
      %v1885 = vadd.f32 %v1881, 1.0
      %v1886 = vadd.f32 %v1882, 1.0
      %v1887 = vadd.f32 %v1883, 1.0
      %v1888 = vmul.f32 %v1884, 0.5
      %v1889 = vmul.f32 %v1885, 0.5
      %v1890 = vmul.f32 %v1886, 0.5
      %v1891 = vmul.f32 %v1887, 0.5
      %v1892 = vmul.f32 %v1852, %v1888
      %v1893 = vmul.f32 %v1854, %v1889
      %v1894 = vmul.f32 %v1856, %v1890
      %v1895 = vmul.f32 %v1858, %v1891
      %v1896 = vpack.c.bf16 %v1894, %v1892
      %v1897 = vpack.c.bf16 %v1895, %v1893
      %v1898 = vld [vmem:[%s12] sm:$0xf]
      %v1899 = vld [vmem:[%s12 + $0x4] sm:$0xf]
      %v1900 = vld [vmem:[%s12 + $0x8] sm:$0xf]
      %v1901 = vld [vmem:[%s12 + $0xc] sm:$0xf]
      %v1902 = vld [vmem:[%s12 + $0x10] sm:$0xf]
      %v1903 = vld [vmem:[%s12 + $0x14] sm:$0xf]
      %v1904 = vld [vmem:[%s12 + $0x18] sm:$0xf]
      %v1905 = vld [vmem:[%s12 + $0x1c] sm:$0xf]
      %v1906 = vld [vmem:[%s12 + $0x20] sm:$0xf]
      %v1907 = vld [vmem:[%s12 + $0x24] sm:$0xf]
      %v1908 = vld [vmem:[%s12 + $0x28] sm:$0xf]
      %v1909 = vld [vmem:[%s12 + $0x2c] sm:$0xf]
      %v1910 = vld [vmem:[%s12 + $0x30] sm:$0xf]
      %v1911 = vld [vmem:[%s12 + $0x34] sm:$0xf]
      %v1912 = vld [vmem:[%s12 + $0x38] sm:$0xf]
      %v1913 = vld [vmem:[%s12 + $0x3c] sm:$0xf]
      %v1914 = vld [vmem:[%s12 + $0x40] sm:$0xf]
      %v1915 = vld [vmem:[%s12 + $0x44] sm:$0xf]
      %v1916 = vld [vmem:[%s12 + $0x48] sm:$0xf]
      %v1917 = vld [vmem:[%s12 + $0x4c] sm:$0xf]
      %v1918 = vld [vmem:[%s12 + $0x50] sm:$0xf]
      %v1919 = vld [vmem:[%s12 + $0x54] sm:$0xf]
      %v1920 = vld [vmem:[%s12 + $0x58] sm:$0xf]
      %v1921 = vld [vmem:[%s12 + $0x5c] sm:$0xf]
      %v1922 = vld [vmem:[%s12 + $0x60] sm:$0xf]
      %v1923 = vld [vmem:[%s12 + $0x64] sm:$0xf]
      %v1924 = vld [vmem:[%s12 + $0x68] sm:$0xf]
      %v1925 = vld [vmem:[%s12 + $0x6c] sm:$0xf]
      %v1926 = vld [vmem:[%s12 + $0x70] sm:$0xf]
      %v1927 = vld [vmem:[%s12 + $0x74] sm:$0xf]
      %v1928 = vld [vmem:[%s12 + $0x78] sm:$0xf]
      %v1929 = vld [vmem:[%s12 + $0x7c] sm:$0xf]
      %v1930 = vld [vmem:[%s13] sm:$0x1]
      %v1932 = vlaneseq
      %v1933 = vshrl.u32 %v1932, 7
      %v1934 = vsub.s32 0, %v1933
      %v1935 = vrot.slane %v1930, %v1934
      %v1969 = vunpack.c.l.b16 %v1898
      %v1970 = vunpack.c.l.b16 %v1899
      %v1971 = vunpack.c.l.b16 %v1900
      %v1972 = vunpack.c.l.b16 %v1901
      %v1973 = vunpack.c.l.b16 %v1902
      %v1974 = vunpack.c.l.b16 %v1903
      %v1975 = vunpack.c.l.b16 %v1904
      %v1976 = vunpack.c.l.b16 %v1905
      %v1977 = vunpack.c.l.b16 %v1906
      %v1978 = vunpack.c.l.b16 %v1907
      %v1979 = vunpack.c.l.b16 %v1908
      %v1980 = vunpack.c.l.b16 %v1909
      %v1981 = vunpack.c.l.b16 %v1910
      %v1982 = vunpack.c.l.b16 %v1911
      %v1983 = vunpack.c.l.b16 %v1912
      %v1984 = vunpack.c.l.b16 %v1913
      %v1985 = vunpack.c.l.b16 %v1914
      %v1986 = vunpack.c.l.b16 %v1915
      %v1987 = vunpack.c.l.b16 %v1916
      %v1988 = vunpack.c.l.b16 %v1917
      %v1989 = vunpack.c.l.b16 %v1918
      %v1990 = vunpack.c.l.b16 %v1919
      %v1991 = vunpack.c.l.b16 %v1920
      %v1992 = vunpack.c.l.b16 %v1921
      %v1993 = vunpack.c.l.b16 %v1922
      %v1994 = vunpack.c.l.b16 %v1923
      %v1995 = vunpack.c.l.b16 %v1924
      %v1996 = vunpack.c.l.b16 %v1925
      %v1997 = vunpack.c.l.b16 %v1926
      %v1998 = vunpack.c.l.b16 %v1927
      %v1999 = vunpack.c.l.b16 %v1928
      %v2000 = vunpack.c.l.b16 %v1929
      %v2001 = vpack.c.b16 %v1970, %v1969
      %v2002 = vpack.c.b16 %v1972, %v1971
      %v2003 = vpack.c.b16 %v1974, %v1973
      %v2004 = vpack.c.b16 %v1976, %v1975
      %v2005 = vpack.c.b16 %v1978, %v1977
      %v2006 = vpack.c.b16 %v1980, %v1979
      %v2007 = vpack.c.b16 %v1982, %v1981
      %v2008 = vpack.c.b16 %v1984, %v1983
      %v2009 = vpack.c.b16 %v1986, %v1985
      %v2010 = vpack.c.b16 %v1988, %v1987
      %v2011 = vpack.c.b16 %v1990, %v1989
      %v2012 = vpack.c.b16 %v1992, %v1991
      %v2013 = vpack.c.b16 %v1994, %v1993
      %v2014 = vpack.c.b16 %v1996, %v1995
      %v2015 = vpack.c.b16 %v1998, %v1997
      %v2016 = vpack.c.b16 %v2000, %v1999
      %2033 = vmatprep.subr.bf16.mxu0 0
      %2034 = vmatpush1.bf16.msra.mxu0 %v2008
      %2035 = vmatprep.subr.bf16.mxu0 0
      %2036 = vmatpush1.bf16.msra.mxu0 %v2007
      %2037 = vmatprep.subr.bf16.mxu0 0
      %2038 = vmatpush1.bf16.msra.mxu0 %v2006
      %2039 = vmatprep.subr.bf16.mxu0 0
      %2040 = vmatpush1.bf16.msra.mxu0 %v2005
      %2041 = vmatprep.subr.bf16.mxu0 0
      %2042 = vmatpush1.bf16.msra.mxu0 %v2004
      %2043 = vmatprep.subr.bf16.mxu0 0
      %2044 = vmatpush1.bf16.msra.mxu0 %v2003
      %2045 = vmatprep.subr.bf16.mxu0 0
      %2046 = vmatpush1.bf16.msra.mxu0 %v2002
      %2047 = vmatprep.subr.bf16.mxu0 0
      %2048 = vmatpush1.bf16.msra.mxu0 %v2001
      %2049 = vmatprep.subr.bf16.mxu0 0
      %2050 = vmatpush2.bf16.msra.mxu0 %v2016
      %2051 = vmatprep.subr.bf16.mxu0 0
      %2052 = vmatpush2.bf16.msra.mxu0 %v2015
      %2053 = vmatprep.subr.bf16.mxu0 0
      %2054 = vmatpush2.bf16.msra.mxu0 %v2014
      %2055 = vmatprep.subr.bf16.mxu0 0
      %2056 = vmatpush2.bf16.msra.mxu0 %v2013
      %2057 = vmatprep.subr.bf16.mxu0 0
      %2058 = vmatpush2.bf16.msra.mxu0 %v2012
      %2059 = vmatprep.subr.bf16.mxu0 0
      %2060 = vmatpush2.bf16.msra.mxu0 %v2011
      %2061 = vmatprep.subr.bf16.mxu0 0
      %2062 = vmatpush2.bf16.msra.mxu0 %v2010
      %2063 = vmatprep.subr.bf16.mxu0 0
      %2064 = vmatpush2.bf16.msra.mxu0 %v2009
      %2065 = vmatprep.mubr.bf16.mxu0 %v1897
      %2066 = vmatmul.mubr.bf16.gmra.mxu0 %v1896
      %v2067 = vpop.f32.mrf.mxu0
      %v2068 = vadd.f32 %v1935, %v2067
      %v2069 = vpop.f32.mrf.mxu0
      %v2070 = vpop.f32.mrf.mxu0
      %v2071 = vadd.f32 %v1935, %v2070
      %v2072 = vpop.f32.mrf.mxu0
      %2073 = vdwg.mxu0
      %v2074 = vadd.f32 %v1652, %v2068
      %v2075 = vadd.f32 %v1653, %v2071
      %2076 = vadd.xlane.f32.xlu0 %v2074
      %v2077 = vpop.xlane.xlu0 %2076
      %2078 = vadd.xlane.f32.xlu0 %v2075
      %v2079 = vpop.xlane.xlu0 %2078
      %v2080 = vmul.f32 %v2077, %v1617
      %v2081 = vmul.f32 %v2079, %v1617
      %v2082 = vsub.f32 %v2074, %v2080
      %v2083 = vsub.f32 %v2075, %v2081
      %v2084 = vmul.f32 %v2082, %v2082
      %v2085 = vmul.f32 %v2083, %v2083
      %2086 = vadd.xlane.f32.xlu0 %v2084
      %v2087 = vpop.xlane.xlu0 %2086
      %2088 = vadd.xlane.f32.xlu0 %v2085
      %v2089 = vpop.xlane.xlu0 %2088
      %v2090 = vmul.f32 %v2087, %v1617
      %v2091 = vmul.f32 %v2089, %v1617
      %v2092 = vadd.f32 %v2090, 1e-05
      %v2093 = vadd.f32 %v2091, 1e-05
      %v2094 = vrsqrt.pop %v2092
      %v2095 = vrsqrt.pop %v2093
      %v2096 = vmul.f32 %v2082, %v2094
      %v2097 = vmul.f32 %v2083, %v2095
      %v2098 = vld [vmem:[%s14] sm:$0x1]
      %v2100 = vlaneseq
      %v2101 = vshrl.u32 %v2100, 7
      %v2102 = vsub.s32 0, %v2101
      %v2103 = vrot.slane %v2098, %v2102
      %v2105 = vmul.f32 %v2096, %v2103
      %v2106 = vmul.f32 %v2097, %v2103
      %v2107 = vld [vmem:[%s15] sm:$0x1]
      %v2109 = vlaneseq
      %v2110 = vshrl.u32 %v2109, 7
      %v2111 = vsub.s32 0, %v2110
      %v2112 = vrot.slane %v2107, %v2111
      %v2114 = vadd.f32 %v2105, %v2112
      %v2115 = vadd.f32 %v2106, %v2112
      %v2116 = vpack.c.bf16 %v2115, %v2114
      %v2117 = vld [vmem:[%s16] sm:$0xff]
      %v2118 = vld [vmem:[%s16 + $0x8] sm:$0xff]
      %v2119 = vld [vmem:[%s16 + $0x10] sm:$0xff]
      %v2120 = vld [vmem:[%s16 + $0x18] sm:$0xff]
      %v2121 = vld [vmem:[%s16 + $0x20] sm:$0xff]
      %v2122 = vld [vmem:[%s16 + $0x28] sm:$0xff]
      %v2123 = vld [vmem:[%s16 + $0x30] sm:$0xff]
      %v2124 = vld [vmem:[%s16 + $0x38] sm:$0xff]
      %v2125 = vld [vmem:[%s16 + $0x40] sm:$0xff]
      %v2126 = vld [vmem:[%s16 + $0x48] sm:$0xff]
      %v2127 = vld [vmem:[%s16 + $0x50] sm:$0xff]
      %v2128 = vld [vmem:[%s16 + $0x58] sm:$0xff]
      %v2129 = vld [vmem:[%s16 + $0x60] sm:$0xff]
      %v2130 = vld [vmem:[%s16 + $0x68] sm:$0xff]
      %v2131 = vld [vmem:[%s16 + $0x70] sm:$0xff]
      %v2132 = vld [vmem:[%s16 + $0x78] sm:$0xff]
      %v2133 = vld [vmem:[%s17] sm:$0x3]
      %v2135 = vlaneseq
      %v2136 = vshrl.u32 %v2135, 7
      %v2137 = vsub.s32 0, %v2136
      %v2138 = vrot.slane %v2133, %v2137
      %v2139 = vlaneseq
      %v2140 = vshrl.u32 %v2139, 7
      %v2141 = vsub.s32 1, %v2140
      %v2142 = vrot.slane %v2133, %v2141
      %v2161 = vunpack.c.l.b16 %v2117
      %v2162 = vunpack.c.h.b16 %v2117
      %v2163 = vunpack.c.l.b16 %v2118
      %v2164 = vunpack.c.h.b16 %v2118
      %v2165 = vunpack.c.l.b16 %v2119
      %v2166 = vunpack.c.h.b16 %v2119
      %v2167 = vunpack.c.l.b16 %v2120
      %v2168 = vunpack.c.h.b16 %v2120
      %v2169 = vunpack.c.l.b16 %v2121
      %v2170 = vunpack.c.h.b16 %v2121
      %v2171 = vunpack.c.l.b16 %v2122
      %v2172 = vunpack.c.h.b16 %v2122
      %v2173 = vunpack.c.l.b16 %v2123
      %v2174 = vunpack.c.h.b16 %v2123
      %v2175 = vunpack.c.l.b16 %v2124
      %v2176 = vunpack.c.h.b16 %v2124
      %v2177 = vunpack.c.l.b16 %v2125
      %v2178 = vunpack.c.h.b16 %v2125
      %v2179 = vunpack.c.l.b16 %v2126
      %v2180 = vunpack.c.h.b16 %v2126
      %v2181 = vunpack.c.l.b16 %v2127
      %v2182 = vunpack.c.h.b16 %v2127
      %v2183 = vunpack.c.l.b16 %v2128
      %v2184 = vunpack.c.h.b16 %v2128
      %v2185 = vunpack.c.l.b16 %v2129
      %v2186 = vunpack.c.h.b16 %v2129
      %v2187 = vunpack.c.l.b16 %v2130
      %v2188 = vunpack.c.h.b16 %v2130
      %v2189 = vunpack.c.l.b16 %v2131
      %v2190 = vunpack.c.h.b16 %v2131
      %v2191 = vunpack.c.l.b16 %v2132
      %v2192 = vunpack.c.h.b16 %v2132
      %v2193 = vpack.c.b16 %v2163, %v2161
      %v2194 = vpack.c.b16 %v2164, %v2162
      %v2195 = vpack.c.b16 %v2167, %v2165
      %v2196 = vpack.c.b16 %v2168, %v2166
      %v2197 = vpack.c.b16 %v2171, %v2169
      %v2198 = vpack.c.b16 %v2172, %v2170
      %v2199 = vpack.c.b16 %v2175, %v2173
      %v2200 = vpack.c.b16 %v2176, %v2174
      %v2201 = vpack.c.b16 %v2179, %v2177
      %v2202 = vpack.c.b16 %v2180, %v2178
      %v2203 = vpack.c.b16 %v2183, %v2181
      %v2204 = vpack.c.b16 %v2184, %v2182
      %v2205 = vpack.c.b16 %v2187, %v2185
      %v2206 = vpack.c.b16 %v2188, %v2186
      %v2207 = vpack.c.b16 %v2191, %v2189
      %v2208 = vpack.c.b16 %v2192, %v2190
      %2225 = vmatprep.subr.bf16.mxu0 %v2208
      %2226 = vmatpush1.bf16.msra.mxu0 %v2207
      %2227 = vmatprep.subr.bf16.mxu0 %v2206
      %2228 = vmatpush1.bf16.msra.mxu0 %v2205
      %2229 = vmatprep.subr.bf16.mxu0 %v2204
      %2230 = vmatpush1.bf16.msra.mxu0 %v2203
      %2231 = vmatprep.subr.bf16.mxu0 %v2202
      %2232 = vmatpush1.bf16.msra.mxu0 %v2201
      %2233 = vmatprep.subr.bf16.mxu0 %v2200
      %2234 = vmatpush1.bf16.msra.mxu0 %v2199
      %2235 = vmatprep.subr.bf16.mxu0 %v2198
      %2236 = vmatpush1.bf16.msra.mxu0 %v2197
      %2237 = vmatprep.subr.bf16.mxu0 %v2196
      %2238 = vmatpush1.bf16.msra.mxu0 %v2195
      %2239 = vmatprep.subr.bf16.mxu0 %v2194
      %2240 = vmatpush1.bf16.msra.mxu0 %v2193
      %2241 = vmatprep.subr.bf16.mxu0 0
      %2242 = vmatpush2.bf16.msra.mxu0 0
      %2243 = vmatprep.subr.bf16.mxu0 0
      %2244 = vmatpush2.bf16.msra.mxu0 0
      %2245 = vmatprep.subr.bf16.mxu0 0
      %2246 = vmatpush2.bf16.msra.mxu0 0
      %2247 = vmatprep.subr.bf16.mxu0 0
      %2248 = vmatpush2.bf16.msra.mxu0 0
      %2249 = vmatprep.subr.bf16.mxu0 0
      %2250 = vmatpush2.bf16.msra.mxu0 0
      %2251 = vmatprep.subr.bf16.mxu0 0
      %2252 = vmatpush2.bf16.msra.mxu0 0
      %2253 = vmatprep.subr.bf16.mxu0 0
      %2254 = vmatpush2.bf16.msra.mxu0 0
      %2255 = vmatprep.subr.bf16.mxu0 0
      %2256 = vmatpush2.bf16.msra.mxu0 0
      %2257 = vmatprep.mubr.bf16.mxu0 0
      %2258 = vmatmul.mubr.bf16.gmra.mxu0 %v2116
      %v2259 = vpop.f32.mrf.mxu0
      %v2260 = vadd.f32 %v2138, %v2259
      %v2261 = vpop.f32.mrf.mxu0
      %v2262 = vadd.f32 %v2142, %v2261
      %v2263 = vpop.f32.mrf.mxu0
      %v2264 = vadd.f32 %v2138, %v2263
      %v2265 = vpop.f32.mrf.mxu0
      %v2266 = vadd.f32 %v2142, %v2265
      %2267 = vdwg.mxu0
      %v2268 = vmul.f32 %v2260, %v2260
      %v2269 = vmul.f32 %v2262, %v2262
      %v2270 = vmul.f32 %v2264, %v2264
      %v2271 = vmul.f32 %v2266, %v2266
      %v2272 = vmul.f32 %v2260, %v2268
      %v2273 = vmul.f32 %v2262, %v2269
      %v2274 = vmul.f32 %v2264, %v2270
      %v2275 = vmul.f32 %v2266, %v2271
      %v2276 = vmul.f32 %v2272, 0.044715
      %v2277 = vmul.f32 %v2273, 0.044715
      %v2278 = vmul.f32 %v2274, 0.044715
      %v2279 = vmul.f32 %v2275, 0.044715
      %v2280 = vadd.f32 %v2260, %v2276
      %v2281 = vadd.f32 %v2262, %v2277
      %v2282 = vadd.f32 %v2264, %v2278
      %v2283 = vadd.f32 %v2266, %v2279
      %v2284 = vmul.f32 %v2280, 0.7978846
      %v2285 = vmul.f32 %v2281, 0.7978846
      %v2286 = vmul.f32 %v2282, 0.7978846
      %v2287 = vmul.f32 %v2283, 0.7978846
      %v2288 = vtanh.pop %v2284
      %v2289 = vtanh.pop %v2285
      %v2290 = vtanh.pop %v2286
      %v2291 = vtanh.pop %v2287
      %v2292 = vadd.f32 %v2288, 1.0
      %v2293 = vadd.f32 %v2289, 1.0
      %v2294 = vadd.f32 %v2290, 1.0
      %v2295 = vadd.f32 %v2291, 1.0
      %v2296 = vmul.f32 %v2292, 0.5
      %v2297 = vmul.f32 %v2293, 0.5
      %v2298 = vmul.f32 %v2294, 0.5
      %v2299 = vmul.f32 %v2295, 0.5
      %v2300 = vmul.f32 %v2260, %v2296
      %v2301 = vmul.f32 %v2262, %v2297
      %v2302 = vmul.f32 %v2264, %v2298
      %v2303 = vmul.f32 %v2266, %v2299
      %v2304 = vpack.c.bf16 %v2302, %v2300
      %v2305 = vpack.c.bf16 %v2303, %v2301
      %v2306 = vld [vmem:[%s18] sm:$0xf]
      %v2307 = vld [vmem:[%s18 + $0x4] sm:$0xf]
      %v2308 = vld [vmem:[%s18 + $0x8] sm:$0xf]
      %v2309 = vld [vmem:[%s18 + $0xc] sm:$0xf]
      %v2310 = vld [vmem:[%s18 + $0x10] sm:$0xf]
      %v2311 = vld [vmem:[%s18 + $0x14] sm:$0xf]
      %v2312 = vld [vmem:[%s18 + $0x18] sm:$0xf]
      %v2313 = vld [vmem:[%s18 + $0x1c] sm:$0xf]
      %v2314 = vld [vmem:[%s18 + $0x20] sm:$0xf]
      %v2315 = vld [vmem:[%s18 + $0x24] sm:$0xf]
      %v2316 = vld [vmem:[%s18 + $0x28] sm:$0xf]
      %v2317 = vld [vmem:[%s18 + $0x2c] sm:$0xf]
      %v2318 = vld [vmem:[%s18 + $0x30] sm:$0xf]
      %v2319 = vld [vmem:[%s18 + $0x34] sm:$0xf]
      %v2320 = vld [vmem:[%s18 + $0x38] sm:$0xf]
      %v2321 = vld [vmem:[%s18 + $0x3c] sm:$0xf]
      %v2322 = vld [vmem:[%s18 + $0x40] sm:$0xf]
      %v2323 = vld [vmem:[%s18 + $0x44] sm:$0xf]
      %v2324 = vld [vmem:[%s18 + $0x48] sm:$0xf]
      %v2325 = vld [vmem:[%s18 + $0x4c] sm:$0xf]
      %v2326 = vld [vmem:[%s18 + $0x50] sm:$0xf]
      %v2327 = vld [vmem:[%s18 + $0x54] sm:$0xf]
      %v2328 = vld [vmem:[%s18 + $0x58] sm:$0xf]
      %v2329 = vld [vmem:[%s18 + $0x5c] sm:$0xf]
      %v2330 = vld [vmem:[%s18 + $0x60] sm:$0xf]
      %v2331 = vld [vmem:[%s18 + $0x64] sm:$0xf]
      %v2332 = vld [vmem:[%s18 + $0x68] sm:$0xf]
      %v2333 = vld [vmem:[%s18 + $0x6c] sm:$0xf]
      %v2334 = vld [vmem:[%s18 + $0x70] sm:$0xf]
      %v2335 = vld [vmem:[%s18 + $0x74] sm:$0xf]
      %v2336 = vld [vmem:[%s18 + $0x78] sm:$0xf]
      %v2337 = vld [vmem:[%s18 + $0x7c] sm:$0xf]
      %v2338 = vld [vmem:[%s19] sm:$0x1]
      %v2340 = vlaneseq
      %v2341 = vshrl.u32 %v2340, 7
      %v2342 = vsub.s32 0, %v2341
      %v2343 = vrot.slane %v2338, %v2342
      %v2377 = vunpack.c.l.b16 %v2306
      %v2378 = vunpack.c.l.b16 %v2307
      %v2379 = vunpack.c.l.b16 %v2308
      %v2380 = vunpack.c.l.b16 %v2309
      %v2381 = vunpack.c.l.b16 %v2310
      %v2382 = vunpack.c.l.b16 %v2311
      %v2383 = vunpack.c.l.b16 %v2312
      %v2384 = vunpack.c.l.b16 %v2313
      %v2385 = vunpack.c.l.b16 %v2314
      %v2386 = vunpack.c.l.b16 %v2315
      %v2387 = vunpack.c.l.b16 %v2316
      %v2388 = vunpack.c.l.b16 %v2317
      %v2389 = vunpack.c.l.b16 %v2318
      %v2390 = vunpack.c.l.b16 %v2319
      %v2391 = vunpack.c.l.b16 %v2320
      %v2392 = vunpack.c.l.b16 %v2321
      %v2393 = vunpack.c.l.b16 %v2322
      %v2394 = vunpack.c.l.b16 %v2323
      %v2395 = vunpack.c.l.b16 %v2324
      %v2396 = vunpack.c.l.b16 %v2325
      %v2397 = vunpack.c.l.b16 %v2326
      %v2398 = vunpack.c.l.b16 %v2327
      %v2399 = vunpack.c.l.b16 %v2328
      %v2400 = vunpack.c.l.b16 %v2329
      %v2401 = vunpack.c.l.b16 %v2330
      %v2402 = vunpack.c.l.b16 %v2331
      %v2403 = vunpack.c.l.b16 %v2332
      %v2404 = vunpack.c.l.b16 %v2333
      %v2405 = vunpack.c.l.b16 %v2334
      %v2406 = vunpack.c.l.b16 %v2335
      %v2407 = vunpack.c.l.b16 %v2336
      %v2408 = vunpack.c.l.b16 %v2337
      %v2409 = vpack.c.b16 %v2378, %v2377
      %v2410 = vpack.c.b16 %v2380, %v2379
      %v2411 = vpack.c.b16 %v2382, %v2381
      %v2412 = vpack.c.b16 %v2384, %v2383
      %v2413 = vpack.c.b16 %v2386, %v2385
      %v2414 = vpack.c.b16 %v2388, %v2387
      %v2415 = vpack.c.b16 %v2390, %v2389
      %v2416 = vpack.c.b16 %v2392, %v2391
      %v2417 = vpack.c.b16 %v2394, %v2393
      %v2418 = vpack.c.b16 %v2396, %v2395
      %v2419 = vpack.c.b16 %v2398, %v2397
      %v2420 = vpack.c.b16 %v2400, %v2399
      %v2421 = vpack.c.b16 %v2402, %v2401
      %v2422 = vpack.c.b16 %v2404, %v2403
      %v2423 = vpack.c.b16 %v2406, %v2405
      %v2424 = vpack.c.b16 %v2408, %v2407
      %2441 = vmatprep.subr.bf16.mxu0 0
      %2442 = vmatpush1.bf16.msra.mxu0 %v2416
      %2443 = vmatprep.subr.bf16.mxu0 0
      %2444 = vmatpush1.bf16.msra.mxu0 %v2415
      %2445 = vmatprep.subr.bf16.mxu0 0
      %2446 = vmatpush1.bf16.msra.mxu0 %v2414
      %2447 = vmatprep.subr.bf16.mxu0 0
      %2448 = vmatpush1.bf16.msra.mxu0 %v2413
      %2449 = vmatprep.subr.bf16.mxu0 0
      %2450 = vmatpush1.bf16.msra.mxu0 %v2412
      %2451 = vmatprep.subr.bf16.mxu0 0
      %2452 = vmatpush1.bf16.msra.mxu0 %v2411
      %2453 = vmatprep.subr.bf16.mxu0 0
      %2454 = vmatpush1.bf16.msra.mxu0 %v2410
      %2455 = vmatprep.subr.bf16.mxu0 0
      %2456 = vmatpush1.bf16.msra.mxu0 %v2409
      %2457 = vmatprep.subr.bf16.mxu0 0
      %2458 = vmatpush2.bf16.msra.mxu0 %v2424
      %2459 = vmatprep.subr.bf16.mxu0 0
      %2460 = vmatpush2.bf16.msra.mxu0 %v2423
      %2461 = vmatprep.subr.bf16.mxu0 0
      %2462 = vmatpush2.bf16.msra.mxu0 %v2422
      %2463 = vmatprep.subr.bf16.mxu0 0
      %2464 = vmatpush2.bf16.msra.mxu0 %v2421
      %2465 = vmatprep.subr.bf16.mxu0 0
      %2466 = vmatpush2.bf16.msra.mxu0 %v2420
      %2467 = vmatprep.subr.bf16.mxu0 0
      %2468 = vmatpush2.bf16.msra.mxu0 %v2419
      %2469 = vmatprep.subr.bf16.mxu0 0
      %2470 = vmatpush2.bf16.msra.mxu0 %v2418
      %2471 = vmatprep.subr.bf16.mxu0 0
      %2472 = vmatpush2.bf16.msra.mxu0 %v2417
      %2473 = vmatprep.mubr.bf16.mxu0 %v2305
      %2474 = vmatmul.mubr.bf16.gmra.mxu0 %v2304
      %v2475 = vpop.f32.mrf.mxu0
      %v2476 = vadd.f32 %v2343, %v2475
      %v2477 = vpop.f32.mrf.mxu0
      %v2478 = vpop.f32.mrf.mxu0
      %v2479 = vadd.f32 %v2343, %v2478
      %v2480 = vpop.f32.mrf.mxu0
      %2481 = vdwg.mxu0
      %v2482 = vadd.f32 %v2114, %v2476
      %v2483 = vadd.f32 %v2115, %v2479
      %2484 = vadd.xlane.f32.xlu0 %v2482
      %v2485 = vpop.xlane.xlu0 %2484
      %2486 = vadd.xlane.f32.xlu0 %v2483
      %v2487 = vpop.xlane.xlu0 %2486
      %v2488 = vmul.f32 %v2485, %v1617
      %v2489 = vmul.f32 %v2487, %v1617
      %v2490 = vsub.f32 %v2482, %v2488
      %v2491 = vsub.f32 %v2483, %v2489
      %v2492 = vmul.f32 %v2490, %v2490
      %v2493 = vmul.f32 %v2491, %v2491
      %2494 = vadd.xlane.f32.xlu0 %v2492
      %v2495 = vpop.xlane.xlu0 %2494
      %2496 = vadd.xlane.f32.xlu0 %v2493
      %v2497 = vpop.xlane.xlu0 %2496
      %v2498 = vmul.f32 %v2495, %v1617
      %v2499 = vmul.f32 %v2497, %v1617
      %v2500 = vadd.f32 %v2498, 1e-05
      %v2501 = vadd.f32 %v2499, 1e-05
      %v2502 = vrsqrt.pop %v2500
      %v2503 = vrsqrt.pop %v2501
      %v2504 = vmul.f32 %v2490, %v2502
      %v2505 = vmul.f32 %v2491, %v2503
      %v2506 = vld [vmem:[%s20] sm:$0x1]
      %v2508 = vlaneseq
      %v2509 = vshrl.u32 %v2508, 7
      %v2510 = vsub.s32 0, %v2509
      %v2511 = vrot.slane %v2506, %v2510
      %v2513 = vmul.f32 %v2504, %v2511
      %v2514 = vmul.f32 %v2505, %v2511
      %v2515 = vld [vmem:[%s21] sm:$0x1]
      %v2517 = vlaneseq
      %v2518 = vshrl.u32 %v2517, 7
      %v2519 = vsub.s32 0, %v2518
      %v2520 = vrot.slane %v2515, %v2519
      %v2522 = vadd.f32 %v2513, %v2520
      %v2523 = vadd.f32 %v2514, %v2520
      %2524 = vst [vmem:[%s703] sm:$0xff] %v2522
      %2525 = vst [vmem:[%s703 + $0x8] sm:$0xff] %v2523
      %p2526 = scmp.lt.s32.totalorder %s33, 1
      %s2527 = scalar_select %p2526, %s33, 1
      %s2528 = smul.addr %s2527, 2
      %s2529 = smul.addr %s2528, 8
      %s2530 = scalar_lea.vmem %s22, %s2529
      // Predicated region
      $region109: #{sm_diffusion_forward.8} parent=107 // pred_check
        %p2531 = pneg %p523
      $region110: #{sm_diffusion_forward.8} parent=107 // pred_check_branch
        %2533 = sbr.rel (%p2531) target = $region112
      $region111: #{sm_diffusion_forward.8} parent=107 // pred_region
        _
      $region112: #{sm_diffusion_forward.8} parent=107 // pred_fallthru
        _
    $region108: #{sm_diffusion_forward.8} parent=5 // pred_fallthru
      _
    %p2534 = scmp.le.s32.totalorder 2, %s28
    // Predicated region
    $region113: #{sm_diffusion_forward.8} parent=5 // pred_check
      %p2535 = pneg %p2534
    $region114: #{sm_diffusion_forward.8} parent=5 // pred_check_branch
      %2537 = sbr.rel (%p2535) target = $region116
    $region115: #{sm_diffusion_forward.8} parent=5 // pred_region
      %s2538 = ssub.s32 %s28, 2
      // Predicated region
      $region117: #{sm_diffusion_forward.8} parent=115 // pred_check
        %p2539 = pneg %p529
      $region118: #{sm_diffusion_forward.8} parent=115 // pred_check_branch
        %2541 = sbr.rel (%p2539) target = $region120
      $region119: #{sm_diffusion_forward.8} parent=115 // pred_region
        %p2542 = scmp.lt.s32.totalorder %s34, 1
        %s2543 = scalar_select %p2542, %s34, 1
        %s2544 = smul.addr %s2543, 2
        %s2545 = smul.addr %s2544, 8
        %s2546 = scalar_lea.vmem %s22, %s2545
      $region120: #{sm_diffusion_forward.8} parent=115 // pred_fallthru
        _
    $region116: #{sm_diffusion_forward.8} parent=5 // pred_fallthru
      _
  $region6: #{sm_diffusion_forward.8} parent=0 // loop_footer
    %s32 = sadd.s32 1, %s28
  $region7: #{sm_diffusion_forward.8} parent=0 // loop_footer_branch
    %27 = sbr.rel target = $region3
  $region8: #{sm_diffusion_forward.8} parent=0 // loop_exit
    _

</llo_original>
